<compile_context>
chip_gen: v7x
topology: tpu7x:2x2x1
jax: 0.10.0
libtpu: 0.0.40
codegen_flags: <defaults>
</compile_context>

<pallas_src>
import jax
import jax.numpy as jnp
from jax import lax
from jax.experimental import pallas as pl
from jax.experimental.pallas import tpu as pltpu


_SENTINEL = 1.0e15   # far-away pad coordinate: squared distance ~2e30 stays
                     # finite in f32/bf16 and never wins a nearest-neighbor min.


def _round_up(x, m):
    return ((x + m - 1) // m) * m


def _pick_bt(B, cap=8):
    # Keep >=2 batch-pack steps whenever B > 1 so v7x's two TensorCores both
    # get work under dimension_semantics=("parallel", ...).
    cap = min(cap, max(1, B // 2)) if B > 1 else 1
    for bt in range(min(cap, B), 0, -1):
        if B % bt == 0:
            return bt
    return 1


def _vmem_capacity_bytes():
    cap = 128 * 1024 * 1024
    try:
        info = pltpu.get_tpu_info()
        cap = int(getattr(info, "vmem_capacity_bytes", cap)) or cap
    except Exception:
        pass  # fall back to the v5e/v6e 128 MiB figure
    return cap


def _step_vmem_bytes(bt, nt, mt, m_pad):
    """Rough per-kernel VMEM model for the chosen tiles (f32)."""
    temp_factor = 4                                    # dx/dy/d + compiler temps
    d_temps = temp_factor * bt * nt * mt * 4
    pred_buf = 2 * bt * nt * 128 * 4                   # (..., 2) lane-pads to 128
    gt_buf = 2 * bt * 2 * mt * 4                       # lane-dense, streamed
    scratch = bt * nt * 4 + bt * 128 * 4 + bt * m_pad * 4
    out_buf = 2 * bt * 128 * 4
    return d_temps + pred_buf + gt_buf + scratch + out_buf


def _pick_tiles(B, N, M, budget_bytes):
    """Pick (bt, nt, mt) so the per-step working set fits the VMEM budget."""
    bt = _pick_bt(B)
    m_full = M if M <= 128 else _round_up(M, 128)

    def pow2s(hi, lo, upper):
        out, c = [], hi
        while c >= lo:
            if c < upper:
                out.append(c)
            c //= 2
        return out

    nt_cands = [N] + pow2s(4096, 8, N)            # multiples of 8 (or full N)
    mt_cands = [m_full] + pow2s(4096, 128, m_full)  # multiples of 128 (or full M)

    def fits(nt, mt):
        m_pad = m_full if mt >= M else _round_up(M, mt)
        return _step_vmem_bytes(bt, nt, mt, m_pad) <= budget_bytes

    fallback = None
    for mt in mt_cands:                  # prefer the whole (padded) M per step
        for nt in nt_cands:              # descending: first fit = largest nt
            if fits(nt, mt):
                if nt >= min(N, 256):
                    return bt, nt, mt
                if fallback is None:
                    fallback = (bt, nt, mt)
                break
    return fallback if fallback is not None else (bt, min(N, 8), min(m_full, 128))


def chamfer_2d_per_batch(pred_pts, gt_pts, *, bt=None, nt=None, mt=None,
                         use_bf16_math=False, vmem_limit_bytes=None):
    """pred_pts: (B, N, 2), gt_pts: (B, M, 2) -> (B,) symmetric squared chamfer
    (mean over pred of nearest-gt sq. dist + mean over gt of nearest-pred)."""
    B, N, C = pred_pts.shape
    Bg, M, Cg = gt_pts.shape
    assert C == 2 and Cg == 2 and Bg == B and N >= 1 and M >= 1

    cap = _vmem_capacity_bytes()
    a_bt, a_nt, a_mt = _pick_tiles(B, N, M, int(cap * 0.70))
    bt = a_bt if bt is None else int(bt)
    nt = a_nt if nt is None else int(nt)
    mt = a_mt if mt is None else int(mt)
    assert B % bt == 0, "bt must divide B"
    # TODO(synk): for B == 1 the leading 'parallel' axis has a single step and
    # one v7x TensorCore idles; splitting the pred axis onto the parallel axis
    # (partial outputs combined outside) would fix that.

    if nt >= N:
        nt, N_pad = N, N                       # full-extent block: no padding
    else:
        assert nt % 8 == 0, "pred tile must be a multiple of 8"
        N_pad = _round_up(N, nt)
    if mt >= M:
        M_pad = M if (M <= 128 or M % 128 == 0) else _round_up(M, 128)
        mt = M_pad
    else:
        assert mt % 128 == 0, "gt tile must be a multiple of 128"
        M_pad = _round_up(M, mt)

    n_btiles, n_ntiles, n_mtiles = B // bt, N_pad // nt, M_pad // mt
    n_ragged, m_ragged = (N_pad != N), (M_pad != M)

    if vmem_limit_bytes is None:
        need = _step_vmem_bytes(bt, nt, mt, M_pad)
        vmem_limit_bytes = int(min(cap * 0.9, max(need + (8 << 20), 32 << 20)))

    compute_dtype = jnp.bfloat16 if use_bf16_math else jnp.float32

    # pred stays points-first (its point axis lands on sublanes of the distance
    # tile) and only changes on the outer pred-tile axis; gt goes channels-first
    # so the block streamed every step is lane-dense (2 rows of mt f32).
    pred_pf = pred_pts.astype(jnp.float32)                         # (B, N, 2)
    gt_cf = jnp.transpose(gt_pts.astype(jnp.float32), (0, 2, 1))   # (B, 2, M)
    if n_ragged:
        pred_pf = jnp.pad(pred_pf, ((0, 0), (0, N_pad - N), (0, 0)),
                          constant_values=_SENTINEL)
    if m_ragged:
        gt_cf = jnp.pad(gt_cf, ((0, 0), (0, 0), (0, M_pad - M)),
                        constant_values=_SENTINEL)

    inv_n = 1.0 / float(N)
    inv_m = 1.0 / float(M)

    def kernel(p_ref, q_ref, o_ref, accp_tile, accp_sum, accq_full):
        n = pl.program_id(1)          # pred tile (outer reduction axis)
        j = pl.program_id(2)          # gt tile   (inner, streamed every step)

        p = p_ref[...].astype(compute_dtype)        # (bt, nt, 2)
        q = q_ref[...].astype(compute_dtype)        # (bt, 2, mt)
        px, py = p[:, :, 0:1], p[:, :, 1:2]         # (bt, nt, 1)
        qx, qy = q[:, 0:1, :], q[:, 1:2, :]         # (bt, 1, mt)

        # d[b, r, c] = ||pred_r - gt_c||^2, pure VPU broadcast-subtract-square.
        dx = px - qx                                # (bt, nt, mt)
        dy = py - qy
        d = dx * dx + dy * dy

        # Per-tile nearest-neighbour reductions (XLU); the full distance tile
        # is never written to scratch (review item 1).
        tile_p2q = jnp.min(d, axis=2).astype(jnp.float32)   # (bt, nt) lane-min
        tile_q2p = jnp.min(d, axis=1).astype(jnp.float32)   # (bt, mt) sublane-min

        # pred->gt: running min over gt tiles for the current pred tile.
        @pl.when(j == 0)
        def _():
            accp_tile[...] = tile_p2q

        @pl.when(j > 0)
        def _():
            accp_tile[...] = jnp.minimum(accp_tile[...], tile_p2q)

        # gt->pred: running min over pred tiles, kept for every gt point.
        @pl.when(n == 0)
        def _():
            v = tile_q2p
            if m_ragged:   # zero padded gt lanes so they never enter the sum
                lane = lax.broadcasted_iota(jnp.int32, (bt, mt), 1)
                v = jnp.where(lane + j * mt < M, v, 0.0)
            accq_full[j] = v

        @pl.when(n > 0)
        def _():
            accq_full[j] = jnp.minimum(accq_full[j], tile_q2p)

        # Fold this pred tile's nearest-gt distances into the per-pack sum once
        # every gt tile has been seen.
        @pl.when(j == n_mtiles - 1)
        def _():
            rows = accp_tile[...]
            if n_ragged:   # zero padded pred rows
                lane = lax.broadcasted_iota(jnp.int32, (bt, nt), 1)
                rows = jnp.where(lane + n * nt < N, rows, 0.0)
            s = jnp.sum(rows, axis=-1, keepdims=True)        # (bt, 1)

            @pl.when(n == 0)
            def _():
                accp_sum[...] = s

            @pl.when(n > 0)
            def _():
                accp_sum[...] = accp_sum[...] + s

        @pl.when(jnp.logical_and(n == n_ntiles - 1, j == n_mtiles - 1))
        def _():
            q2p = jnp.sum(jnp.sum(accq_full[...], axis=0), axis=-1,
                          keepdims=True)                      # (bt, 1)
            cham = accp_sum[...] * inv_n + q2p * inv_m        # (bt, 1)
            o_ref[0] = jnp.broadcast_to(cham, (bt, 128))      # lane-dense slab

    out = pl.pallas_call(
        kernel,
        out_shape=jax.ShapeDtypeStruct((n_btiles, bt, 128), jnp.float32),
        grid_spec=pltpu.PrefetchScalarGridSpec(
            num_scalar_prefetch=0,
            grid=(n_btiles, n_ntiles, n_mtiles),
            in_specs=[
                pl.BlockSpec((bt, nt, 2), lambda i, n, j: (i, n, 0)),
                pl.BlockSpec((bt, 2, mt), lambda i, n, j: (i, 0, j)),
            ],
            out_specs=pl.BlockSpec((1, bt, 128), lambda i, n, j: (i, 0, 0)),
            scratch_shapes=[
                pltpu.VMEM((bt, nt), jnp.float32),            # p2q tile min
                pltpu.VMEM((bt, 1), jnp.float32),             # p2q running sum
                pltpu.VMEM((n_mtiles, bt, mt), jnp.float32),  # q2p running min
            ],
        ),
        compiler_params=pltpu.CompilerParams(
            dimension_semantics=("parallel", "arbitrary", "arbitrary"),
            vmem_limit_bytes=vmem_limit_bytes),
    )(pred_pf, gt_cf)
    return out[:, :, 0].reshape(B)


class Criterion:
    """JAX/Pallas equivalent of the PyTorch Criterion module (forward only)."""

    def __init__(self, weight=1.0, use_bf16_math=False):
        self.weight = float(weight)   # deterministic init, no checkpoint load
        self.use_bf16_math = use_bf16_math
        self.i = 0

    def __call__(self, data_dict):
        # TODO(synk): calc_chamfer's source / exact data_dict keys are not in
        # the spec; assumed keys pred_points/gt_points and symmetric
        # mean-of-min squared 2-D chamfer scaled by self.weight.
        per_batch = chamfer_2d_per_batch(
            data_dict["pred_points"], data_dict["gt_points"],
            use_bf16_math=self.use_bf16_math)
        loss = jnp.float32(self.weight) * jnp.mean(per_batch)
        return dict(chamfer_2d=loss)


def _chamfer_ref(pred_pts, gt_pts):
    # pure-JAX reference; same direct-difference squared-chamfer form
    p = pred_pts.astype(jnp.float32)   # (B, N, 2)
    q = gt_pts.astype(jnp.float32)     # (B, M, 2)
    d = jnp.sum((p[:, :, None, :] - q[:, None, :, :]) ** 2, axis=-1)  # (B,N,M)
    return jnp.min(d, axis=2).mean(axis=1) + jnp.min(d, axis=1).mean(axis=1)


if __name__ == "__main__":
    key = jax.random.PRNGKey(0)
    k1, k2, k3, k4 = jax.random.split(key, 4)

    # 1) Criterion path with auto-picked tiles (B=8 -> bt=4: two parallel
    #    batch-pack steps for v7x megacore; full N/M per step at these shapes).
    B, N, M = 8, 256, 384
    pred = jax.random.normal(k1, (B, N, 2), dtype=jnp.float32)
    gt = jax.random.normal(k2, (B, M, 2), dtype=jnp.float32)
    criterion = Criterion(weight=1.0)
    loss = jax.block_until_ready(
        criterion({"pred_points": pred, "gt_points": gt})["chamfer_2d"])
    ref = jnp.mean(_chamfer_ref(pred, gt))
    assert jnp.allclose(loss, ref, rtol=1e-4, atol=1e-5), (loss, ref)

    # 2) Forced small tiles + ragged N/M: exercises multi-tile accumulation on
    #    both point axes, sentinel padding and the summation masks.
    B2, N2, M2 = 4, 200, 250
    pred2 = jax.random.normal(k3, (B2, N2, 2), dtype=jnp.float32)
    gt2 = jax.random.normal(k4, (B2, M2, 2), dtype=jnp.float32)
    got2 = jax.block_until_ready(
        chamfer_2d_per_batch(pred2, gt2, bt=2, nt=128, mt=128))
    ref2 = _chamfer_ref(pred2, gt2)
    assert jnp.allclose(got2, ref2, rtol=1e-4, atol=1e-5), (got2, ref2)

    # 3) Optional bf16 distance math (v6e/v7x VALU); accumulators stay f32.
    got3 = jax.block_until_ready(
        chamfer_2d_per_batch(pred, gt, use_bf16_math=True))
    ref3 = _chamfer_ref(pred, gt)
    assert jnp.allclose(got3, ref3, rtol=5e-2, atol=1e-3), (got3, ref3)

    print("KERNEL_OK")
</pallas_src>

<mosaic_0001>
module attributes {stable_mosaic.version = 11 : i64} {
  func.func @kernel(%arg0: i32, %arg1: i32, %arg2: i32, %arg3: memref<4x256x2xf32, #tpu.memory_space<vmem>>, %arg4: memref<4x2x384xf32, #tpu.memory_space<vmem>>, %arg5: memref<1x4x128xf32, #tpu.memory_space<vmem>>, %arg6: memref<4x256xf32, #tpu.memory_space<vmem>>, %arg7: memref<4x1xf32, #tpu.memory_space<vmem>>, %arg8: memref<1x4x384xf32, #tpu.memory_space<vmem>>) attributes {dimension_semantics = [#tpu.dimension_semantics<parallel>, #tpu.dimension_semantics<arbitrary>, #tpu.dimension_semantics<arbitrary>], iteration_bounds = array<i64: 2, 1, 1>, scalar_prefetch = 0 : i64, scratch_operands = 3 : i64, tpu.core_type = #tpu.core_type<tc>, window_params = [{transform_indices = @transform_0, window_bounds = array<i64: 4, 256, 2>}, {transform_indices = @transform_1, window_bounds = array<i64: 4, 2, 384>}, {transform_indices = @transform_2, window_bounds = array<i64: 1, 4, 128>}]} {
    %c0 = arith.constant 0 : index
    %c0_0 = arith.constant 0 : index
    %c0_1 = arith.constant 0 : index
    %0 = vector.load %arg3[%c0, %c0_0, %c0_1] : memref<4x256x2xf32, #tpu.memory_space<vmem>>, vector<4x256x2xf32>
    %c0_2 = arith.constant 0 : index
    %c0_3 = arith.constant 0 : index
    %c0_4 = arith.constant 0 : index
    %1 = vector.load %arg4[%c0_2, %c0_3, %c0_4] : memref<4x2x384xf32, #tpu.memory_space<vmem>>, vector<4x2x384xf32>
    %2 = vector.extract_strided_slice %0 {offsets = [0, 0, 0], sizes = [4, 256, 1], strides = [1, 1, 1]} : vector<4x256x2xf32> to vector<4x256x1xf32>
    %3 = vector.extract_strided_slice %0 {offsets = [0, 0, 1], sizes = [4, 256, 1], strides = [1, 1, 1]} : vector<4x256x2xf32> to vector<4x256x1xf32>
    %4 = vector.extract_strided_slice %1 {offsets = [0, 0, 0], sizes = [4, 1, 384], strides = [1, 1, 1]} : vector<4x2x384xf32> to vector<4x1x384xf32>
    %5 = vector.extract_strided_slice %1 {offsets = [0, 1, 0], sizes = [4, 1, 384], strides = [1, 1, 1]} : vector<4x2x384xf32> to vector<4x1x384xf32>
    %6 = vector.broadcast %2 : vector<4x256x1xf32> to vector<4x256x384xf32>
    %7 = vector.broadcast %4 : vector<4x1x384xf32> to vector<4x256x384xf32>
    %8 = arith.subf %6, %7 : vector<4x256x384xf32>
    %9 = vector.broadcast %3 : vector<4x256x1xf32> to vector<4x256x384xf32>
    %10 = vector.broadcast %5 : vector<4x1x384xf32> to vector<4x256x384xf32>
    %11 = arith.subf %9, %10 : vector<4x256x384xf32>
    %12 = arith.mulf %8, %8 : vector<4x256x384xf32>
    %13 = arith.mulf %11, %11 : vector<4x256x384xf32>
    %14 = arith.addf %12, %13 : vector<4x256x384xf32>
    %cst = arith.constant dense<0x7F800000> : vector<4x256xf32>
    %15 = vector.multi_reduction <minimumf>, %14, %cst [2] : vector<4x256x384xf32> to vector<4x256xf32>
    %cst_5 = arith.constant dense<0x7F800000> : vector<4x384xf32>
    %16 = vector.multi_reduction <minimumf>, %14, %cst_5 [1] : vector<4x256x384xf32> to vector<4x384xf32>
    %c0_i32 = arith.constant 0 : i32
    %17 = arith.cmpi eq, %arg2, %c0_i32 : i32
    %18 = arith.extui %17 : i1 to i32
    %c0_i32_6 = arith.constant 0 : i32
    %19 = arith.cmpi ne, %18, %c0_i32_6 : i32
    scf.if %19 {
      %c0_18 = arith.constant 0 : index
      %c0_19 = arith.constant 0 : index
      %37 = vector.load %arg6[%c0_18, %c0_19] : memref<4x256xf32, #tpu.memory_space<vmem>>, vector<4x256xf32>
      tpu.vector_store %arg6[%c0_18, %c0_19], %15 {strides = array<i32>} : memref<4x256xf32, #tpu.memory_space<vmem>>, vector<4x256xf32>,
    } else {
    }
    %c0_i32_7 = arith.constant 0 : i32
    %20 = arith.cmpi sgt, %arg2, %c0_i32_7 : i32
    %21 = arith.extui %20 : i1 to i32
    %c0_i32_8 = arith.constant 0 : i32
    %22 = arith.cmpi ne, %21, %c0_i32_8 : i32
    scf.if %22 {
      %c0_18 = arith.constant 0 : index
      %c0_19 = arith.constant 0 : index
      %37 = vector.load %arg6[%c0_18, %c0_19] : memref<4x256xf32, #tpu.memory_space<vmem>>, vector<4x256xf32>
      %38 = arith.minimumf %37, %15 : vector<4x256xf32>
      %c0_20 = arith.constant 0 : index
      %c0_21 = arith.constant 0 : index
      %39 = vector.load %arg6[%c0_20, %c0_21] : memref<4x256xf32, #tpu.memory_space<vmem>>, vector<4x256xf32>
      tpu.vector_store %arg6[%c0_20, %c0_21], %38 {strides = array<i32>} : memref<4x256xf32, #tpu.memory_space<vmem>>, vector<4x256xf32>,
    } else {
    }
    %c0_i32_9 = arith.constant 0 : i32
    %23 = arith.cmpi eq, %arg1, %c0_i32_9 : i32
    %24 = arith.extui %23 : i1 to i32
    %c0_i32_10 = arith.constant 0 : i32
    %25 = arith.cmpi ne, %24, %c0_i32_10 : i32
    scf.if %25 {
      %37 = arith.index_cast %arg2 : i32 to index
      %c0_18 = arith.constant 0 : index
      %c0_19 = arith.constant 0 : index
      %38 = vector.load %arg8[%37, %c0_18, %c0_19] : memref<1x4x384xf32, #tpu.memory_space<vmem>>, vector<1x4x384xf32>
      %39 = vector.shape_cast %38 : vector<1x4x384xf32> to vector<4x384xf32>
      %40 = vector.shape_cast %16 : vector<4x384xf32> to vector<1x4x384xf32>
      tpu.vector_store %arg8[%37, %c0_18, %c0_19], %40 {strides = array<i32>} : memref<1x4x384xf32, #tpu.memory_space<vmem>>, vector<1x4x384xf32>,
    } else {
    }
    %c0_i32_11 = arith.constant 0 : i32
    %26 = arith.cmpi sgt, %arg1, %c0_i32_11 : i32
    %27 = arith.extui %26 : i1 to i32
    %c0_i32_12 = arith.constant 0 : i32
    %28 = arith.cmpi ne, %27, %c0_i32_12 : i32
    scf.if %28 {
      %37 = arith.index_cast %arg2 : i32 to index
      %c0_18 = arith.constant 0 : index
      %c0_19 = arith.constant 0 : index
      %38 = vector.load %arg8[%37, %c0_18, %c0_19] : memref<1x4x384xf32, #tpu.memory_space<vmem>>, vector<1x4x384xf32>
      %39 = vector.shape_cast %38 : vector<1x4x384xf32> to vector<4x384xf32>
      %40 = arith.minimumf %39, %16 : vector<4x384xf32>
      %41 = arith.index_cast %arg2 : i32 to index
      %c0_20 = arith.constant 0 : index
      %c0_21 = arith.constant 0 : index
      %42 = vector.load %arg8[%41, %c0_20, %c0_21] : memref<1x4x384xf32, #tpu.memory_space<vmem>>, vector<1x4x384xf32>
      %43 = vector.shape_cast %42 : vector<1x4x384xf32> to vector<4x384xf32>
      %44 = vector.shape_cast %40 : vector<4x384xf32> to vector<1x4x384xf32>
      tpu.vector_store %arg8[%41, %c0_20, %c0_21], %44 {strides = array<i32>} : memref<1x4x384xf32, #tpu.memory_space<vmem>>, vector<1x4x384xf32>,
    } else {
    }
    %c0_i32_13 = arith.constant 0 : i32
    %29 = arith.cmpi eq, %arg2, %c0_i32_13 : i32
    %30 = arith.extui %29 : i1 to i32
    %c0_i32_14 = arith.constant 0 : i32
    %31 = arith.cmpi ne, %30, %c0_i32_14 : i32
    scf.if %31 {
      %c0_18 = arith.constant 0 : index
      %c0_19 = arith.constant 0 : index
      %37 = vector.load %arg6[%c0_18, %c0_19] : memref<4x256xf32, #tpu.memory_space<vmem>>, vector<4x256xf32>
      %cst_20 = arith.constant dense<0.000000e+00> : vector<4xf32>
      %38 = vector.multi_reduction <add>, %37, %cst_20 [1] : vector<4x256xf32> to vector<4xf32>
      %39 = vector.shape_cast %38 : vector<4xf32> to vector<4x1xf32>
      %c0_i32_21 = arith.constant 0 : i32
      %40 = arith.cmpi eq, %arg1, %c0_i32_21 : i32
      %41 = arith.extui %40 : i1 to i32
      %c0_i32_22 = arith.constant 0 : i32
      %42 = arith.cmpi ne, %41, %c0_i32_22 : i32
      scf.if %42 {
        %c0_25 = arith.constant 0 : index
        %c0_26 = arith.constant 0 : index
        %46 = vector.load %arg7[%c0_25, %c0_26] : memref<4x1xf32, #tpu.memory_space<vmem>>, vector<4x1xf32>
        tpu.vector_store %arg7[%c0_25, %c0_26], %39 {strides = array<i32>} : memref<4x1xf32, #tpu.memory_space<vmem>>, vector<4x1xf32>,
      } else {
      }
      %c0_i32_23 = arith.constant 0 : i32
      %43 = arith.cmpi sgt, %arg1, %c0_i32_23 : i32
      %44 = arith.extui %43 : i1 to i32
      %c0_i32_24 = arith.constant 0 : i32
      %45 = arith.cmpi ne, %44, %c0_i32_24 : i32
      scf.if %45 {
        %c0_25 = arith.constant 0 : index
        %c0_26 = arith.constant 0 : index
        %46 = vector.load %arg7[%c0_25, %c0_26] : memref<4x1xf32, #tpu.memory_space<vmem>>, vector<4x1xf32>
        %47 = arith.addf %46, %39 : vector<4x1xf32>
        %c0_27 = arith.constant 0 : index
        %c0_28 = arith.constant 0 : index
        %48 = vector.load %arg7[%c0_27, %c0_28] : memref<4x1xf32, #tpu.memory_space<vmem>>, vector<4x1xf32>
        tpu.vector_store %arg7[%c0_27, %c0_28], %47 {strides = array<i32>} : memref<4x1xf32, #tpu.memory_space<vmem>>, vector<4x1xf32>,
      } else {
      }
    } else {
    }
    %c0_i32_15 = arith.constant 0 : i32
    %32 = arith.cmpi eq, %arg1, %c0_i32_15 : i32
    %c0_i32_16 = arith.constant 0 : i32
    %33 = arith.cmpi eq, %arg2, %c0_i32_16 : i32
    %34 = arith.andi %32, %33 : i1
    %35 = arith.extui %34 : i1 to i32
    %c0_i32_17 = arith.constant 0 : i32
    %36 = arith.cmpi ne, %35, %c0_i32_17 : i32
    scf.if %36 {
      %c0_18 = arith.constant 0 : index
      %c0_19 = arith.constant 0 : index
      %c0_20 = arith.constant 0 : index
      %37 = vector.load %arg8[%c0_18, %c0_19, %c0_20] : memref<1x4x384xf32, #tpu.memory_space<vmem>>, vector<1x4x384xf32>
      %cst_21 = arith.constant dense<0.000000e+00> : vector<4x384xf32>
      %38 = vector.multi_reduction <add>, %37, %cst_21 [0] : vector<1x4x384xf32> to vector<4x384xf32>
      %cst_22 = arith.constant dense<0.000000e+00> : vector<4xf32>
      %39 = vector.multi_reduction <add>, %38, %cst_22 [1] : vector<4x384xf32> to vector<4xf32>
      %40 = vector.shape_cast %39 : vector<4xf32> to vector<4x1xf32>
      %c0_23 = arith.constant 0 : index
      %c0_24 = arith.constant 0 : index
      %41 = vector.load %arg7[%c0_23, %c0_24] : memref<4x1xf32, #tpu.memory_space<vmem>>, vector<4x1xf32>
      %cst_25 = arith.constant 3.906250e-03 : f32
      %42 = vector.broadcast %cst_25 : f32 to vector<4x1xf32>
      %43 = arith.mulf %41, %42 : vector<4x1xf32>
      %cst_26 = arith.constant 0.00260416674 : f32
      %44 = vector.broadcast %cst_26 : f32 to vector<4x1xf32>
      %45 = arith.mulf %40, %44 : vector<4x1xf32>
      %46 = arith.addf %43, %45 : vector<4x1xf32>
      %47 = vector.shape_cast %46 : vector<4x1xf32> to vector<4x1xf32>
      %48 = vector.broadcast %47 : vector<4x1xf32> to vector<4x128xf32>
      %c0_27 = arith.constant 0 : index
      %c0_28 = arith.constant 0 : index
      %c0_29 = arith.constant 0 : index
      %49 = vector.load %arg5[%c0_27, %c0_28, %c0_29] : memref<1x4x128xf32, #tpu.memory_space<vmem>>, vector<1x4x128xf32>
      %50 = vector.shape_cast %49 : vector<1x4x128xf32> to vector<4x128xf32>
      %51 = vector.shape_cast %48 : vector<4x128xf32> to vector<1x4x128xf32>
      tpu.vector_store %arg5[%c0_27, %c0_28, %c0_29], %51 {strides = array<i32>} : memref<1x4x128xf32, #tpu.memory_space<vmem>>, vector<1x4x128xf32>,
    } else {
    }
    return
  }
  func.func @transform_0(%arg0: i32, %arg1: i32, %arg2: i32) -> (i32, i32, i32) {
    %c0_i32 = arith.constant 0 : i32
    %c0_i32_0 = arith.constant 0 : i32
    return %arg0, %arg1, %c0_i32 : i32, i32, i32
  }
  func.func @transform_1(%arg0: i32, %arg1: i32, %arg2: i32) -> (i32, i32, i32) {
    %c0_i32 = arith.constant 0 : i32
    %c0_i32_0 = arith.constant 0 : i32
    return %arg0, %c0_i32, %arg2 : i32, i32, i32
  }
  func.func @transform_2(%arg0: i32, %arg1: i32, %arg2: i32) -> (i32, i32, i32) {
    %c0_i32 = arith.constant 0 : i32
    %c0_i32_0 = arith.constant 0 : i32
    %c0_i32_1 = arith.constant 0 : i32
    return %arg0, %c0_i32, %c0_i32_0 : i32, i32, i32
  }
}

</mosaic_0001>

<llo_original>
// kernel: tpu_custom_call.1
$region0: #{tpu_custom_call.1}
  #allocation0 [shape = 'u32[]', space=smem, size = 0x4, offset = 0x4, fixed_abs, tag = 'smem constant byte address 0x4 - core index']
  #allocation1 [shape = 'u32[144,128]{1,0:T(1,128)}', space=vmem, size = 0x12000, scoped, tag = 'internal scratch']
  #allocation2 [shape = 'f32[4,256]{1,0:T(4,128)}', space=vmem, size = 0x1000, scoped, tag = 'scratch operand']
  #allocation3 [shape = 'f32[4,1]{1,0:T(4,128)}', space=vmem, size = 0x800, scoped, tag = 'scratch operand']
  #allocation4 [shape = 'f32[1,4,384]{2,1,0:T(4,128)}', space=vmem, size = 0x1800, scoped, tag = 'scratch operand']
  %s0 = inlined_call_operand.vmem [shape: f32[8,256,2], index: 0, kind: input, shape index: {}]
  %s1 = inlined_call_operand.vmem [shape: f32[8,2,384], index: 1, kind: input, shape index: {}]
  %s2 = inlined_call_operand.hbm [shape: f32[2,4,128], index: 2, kind: output, shape index: {}]
  %s3 = sld [smem:[#allocation0]]
  $region73: #{tpu_custom_call.1} parent=0
    _
  %s5 = ssub.s32 1, %s3
  %s6 = scalar_select 0, %s5, %s3
  $region1: #{tpu_custom_call.1} parent=0
    #allocation5 [shape = 'u8[4096]{0}', space=vmem, size = 0x1000, scoped, tag = 'output window, operand 0']
    #allocation6 [shape = 's32[2]{0}', space=sflag, size = 0x8, scoped, tag = 'scoped memory for tpu_custom_call.1']
    %7 = vsyncpa [#allocation6], 0
    %s8 = scalar_lea.sflag [#allocation6], 1
    %9 = vsyncpa %s8, 0
    loop: start=0, step=1, limit=4
    $region2: #{tpu_custom_call.1} parent=1 // loop_pre_header
      _
    $region3: #{tpu_custom_call.1} parent=1 // loop_header
      %s11 = sphi 0, %s15
      %p12 = scmp.ge.s32.totalorder %s11, 4
      %s18 = sphi 0, %s37
      %s19 = sphi 0, %s33
      %s20 = sphi 0, %s29
      %s21 = sphi 0, %s18
      %s22 = sphi 0, %s19
      %s23 = sphi 0, %s20
      %s24 = sphi 0, %s21
      %s25 = sphi 0, %s22
      %s26 = sphi 0, %s23
      %s42 = sphi 0, %s44
      %s45 = sphi 0, %s42
      %s46 = sphi 0, %s45
      %s62 = sphi 0, %s46
      %s70 = sphi 0, %s72
      %s73 = sphi 0, %s70
      %s74 = sphi 0, %s73
      %s90 = sphi 0, %s74
      %s96 = sphi 0, %s98
      %s99 = sphi 0, %s96
      %s100 = sphi 0, %s99
      %s116 = sphi 0, %s100
    $region4: #{tpu_custom_call.1} parent=1 // loop_header_branch
      %14 = sbr.rel (%p12) target = $region8
    $region5: #{tpu_custom_call.1} parent=1 // loop_body
      %s16 = ssub.s32 %s11, 1
      %s17 = ssub.s32 %s11, 2
      %s27 = sadd.s32 1, %s20
      %p28 = scmp.ge.s32.totalorder %s27, 1
      %s29 = scalar_select %p28, 0, %s27
      %s30 = sadd.s32 1, %s19
      %s31 = scalar_select %p28, %s30, %s19
      %p32 = scmp.ge.s32.totalorder %s31, 1
      %s33 = scalar_select %p32, 0, %s31
      %s34 = sadd.s32 1, %s18
      %s35 = scalar_select %p32, %s34, %s18
      %p36 = scmp.ge.s32.totalorder %s35, 2
      %s37 = scalar_select %p36, 0, %s35
      %s38 = ssub.s32 %s18, %s37
      %s39 = ssub.s32 %s19, %s33
      %s40 = sor.u32 %s38, %s39
      %p41 = scmp.eq.s32.totalorder %s40, 0
      %s43 = sadd.s32 %s42, 1
      %s44 = scalar_select %p41, %s42, %s43
      %p47 = pneg %p41
      %p48 = scmp.eq.s32.totalorder %s11, 1
      %p49 = por %p47, %p48
      %p50 = scmp.ne.s32.totalorder %s42, %s45
      %p51 = scmp.eq.s32.totalorder %s11, 0
      %p52 = por %p50, %p51
      %p53 = scmp.ne.s32.totalorder %s42, %s45
      %p54 = scmp.eq.s32.totalorder %s16, 1
      %p55 = por %p53, %p54
      %p56 = scmp.ne.s32.totalorder %s45, %s46
      %p57 = scmp.eq.s32.totalorder %s16, 0
      %p58 = por %p56, %p57
      %p59 = scmp.ne.s32.totalorder %s45, %s46
      %p60 = scmp.eq.s32.totalorder %s17, 1
      %p61 = por %p59, %p60
      %p63 = scmp.ne.s32.totalorder %s46, %s62
      %p64 = scmp.eq.s32.totalorder %s17, 0
      %p65 = por %p63, %p64
      %s66 = ssub.s32 %s18, %s37
      %s67 = ssub.s32 %s20, %s29
      %s68 = sor.u32 %s66, %s67
      %p69 = scmp.eq.s32.totalorder %s68, 0
      %s71 = sadd.s32 %s70, 1
      %s72 = scalar_select %p69, %s70, %s71
      %p75 = pneg %p69
      %p76 = scmp.eq.s32.totalorder %s11, 1
      %p77 = por %p75, %p76
      %p78 = scmp.ne.s32.totalorder %s70, %s73
      %p79 = scmp.eq.s32.totalorder %s11, 0
      %p80 = por %p78, %p79
      %p81 = scmp.ne.s32.totalorder %s70, %s73
      %p82 = scmp.eq.s32.totalorder %s16, 1
      %p83 = por %p81, %p82
      %p84 = scmp.ne.s32.totalorder %s73, %s74
      %p85 = scmp.eq.s32.totalorder %s16, 0
      %p86 = por %p84, %p85
      %p87 = scmp.ne.s32.totalorder %s73, %s74
      %p88 = scmp.eq.s32.totalorder %s17, 1
      %p89 = por %p87, %p88
      %p91 = scmp.ne.s32.totalorder %s74, %s90
      %p92 = scmp.eq.s32.totalorder %s17, 0
      %p93 = por %p91, %p92
      %s94 = ssub.s32 %s18, %s37
      %p95 = scmp.eq.s32.totalorder %s94, 0
      %s97 = sadd.s32 %s96, 1
      %s98 = scalar_select %p95, %s96, %s97
      %p101 = pneg %p95
      %p102 = scmp.eq.s32.totalorder %s11, 1
      %p103 = por %p101, %p102
      %p104 = scmp.ne.s32.totalorder %s96, %s99
      %p105 = scmp.eq.s32.totalorder %s11, 0
      %p106 = por %p104, %p105
      %p107 = scmp.ne.s32.totalorder %s96, %s99
      %p108 = scmp.eq.s32.totalorder %s16, 1
      %p109 = por %p107, %p108
      %p110 = scmp.ne.s32.totalorder %s99, %s100
      %p111 = scmp.eq.s32.totalorder %s16, 0
      %p112 = por %p110, %p111
      %p113 = scmp.ne.s32.totalorder %s99, %s100
      %p114 = scmp.eq.s32.totalorder %s17, 1
      %p115 = por %p113, %p114
      %p117 = scmp.ne.s32.totalorder %s100, %s116
      %p118 = scmp.eq.s32.totalorder %s17, 0
      %p119 = por %p117, %p118
      %p120 = scmp.le.s32.totalorder 1, %s11
      %p121 = scmp.lt.s32.totalorder %s11, 3
      %p122 = pnand %p120, %p121
      %p123 = pneg %p122
      // Predicated region
      $region9: #{tpu_custom_call.1} parent=5 // pred_check
        _
      $region10: #{tpu_custom_call.1} parent=5 // pred_check_branch
        %125 = sbr.rel (%p122) target = $region12
      $region11: #{tpu_custom_call.1} parent=5 // pred_region
        %s126 = ssub.s32 %s11, 1
      $region12: #{tpu_custom_call.1} parent=5 // pred_fallthru
        _
      %p127 = scmp.lt.s32.totalorder %s11, 2
      // Predicated region
      $region13: #{tpu_custom_call.1} parent=5 // pred_check
        %p128 = pneg %p127
      $region14: #{tpu_custom_call.1} parent=5 // pred_check_branch
        %130 = sbr.rel (%p128) target = $region16
      $region15: #{tpu_custom_call.1} parent=5 // pred_region
        // Predicated region
        $region17: #{tpu_custom_call.1} parent=15 // pred_check
          %p131 = pneg %p52
        $region18: #{tpu_custom_call.1} parent=15 // pred_check_branch
          %133 = sbr.rel (%p131) target = $region20
        $region19: #{tpu_custom_call.1} parent=15 // pred_region
          %s134 = smul.u32 4, %s18
          %s135 = smul.u32 32, %s19
          %p136 = scmp.lt.s32.totalorder %s134, 7
          %s137 = scalar_select %p136, %s134, 7
          %p138 = scmp.lt.s32.totalorder %s135, 31
          %s139 = scalar_select %p138, %s135, 31
          %s140 = smul.addr %s137, 32
          %s141 = sadd.s32 %s139, %s140
          %s142 = smul.addr %s141, 8
          %s143 = scalar_lea.vmem %s0, %s142
          %s144 = smul.u32 4, %s18
          %s145 = smul.u32 32, %s19
        $region20: #{tpu_custom_call.1} parent=15 // pred_fallthru
          _
        // Predicated region
        $region21: #{tpu_custom_call.1} parent=15 // pred_check
          %p146 = pneg %p80
        $region22: #{tpu_custom_call.1} parent=15 // pred_check_branch
          %148 = sbr.rel (%p146) target = $region24
        $region23: #{tpu_custom_call.1} parent=15 // pred_region
          %s149 = smul.u32 4, %s18
          %s150 = smul.u32 3, %s20
          %p151 = scmp.lt.s32.totalorder %s149, 7
          %s152 = scalar_select %p151, %s149, 7
          %p153 = scmp.lt.s32.totalorder %s150, 2
          %s154 = scalar_select %p153, %s150, 2
          %s155 = smul.addr %s152, 3
          %s156 = sadd.s32 %s154, %s155
          %s157 = smul.addr %s156, 2
          %s158 = scalar_lea.vmem %s1, %s157
          %s159 = smul.u32 4, %s18
          %s160 = smul.u32 3, %s20
        $region24: #{tpu_custom_call.1} parent=15 // pred_fallthru
          _
      $region16: #{tpu_custom_call.1} parent=5 // pred_fallthru
        _
      %p161 = scmp.le.s32.totalorder 1, %s11
      %p162 = scmp.lt.s32.totalorder %s11, 3
      %p163 = pnand %p161, %p162
      %p164 = pneg %p163
      // Predicated region
      $region25: #{tpu_custom_call.1} parent=5 // pred_check
        _
      $region26: #{tpu_custom_call.1} parent=5 // pred_check_branch
        %166 = sbr.rel (%p163) target = $region28
      $region27: #{tpu_custom_call.1} parent=5 // pred_region
        %s167 = ssub.s32 %s11, 1
        %s168 = smul.u32 4, %s21
        %s169 = smul.u32 32, %s22
        %p170 = scmp.lt.s32.totalorder %s168, 7
        %s171 = scalar_select %p170, %s168, 7
        %p172 = scmp.lt.s32.totalorder %s169, 31
        %s173 = scalar_select %p172, %s169, 31
        %s174 = smul.addr %s171, 32
        %s175 = sadd.s32 %s173, %s174
        %s176 = smul.addr %s175, 8
        %s177 = scalar_lea.vmem %s0, %s176
        %p178 = pneg %p58
        %p179 = pneg %p55
        %s180 = smul.u32 4, %s21
        %s181 = smul.u32 3, %s23
        %p182 = scmp.lt.s32.totalorder %s180, 7
        %s183 = scalar_select %p182, %s180, 7
        %p184 = scmp.lt.s32.totalorder %s181, 2
        %s185 = scalar_select %p184, %s181, 2
        %s186 = smul.addr %s183, 3
        %s187 = sadd.s32 %s185, %s186
        %s188 = smul.addr %s187, 2
        %s189 = scalar_lea.vmem %s1, %s188
        %p190 = pneg %p86
        %p191 = pneg %p83
        %p192 = pneg %p112
        %p193 = pneg %p109
        %s194 = sand.u32 %s99, 1
        %s195 = scalar_lea.sflag [#allocation6], %s194
        %s196 = sand.u32 %s99, 1
        %s197 = smul.addr %s196, 4
        %s198 = scalar_lea.vmem [#allocation5], %s197
        %s199 = smul.u32 4, %s21
        %s200 = smul.u32 32, %s22
        %p201 = scmp.lt.s32.totalorder %s199, 7
        %s202 = scalar_select %p201, %s199, 7
        %p203 = scmp.lt.s32.totalorder %s200, 31
        %s204 = scalar_select %p203, %s200, 31
        %s205 = smul.addr %s202, 32
        %s206 = sadd.s32 %s204, %s205
        %s207 = smul.addr %s206, 8
        %s208 = scalar_lea.vmem %s0, %s207
        %s209 = smul.u32 4, %s21
        %s210 = smul.u32 32, %s22
        %s211 = smul.u32 4, %s21
        %s212 = smul.u32 3, %s23
        %p213 = scmp.lt.s32.totalorder %s211, 7
        %s214 = scalar_select %p213, %s211, 7
        %p215 = scmp.lt.s32.totalorder %s212, 2
        %s216 = scalar_select %p215, %s212, 2
        %s217 = smul.addr %s214, 3
        %s218 = sadd.s32 %s216, %s217
        %s219 = smul.addr %s218, 2
        %s220 = scalar_lea.vmem %s1, %s219
        %s221 = smul.u32 4, %s21
        %s222 = smul.u32 3, %s23
        %v223 = vld [vmem:[%s208] sm:$0xff]
        %v224 = vld [vmem:[%s208 + $0x8] sm:$0xff]
        %v225 = vld [vmem:[%s208 + $0x10] sm:$0xff]
        %v226 = vld [vmem:[%s208 + $0x18] sm:$0xff]
        %v227 = vld [vmem:[%s208 + $0x20] sm:$0xff]
        %v228 = vld [vmem:[%s208 + $0x28] sm:$0xff]
        %v229 = vld [vmem:[%s208 + $0x30] sm:$0xff]
        %v230 = vld [vmem:[%s208 + $0x38] sm:$0xff]
        %v231 = vld [vmem:[%s208 + $0x40] sm:$0xff]
        %v232 = vld [vmem:[%s208 + $0x48] sm:$0xff]
        %v233 = vld [vmem:[%s208 + $0x50] sm:$0xff]
        %v234 = vld [vmem:[%s208 + $0x58] sm:$0xff]
        %v235 = vld [vmem:[%s208 + $0x60] sm:$0xff]
        %v236 = vld [vmem:[%s208 + $0x68] sm:$0xff]
        %v237 = vld [vmem:[%s208 + $0x70] sm:$0xff]
        %v238 = vld [vmem:[%s208 + $0x78] sm:$0xff]
        %v239 = vld [vmem:[%s208 + $0x80] sm:$0xff]
        %v240 = vld [vmem:[%s208 + $0x88] sm:$0xff]
        %v241 = vld [vmem:[%s208 + $0x90] sm:$0xff]
        %v242 = vld [vmem:[%s208 + $0x98] sm:$0xff]
        %v243 = vld [vmem:[%s208 + $0xa0] sm:$0xff]
        %v244 = vld [vmem:[%s208 + $0xa8] sm:$0xff]
        %v245 = vld [vmem:[%s208 + $0xb0] sm:$0xff]
        %v246 = vld [vmem:[%s208 + $0xb8] sm:$0xff]
        %v247 = vld [vmem:[%s208 + $0xc0] sm:$0xff]
        %v248 = vld [vmem:[%s208 + $0xc8] sm:$0xff]
        %v249 = vld [vmem:[%s208 + $0xd0] sm:$0xff]
        %v250 = vld [vmem:[%s208 + $0xd8] sm:$0xff]
        %v251 = vld [vmem:[%s208 + $0xe0] sm:$0xff]
        %v252 = vld [vmem:[%s208 + $0xe8] sm:$0xff]
        %v253 = vld [vmem:[%s208 + $0xf0] sm:$0xff]
        %v254 = vld [vmem:[%s208 + $0xf8] sm:$0xff]
        %v255 = vld [vmem:[%s208 + $0x100] sm:$0xff]
        %v256 = vld [vmem:[%s208 + $0x108] sm:$0xff]
        %v257 = vld [vmem:[%s208 + $0x110] sm:$0xff]
        %v258 = vld [vmem:[%s208 + $0x118] sm:$0xff]
        %v259 = vld [vmem:[%s208 + $0x120] sm:$0xff]
        %v260 = vld [vmem:[%s208 + $0x128] sm:$0xff]
        %v261 = vld [vmem:[%s208 + $0x130] sm:$0xff]
        %v262 = vld [vmem:[%s208 + $0x138] sm:$0xff]
        %v263 = vld [vmem:[%s208 + $0x140] sm:$0xff]
        %v264 = vld [vmem:[%s208 + $0x148] sm:$0xff]
        %v265 = vld [vmem:[%s208 + $0x150] sm:$0xff]
        %v266 = vld [vmem:[%s208 + $0x158] sm:$0xff]
        %v267 = vld [vmem:[%s208 + $0x160] sm:$0xff]
        %v268 = vld [vmem:[%s208 + $0x168] sm:$0xff]
        %v269 = vld [vmem:[%s208 + $0x170] sm:$0xff]
        %v270 = vld [vmem:[%s208 + $0x178] sm:$0xff]
        %v271 = vld [vmem:[%s208 + $0x180] sm:$0xff]
        %v272 = vld [vmem:[%s208 + $0x188] sm:$0xff]
        %v273 = vld [vmem:[%s208 + $0x190] sm:$0xff]
        %v274 = vld [vmem:[%s208 + $0x198] sm:$0xff]
        %v275 = vld [vmem:[%s208 + $0x1a0] sm:$0xff]
        %v276 = vld [vmem:[%s208 + $0x1a8] sm:$0xff]
        %v277 = vld [vmem:[%s208 + $0x1b0] sm:$0xff]
        %v278 = vld [vmem:[%s208 + $0x1b8] sm:$0xff]
        %v279 = vld [vmem:[%s208 + $0x1c0] sm:$0xff]
        %v280 = vld [vmem:[%s208 + $0x1c8] sm:$0xff]
        %v281 = vld [vmem:[%s208 + $0x1d0] sm:$0xff]
        %v282 = vld [vmem:[%s208 + $0x1d8] sm:$0xff]
        %v283 = vld [vmem:[%s208 + $0x1e0] sm:$0xff]
        %v284 = vld [vmem:[%s208 + $0x1e8] sm:$0xff]
        %v285 = vld [vmem:[%s208 + $0x1f0] sm:$0xff]
        %v286 = vld [vmem:[%s208 + $0x1f8] sm:$0xff]
        %v287 = vld [vmem:[%s208 + $0x200] sm:$0xff]
        %v288 = vld [vmem:[%s208 + $0x208] sm:$0xff]
        %v289 = vld [vmem:[%s208 + $0x210] sm:$0xff]
        %v290 = vld [vmem:[%s208 + $0x218] sm:$0xff]
        %v291 = vld [vmem:[%s208 + $0x220] sm:$0xff]
        %v292 = vld [vmem:[%s208 + $0x228] sm:$0xff]
        %v293 = vld [vmem:[%s208 + $0x230] sm:$0xff]
        %v294 = vld [vmem:[%s208 + $0x238] sm:$0xff]
        %v295 = vld [vmem:[%s208 + $0x240] sm:$0xff]
        %v296 = vld [vmem:[%s208 + $0x248] sm:$0xff]
        %v297 = vld [vmem:[%s208 + $0x250] sm:$0xff]
        %v298 = vld [vmem:[%s208 + $0x258] sm:$0xff]
        %v299 = vld [vmem:[%s208 + $0x260] sm:$0xff]
        %v300 = vld [vmem:[%s208 + $0x268] sm:$0xff]
        %v301 = vld [vmem:[%s208 + $0x270] sm:$0xff]
        %v302 = vld [vmem:[%s208 + $0x278] sm:$0xff]
        %v303 = vld [vmem:[%s208 + $0x280] sm:$0xff]
        %v304 = vld [vmem:[%s208 + $0x288] sm:$0xff]
        %v305 = vld [vmem:[%s208 + $0x290] sm:$0xff]
        %v306 = vld [vmem:[%s208 + $0x298] sm:$0xff]
        %v307 = vld [vmem:[%s208 + $0x2a0] sm:$0xff]
        %v308 = vld [vmem:[%s208 + $0x2a8] sm:$0xff]
        %v309 = vld [vmem:[%s208 + $0x2b0] sm:$0xff]
        %v310 = vld [vmem:[%s208 + $0x2b8] sm:$0xff]
        %v311 = vld [vmem:[%s208 + $0x2c0] sm:$0xff]
        %v312 = vld [vmem:[%s208 + $0x2c8] sm:$0xff]
        %v313 = vld [vmem:[%s208 + $0x2d0] sm:$0xff]
        %v314 = vld [vmem:[%s208 + $0x2d8] sm:$0xff]
        %v315 = vld [vmem:[%s208 + $0x2e0] sm:$0xff]
        %v316 = vld [vmem:[%s208 + $0x2e8] sm:$0xff]
        %v317 = vld [vmem:[%s208 + $0x2f0] sm:$0xff]
        %v318 = vld [vmem:[%s208 + $0x2f8] sm:$0xff]
        %v319 = vld [vmem:[%s208 + $0x300] sm:$0xff]
        %v320 = vld [vmem:[%s208 + $0x308] sm:$0xff]
        %v321 = vld [vmem:[%s208 + $0x310] sm:$0xff]
        %v322 = vld [vmem:[%s208 + $0x318] sm:$0xff]
        %v323 = vld [vmem:[%s208 + $0x320] sm:$0xff]
        %v324 = vld [vmem:[%s208 + $0x328] sm:$0xff]
        %v325 = vld [vmem:[%s208 + $0x330] sm:$0xff]
        %v326 = vld [vmem:[%s208 + $0x338] sm:$0xff]
        %v327 = vld [vmem:[%s208 + $0x340] sm:$0xff]
        %v328 = vld [vmem:[%s208 + $0x348] sm:$0xff]
        %v329 = vld [vmem:[%s208 + $0x350] sm:$0xff]
        %v330 = vld [vmem:[%s208 + $0x358] sm:$0xff]
        %v331 = vld [vmem:[%s208 + $0x360] sm:$0xff]
        %v332 = vld [vmem:[%s208 + $0x368] sm:$0xff]
        %v333 = vld [vmem:[%s208 + $0x370] sm:$0xff]
        %v334 = vld [vmem:[%s208 + $0x378] sm:$0xff]
        %v335 = vld [vmem:[%s208 + $0x380] sm:$0xff]
        %v336 = vld [vmem:[%s208 + $0x388] sm:$0xff]
        %v337 = vld [vmem:[%s208 + $0x390] sm:$0xff]
        %v338 = vld [vmem:[%s208 + $0x398] sm:$0xff]
        %v339 = vld [vmem:[%s208 + $0x3a0] sm:$0xff]
        %v340 = vld [vmem:[%s208 + $0x3a8] sm:$0xff]
        %v341 = vld [vmem:[%s208 + $0x3b0] sm:$0xff]
        %v342 = vld [vmem:[%s208 + $0x3b8] sm:$0xff]
        %v343 = vld [vmem:[%s208 + $0x3c0] sm:$0xff]
        %v344 = vld [vmem:[%s208 + $0x3c8] sm:$0xff]
        %v345 = vld [vmem:[%s208 + $0x3d0] sm:$0xff]
        %v346 = vld [vmem:[%s208 + $0x3d8] sm:$0xff]
        %v347 = vld [vmem:[%s208 + $0x3e0] sm:$0xff]
        %v348 = vld [vmem:[%s208 + $0x3e8] sm:$0xff]
        %v349 = vld [vmem:[%s208 + $0x3f0] sm:$0xff]
        %v350 = vld [vmem:[%s208 + $0x3f8] sm:$0xff]
        %v351 = vld [vmem:[%s220] sm:$0x3f]
        %v352 = vld [vmem:[%s220 + $0x6] sm:$0x3f]
        %v353 = vld [vmem:[%s220 + $0xc] sm:$0x3f]
        %v354 = vld [vmem:[%s220 + $0x12] sm:$0x3f]
        %356 = vset.pattern.permute.xlu0 0
        %357 = vperm.xlu0 %356, %v223
        %v358 = vpop.permute.xlu0 %357
        %361 = vset.pattern.permute.xlu0 0
        %362 = vperm.xlu0 %361, %v224
        %v363 = vpop.permute.xlu0 %362
        %366 = vset.pattern.permute.xlu0 0
        %367 = vperm.xlu0 %366, %v225
        %v368 = vpop.permute.xlu0 %367
        %371 = vset.pattern.permute.xlu0 0
        %372 = vperm.xlu0 %371, %v226
        %v373 = vpop.permute.xlu0 %372
        %376 = vset.pattern.permute.xlu0 0
        %377 = vperm.xlu0 %376, %v227
        %v378 = vpop.permute.xlu0 %377
        %381 = vset.pattern.permute.xlu0 0
        %382 = vperm.xlu0 %381, %v228
        %v383 = vpop.permute.xlu0 %382
        %386 = vset.pattern.permute.xlu0 0
        %387 = vperm.xlu0 %386, %v229
        %v388 = vpop.permute.xlu0 %387
        %391 = vset.pattern.permute.xlu0 0
        %392 = vperm.xlu0 %391, %v230
        %v393 = vpop.permute.xlu0 %392
        %396 = vset.pattern.permute.xlu0 0
        %397 = vperm.xlu0 %396, %v231
        %v398 = vpop.permute.xlu0 %397
        %401 = vset.pattern.permute.xlu0 0
        %402 = vperm.xlu0 %401, %v232
        %v403 = vpop.permute.xlu0 %402
        %406 = vset.pattern.permute.xlu0 0
        %407 = vperm.xlu0 %406, %v233
        %v408 = vpop.permute.xlu0 %407
        %411 = vset.pattern.permute.xlu0 0
        %412 = vperm.xlu0 %411, %v234
        %v413 = vpop.permute.xlu0 %412
        %416 = vset.pattern.permute.xlu0 0
        %417 = vperm.xlu0 %416, %v235
        %v418 = vpop.permute.xlu0 %417
        %421 = vset.pattern.permute.xlu0 0
        %422 = vperm.xlu0 %421, %v236
        %v423 = vpop.permute.xlu0 %422
        %426 = vset.pattern.permute.xlu0 0
        %427 = vperm.xlu0 %426, %v237
        %v428 = vpop.permute.xlu0 %427
        %431 = vset.pattern.permute.xlu0 0
        %432 = vperm.xlu0 %431, %v238
        %v433 = vpop.permute.xlu0 %432
        %436 = vset.pattern.permute.xlu0 0
        %437 = vperm.xlu0 %436, %v239
        %v438 = vpop.permute.xlu0 %437
        %441 = vset.pattern.permute.xlu0 0
        %442 = vperm.xlu0 %441, %v240
        %v443 = vpop.permute.xlu0 %442
        %446 = vset.pattern.permute.xlu0 0
        %447 = vperm.xlu0 %446, %v241
        %v448 = vpop.permute.xlu0 %447
        %451 = vset.pattern.permute.xlu0 0
        %452 = vperm.xlu0 %451, %v242
        %v453 = vpop.permute.xlu0 %452
        %456 = vset.pattern.permute.xlu0 0
        %457 = vperm.xlu0 %456, %v243
        %v458 = vpop.permute.xlu0 %457
        %461 = vset.pattern.permute.xlu0 0
        %462 = vperm.xlu0 %461, %v244
        %v463 = vpop.permute.xlu0 %462
        %466 = vset.pattern.permute.xlu0 0
        %467 = vperm.xlu0 %466, %v245
        %v468 = vpop.permute.xlu0 %467
        %471 = vset.pattern.permute.xlu0 0
        %472 = vperm.xlu0 %471, %v246
        %v473 = vpop.permute.xlu0 %472
        %476 = vset.pattern.permute.xlu0 0
        %477 = vperm.xlu0 %476, %v247
        %v478 = vpop.permute.xlu0 %477
        %481 = vset.pattern.permute.xlu0 0
        %482 = vperm.xlu0 %481, %v248
        %v483 = vpop.permute.xlu0 %482
        %486 = vset.pattern.permute.xlu0 0
        %487 = vperm.xlu0 %486, %v249
        %v488 = vpop.permute.xlu0 %487
        %491 = vset.pattern.permute.xlu0 0
        %492 = vperm.xlu0 %491, %v250
        %v493 = vpop.permute.xlu0 %492
        %496 = vset.pattern.permute.xlu0 0
        %497 = vperm.xlu0 %496, %v251
        %v498 = vpop.permute.xlu0 %497
        %501 = vset.pattern.permute.xlu0 0
        %502 = vperm.xlu0 %501, %v252
        %v503 = vpop.permute.xlu0 %502
        %506 = vset.pattern.permute.xlu0 0
        %507 = vperm.xlu0 %506, %v253
        %v508 = vpop.permute.xlu0 %507
        %511 = vset.pattern.permute.xlu0 0
        %512 = vperm.xlu0 %511, %v254
        %v513 = vpop.permute.xlu0 %512
        %516 = vset.pattern.permute.xlu0 0
        %517 = vperm.xlu0 %516, %v255
        %v518 = vpop.permute.xlu0 %517
        %521 = vset.pattern.permute.xlu0 0
        %522 = vperm.xlu0 %521, %v256
        %v523 = vpop.permute.xlu0 %522
        %526 = vset.pattern.permute.xlu0 0
        %527 = vperm.xlu0 %526, %v257
        %v528 = vpop.permute.xlu0 %527
        %531 = vset.pattern.permute.xlu0 0
        %532 = vperm.xlu0 %531, %v258
        %v533 = vpop.permute.xlu0 %532
        %536 = vset.pattern.permute.xlu0 0
        %537 = vperm.xlu0 %536, %v259
        %v538 = vpop.permute.xlu0 %537
        %541 = vset.pattern.permute.xlu0 0
        %542 = vperm.xlu0 %541, %v260
        %v543 = vpop.permute.xlu0 %542
        %546 = vset.pattern.permute.xlu0 0
        %547 = vperm.xlu0 %546, %v261
        %v548 = vpop.permute.xlu0 %547
        %551 = vset.pattern.permute.xlu0 0
        %552 = vperm.xlu0 %551, %v262
        %v553 = vpop.permute.xlu0 %552
        %556 = vset.pattern.permute.xlu0 0
        %557 = vperm.xlu0 %556, %v263
        %v558 = vpop.permute.xlu0 %557
        %561 = vset.pattern.permute.xlu0 0
        %562 = vperm.xlu0 %561, %v264
        %v563 = vpop.permute.xlu0 %562
        %566 = vset.pattern.permute.xlu0 0
        %567 = vperm.xlu0 %566, %v265
        %v568 = vpop.permute.xlu0 %567
        %571 = vset.pattern.permute.xlu0 0
        %572 = vperm.xlu0 %571, %v266
        %v573 = vpop.permute.xlu0 %572
        %576 = vset.pattern.permute.xlu0 0
        %577 = vperm.xlu0 %576, %v267
        %v578 = vpop.permute.xlu0 %577
        %581 = vset.pattern.permute.xlu0 0
        %582 = vperm.xlu0 %581, %v268
        %v583 = vpop.permute.xlu0 %582
        %586 = vset.pattern.permute.xlu0 0
        %587 = vperm.xlu0 %586, %v269
        %v588 = vpop.permute.xlu0 %587
        %591 = vset.pattern.permute.xlu0 0
        %592 = vperm.xlu0 %591, %v270
        %v593 = vpop.permute.xlu0 %592
        %596 = vset.pattern.permute.xlu0 0
        %597 = vperm.xlu0 %596, %v271
        %v598 = vpop.permute.xlu0 %597
        %601 = vset.pattern.permute.xlu0 0
        %602 = vperm.xlu0 %601, %v272
        %v603 = vpop.permute.xlu0 %602
        %606 = vset.pattern.permute.xlu0 0
        %607 = vperm.xlu0 %606, %v273
        %v608 = vpop.permute.xlu0 %607
        %611 = vset.pattern.permute.xlu0 0
        %612 = vperm.xlu0 %611, %v274
        %v613 = vpop.permute.xlu0 %612
        %616 = vset.pattern.permute.xlu0 0
        %617 = vperm.xlu0 %616, %v275
        %v618 = vpop.permute.xlu0 %617
        %621 = vset.pattern.permute.xlu0 0
        %622 = vperm.xlu0 %621, %v276
        %v623 = vpop.permute.xlu0 %622
        %626 = vset.pattern.permute.xlu0 0
        %627 = vperm.xlu0 %626, %v277
        %v628 = vpop.permute.xlu0 %627
        %631 = vset.pattern.permute.xlu0 0
        %632 = vperm.xlu0 %631, %v278
        %v633 = vpop.permute.xlu0 %632
        %636 = vset.pattern.permute.xlu0 0
        %637 = vperm.xlu0 %636, %v279
        %v638 = vpop.permute.xlu0 %637
        %641 = vset.pattern.permute.xlu0 0
        %642 = vperm.xlu0 %641, %v280
        %v643 = vpop.permute.xlu0 %642
        %646 = vset.pattern.permute.xlu0 0
        %647 = vperm.xlu0 %646, %v281
        %v648 = vpop.permute.xlu0 %647
        %651 = vset.pattern.permute.xlu0 0
        %652 = vperm.xlu0 %651, %v282
        %v653 = vpop.permute.xlu0 %652
        %656 = vset.pattern.permute.xlu0 0
        %657 = vperm.xlu0 %656, %v283
        %v658 = vpop.permute.xlu0 %657
        %661 = vset.pattern.permute.xlu0 0
        %662 = vperm.xlu0 %661, %v284
        %v663 = vpop.permute.xlu0 %662
        %666 = vset.pattern.permute.xlu0 0
        %667 = vperm.xlu0 %666, %v285
        %v668 = vpop.permute.xlu0 %667
        %671 = vset.pattern.permute.xlu0 0
        %672 = vperm.xlu0 %671, %v286
        %v673 = vpop.permute.xlu0 %672
        %676 = vset.pattern.permute.xlu0 0
        %677 = vperm.xlu0 %676, %v287
        %v678 = vpop.permute.xlu0 %677
        %681 = vset.pattern.permute.xlu0 0
        %682 = vperm.xlu0 %681, %v288
        %v683 = vpop.permute.xlu0 %682
        %686 = vset.pattern.permute.xlu0 0
        %687 = vperm.xlu0 %686, %v289
        %v688 = vpop.permute.xlu0 %687
        %691 = vset.pattern.permute.xlu0 0
        %692 = vperm.xlu0 %691, %v290
        %v693 = vpop.permute.xlu0 %692
        %696 = vset.pattern.permute.xlu0 0
        %697 = vperm.xlu0 %696, %v291
        %v698 = vpop.permute.xlu0 %697
        %701 = vset.pattern.permute.xlu0 0
        %702 = vperm.xlu0 %701, %v292
        %v703 = vpop.permute.xlu0 %702
        %706 = vset.pattern.permute.xlu0 0
        %707 = vperm.xlu0 %706, %v293
        %v708 = vpop.permute.xlu0 %707
        %711 = vset.pattern.permute.xlu0 0
        %712 = vperm.xlu0 %711, %v294
        %v713 = vpop.permute.xlu0 %712
        %716 = vset.pattern.permute.xlu0 0
        %717 = vperm.xlu0 %716, %v295
        %v718 = vpop.permute.xlu0 %717
        %721 = vset.pattern.permute.xlu0 0
        %722 = vperm.xlu0 %721, %v296
        %v723 = vpop.permute.xlu0 %722
        %726 = vset.pattern.permute.xlu0 0
        %727 = vperm.xlu0 %726, %v297
        %v728 = vpop.permute.xlu0 %727
        %731 = vset.pattern.permute.xlu0 0
        %732 = vperm.xlu0 %731, %v298
        %v733 = vpop.permute.xlu0 %732
        %736 = vset.pattern.permute.xlu0 0
        %737 = vperm.xlu0 %736, %v299
        %v738 = vpop.permute.xlu0 %737
        %741 = vset.pattern.permute.xlu0 0
        %742 = vperm.xlu0 %741, %v300
        %v743 = vpop.permute.xlu0 %742
        %746 = vset.pattern.permute.xlu0 0
        %747 = vperm.xlu0 %746, %v301
        %v748 = vpop.permute.xlu0 %747
        %751 = vset.pattern.permute.xlu0 0
        %752 = vperm.xlu0 %751, %v302
        %v753 = vpop.permute.xlu0 %752
        %756 = vset.pattern.permute.xlu0 0
        %757 = vperm.xlu0 %756, %v303
        %v758 = vpop.permute.xlu0 %757
        %761 = vset.pattern.permute.xlu0 0
        %762 = vperm.xlu0 %761, %v304
        %v763 = vpop.permute.xlu0 %762
        %766 = vset.pattern.permute.xlu0 0
        %767 = vperm.xlu0 %766, %v305
        %v768 = vpop.permute.xlu0 %767
        %771 = vset.pattern.permute.xlu0 0
        %772 = vperm.xlu0 %771, %v306
        %v773 = vpop.permute.xlu0 %772
        %776 = vset.pattern.permute.xlu0 0
        %777 = vperm.xlu0 %776, %v307
        %v778 = vpop.permute.xlu0 %777
        %781 = vset.pattern.permute.xlu0 0
        %782 = vperm.xlu0 %781, %v308
        %v783 = vpop.permute.xlu0 %782
        %786 = vset.pattern.permute.xlu0 0
        %787 = vperm.xlu0 %786, %v309
        %v788 = vpop.permute.xlu0 %787
        %791 = vset.pattern.permute.xlu0 0
        %792 = vperm.xlu0 %791, %v310
        %v793 = vpop.permute.xlu0 %792
        %796 = vset.pattern.permute.xlu0 0
        %797 = vperm.xlu0 %796, %v311
        %v798 = vpop.permute.xlu0 %797
        %801 = vset.pattern.permute.xlu0 0
        %802 = vperm.xlu0 %801, %v312
        %v803 = vpop.permute.xlu0 %802
        %806 = vset.pattern.permute.xlu0 0
        %807 = vperm.xlu0 %806, %v313
        %v808 = vpop.permute.xlu0 %807
        %811 = vset.pattern.permute.xlu0 0
        %812 = vperm.xlu0 %811, %v314
        %v813 = vpop.permute.xlu0 %812
        %816 = vset.pattern.permute.xlu0 0
        %817 = vperm.xlu0 %816, %v315
        %v818 = vpop.permute.xlu0 %817
        %821 = vset.pattern.permute.xlu0 0
        %822 = vperm.xlu0 %821, %v316
        %v823 = vpop.permute.xlu0 %822
        %826 = vset.pattern.permute.xlu0 0
        %827 = vperm.xlu0 %826, %v317
        %v828 = vpop.permute.xlu0 %827
        %831 = vset.pattern.permute.xlu0 0
        %832 = vperm.xlu0 %831, %v318
        %v833 = vpop.permute.xlu0 %832
        %836 = vset.pattern.permute.xlu0 0
        %837 = vperm.xlu0 %836, %v319
        %v838 = vpop.permute.xlu0 %837
        %841 = vset.pattern.permute.xlu0 0
        %842 = vperm.xlu0 %841, %v320
        %v843 = vpop.permute.xlu0 %842
        %846 = vset.pattern.permute.xlu0 0
        %847 = vperm.xlu0 %846, %v321
        %v848 = vpop.permute.xlu0 %847
        %851 = vset.pattern.permute.xlu0 0
        %852 = vperm.xlu0 %851, %v322
        %v853 = vpop.permute.xlu0 %852
        %856 = vset.pattern.permute.xlu0 0
        %857 = vperm.xlu0 %856, %v323
        %v858 = vpop.permute.xlu0 %857
        %861 = vset.pattern.permute.xlu0 0
        %862 = vperm.xlu0 %861, %v324
        %v863 = vpop.permute.xlu0 %862
        %866 = vset.pattern.permute.xlu0 0
        %867 = vperm.xlu0 %866, %v325
        %v868 = vpop.permute.xlu0 %867
        %871 = vset.pattern.permute.xlu0 0
        %872 = vperm.xlu0 %871, %v326
        %v873 = vpop.permute.xlu0 %872
        %876 = vset.pattern.permute.xlu0 0
        %877 = vperm.xlu0 %876, %v327
        %v878 = vpop.permute.xlu0 %877
        %881 = vset.pattern.permute.xlu0 0
        %882 = vperm.xlu0 %881, %v328
        %v883 = vpop.permute.xlu0 %882
        %886 = vset.pattern.permute.xlu0 0
        %887 = vperm.xlu0 %886, %v329
        %v888 = vpop.permute.xlu0 %887
        %891 = vset.pattern.permute.xlu0 0
        %892 = vperm.xlu0 %891, %v330
        %v893 = vpop.permute.xlu0 %892
        %896 = vset.pattern.permute.xlu0 0
        %897 = vperm.xlu0 %896, %v331
        %v898 = vpop.permute.xlu0 %897
        %901 = vset.pattern.permute.xlu0 0
        %902 = vperm.xlu0 %901, %v332
        %v903 = vpop.permute.xlu0 %902
        %906 = vset.pattern.permute.xlu0 0
        %907 = vperm.xlu0 %906, %v333
        %v908 = vpop.permute.xlu0 %907
        %911 = vset.pattern.permute.xlu0 0
        %912 = vperm.xlu0 %911, %v334
        %v913 = vpop.permute.xlu0 %912
        %916 = vset.pattern.permute.xlu0 0
        %917 = vperm.xlu0 %916, %v335
        %v918 = vpop.permute.xlu0 %917
        %921 = vset.pattern.permute.xlu0 0
        %922 = vperm.xlu0 %921, %v336
        %v923 = vpop.permute.xlu0 %922
        %926 = vset.pattern.permute.xlu0 0
        %927 = vperm.xlu0 %926, %v337
        %v928 = vpop.permute.xlu0 %927
        %931 = vset.pattern.permute.xlu0 0
        %932 = vperm.xlu0 %931, %v338
        %v933 = vpop.permute.xlu0 %932
        %936 = vset.pattern.permute.xlu0 0
        %937 = vperm.xlu0 %936, %v339
        %v938 = vpop.permute.xlu0 %937
        %941 = vset.pattern.permute.xlu0 0
        %942 = vperm.xlu0 %941, %v340
        %v943 = vpop.permute.xlu0 %942
        %946 = vset.pattern.permute.xlu0 0
        %947 = vperm.xlu0 %946, %v341
        %v948 = vpop.permute.xlu0 %947
        %951 = vset.pattern.permute.xlu0 0
        %952 = vperm.xlu0 %951, %v342
        %v953 = vpop.permute.xlu0 %952
        %956 = vset.pattern.permute.xlu0 0
        %957 = vperm.xlu0 %956, %v343
        %v958 = vpop.permute.xlu0 %957
        %961 = vset.pattern.permute.xlu0 0
        %962 = vperm.xlu0 %961, %v344
        %v963 = vpop.permute.xlu0 %962
        %966 = vset.pattern.permute.xlu0 0
        %967 = vperm.xlu0 %966, %v345
        %v968 = vpop.permute.xlu0 %967
        %971 = vset.pattern.permute.xlu0 0
        %972 = vperm.xlu0 %971, %v346
        %v973 = vpop.permute.xlu0 %972
        %976 = vset.pattern.permute.xlu0 0
        %977 = vperm.xlu0 %976, %v347
        %v978 = vpop.permute.xlu0 %977
        %981 = vset.pattern.permute.xlu0 0
        %982 = vperm.xlu0 %981, %v348
        %v983 = vpop.permute.xlu0 %982
        %986 = vset.pattern.permute.xlu0 0
        %987 = vperm.xlu0 %986, %v349
        %v988 = vpop.permute.xlu0 %987
        %991 = vset.pattern.permute.xlu0 0
        %992 = vperm.xlu0 %991, %v350
        %v993 = vpop.permute.xlu0 %992
        %v999 = vlaneseq
        %v1000 = vshrl.u32 %v999, 7
        %v1001 = vsub.s32 0, %v1000
        %v1002 = vrot.slane %v351, %v1001
        %v1003 = vlaneseq
        %v1004 = vshrl.u32 %v1003, 7
        %v1005 = vsub.s32 2, %v1004
        %v1006 = vrot.slane %v351, %v1005
        %v1007 = vlaneseq
        %v1008 = vshrl.u32 %v1007, 7
        %v1009 = vsub.s32 4, %v1008
        %v1010 = vrot.slane %v351, %v1009
        %v1011 = vlaneseq
        %v1012 = vshrl.u32 %v1011, 7
        %v1013 = vsub.s32 0, %v1012
        %v1014 = vrot.slane %v352, %v1013
        %v1015 = vlaneseq
        %v1016 = vshrl.u32 %v1015, 7
        %v1017 = vsub.s32 2, %v1016
        %v1018 = vrot.slane %v352, %v1017
        %v1019 = vlaneseq
        %v1020 = vshrl.u32 %v1019, 7
        %v1021 = vsub.s32 4, %v1020
        %v1022 = vrot.slane %v352, %v1021
        %v1023 = vlaneseq
        %v1024 = vshrl.u32 %v1023, 7
        %v1025 = vsub.s32 0, %v1024
        %v1026 = vrot.slane %v353, %v1025
        %v1027 = vlaneseq
        %v1028 = vshrl.u32 %v1027, 7
        %v1029 = vsub.s32 2, %v1028
        %v1030 = vrot.slane %v353, %v1029
        %v1031 = vlaneseq
        %v1032 = vshrl.u32 %v1031, 7
        %v1033 = vsub.s32 4, %v1032
        %v1034 = vrot.slane %v353, %v1033
        %v1035 = vlaneseq
        %v1036 = vshrl.u32 %v1035, 7
        %v1037 = vsub.s32 0, %v1036
        %v1038 = vrot.slane %v354, %v1037
        %v1039 = vlaneseq
        %v1040 = vshrl.u32 %v1039, 7
        %v1041 = vsub.s32 2, %v1040
        %v1042 = vrot.slane %v354, %v1041
        %v1043 = vlaneseq
        %v1044 = vshrl.u32 %v1043, 7
        %v1045 = vsub.s32 4, %v1044
        %v1046 = vrot.slane %v354, %v1045
        %v1059 = vlaneseq
        %v1060 = vshrl.u32 %v1059, 7
        %v1061 = vsub.s32 0, %v1060
        %v1062 = vrot.slane %v1002, %v1061
        %v1063 = vlaneseq
        %v1064 = vshrl.u32 %v1063, 7
        %v1065 = vsub.s32 0, %v1064
        %v1066 = vrot.slane %v1006, %v1065
        %v1067 = vlaneseq
        %v1068 = vshrl.u32 %v1067, 7
        %v1069 = vsub.s32 0, %v1068
        %v1070 = vrot.slane %v1010, %v1069
        %v1071 = vlaneseq
        %v1072 = vshrl.u32 %v1071, 7
        %v1073 = vsub.s32 0, %v1072
        %v1074 = vrot.slane %v1014, %v1073
        %v1075 = vlaneseq
        %v1076 = vshrl.u32 %v1075, 7
        %v1077 = vsub.s32 0, %v1076
        %v1078 = vrot.slane %v1018, %v1077
        %v1079 = vlaneseq
        %v1080 = vshrl.u32 %v1079, 7
        %v1081 = vsub.s32 0, %v1080
        %v1082 = vrot.slane %v1022, %v1081
        %v1083 = vlaneseq
        %v1084 = vshrl.u32 %v1083, 7
        %v1085 = vsub.s32 0, %v1084
        %v1086 = vrot.slane %v1026, %v1085
        %v1087 = vlaneseq
        %v1088 = vshrl.u32 %v1087, 7
        %v1089 = vsub.s32 0, %v1088
        %v1090 = vrot.slane %v1030, %v1089
        %v1091 = vlaneseq
        %v1092 = vshrl.u32 %v1091, 7
        %v1093 = vsub.s32 0, %v1092
        %v1094 = vrot.slane %v1034, %v1093
        %v1095 = vlaneseq
        %v1096 = vshrl.u32 %v1095, 7
        %v1097 = vsub.s32 0, %v1096
        %v1098 = vrot.slane %v1038, %v1097
        %v1099 = vlaneseq
        %v1100 = vshrl.u32 %v1099, 7
        %v1101 = vsub.s32 0, %v1100
        %v1102 = vrot.slane %v1042, %v1101
        %v1103 = vlaneseq
        %v1104 = vshrl.u32 %v1103, 7
        %v1105 = vsub.s32 0, %v1104
        %v1106 = vrot.slane %v1046, %v1105
        %v1107 = vsub.f32 %v358, %v1062
        %v1108 = vsub.f32 %v358, %v1066
        %v1109 = vsub.f32 %v358, %v1070
        %v1110 = vsub.f32 %v363, %v1062
        %v1111 = vsub.f32 %v363, %v1066
        %v1112 = vsub.f32 %v363, %v1070
        %v1113 = vsub.f32 %v368, %v1062
        %v1114 = vsub.f32 %v368, %v1066
        %v1115 = vsub.f32 %v368, %v1070
        %v1116 = vsub.f32 %v373, %v1062
        %v1117 = vsub.f32 %v373, %v1066
        %v1118 = vsub.f32 %v373, %v1070
        %v1119 = vsub.f32 %v378, %v1062
        %v1120 = vsub.f32 %v378, %v1066
        %v1121 = vsub.f32 %v378, %v1070
        %v1122 = vsub.f32 %v383, %v1062
        %v1123 = vsub.f32 %v383, %v1066
        %v1124 = vsub.f32 %v383, %v1070
        %v1125 = vsub.f32 %v388, %v1062
        %v1126 = vsub.f32 %v388, %v1066
        %v1127 = vsub.f32 %v388, %v1070
        %v1128 = vsub.f32 %v393, %v1062
        %v1129 = vsub.f32 %v393, %v1066
        %v1130 = vsub.f32 %v393, %v1070
        %v1131 = vsub.f32 %v398, %v1062
        %v1132 = vsub.f32 %v398, %v1066
        %v1133 = vsub.f32 %v398, %v1070
        %v1134 = vsub.f32 %v403, %v1062
        %v1135 = vsub.f32 %v403, %v1066
        %v1136 = vsub.f32 %v403, %v1070
        %v1137 = vsub.f32 %v408, %v1062
        %v1138 = vsub.f32 %v408, %v1066
        %v1139 = vsub.f32 %v408, %v1070
        %v1140 = vsub.f32 %v413, %v1062
        %v1141 = vsub.f32 %v413, %v1066
        %v1142 = vsub.f32 %v413, %v1070
        %v1143 = vsub.f32 %v418, %v1062
        %v1144 = vsub.f32 %v418, %v1066
        %v1145 = vsub.f32 %v418, %v1070
        %v1146 = vsub.f32 %v423, %v1062
        %v1147 = vsub.f32 %v423, %v1066
        %v1148 = vsub.f32 %v423, %v1070
        %v1149 = vsub.f32 %v428, %v1062
        %v1150 = vsub.f32 %v428, %v1066
        %v1151 = vsub.f32 %v428, %v1070
        %v1152 = vsub.f32 %v433, %v1062
        %v1153 = vsub.f32 %v433, %v1066
        %v1154 = vsub.f32 %v433, %v1070
        %v1155 = vsub.f32 %v438, %v1062
        %v1156 = vsub.f32 %v438, %v1066
        %v1157 = vsub.f32 %v438, %v1070
        %v1158 = vsub.f32 %v443, %v1062
        %v1159 = vsub.f32 %v443, %v1066
        %v1160 = vsub.f32 %v443, %v1070
        %v1161 = vsub.f32 %v448, %v1062
        %v1162 = vsub.f32 %v448, %v1066
        %v1163 = vsub.f32 %v448, %v1070
        %v1164 = vsub.f32 %v453, %v1062
        %v1165 = vsub.f32 %v453, %v1066
        %v1166 = vsub.f32 %v453, %v1070
        %v1167 = vsub.f32 %v458, %v1062
        %v1168 = vsub.f32 %v458, %v1066
        %v1169 = vsub.f32 %v458, %v1070
        %v1170 = vsub.f32 %v463, %v1062
        %v1171 = vsub.f32 %v463, %v1066
        %v1172 = vsub.f32 %v463, %v1070
        %v1173 = vsub.f32 %v468, %v1062
        %v1174 = vsub.f32 %v468, %v1066
        %v1175 = vsub.f32 %v468, %v1070
        %v1176 = vsub.f32 %v473, %v1062
        %v1177 = vsub.f32 %v473, %v1066
        %v1178 = vsub.f32 %v473, %v1070
        %v1179 = vsub.f32 %v478, %v1062
        %v1180 = vsub.f32 %v478, %v1066
        %v1181 = vsub.f32 %v478, %v1070
        %v1182 = vsub.f32 %v483, %v1062
        %v1183 = vsub.f32 %v483, %v1066
        %v1184 = vsub.f32 %v483, %v1070
        %v1185 = vsub.f32 %v488, %v1062
        %v1186 = vsub.f32 %v488, %v1066
        %v1187 = vsub.f32 %v488, %v1070
        %v1188 = vsub.f32 %v493, %v1062
        %v1189 = vsub.f32 %v493, %v1066
        %v1190 = vsub.f32 %v493, %v1070
        %v1191 = vsub.f32 %v498, %v1062
        %v1192 = vsub.f32 %v498, %v1066
        %v1193 = vsub.f32 %v498, %v1070
        %v1194 = vsub.f32 %v503, %v1062
        %v1195 = vsub.f32 %v503, %v1066
        %v1196 = vsub.f32 %v503, %v1070
        %v1197 = vsub.f32 %v508, %v1062
        %v1198 = vsub.f32 %v508, %v1066
        %v1199 = vsub.f32 %v508, %v1070
        %v1200 = vsub.f32 %v513, %v1062
        %v1201 = vsub.f32 %v513, %v1066
        %v1202 = vsub.f32 %v513, %v1070
        %v1203 = vsub.f32 %v518, %v1074
        %v1204 = vsub.f32 %v518, %v1078
        %v1205 = vsub.f32 %v518, %v1082
        %v1206 = vsub.f32 %v523, %v1074
        %v1207 = vsub.f32 %v523, %v1078
        %v1208 = vsub.f32 %v523, %v1082
        %v1209 = vsub.f32 %v528, %v1074
        %v1210 = vsub.f32 %v528, %v1078
        %v1211 = vsub.f32 %v528, %v1082
        %v1212 = vsub.f32 %v533, %v1074
        %v1213 = vsub.f32 %v533, %v1078
        %v1214 = vsub.f32 %v533, %v1082
        %v1215 = vsub.f32 %v538, %v1074
        %v1216 = vsub.f32 %v538, %v1078
        %v1217 = vsub.f32 %v538, %v1082
        %v1218 = vsub.f32 %v543, %v1074
        %v1219 = vsub.f32 %v543, %v1078
        %v1220 = vsub.f32 %v543, %v1082
        %v1221 = vsub.f32 %v548, %v1074
        %v1222 = vsub.f32 %v548, %v1078
        %v1223 = vsub.f32 %v548, %v1082
        %v1224 = vsub.f32 %v553, %v1074
        %v1225 = vsub.f32 %v553, %v1078
        %v1226 = vsub.f32 %v553, %v1082
        %v1227 = vsub.f32 %v558, %v1074
        %v1228 = vsub.f32 %v558, %v1078
        %v1229 = vsub.f32 %v558, %v1082
        %v1230 = vsub.f32 %v563, %v1074
        %v1231 = vsub.f32 %v563, %v1078
        %v1232 = vsub.f32 %v563, %v1082
        %v1233 = vsub.f32 %v568, %v1074
        %v1234 = vsub.f32 %v568, %v1078
        %v1235 = vsub.f32 %v568, %v1082
        %v1236 = vsub.f32 %v573, %v1074
        %v1237 = vsub.f32 %v573, %v1078
        %v1238 = vsub.f32 %v573, %v1082
        %v1239 = vsub.f32 %v578, %v1074
        %v1240 = vsub.f32 %v578, %v1078
        %v1241 = vsub.f32 %v578, %v1082
        %v1242 = vsub.f32 %v583, %v1074
        %v1243 = vsub.f32 %v583, %v1078
        %v1244 = vsub.f32 %v583, %v1082
        %v1245 = vsub.f32 %v588, %v1074
        %v1246 = vsub.f32 %v588, %v1078
        %v1247 = vsub.f32 %v588, %v1082
        %v1248 = vsub.f32 %v593, %v1074
        %v1249 = vsub.f32 %v593, %v1078
        %v1250 = vsub.f32 %v593, %v1082
        %v1251 = vsub.f32 %v598, %v1074
        %v1252 = vsub.f32 %v598, %v1078
        %v1253 = vsub.f32 %v598, %v1082
        %v1254 = vsub.f32 %v603, %v1074
        %v1255 = vsub.f32 %v603, %v1078
        %v1256 = vsub.f32 %v603, %v1082
        %v1257 = vsub.f32 %v608, %v1074
        %v1258 = vsub.f32 %v608, %v1078
        %v1259 = vsub.f32 %v608, %v1082
        %v1260 = vsub.f32 %v613, %v1074
        %v1261 = vsub.f32 %v613, %v1078
        %v1262 = vsub.f32 %v613, %v1082
        %v1263 = vsub.f32 %v618, %v1074
        %v1264 = vsub.f32 %v618, %v1078
        %v1265 = vsub.f32 %v618, %v1082
        %v1266 = vsub.f32 %v623, %v1074
        %v1267 = vsub.f32 %v623, %v1078
        %v1268 = vsub.f32 %v623, %v1082
        %v1269 = vsub.f32 %v628, %v1074
        %v1270 = vsub.f32 %v628, %v1078
        %v1271 = vsub.f32 %v628, %v1082
        %v1272 = vsub.f32 %v633, %v1074
        %v1273 = vsub.f32 %v633, %v1078
        %v1274 = vsub.f32 %v633, %v1082
        %v1275 = vsub.f32 %v638, %v1074
        %v1276 = vsub.f32 %v638, %v1078
        %v1277 = vsub.f32 %v638, %v1082
        %v1278 = vsub.f32 %v643, %v1074
        %v1279 = vsub.f32 %v643, %v1078
        %v1280 = vsub.f32 %v643, %v1082
        %v1281 = vsub.f32 %v648, %v1074
        %v1282 = vsub.f32 %v648, %v1078
        %v1283 = vsub.f32 %v648, %v1082
        %v1284 = vsub.f32 %v653, %v1074
        %v1285 = vsub.f32 %v653, %v1078
        %v1286 = vsub.f32 %v653, %v1082
        %v1287 = vsub.f32 %v658, %v1074
        %v1288 = vsub.f32 %v658, %v1078
        %v1289 = vsub.f32 %v658, %v1082
        %v1290 = vsub.f32 %v663, %v1074
        %v1291 = vsub.f32 %v663, %v1078
        %v1292 = vsub.f32 %v663, %v1082
        %v1293 = vsub.f32 %v668, %v1074
        %v1294 = vsub.f32 %v668, %v1078
        %v1295 = vsub.f32 %v668, %v1082
        %v1296 = vsub.f32 %v673, %v1074
        %v1297 = vsub.f32 %v673, %v1078
        %v1298 = vsub.f32 %v673, %v1082
        %v1299 = vsub.f32 %v678, %v1086
        %v1300 = vsub.f32 %v678, %v1090
        %v1301 = vsub.f32 %v678, %v1094
        %v1302 = vsub.f32 %v683, %v1086
        %v1303 = vsub.f32 %v683, %v1090
        %v1304 = vsub.f32 %v683, %v1094
        %v1305 = vsub.f32 %v688, %v1086
        %v1306 = vsub.f32 %v688, %v1090
        %v1307 = vsub.f32 %v688, %v1094
        %v1308 = vsub.f32 %v693, %v1086
        %v1309 = vsub.f32 %v693, %v1090
        %v1310 = vsub.f32 %v693, %v1094
        %v1311 = vsub.f32 %v698, %v1086
        %v1312 = vsub.f32 %v698, %v1090
        %v1313 = vsub.f32 %v698, %v1094
        %v1314 = vsub.f32 %v703, %v1086
        %v1315 = vsub.f32 %v703, %v1090
        %v1316 = vsub.f32 %v703, %v1094
        %v1317 = vsub.f32 %v708, %v1086
        %v1318 = vsub.f32 %v708, %v1090
        %v1319 = vsub.f32 %v708, %v1094
        %v1320 = vsub.f32 %v713, %v1086
        %v1321 = vsub.f32 %v713, %v1090
        %v1322 = vsub.f32 %v713, %v1094
        %v1323 = vsub.f32 %v718, %v1086
        %v1324 = vsub.f32 %v718, %v1090
        %v1325 = vsub.f32 %v718, %v1094
        %v1326 = vsub.f32 %v723, %v1086
        %v1327 = vsub.f32 %v723, %v1090
        %v1328 = vsub.f32 %v723, %v1094
        %v1329 = vsub.f32 %v728, %v1086
        %v1330 = vsub.f32 %v728, %v1090
        %v1331 = vsub.f32 %v728, %v1094
        %v1332 = vsub.f32 %v733, %v1086
        %v1333 = vsub.f32 %v733, %v1090
        %v1334 = vsub.f32 %v733, %v1094
        %v1335 = vsub.f32 %v738, %v1086
        %v1336 = vsub.f32 %v738, %v1090
        %v1337 = vsub.f32 %v738, %v1094
        %v1338 = vsub.f32 %v743, %v1086
        %v1339 = vsub.f32 %v743, %v1090
        %v1340 = vsub.f32 %v743, %v1094
        %v1341 = vsub.f32 %v748, %v1086
        %v1342 = vsub.f32 %v748, %v1090
        %v1343 = vsub.f32 %v748, %v1094
        %v1344 = vsub.f32 %v753, %v1086
        %v1345 = vsub.f32 %v753, %v1090
        %v1346 = vsub.f32 %v753, %v1094
        %v1347 = vsub.f32 %v758, %v1086
        %v1348 = vsub.f32 %v758, %v1090
        %v1349 = vsub.f32 %v758, %v1094
        %v1350 = vsub.f32 %v763, %v1086
        %v1351 = vsub.f32 %v763, %v1090
        %v1352 = vsub.f32 %v763, %v1094
        %v1353 = vsub.f32 %v768, %v1086
        %v1354 = vsub.f32 %v768, %v1090
        %v1355 = vsub.f32 %v768, %v1094
        %v1356 = vsub.f32 %v773, %v1086
        %v1357 = vsub.f32 %v773, %v1090
        %v1358 = vsub.f32 %v773, %v1094
        %v1359 = vsub.f32 %v778, %v1086
        %v1360 = vsub.f32 %v778, %v1090
        %v1361 = vsub.f32 %v778, %v1094
        %v1362 = vsub.f32 %v783, %v1086
        %v1363 = vsub.f32 %v783, %v1090
        %v1364 = vsub.f32 %v783, %v1094
        %v1365 = vsub.f32 %v788, %v1086
        %v1366 = vsub.f32 %v788, %v1090
        %v1367 = vsub.f32 %v788, %v1094
        %v1368 = vsub.f32 %v793, %v1086
        %v1369 = vsub.f32 %v793, %v1090
        %v1370 = vsub.f32 %v793, %v1094
        %v1371 = vsub.f32 %v798, %v1086
        %v1372 = vsub.f32 %v798, %v1090
        %v1373 = vsub.f32 %v798, %v1094
        %v1374 = vsub.f32 %v803, %v1086
        %v1375 = vsub.f32 %v803, %v1090
        %v1376 = vsub.f32 %v803, %v1094
        %v1377 = vsub.f32 %v808, %v1086
        %v1378 = vsub.f32 %v808, %v1090
        %v1379 = vsub.f32 %v808, %v1094
        %v1380 = vsub.f32 %v813, %v1086
        %v1381 = vsub.f32 %v813, %v1090
        %v1382 = vsub.f32 %v813, %v1094
        %v1383 = vsub.f32 %v818, %v1086
        %v1384 = vsub.f32 %v818, %v1090
        %v1385 = vsub.f32 %v818, %v1094
        %v1386 = vsub.f32 %v823, %v1086
        %v1387 = vsub.f32 %v823, %v1090
        %v1388 = vsub.f32 %v823, %v1094
        %v1389 = vsub.f32 %v828, %v1086
        %v1390 = vsub.f32 %v828, %v1090
        %v1391 = vsub.f32 %v828, %v1094
        %v1392 = vsub.f32 %v833, %v1086
        %v1393 = vsub.f32 %v833, %v1090
        %v1394 = vsub.f32 %v833, %v1094
        %v1395 = vsub.f32 %v838, %v1098
        %v1396 = vsub.f32 %v838, %v1102
        %v1397 = vsub.f32 %v838, %v1106
        %v1398 = vsub.f32 %v843, %v1098
        %v1399 = vsub.f32 %v843, %v1102
        %v1400 = vsub.f32 %v843, %v1106
        %v1401 = vsub.f32 %v848, %v1098
        %v1402 = vsub.f32 %v848, %v1102
        %v1403 = vsub.f32 %v848, %v1106
        %v1404 = vsub.f32 %v853, %v1098
        %v1405 = vsub.f32 %v853, %v1102
        %v1406 = vsub.f32 %v853, %v1106
        %v1407 = vsub.f32 %v858, %v1098
        %v1408 = vsub.f32 %v858, %v1102
        %v1409 = vsub.f32 %v858, %v1106
        %v1410 = vsub.f32 %v863, %v1098
        %v1411 = vsub.f32 %v863, %v1102
        %v1412 = vsub.f32 %v863, %v1106
        %v1413 = vsub.f32 %v868, %v1098
        %v1414 = vsub.f32 %v868, %v1102
        %v1415 = vsub.f32 %v868, %v1106
        %v1416 = vsub.f32 %v873, %v1098
        %v1417 = vsub.f32 %v873, %v1102
        %v1418 = vsub.f32 %v873, %v1106
        %v1419 = vsub.f32 %v878, %v1098
        %v1420 = vsub.f32 %v878, %v1102
        %v1421 = vsub.f32 %v878, %v1106
        %v1422 = vsub.f32 %v883, %v1098
        %v1423 = vsub.f32 %v883, %v1102
        %v1424 = vsub.f32 %v883, %v1106
        %v1425 = vsub.f32 %v888, %v1098
        %v1426 = vsub.f32 %v888, %v1102
        %v1427 = vsub.f32 %v888, %v1106
        %v1428 = vsub.f32 %v893, %v1098
        %v1429 = vsub.f32 %v893, %v1102
        %v1430 = vsub.f32 %v893, %v1106
        %v1431 = vsub.f32 %v898, %v1098
        %v1432 = vsub.f32 %v898, %v1102
        %v1433 = vsub.f32 %v898, %v1106
        %v1434 = vsub.f32 %v903, %v1098
        %v1435 = vsub.f32 %v903, %v1102
        %v1436 = vsub.f32 %v903, %v1106
        %v1437 = vsub.f32 %v908, %v1098
        %v1438 = vsub.f32 %v908, %v1102
        %v1439 = vsub.f32 %v908, %v1106
        %v1440 = vsub.f32 %v913, %v1098
        %v1441 = vsub.f32 %v913, %v1102
        %v1442 = vsub.f32 %v913, %v1106
        %v1443 = vsub.f32 %v918, %v1098
        %v1444 = vsub.f32 %v918, %v1102
        %v1445 = vsub.f32 %v918, %v1106
        %v1446 = vsub.f32 %v923, %v1098
        %v1447 = vsub.f32 %v923, %v1102
        %v1448 = vsub.f32 %v923, %v1106
        %v1449 = vsub.f32 %v928, %v1098
        %v1450 = vsub.f32 %v928, %v1102
        %v1451 = vsub.f32 %v928, %v1106
        %v1452 = vsub.f32 %v933, %v1098
        %v1453 = vsub.f32 %v933, %v1102
        %v1454 = vsub.f32 %v933, %v1106
        %v1455 = vsub.f32 %v938, %v1098
        %v1456 = vsub.f32 %v938, %v1102
        %v1457 = vsub.f32 %v938, %v1106
        %v1458 = vsub.f32 %v943, %v1098
        %v1459 = vsub.f32 %v943, %v1102
        %v1460 = vsub.f32 %v943, %v1106
        %v1461 = vsub.f32 %v948, %v1098
        %v1462 = vsub.f32 %v948, %v1102
        %v1463 = vsub.f32 %v948, %v1106
        %v1464 = vsub.f32 %v953, %v1098
        %v1465 = vsub.f32 %v953, %v1102
        %v1466 = vsub.f32 %v953, %v1106
        %v1467 = vsub.f32 %v958, %v1098
        %v1468 = vsub.f32 %v958, %v1102
        %v1469 = vsub.f32 %v958, %v1106
        %v1470 = vsub.f32 %v963, %v1098
        %v1471 = vsub.f32 %v963, %v1102
        %v1472 = vsub.f32 %v963, %v1106
        %v1473 = vsub.f32 %v968, %v1098
        %v1474 = vsub.f32 %v968, %v1102
        %v1475 = vsub.f32 %v968, %v1106
        %v1476 = vsub.f32 %v973, %v1098
        %v1477 = vsub.f32 %v973, %v1102
        %v1478 = vsub.f32 %v973, %v1106
        %v1479 = vsub.f32 %v978, %v1098
        %v1480 = vsub.f32 %v978, %v1102
        %v1481 = vsub.f32 %v978, %v1106
        %v1482 = vsub.f32 %v983, %v1098
        %v1483 = vsub.f32 %v983, %v1102
        %v1484 = vsub.f32 %v983, %v1106
        %v1485 = vsub.f32 %v988, %v1098
        %v1486 = vsub.f32 %v988, %v1102
        %v1487 = vsub.f32 %v988, %v1106
        %v1488 = vsub.f32 %v993, %v1098
        %v1489 = vsub.f32 %v993, %v1102
        %v1490 = vsub.f32 %v993, %v1106
        %1491 = vset.pattern.permute.xlu0 1
        %1492 = vperm.xlu0 %1491, %v223
        %v1493 = vpop.permute.xlu0 %1492
        %1495 = vset.pattern.permute.xlu0 1
        %1496 = vperm.xlu0 %1495, %v224
        %v1497 = vpop.permute.xlu0 %1496
        %1499 = vset.pattern.permute.xlu0 1
        %1500 = vperm.xlu0 %1499, %v225
        %v1501 = vpop.permute.xlu0 %1500
        %1503 = vset.pattern.permute.xlu0 1
        %1504 = vperm.xlu0 %1503, %v226
        %v1505 = vpop.permute.xlu0 %1504
        %1507 = vset.pattern.permute.xlu0 1
        %1508 = vperm.xlu0 %1507, %v227
        %v1509 = vpop.permute.xlu0 %1508
        %1511 = vset.pattern.permute.xlu0 1
        %1512 = vperm.xlu0 %1511, %v228
        %v1513 = vpop.permute.xlu0 %1512
        %1515 = vset.pattern.permute.xlu0 1
        %1516 = vperm.xlu0 %1515, %v229
        %v1517 = vpop.permute.xlu0 %1516
        %1519 = vset.pattern.permute.xlu0 1
        %1520 = vperm.xlu0 %1519, %v230
        %v1521 = vpop.permute.xlu0 %1520
        %1523 = vset.pattern.permute.xlu0 1
        %1524 = vperm.xlu0 %1523, %v231
        %v1525 = vpop.permute.xlu0 %1524
        %1527 = vset.pattern.permute.xlu0 1
        %1528 = vperm.xlu0 %1527, %v232
        %v1529 = vpop.permute.xlu0 %1528
        %1531 = vset.pattern.permute.xlu0 1
        %1532 = vperm.xlu0 %1531, %v233
        %v1533 = vpop.permute.xlu0 %1532
        %1535 = vset.pattern.permute.xlu0 1
        %1536 = vperm.xlu0 %1535, %v234
        %v1537 = vpop.permute.xlu0 %1536
        %1539 = vset.pattern.permute.xlu0 1
        %1540 = vperm.xlu0 %1539, %v235
        %v1541 = vpop.permute.xlu0 %1540
        %1543 = vset.pattern.permute.xlu0 1
        %1544 = vperm.xlu0 %1543, %v236
        %v1545 = vpop.permute.xlu0 %1544
        %1547 = vset.pattern.permute.xlu0 1
        %1548 = vperm.xlu0 %1547, %v237
        %v1549 = vpop.permute.xlu0 %1548
        %1551 = vset.pattern.permute.xlu0 1
        %1552 = vperm.xlu0 %1551, %v238
        %v1553 = vpop.permute.xlu0 %1552
        %1555 = vset.pattern.permute.xlu0 1
        %1556 = vperm.xlu0 %1555, %v239
        %v1557 = vpop.permute.xlu0 %1556
        %1559 = vset.pattern.permute.xlu0 1
        %1560 = vperm.xlu0 %1559, %v240
        %v1561 = vpop.permute.xlu0 %1560
        %1563 = vset.pattern.permute.xlu0 1
        %1564 = vperm.xlu0 %1563, %v241
        %v1565 = vpop.permute.xlu0 %1564
        %1567 = vset.pattern.permute.xlu0 1
        %1568 = vperm.xlu0 %1567, %v242
        %v1569 = vpop.permute.xlu0 %1568
        %1571 = vset.pattern.permute.xlu0 1
        %1572 = vperm.xlu0 %1571, %v243
        %v1573 = vpop.permute.xlu0 %1572
        %1575 = vset.pattern.permute.xlu0 1
        %1576 = vperm.xlu0 %1575, %v244
        %v1577 = vpop.permute.xlu0 %1576
        %1579 = vset.pattern.permute.xlu0 1
        %1580 = vperm.xlu0 %1579, %v245
        %v1581 = vpop.permute.xlu0 %1580
        %1583 = vset.pattern.permute.xlu0 1
        %1584 = vperm.xlu0 %1583, %v246
        %v1585 = vpop.permute.xlu0 %1584
        %1587 = vset.pattern.permute.xlu0 1
        %1588 = vperm.xlu0 %1587, %v247
        %v1589 = vpop.permute.xlu0 %1588
        %1591 = vset.pattern.permute.xlu0 1
        %1592 = vperm.xlu0 %1591, %v248
        %v1593 = vpop.permute.xlu0 %1592
        %1595 = vset.pattern.permute.xlu0 1
        %1596 = vperm.xlu0 %1595, %v249
        %v1597 = vpop.permute.xlu0 %1596
        %1599 = vset.pattern.permute.xlu0 1
        %1600 = vperm.xlu0 %1599, %v250
        %v1601 = vpop.permute.xlu0 %1600
        %1603 = vset.pattern.permute.xlu0 1
        %1604 = vperm.xlu0 %1603, %v251
        %v1605 = vpop.permute.xlu0 %1604
        %1607 = vset.pattern.permute.xlu0 1
        %1608 = vperm.xlu0 %1607, %v252
        %v1609 = vpop.permute.xlu0 %1608
        %1611 = vset.pattern.permute.xlu0 1
        %1612 = vperm.xlu0 %1611, %v253
        %v1613 = vpop.permute.xlu0 %1612
        %1615 = vset.pattern.permute.xlu0 1
        %1616 = vperm.xlu0 %1615, %v254
        %v1617 = vpop.permute.xlu0 %1616
        %1619 = vset.pattern.permute.xlu0 1
        %1620 = vperm.xlu0 %1619, %v255
        %v1621 = vpop.permute.xlu0 %1620
        %1623 = vset.pattern.permute.xlu0 1
        %1624 = vperm.xlu0 %1623, %v256
        %v1625 = vpop.permute.xlu0 %1624
        %1627 = vset.pattern.permute.xlu0 1
        %1628 = vperm.xlu0 %1627, %v257
        %v1629 = vpop.permute.xlu0 %1628
        %1631 = vset.pattern.permute.xlu0 1
        %1632 = vperm.xlu0 %1631, %v258
        %v1633 = vpop.permute.xlu0 %1632
        %1635 = vset.pattern.permute.xlu0 1
        %1636 = vperm.xlu0 %1635, %v259
        %v1637 = vpop.permute.xlu0 %1636
        %1639 = vset.pattern.permute.xlu0 1
        %1640 = vperm.xlu0 %1639, %v260
        %v1641 = vpop.permute.xlu0 %1640
        %1643 = vset.pattern.permute.xlu0 1
        %1644 = vperm.xlu0 %1643, %v261
        %v1645 = vpop.permute.xlu0 %1644
        %1647 = vset.pattern.permute.xlu0 1
        %1648 = vperm.xlu0 %1647, %v262
        %v1649 = vpop.permute.xlu0 %1648
        %1651 = vset.pattern.permute.xlu0 1
        %1652 = vperm.xlu0 %1651, %v263
        %v1653 = vpop.permute.xlu0 %1652
        %1655 = vset.pattern.permute.xlu0 1
        %1656 = vperm.xlu0 %1655, %v264
        %v1657 = vpop.permute.xlu0 %1656
        %1659 = vset.pattern.permute.xlu0 1
        %1660 = vperm.xlu0 %1659, %v265
        %v1661 = vpop.permute.xlu0 %1660
        %1663 = vset.pattern.permute.xlu0 1
        %1664 = vperm.xlu0 %1663, %v266
        %v1665 = vpop.permute.xlu0 %1664
        %1667 = vset.pattern.permute.xlu0 1
        %1668 = vperm.xlu0 %1667, %v267
        %v1669 = vpop.permute.xlu0 %1668
        %1671 = vset.pattern.permute.xlu0 1
        %1672 = vperm.xlu0 %1671, %v268
        %v1673 = vpop.permute.xlu0 %1672
        %1675 = vset.pattern.permute.xlu0 1
        %1676 = vperm.xlu0 %1675, %v269
        %v1677 = vpop.permute.xlu0 %1676
        %1679 = vset.pattern.permute.xlu0 1
        %1680 = vperm.xlu0 %1679, %v270
        %v1681 = vpop.permute.xlu0 %1680
        %1683 = vset.pattern.permute.xlu0 1
        %1684 = vperm.xlu0 %1683, %v271
        %v1685 = vpop.permute.xlu0 %1684
        %1687 = vset.pattern.permute.xlu0 1
        %1688 = vperm.xlu0 %1687, %v272
        %v1689 = vpop.permute.xlu0 %1688
        %1691 = vset.pattern.permute.xlu0 1
        %1692 = vperm.xlu0 %1691, %v273
        %v1693 = vpop.permute.xlu0 %1692
        %1695 = vset.pattern.permute.xlu0 1
        %1696 = vperm.xlu0 %1695, %v274
        %v1697 = vpop.permute.xlu0 %1696
        %1699 = vset.pattern.permute.xlu0 1
        %1700 = vperm.xlu0 %1699, %v275
        %v1701 = vpop.permute.xlu0 %1700
        %1703 = vset.pattern.permute.xlu0 1
        %1704 = vperm.xlu0 %1703, %v276
        %v1705 = vpop.permute.xlu0 %1704
        %1707 = vset.pattern.permute.xlu0 1
        %1708 = vperm.xlu0 %1707, %v277
        %v1709 = vpop.permute.xlu0 %1708
        %1711 = vset.pattern.permute.xlu0 1
        %1712 = vperm.xlu0 %1711, %v278
        %v1713 = vpop.permute.xlu0 %1712
        %1715 = vset.pattern.permute.xlu0 1
        %1716 = vperm.xlu0 %1715, %v279
        %v1717 = vpop.permute.xlu0 %1716
        %1719 = vset.pattern.permute.xlu0 1
        %1720 = vperm.xlu0 %1719, %v280
        %v1721 = vpop.permute.xlu0 %1720
        %1723 = vset.pattern.permute.xlu0 1
        %1724 = vperm.xlu0 %1723, %v281
        %v1725 = vpop.permute.xlu0 %1724
        %1727 = vset.pattern.permute.xlu0 1
        %1728 = vperm.xlu0 %1727, %v282
        %v1729 = vpop.permute.xlu0 %1728
        %1731 = vset.pattern.permute.xlu0 1
        %1732 = vperm.xlu0 %1731, %v283
        %v1733 = vpop.permute.xlu0 %1732
        %1735 = vset.pattern.permute.xlu0 1
        %1736 = vperm.xlu0 %1735, %v284
        %v1737 = vpop.permute.xlu0 %1736
        %1739 = vset.pattern.permute.xlu0 1
        %1740 = vperm.xlu0 %1739, %v285
        %v1741 = vpop.permute.xlu0 %1740
        %1743 = vset.pattern.permute.xlu0 1
        %1744 = vperm.xlu0 %1743, %v286
        %v1745 = vpop.permute.xlu0 %1744
        %1747 = vset.pattern.permute.xlu0 1
        %1748 = vperm.xlu0 %1747, %v287
        %v1749 = vpop.permute.xlu0 %1748
        %1751 = vset.pattern.permute.xlu0 1
        %1752 = vperm.xlu0 %1751, %v288
        %v1753 = vpop.permute.xlu0 %1752
        %1755 = vset.pattern.permute.xlu0 1
        %1756 = vperm.xlu0 %1755, %v289
        %v1757 = vpop.permute.xlu0 %1756
        %1759 = vset.pattern.permute.xlu0 1
        %1760 = vperm.xlu0 %1759, %v290
        %v1761 = vpop.permute.xlu0 %1760
        %1763 = vset.pattern.permute.xlu0 1
        %1764 = vperm.xlu0 %1763, %v291
        %v1765 = vpop.permute.xlu0 %1764
        %1767 = vset.pattern.permute.xlu0 1
        %1768 = vperm.xlu0 %1767, %v292
        %v1769 = vpop.permute.xlu0 %1768
        %1771 = vset.pattern.permute.xlu0 1
        %1772 = vperm.xlu0 %1771, %v293
        %v1773 = vpop.permute.xlu0 %1772
        %1775 = vset.pattern.permute.xlu0 1
        %1776 = vperm.xlu0 %1775, %v294
        %v1777 = vpop.permute.xlu0 %1776
        %1779 = vset.pattern.permute.xlu0 1
        %1780 = vperm.xlu0 %1779, %v295
        %v1781 = vpop.permute.xlu0 %1780
        %1783 = vset.pattern.permute.xlu0 1
        %1784 = vperm.xlu0 %1783, %v296
        %v1785 = vpop.permute.xlu0 %1784
        %1787 = vset.pattern.permute.xlu0 1
        %1788 = vperm.xlu0 %1787, %v297
        %v1789 = vpop.permute.xlu0 %1788
        %1791 = vset.pattern.permute.xlu0 1
        %1792 = vperm.xlu0 %1791, %v298
        %v1793 = vpop.permute.xlu0 %1792
        %1795 = vset.pattern.permute.xlu0 1
        %1796 = vperm.xlu0 %1795, %v299
        %v1797 = vpop.permute.xlu0 %1796
        %1799 = vset.pattern.permute.xlu0 1
        %1800 = vperm.xlu0 %1799, %v300
        %v1801 = vpop.permute.xlu0 %1800
        %1803 = vset.pattern.permute.xlu0 1
        %1804 = vperm.xlu0 %1803, %v301
        %v1805 = vpop.permute.xlu0 %1804
        %1807 = vset.pattern.permute.xlu0 1
        %1808 = vperm.xlu0 %1807, %v302
        %v1809 = vpop.permute.xlu0 %1808
        %1811 = vset.pattern.permute.xlu0 1
        %1812 = vperm.xlu0 %1811, %v303
        %v1813 = vpop.permute.xlu0 %1812
        %1815 = vset.pattern.permute.xlu0 1
        %1816 = vperm.xlu0 %1815, %v304
        %v1817 = vpop.permute.xlu0 %1816
        %1819 = vset.pattern.permute.xlu0 1
        %1820 = vperm.xlu0 %1819, %v305
        %v1821 = vpop.permute.xlu0 %1820
        %1823 = vset.pattern.permute.xlu0 1
        %1824 = vperm.xlu0 %1823, %v306
        %v1825 = vpop.permute.xlu0 %1824
        %1827 = vset.pattern.permute.xlu0 1
        %1828 = vperm.xlu0 %1827, %v307
        %v1829 = vpop.permute.xlu0 %1828
        %1831 = vset.pattern.permute.xlu0 1
        %1832 = vperm.xlu0 %1831, %v308
        %v1833 = vpop.permute.xlu0 %1832
        %1835 = vset.pattern.permute.xlu0 1
        %1836 = vperm.xlu0 %1835, %v309
        %v1837 = vpop.permute.xlu0 %1836
        %1839 = vset.pattern.permute.xlu0 1
        %1840 = vperm.xlu0 %1839, %v310
        %v1841 = vpop.permute.xlu0 %1840
        %1843 = vset.pattern.permute.xlu0 1
        %1844 = vperm.xlu0 %1843, %v311
        %v1845 = vpop.permute.xlu0 %1844
        %1847 = vset.pattern.permute.xlu0 1
        %1848 = vperm.xlu0 %1847, %v312
        %v1849 = vpop.permute.xlu0 %1848
        %1851 = vset.pattern.permute.xlu0 1
        %1852 = vperm.xlu0 %1851, %v313
        %v1853 = vpop.permute.xlu0 %1852
        %1855 = vset.pattern.permute.xlu0 1
        %1856 = vperm.xlu0 %1855, %v314
        %v1857 = vpop.permute.xlu0 %1856
        %1859 = vset.pattern.permute.xlu0 1
        %1860 = vperm.xlu0 %1859, %v315
        %v1861 = vpop.permute.xlu0 %1860
        %1863 = vset.pattern.permute.xlu0 1
        %1864 = vperm.xlu0 %1863, %v316
        %v1865 = vpop.permute.xlu0 %1864
        %1867 = vset.pattern.permute.xlu0 1
        %1868 = vperm.xlu0 %1867, %v317
        %v1869 = vpop.permute.xlu0 %1868
        %1871 = vset.pattern.permute.xlu0 1
        %1872 = vperm.xlu0 %1871, %v318
        %v1873 = vpop.permute.xlu0 %1872
        %1875 = vset.pattern.permute.xlu0 1
        %1876 = vperm.xlu0 %1875, %v319
        %v1877 = vpop.permute.xlu0 %1876
        %1879 = vset.pattern.permute.xlu0 1
        %1880 = vperm.xlu0 %1879, %v320
        %v1881 = vpop.permute.xlu0 %1880
        %1883 = vset.pattern.permute.xlu0 1
        %1884 = vperm.xlu0 %1883, %v321
        %v1885 = vpop.permute.xlu0 %1884
        %1887 = vset.pattern.permute.xlu0 1
        %1888 = vperm.xlu0 %1887, %v322
        %v1889 = vpop.permute.xlu0 %1888
        %1891 = vset.pattern.permute.xlu0 1
        %1892 = vperm.xlu0 %1891, %v323
        %v1893 = vpop.permute.xlu0 %1892
        %1895 = vset.pattern.permute.xlu0 1
        %1896 = vperm.xlu0 %1895, %v324
        %v1897 = vpop.permute.xlu0 %1896
        %1899 = vset.pattern.permute.xlu0 1
        %1900 = vperm.xlu0 %1899, %v325
        %v1901 = vpop.permute.xlu0 %1900
        %1903 = vset.pattern.permute.xlu0 1
        %1904 = vperm.xlu0 %1903, %v326
        %v1905 = vpop.permute.xlu0 %1904
        %1907 = vset.pattern.permute.xlu0 1
        %1908 = vperm.xlu0 %1907, %v327
        %v1909 = vpop.permute.xlu0 %1908
        %1911 = vset.pattern.permute.xlu0 1
        %1912 = vperm.xlu0 %1911, %v328
        %v1913 = vpop.permute.xlu0 %1912
        %1915 = vset.pattern.permute.xlu0 1
        %1916 = vperm.xlu0 %1915, %v329
        %v1917 = vpop.permute.xlu0 %1916
        %1919 = vset.pattern.permute.xlu0 1
        %1920 = vperm.xlu0 %1919, %v330
        %v1921 = vpop.permute.xlu0 %1920
        %1923 = vset.pattern.permute.xlu0 1
        %1924 = vperm.xlu0 %1923, %v331
        %v1925 = vpop.permute.xlu0 %1924
        %1927 = vset.pattern.permute.xlu0 1
        %1928 = vperm.xlu0 %1927, %v332
        %v1929 = vpop.permute.xlu0 %1928
        %1931 = vset.pattern.permute.xlu0 1
        %1932 = vperm.xlu0 %1931, %v333
        %v1933 = vpop.permute.xlu0 %1932
        %1935 = vset.pattern.permute.xlu0 1
        %1936 = vperm.xlu0 %1935, %v334
        %v1937 = vpop.permute.xlu0 %1936
        %1939 = vset.pattern.permute.xlu0 1
        %1940 = vperm.xlu0 %1939, %v335
        %v1941 = vpop.permute.xlu0 %1940
        %1943 = vset.pattern.permute.xlu0 1
        %1944 = vperm.xlu0 %1943, %v336
        %v1945 = vpop.permute.xlu0 %1944
        %1947 = vset.pattern.permute.xlu0 1
        %1948 = vperm.xlu0 %1947, %v337
        %v1949 = vpop.permute.xlu0 %1948
        %1951 = vset.pattern.permute.xlu0 1
        %1952 = vperm.xlu0 %1951, %v338
        %v1953 = vpop.permute.xlu0 %1952
        %1955 = vset.pattern.permute.xlu0 1
        %1956 = vperm.xlu0 %1955, %v339
        %v1957 = vpop.permute.xlu0 %1956
        %1959 = vset.pattern.permute.xlu0 1
        %1960 = vperm.xlu0 %1959, %v340
        %v1961 = vpop.permute.xlu0 %1960
        %1963 = vset.pattern.permute.xlu0 1
        %1964 = vperm.xlu0 %1963, %v341
        %v1965 = vpop.permute.xlu0 %1964
        %1967 = vset.pattern.permute.xlu0 1
        %1968 = vperm.xlu0 %1967, %v342
        %v1969 = vpop.permute.xlu0 %1968
        %1971 = vset.pattern.permute.xlu0 1
        %1972 = vperm.xlu0 %1971, %v343
        %v1973 = vpop.permute.xlu0 %1972
        %1975 = vset.pattern.permute.xlu0 1
        %1976 = vperm.xlu0 %1975, %v344
        %v1977 = vpop.permute.xlu0 %1976
        %1979 = vset.pattern.permute.xlu0 1
        %1980 = vperm.xlu0 %1979, %v345
        %v1981 = vpop.permute.xlu0 %1980
        %1983 = vset.pattern.permute.xlu0 1
        %1984 = vperm.xlu0 %1983, %v346
        %v1985 = vpop.permute.xlu0 %1984
        %1987 = vset.pattern.permute.xlu0 1
        %1988 = vperm.xlu0 %1987, %v347
        %v1989 = vpop.permute.xlu0 %1988
        %1991 = vset.pattern.permute.xlu0 1
        %1992 = vperm.xlu0 %1991, %v348
        %v1993 = vpop.permute.xlu0 %1992
        %1995 = vset.pattern.permute.xlu0 1
        %1996 = vperm.xlu0 %1995, %v349
        %v1997 = vpop.permute.xlu0 %1996
        %1999 = vset.pattern.permute.xlu0 1
        %2000 = vperm.xlu0 %1999, %v350
        %v2001 = vpop.permute.xlu0 %2000
        %v2003 = vlaneseq
        %v2004 = vshrl.u32 %v2003, 7
        %v2005 = vsub.s32 1, %v2004
        %v2006 = vrot.slane %v351, %v2005
        %v2007 = vlaneseq
        %v2008 = vshrl.u32 %v2007, 7
        %v2009 = vsub.s32 3, %v2008
        %v2010 = vrot.slane %v351, %v2009
        %v2011 = vlaneseq
        %v2012 = vshrl.u32 %v2011, 7
        %v2013 = vsub.s32 5, %v2012
        %v2014 = vrot.slane %v351, %v2013
        %v2015 = vlaneseq
        %v2016 = vshrl.u32 %v2015, 7
        %v2017 = vsub.s32 1, %v2016
        %v2018 = vrot.slane %v352, %v2017
        %v2019 = vlaneseq
        %v2020 = vshrl.u32 %v2019, 7
        %v2021 = vsub.s32 3, %v2020
        %v2022 = vrot.slane %v352, %v2021
        %v2023 = vlaneseq
        %v2024 = vshrl.u32 %v2023, 7
        %v2025 = vsub.s32 5, %v2024
        %v2026 = vrot.slane %v352, %v2025
        %v2027 = vlaneseq
        %v2028 = vshrl.u32 %v2027, 7
        %v2029 = vsub.s32 1, %v2028
        %v2030 = vrot.slane %v353, %v2029
        %v2031 = vlaneseq
        %v2032 = vshrl.u32 %v2031, 7
        %v2033 = vsub.s32 3, %v2032
        %v2034 = vrot.slane %v353, %v2033
        %v2035 = vlaneseq
        %v2036 = vshrl.u32 %v2035, 7
        %v2037 = vsub.s32 5, %v2036
        %v2038 = vrot.slane %v353, %v2037
        %v2039 = vlaneseq
        %v2040 = vshrl.u32 %v2039, 7
        %v2041 = vsub.s32 1, %v2040
        %v2042 = vrot.slane %v354, %v2041
        %v2043 = vlaneseq
        %v2044 = vshrl.u32 %v2043, 7
        %v2045 = vsub.s32 3, %v2044
        %v2046 = vrot.slane %v354, %v2045
        %v2047 = vlaneseq
        %v2048 = vshrl.u32 %v2047, 7
        %v2049 = vsub.s32 5, %v2048
        %v2050 = vrot.slane %v354, %v2049
        %v2063 = vlaneseq
        %v2064 = vshrl.u32 %v2063, 7
        %v2065 = vsub.s32 1, %v2064
        %v2066 = vrot.slane %v2006, %v2065
        %v2067 = vlaneseq
        %v2068 = vshrl.u32 %v2067, 7
        %v2069 = vsub.s32 1, %v2068
        %v2070 = vrot.slane %v2010, %v2069
        %v2071 = vlaneseq
        %v2072 = vshrl.u32 %v2071, 7
        %v2073 = vsub.s32 1, %v2072
        %v2074 = vrot.slane %v2014, %v2073
        %v2075 = vlaneseq
        %v2076 = vshrl.u32 %v2075, 7
        %v2077 = vsub.s32 1, %v2076
        %v2078 = vrot.slane %v2018, %v2077
        %v2079 = vlaneseq
        %v2080 = vshrl.u32 %v2079, 7
        %v2081 = vsub.s32 1, %v2080
        %v2082 = vrot.slane %v2022, %v2081
        %v2083 = vlaneseq
        %v2084 = vshrl.u32 %v2083, 7
        %v2085 = vsub.s32 1, %v2084
        %v2086 = vrot.slane %v2026, %v2085
        %v2087 = vlaneseq
        %v2088 = vshrl.u32 %v2087, 7
        %v2089 = vsub.s32 1, %v2088
        %v2090 = vrot.slane %v2030, %v2089
        %v2091 = vlaneseq
        %v2092 = vshrl.u32 %v2091, 7
        %v2093 = vsub.s32 1, %v2092
        %v2094 = vrot.slane %v2034, %v2093
        %v2095 = vlaneseq
        %v2096 = vshrl.u32 %v2095, 7
        %v2097 = vsub.s32 1, %v2096
        %v2098 = vrot.slane %v2038, %v2097
        %v2099 = vlaneseq
        %v2100 = vshrl.u32 %v2099, 7
        %v2101 = vsub.s32 1, %v2100
        %v2102 = vrot.slane %v2042, %v2101
        %v2103 = vlaneseq
        %v2104 = vshrl.u32 %v2103, 7
        %v2105 = vsub.s32 1, %v2104
        %v2106 = vrot.slane %v2046, %v2105
        %v2107 = vlaneseq
        %v2108 = vshrl.u32 %v2107, 7
        %v2109 = vsub.s32 1, %v2108
        %v2110 = vrot.slane %v2050, %v2109
        %v2111 = vsub.f32 %v1493, %v2066
        %v2112 = vsub.f32 %v1493, %v2070
        %v2113 = vsub.f32 %v1493, %v2074
        %v2114 = vsub.f32 %v1497, %v2066
        %v2115 = vsub.f32 %v1497, %v2070
        %v2116 = vsub.f32 %v1497, %v2074
        %v2117 = vsub.f32 %v1501, %v2066
        %v2118 = vsub.f32 %v1501, %v2070
        %v2119 = vsub.f32 %v1501, %v2074
        %v2120 = vsub.f32 %v1505, %v2066
        %v2121 = vsub.f32 %v1505, %v2070
        %v2122 = vsub.f32 %v1505, %v2074
        %v2123 = vsub.f32 %v1509, %v2066
        %v2124 = vsub.f32 %v1509, %v2070
        %v2125 = vsub.f32 %v1509, %v2074
        %v2126 = vsub.f32 %v1513, %v2066
        %v2127 = vsub.f32 %v1513, %v2070
        %v2128 = vsub.f32 %v1513, %v2074
        %v2129 = vsub.f32 %v1517, %v2066
        %v2130 = vsub.f32 %v1517, %v2070
        %v2131 = vsub.f32 %v1517, %v2074
        %v2132 = vsub.f32 %v1521, %v2066
        %v2133 = vsub.f32 %v1521, %v2070
        %v2134 = vsub.f32 %v1521, %v2074
        %v2135 = vsub.f32 %v1525, %v2066
        %v2136 = vsub.f32 %v1525, %v2070
        %v2137 = vsub.f32 %v1525, %v2074
        %v2138 = vsub.f32 %v1529, %v2066
        %v2139 = vsub.f32 %v1529, %v2070
        %v2140 = vsub.f32 %v1529, %v2074
        %v2141 = vsub.f32 %v1533, %v2066
        %v2142 = vsub.f32 %v1533, %v2070
        %v2143 = vsub.f32 %v1533, %v2074
        %v2144 = vsub.f32 %v1537, %v2066
        %v2145 = vsub.f32 %v1537, %v2070
        %v2146 = vsub.f32 %v1537, %v2074
        %v2147 = vsub.f32 %v1541, %v2066
        %v2148 = vsub.f32 %v1541, %v2070
        %v2149 = vsub.f32 %v1541, %v2074
        %v2150 = vsub.f32 %v1545, %v2066
        %v2151 = vsub.f32 %v1545, %v2070
        %v2152 = vsub.f32 %v1545, %v2074
        %v2153 = vsub.f32 %v1549, %v2066
        %v2154 = vsub.f32 %v1549, %v2070
        %v2155 = vsub.f32 %v1549, %v2074
        %v2156 = vsub.f32 %v1553, %v2066
        %v2157 = vsub.f32 %v1553, %v2070
        %v2158 = vsub.f32 %v1553, %v2074
        %v2159 = vsub.f32 %v1557, %v2066
        %v2160 = vsub.f32 %v1557, %v2070
        %v2161 = vsub.f32 %v1557, %v2074
        %v2162 = vsub.f32 %v1561, %v2066
        %v2163 = vsub.f32 %v1561, %v2070
        %v2164 = vsub.f32 %v1561, %v2074
        %v2165 = vsub.f32 %v1565, %v2066
        %v2166 = vsub.f32 %v1565, %v2070
        %v2167 = vsub.f32 %v1565, %v2074
        %v2168 = vsub.f32 %v1569, %v2066
        %v2169 = vsub.f32 %v1569, %v2070
        %v2170 = vsub.f32 %v1569, %v2074
        %v2171 = vsub.f32 %v1573, %v2066
        %v2172 = vsub.f32 %v1573, %v2070
        %v2173 = vsub.f32 %v1573, %v2074
        %v2174 = vsub.f32 %v1577, %v2066
        %v2175 = vsub.f32 %v1577, %v2070
        %v2176 = vsub.f32 %v1577, %v2074
        %v2177 = vsub.f32 %v1581, %v2066
        %v2178 = vsub.f32 %v1581, %v2070
        %v2179 = vsub.f32 %v1581, %v2074
        %v2180 = vsub.f32 %v1585, %v2066
        %v2181 = vsub.f32 %v1585, %v2070
        %v2182 = vsub.f32 %v1585, %v2074
        %v2183 = vsub.f32 %v1589, %v2066
        %v2184 = vsub.f32 %v1589, %v2070
        %v2185 = vsub.f32 %v1589, %v2074
        %v2186 = vsub.f32 %v1593, %v2066
        %v2187 = vsub.f32 %v1593, %v2070
        %v2188 = vsub.f32 %v1593, %v2074
        %v2189 = vsub.f32 %v1597, %v2066
        %v2190 = vsub.f32 %v1597, %v2070
        %v2191 = vsub.f32 %v1597, %v2074
        %v2192 = vsub.f32 %v1601, %v2066
        %v2193 = vsub.f32 %v1601, %v2070
        %v2194 = vsub.f32 %v1601, %v2074
        %v2195 = vsub.f32 %v1605, %v2066
        %v2196 = vsub.f32 %v1605, %v2070
        %v2197 = vsub.f32 %v1605, %v2074
        %v2198 = vsub.f32 %v1609, %v2066
        %v2199 = vsub.f32 %v1609, %v2070
        %v2200 = vsub.f32 %v1609, %v2074
        %v2201 = vsub.f32 %v1613, %v2066
        %v2202 = vsub.f32 %v1613, %v2070
        %v2203 = vsub.f32 %v1613, %v2074
        %v2204 = vsub.f32 %v1617, %v2066
        %v2205 = vsub.f32 %v1617, %v2070
        %v2206 = vsub.f32 %v1617, %v2074
        %v2207 = vsub.f32 %v1621, %v2078
        %v2208 = vsub.f32 %v1621, %v2082
        %v2209 = vsub.f32 %v1621, %v2086
        %v2210 = vsub.f32 %v1625, %v2078
        %v2211 = vsub.f32 %v1625, %v2082
        %v2212 = vsub.f32 %v1625, %v2086
        %v2213 = vsub.f32 %v1629, %v2078
        %v2214 = vsub.f32 %v1629, %v2082
        %v2215 = vsub.f32 %v1629, %v2086
        %v2216 = vsub.f32 %v1633, %v2078
        %v2217 = vsub.f32 %v1633, %v2082
        %v2218 = vsub.f32 %v1633, %v2086
        %v2219 = vsub.f32 %v1637, %v2078
        %v2220 = vsub.f32 %v1637, %v2082
        %v2221 = vsub.f32 %v1637, %v2086
        %v2222 = vsub.f32 %v1641, %v2078
        %v2223 = vsub.f32 %v1641, %v2082
        %v2224 = vsub.f32 %v1641, %v2086
        %v2225 = vsub.f32 %v1645, %v2078
        %v2226 = vsub.f32 %v1645, %v2082
        %v2227 = vsub.f32 %v1645, %v2086
        %v2228 = vsub.f32 %v1649, %v2078
        %v2229 = vsub.f32 %v1649, %v2082
        %v2230 = vsub.f32 %v1649, %v2086
        %v2231 = vsub.f32 %v1653, %v2078
        %v2232 = vsub.f32 %v1653, %v2082
        %v2233 = vsub.f32 %v1653, %v2086
        %v2234 = vsub.f32 %v1657, %v2078
        %v2235 = vsub.f32 %v1657, %v2082
        %v2236 = vsub.f32 %v1657, %v2086
        %v2237 = vsub.f32 %v1661, %v2078
        %v2238 = vsub.f32 %v1661, %v2082
        %v2239 = vsub.f32 %v1661, %v2086
        %v2240 = vsub.f32 %v1665, %v2078
        %v2241 = vsub.f32 %v1665, %v2082
        %v2242 = vsub.f32 %v1665, %v2086
        %v2243 = vsub.f32 %v1669, %v2078
        %v2244 = vsub.f32 %v1669, %v2082
        %v2245 = vsub.f32 %v1669, %v2086
        %v2246 = vsub.f32 %v1673, %v2078
        %v2247 = vsub.f32 %v1673, %v2082
        %v2248 = vsub.f32 %v1673, %v2086
        %v2249 = vsub.f32 %v1677, %v2078
        %v2250 = vsub.f32 %v1677, %v2082
        %v2251 = vsub.f32 %v1677, %v2086
        %v2252 = vsub.f32 %v1681, %v2078
        %v2253 = vsub.f32 %v1681, %v2082
        %v2254 = vsub.f32 %v1681, %v2086
        %v2255 = vsub.f32 %v1685, %v2078
        %v2256 = vsub.f32 %v1685, %v2082
        %v2257 = vsub.f32 %v1685, %v2086
        %v2258 = vsub.f32 %v1689, %v2078
        %v2259 = vsub.f32 %v1689, %v2082
        %v2260 = vsub.f32 %v1689, %v2086
        %v2261 = vsub.f32 %v1693, %v2078
        %v2262 = vsub.f32 %v1693, %v2082
        %v2263 = vsub.f32 %v1693, %v2086
        %v2264 = vsub.f32 %v1697, %v2078
        %v2265 = vsub.f32 %v1697, %v2082
        %v2266 = vsub.f32 %v1697, %v2086
        %v2267 = vsub.f32 %v1701, %v2078
        %v2268 = vsub.f32 %v1701, %v2082
        %v2269 = vsub.f32 %v1701, %v2086
        %v2270 = vsub.f32 %v1705, %v2078
        %v2271 = vsub.f32 %v1705, %v2082
        %v2272 = vsub.f32 %v1705, %v2086
        %v2273 = vsub.f32 %v1709, %v2078
        %v2274 = vsub.f32 %v1709, %v2082
        %v2275 = vsub.f32 %v1709, %v2086
        %v2276 = vsub.f32 %v1713, %v2078
        %v2277 = vsub.f32 %v1713, %v2082
        %v2278 = vsub.f32 %v1713, %v2086
        %v2279 = vsub.f32 %v1717, %v2078
        %v2280 = vsub.f32 %v1717, %v2082
        %v2281 = vsub.f32 %v1717, %v2086
        %v2282 = vsub.f32 %v1721, %v2078
        %v2283 = vsub.f32 %v1721, %v2082
        %v2284 = vsub.f32 %v1721, %v2086
        %v2285 = vsub.f32 %v1725, %v2078
        %v2286 = vsub.f32 %v1725, %v2082
        %v2287 = vsub.f32 %v1725, %v2086
        %v2288 = vsub.f32 %v1729, %v2078
        %v2289 = vsub.f32 %v1729, %v2082
        %v2290 = vsub.f32 %v1729, %v2086
        %v2291 = vsub.f32 %v1733, %v2078
        %v2292 = vsub.f32 %v1733, %v2082
        %v2293 = vsub.f32 %v1733, %v2086
        %v2294 = vsub.f32 %v1737, %v2078
        %v2295 = vsub.f32 %v1737, %v2082
        %v2296 = vsub.f32 %v1737, %v2086
        %v2297 = vsub.f32 %v1741, %v2078
        %v2298 = vsub.f32 %v1741, %v2082
        %v2299 = vsub.f32 %v1741, %v2086
        %v2300 = vsub.f32 %v1745, %v2078
        %v2301 = vsub.f32 %v1745, %v2082
        %v2302 = vsub.f32 %v1745, %v2086
        %v2303 = vsub.f32 %v1749, %v2090
        %v2304 = vsub.f32 %v1749, %v2094
        %v2305 = vsub.f32 %v1749, %v2098
        %v2306 = vsub.f32 %v1753, %v2090
        %v2307 = vsub.f32 %v1753, %v2094
        %v2308 = vsub.f32 %v1753, %v2098
        %v2309 = vsub.f32 %v1757, %v2090
        %v2310 = vsub.f32 %v1757, %v2094
        %v2311 = vsub.f32 %v1757, %v2098
        %v2312 = vsub.f32 %v1761, %v2090
        %v2313 = vsub.f32 %v1761, %v2094
        %v2314 = vsub.f32 %v1761, %v2098
        %v2315 = vsub.f32 %v1765, %v2090
        %v2316 = vsub.f32 %v1765, %v2094
        %v2317 = vsub.f32 %v1765, %v2098
        %v2318 = vsub.f32 %v1769, %v2090
        %v2319 = vsub.f32 %v1769, %v2094
        %v2320 = vsub.f32 %v1769, %v2098
        %v2321 = vsub.f32 %v1773, %v2090
        %v2322 = vsub.f32 %v1773, %v2094
        %v2323 = vsub.f32 %v1773, %v2098
        %v2324 = vsub.f32 %v1777, %v2090
        %v2325 = vsub.f32 %v1777, %v2094
        %v2326 = vsub.f32 %v1777, %v2098
        %v2327 = vsub.f32 %v1781, %v2090
        %v2328 = vsub.f32 %v1781, %v2094
        %v2329 = vsub.f32 %v1781, %v2098
        %v2330 = vsub.f32 %v1785, %v2090
        %v2331 = vsub.f32 %v1785, %v2094
        %v2332 = vsub.f32 %v1785, %v2098
        %v2333 = vsub.f32 %v1789, %v2090
        %v2334 = vsub.f32 %v1789, %v2094
        %v2335 = vsub.f32 %v1789, %v2098
        %v2336 = vsub.f32 %v1793, %v2090
        %v2337 = vsub.f32 %v1793, %v2094
        %v2338 = vsub.f32 %v1793, %v2098
        %v2339 = vsub.f32 %v1797, %v2090
        %v2340 = vsub.f32 %v1797, %v2094
        %v2341 = vsub.f32 %v1797, %v2098
        %v2342 = vsub.f32 %v1801, %v2090
        %v2343 = vsub.f32 %v1801, %v2094
        %v2344 = vsub.f32 %v1801, %v2098
        %v2345 = vsub.f32 %v1805, %v2090
        %v2346 = vsub.f32 %v1805, %v2094
        %v2347 = vsub.f32 %v1805, %v2098
        %v2348 = vsub.f32 %v1809, %v2090
        %v2349 = vsub.f32 %v1809, %v2094
        %v2350 = vsub.f32 %v1809, %v2098
        %v2351 = vsub.f32 %v1813, %v2090
        %v2352 = vsub.f32 %v1813, %v2094
        %v2353 = vsub.f32 %v1813, %v2098
        %v2354 = vsub.f32 %v1817, %v2090
        %v2355 = vsub.f32 %v1817, %v2094
        %v2356 = vsub.f32 %v1817, %v2098
        %v2357 = vsub.f32 %v1821, %v2090
        %v2358 = vsub.f32 %v1821, %v2094
        %v2359 = vsub.f32 %v1821, %v2098
        %v2360 = vsub.f32 %v1825, %v2090
        %v2361 = vsub.f32 %v1825, %v2094
        %v2362 = vsub.f32 %v1825, %v2098
        %v2363 = vsub.f32 %v1829, %v2090
        %v2364 = vsub.f32 %v1829, %v2094
        %v2365 = vsub.f32 %v1829, %v2098
        %v2366 = vsub.f32 %v1833, %v2090
        %v2367 = vsub.f32 %v1833, %v2094
        %v2368 = vsub.f32 %v1833, %v2098
        %v2369 = vsub.f32 %v1837, %v2090
        %v2370 = vsub.f32 %v1837, %v2094
        %v2371 = vsub.f32 %v1837, %v2098
        %v2372 = vsub.f32 %v1841, %v2090
        %v2373 = vsub.f32 %v1841, %v2094
        %v2374 = vsub.f32 %v1841, %v2098
        %v2375 = vsub.f32 %v1845, %v2090
        %v2376 = vsub.f32 %v1845, %v2094
        %v2377 = vsub.f32 %v1845, %v2098
        %v2378 = vsub.f32 %v1849, %v2090
        %v2379 = vsub.f32 %v1849, %v2094
        %v2380 = vsub.f32 %v1849, %v2098
        %v2381 = vsub.f32 %v1853, %v2090
        %v2382 = vsub.f32 %v1853, %v2094
        %v2383 = vsub.f32 %v1853, %v2098
        %v2384 = vsub.f32 %v1857, %v2090
        %v2385 = vsub.f32 %v1857, %v2094
        %v2386 = vsub.f32 %v1857, %v2098
        %v2387 = vsub.f32 %v1861, %v2090
        %v2388 = vsub.f32 %v1861, %v2094
        %v2389 = vsub.f32 %v1861, %v2098
        %v2390 = vsub.f32 %v1865, %v2090
        %v2391 = vsub.f32 %v1865, %v2094
        %v2392 = vsub.f32 %v1865, %v2098
        %v2393 = vsub.f32 %v1869, %v2090
        %v2394 = vsub.f32 %v1869, %v2094
        %v2395 = vsub.f32 %v1869, %v2098
        %v2396 = vsub.f32 %v1873, %v2090
        %v2397 = vsub.f32 %v1873, %v2094
        %v2398 = vsub.f32 %v1873, %v2098
        %v2399 = vsub.f32 %v1877, %v2102
        %v2400 = vsub.f32 %v1877, %v2106
        %v2401 = vsub.f32 %v1877, %v2110
        %v2402 = vsub.f32 %v1881, %v2102
        %v2403 = vsub.f32 %v1881, %v2106
        %v2404 = vsub.f32 %v1881, %v2110
        %v2405 = vsub.f32 %v1885, %v2102
        %v2406 = vsub.f32 %v1885, %v2106
        %v2407 = vsub.f32 %v1885, %v2110
        %v2408 = vsub.f32 %v1889, %v2102
        %v2409 = vsub.f32 %v1889, %v2106
        %v2410 = vsub.f32 %v1889, %v2110
        %v2411 = vsub.f32 %v1893, %v2102
        %v2412 = vsub.f32 %v1893, %v2106
        %v2413 = vsub.f32 %v1893, %v2110
        %v2414 = vsub.f32 %v1897, %v2102
        %v2415 = vsub.f32 %v1897, %v2106
        %v2416 = vsub.f32 %v1897, %v2110
        %v2417 = vsub.f32 %v1901, %v2102
        %v2418 = vsub.f32 %v1901, %v2106
        %v2419 = vsub.f32 %v1901, %v2110
        %v2420 = vsub.f32 %v1905, %v2102
        %v2421 = vsub.f32 %v1905, %v2106
        %v2422 = vsub.f32 %v1905, %v2110
        %v2423 = vsub.f32 %v1909, %v2102
        %v2424 = vsub.f32 %v1909, %v2106
        %v2425 = vsub.f32 %v1909, %v2110
        %v2426 = vsub.f32 %v1913, %v2102
        %v2427 = vsub.f32 %v1913, %v2106
        %v2428 = vsub.f32 %v1913, %v2110
        %v2429 = vsub.f32 %v1917, %v2102
        %v2430 = vsub.f32 %v1917, %v2106
        %v2431 = vsub.f32 %v1917, %v2110
        %v2432 = vsub.f32 %v1921, %v2102
        %v2433 = vsub.f32 %v1921, %v2106
        %v2434 = vsub.f32 %v1921, %v2110
        %v2435 = vsub.f32 %v1925, %v2102
        %v2436 = vsub.f32 %v1925, %v2106
        %v2437 = vsub.f32 %v1925, %v2110
        %v2438 = vsub.f32 %v1929, %v2102
        %v2439 = vsub.f32 %v1929, %v2106
        %v2440 = vsub.f32 %v1929, %v2110
        %v2441 = vsub.f32 %v1933, %v2102
        %v2442 = vsub.f32 %v1933, %v2106
        %v2443 = vsub.f32 %v1933, %v2110
        %v2444 = vsub.f32 %v1937, %v2102
        %v2445 = vsub.f32 %v1937, %v2106
        %v2446 = vsub.f32 %v1937, %v2110
        %v2447 = vsub.f32 %v1941, %v2102
        %v2448 = vsub.f32 %v1941, %v2106
        %v2449 = vsub.f32 %v1941, %v2110
        %v2450 = vsub.f32 %v1945, %v2102
        %v2451 = vsub.f32 %v1945, %v2106
        %v2452 = vsub.f32 %v1945, %v2110
        %v2453 = vsub.f32 %v1949, %v2102
        %v2454 = vsub.f32 %v1949, %v2106
        %v2455 = vsub.f32 %v1949, %v2110
        %v2456 = vsub.f32 %v1953, %v2102
        %v2457 = vsub.f32 %v1953, %v2106
        %v2458 = vsub.f32 %v1953, %v2110
        %v2459 = vsub.f32 %v1957, %v2102
        %v2460 = vsub.f32 %v1957, %v2106
        %v2461 = vsub.f32 %v1957, %v2110
        %v2462 = vsub.f32 %v1961, %v2102
        %v2463 = vsub.f32 %v1961, %v2106
        %v2464 = vsub.f32 %v1961, %v2110
        %v2465 = vsub.f32 %v1965, %v2102
        %v2466 = vsub.f32 %v1965, %v2106
        %v2467 = vsub.f32 %v1965, %v2110
        %v2468 = vsub.f32 %v1969, %v2102
        %v2469 = vsub.f32 %v1969, %v2106
        %v2470 = vsub.f32 %v1969, %v2110
        %v2471 = vsub.f32 %v1973, %v2102
        %v2472 = vsub.f32 %v1973, %v2106
        %v2473 = vsub.f32 %v1973, %v2110
        %v2474 = vsub.f32 %v1977, %v2102
        %v2475 = vsub.f32 %v1977, %v2106
        %v2476 = vsub.f32 %v1977, %v2110
        %v2477 = vsub.f32 %v1981, %v2102
        %v2478 = vsub.f32 %v1981, %v2106
        %v2479 = vsub.f32 %v1981, %v2110
        %v2480 = vsub.f32 %v1985, %v2102
        %v2481 = vsub.f32 %v1985, %v2106
        %v2482 = vsub.f32 %v1985, %v2110
        %v2483 = vsub.f32 %v1989, %v2102
        %v2484 = vsub.f32 %v1989, %v2106
        %v2485 = vsub.f32 %v1989, %v2110
        %v2486 = vsub.f32 %v1993, %v2102
        %v2487 = vsub.f32 %v1993, %v2106
        %v2488 = vsub.f32 %v1993, %v2110
        %v2489 = vsub.f32 %v1997, %v2102
        %v2490 = vsub.f32 %v1997, %v2106
        %v2491 = vsub.f32 %v1997, %v2110
        %v2492 = vsub.f32 %v2001, %v2102
        %v2493 = vsub.f32 %v2001, %v2106
        %v2494 = vsub.f32 %v2001, %v2110
        %v2495 = vmul.f32 %v1107, %v1107
        %v2496 = vmul.f32 %v1108, %v1108
        %v2497 = vmul.f32 %v1109, %v1109
        %v2498 = vmul.f32 %v1110, %v1110
        %v2499 = vmul.f32 %v1111, %v1111
        %v2500 = vmul.f32 %v1112, %v1112
        %v2501 = vmul.f32 %v1113, %v1113
        %v2502 = vmul.f32 %v1114, %v1114
        %v2503 = vmul.f32 %v1115, %v1115
        %v2504 = vmul.f32 %v1116, %v1116
        %v2505 = vmul.f32 %v1117, %v1117
        %v2506 = vmul.f32 %v1118, %v1118
        %v2507 = vmul.f32 %v1119, %v1119
        %v2508 = vmul.f32 %v1120, %v1120
        %v2509 = vmul.f32 %v1121, %v1121
        %v2510 = vmul.f32 %v1122, %v1122
        %v2511 = vmul.f32 %v1123, %v1123
        %v2512 = vmul.f32 %v1124, %v1124
        %v2513 = vmul.f32 %v1125, %v1125
        %v2514 = vmul.f32 %v1126, %v1126
        %v2515 = vmul.f32 %v1127, %v1127
        %v2516 = vmul.f32 %v1128, %v1128
        %v2517 = vmul.f32 %v1129, %v1129
        %v2518 = vmul.f32 %v1130, %v1130
        %v2519 = vmul.f32 %v1131, %v1131
        %v2520 = vmul.f32 %v1132, %v1132
        %v2521 = vmul.f32 %v1133, %v1133
        %v2522 = vmul.f32 %v1134, %v1134
        %v2523 = vmul.f32 %v1135, %v1135
        %v2524 = vmul.f32 %v1136, %v1136
        %v2525 = vmul.f32 %v1137, %v1137
        %v2526 = vmul.f32 %v1138, %v1138
        %v2527 = vmul.f32 %v1139, %v1139
        %v2528 = vmul.f32 %v1140, %v1140
        %v2529 = vmul.f32 %v1141, %v1141
        %v2530 = vmul.f32 %v1142, %v1142
        %v2531 = vmul.f32 %v1143, %v1143
        %v2532 = vmul.f32 %v1144, %v1144
        %v2533 = vmul.f32 %v1145, %v1145
        %v2534 = vmul.f32 %v1146, %v1146
        %v2535 = vmul.f32 %v1147, %v1147
        %v2536 = vmul.f32 %v1148, %v1148
        %v2537 = vmul.f32 %v1149, %v1149
        %v2538 = vmul.f32 %v1150, %v1150
        %v2539 = vmul.f32 %v1151, %v1151
        %v2540 = vmul.f32 %v1152, %v1152
        %v2541 = vmul.f32 %v1153, %v1153
        %v2542 = vmul.f32 %v1154, %v1154
        %v2543 = vmul.f32 %v1155, %v1155
        %v2544 = vmul.f32 %v1156, %v1156
        %v2545 = vmul.f32 %v1157, %v1157
        %v2546 = vmul.f32 %v1158, %v1158
        %v2547 = vmul.f32 %v1159, %v1159
        %v2548 = vmul.f32 %v1160, %v1160
        %v2549 = vmul.f32 %v1161, %v1161
        %v2550 = vmul.f32 %v1162, %v1162
        %v2551 = vmul.f32 %v1163, %v1163
        %v2552 = vmul.f32 %v1164, %v1164
        %v2553 = vmul.f32 %v1165, %v1165
        %v2554 = vmul.f32 %v1166, %v1166
        %v2555 = vmul.f32 %v1167, %v1167
        %v2556 = vmul.f32 %v1168, %v1168
        %v2557 = vmul.f32 %v1169, %v1169
        %v2558 = vmul.f32 %v1170, %v1170
        %v2559 = vmul.f32 %v1171, %v1171
        %v2560 = vmul.f32 %v1172, %v1172
        %v2561 = vmul.f32 %v1173, %v1173
        %v2562 = vmul.f32 %v1174, %v1174
        %v2563 = vmul.f32 %v1175, %v1175
        %v2564 = vmul.f32 %v1176, %v1176
        %v2565 = vmul.f32 %v1177, %v1177
        %v2566 = vmul.f32 %v1178, %v1178
        %v2567 = vmul.f32 %v1179, %v1179
        %v2568 = vmul.f32 %v1180, %v1180
        %v2569 = vmul.f32 %v1181, %v1181
        %v2570 = vmul.f32 %v1182, %v1182
        %v2571 = vmul.f32 %v1183, %v1183
        %v2572 = vmul.f32 %v1184, %v1184
        %v2573 = vmul.f32 %v1185, %v1185
        %v2574 = vmul.f32 %v1186, %v1186
        %v2575 = vmul.f32 %v1187, %v1187
        %v2576 = vmul.f32 %v1188, %v1188
        %v2577 = vmul.f32 %v1189, %v1189
        %v2578 = vmul.f32 %v1190, %v1190
        %v2579 = vmul.f32 %v1191, %v1191
        %v2580 = vmul.f32 %v1192, %v1192
        %v2581 = vmul.f32 %v1193, %v1193
        %v2582 = vmul.f32 %v1194, %v1194
        %v2583 = vmul.f32 %v1195, %v1195
        %v2584 = vmul.f32 %v1196, %v1196
        %v2585 = vmul.f32 %v1197, %v1197
        %v2586 = vmul.f32 %v1198, %v1198
        %v2587 = vmul.f32 %v1199, %v1199
        %v2588 = vmul.f32 %v1200, %v1200
        %v2589 = vmul.f32 %v1201, %v1201
        %v2590 = vmul.f32 %v1202, %v1202
        %v2591 = vmul.f32 %v1203, %v1203
        %v2592 = vmul.f32 %v1204, %v1204
        %v2593 = vmul.f32 %v1205, %v1205
        %v2594 = vmul.f32 %v1206, %v1206
        %v2595 = vmul.f32 %v1207, %v1207
        %v2596 = vmul.f32 %v1208, %v1208
        %v2597 = vmul.f32 %v1209, %v1209
        %v2598 = vmul.f32 %v1210, %v1210
        %v2599 = vmul.f32 %v1211, %v1211
        %v2600 = vmul.f32 %v1212, %v1212
        %v2601 = vmul.f32 %v1213, %v1213
        %v2602 = vmul.f32 %v1214, %v1214
        %v2603 = vmul.f32 %v1215, %v1215
        %v2604 = vmul.f32 %v1216, %v1216
        %v2605 = vmul.f32 %v1217, %v1217
        %v2606 = vmul.f32 %v1218, %v1218
        %v2607 = vmul.f32 %v1219, %v1219
        %v2608 = vmul.f32 %v1220, %v1220
        %v2609 = vmul.f32 %v1221, %v1221
        %v2610 = vmul.f32 %v1222, %v1222
        %v2611 = vmul.f32 %v1223, %v1223
        %v2612 = vmul.f32 %v1224, %v1224
        %v2613 = vmul.f32 %v1225, %v1225
        %v2614 = vmul.f32 %v1226, %v1226
        %v2615 = vmul.f32 %v1227, %v1227
        %v2616 = vmul.f32 %v1228, %v1228
        %v2617 = vmul.f32 %v1229, %v1229
        %v2618 = vmul.f32 %v1230, %v1230
        %v2619 = vmul.f32 %v1231, %v1231
        %v2620 = vmul.f32 %v1232, %v1232
        %v2621 = vmul.f32 %v1233, %v1233
        %v2622 = vmul.f32 %v1234, %v1234
        %v2623 = vmul.f32 %v1235, %v1235
        %v2624 = vmul.f32 %v1236, %v1236
        %v2625 = vmul.f32 %v1237, %v1237
        %v2626 = vmul.f32 %v1238, %v1238
        %v2627 = vmul.f32 %v1239, %v1239
        %v2628 = vmul.f32 %v1240, %v1240
        %v2629 = vmul.f32 %v1241, %v1241
        %v2630 = vmul.f32 %v1242, %v1242
        %v2631 = vmul.f32 %v1243, %v1243
        %v2632 = vmul.f32 %v1244, %v1244
        %v2633 = vmul.f32 %v1245, %v1245
        %v2634 = vmul.f32 %v1246, %v1246
        %v2635 = vmul.f32 %v1247, %v1247
        %v2636 = vmul.f32 %v1248, %v1248
        %v2637 = vmul.f32 %v1249, %v1249
        %v2638 = vmul.f32 %v1250, %v1250
        %v2639 = vmul.f32 %v1251, %v1251
        %v2640 = vmul.f32 %v1252, %v1252
        %v2641 = vmul.f32 %v1253, %v1253
        %v2642 = vmul.f32 %v1254, %v1254
        %v2643 = vmul.f32 %v1255, %v1255
        %v2644 = vmul.f32 %v1256, %v1256
        %v2645 = vmul.f32 %v1257, %v1257
        %v2646 = vmul.f32 %v1258, %v1258
        %v2647 = vmul.f32 %v1259, %v1259
        %v2648 = vmul.f32 %v1260, %v1260
        %v2649 = vmul.f32 %v1261, %v1261
        %v2650 = vmul.f32 %v1262, %v1262
        %v2651 = vmul.f32 %v1263, %v1263
        %v2652 = vmul.f32 %v1264, %v1264
        %v2653 = vmul.f32 %v1265, %v1265
        %v2654 = vmul.f32 %v1266, %v1266
        %v2655 = vmul.f32 %v1267, %v1267
        %v2656 = vmul.f32 %v1268, %v1268
        %v2657 = vmul.f32 %v1269, %v1269
        %v2658 = vmul.f32 %v1270, %v1270
        %v2659 = vmul.f32 %v1271, %v1271
        %v2660 = vmul.f32 %v1272, %v1272
        %v2661 = vmul.f32 %v1273, %v1273
        %v2662 = vmul.f32 %v1274, %v1274
        %v2663 = vmul.f32 %v1275, %v1275
        %v2664 = vmul.f32 %v1276, %v1276
        %v2665 = vmul.f32 %v1277, %v1277
        %v2666 = vmul.f32 %v1278, %v1278
        %v2667 = vmul.f32 %v1279, %v1279
        %v2668 = vmul.f32 %v1280, %v1280
        %v2669 = vmul.f32 %v1281, %v1281
        %v2670 = vmul.f32 %v1282, %v1282
        %v2671 = vmul.f32 %v1283, %v1283
        %v2672 = vmul.f32 %v1284, %v1284
        %v2673 = vmul.f32 %v1285, %v1285
        %v2674 = vmul.f32 %v1286, %v1286
        %v2675 = vmul.f32 %v1287, %v1287
        %v2676 = vmul.f32 %v1288, %v1288
        %v2677 = vmul.f32 %v1289, %v1289
        %v2678 = vmul.f32 %v1290, %v1290
        %v2679 = vmul.f32 %v1291, %v1291
        %v2680 = vmul.f32 %v1292, %v1292
        %v2681 = vmul.f32 %v1293, %v1293
        %v2682 = vmul.f32 %v1294, %v1294
        %v2683 = vmul.f32 %v1295, %v1295
        %v2684 = vmul.f32 %v1296, %v1296
        %v2685 = vmul.f32 %v1297, %v1297
        %v2686 = vmul.f32 %v1298, %v1298
        %v2687 = vmul.f32 %v1299, %v1299
        %v2688 = vmul.f32 %v1300, %v1300
        %v2689 = vmul.f32 %v1301, %v1301
        %v2690 = vmul.f32 %v1302, %v1302
        %v2691 = vmul.f32 %v1303, %v1303
        %v2692 = vmul.f32 %v1304, %v1304
        %v2693 = vmul.f32 %v1305, %v1305
        %v2694 = vmul.f32 %v1306, %v1306
        %v2695 = vmul.f32 %v1307, %v1307
        %v2696 = vmul.f32 %v1308, %v1308
        %v2697 = vmul.f32 %v1309, %v1309
        %v2698 = vmul.f32 %v1310, %v1310
        %v2699 = vmul.f32 %v1311, %v1311
        %v2700 = vmul.f32 %v1312, %v1312
        %v2701 = vmul.f32 %v1313, %v1313
        %v2702 = vmul.f32 %v1314, %v1314
        %v2703 = vmul.f32 %v1315, %v1315
        %v2704 = vmul.f32 %v1316, %v1316
        %v2705 = vmul.f32 %v1317, %v1317
        %v2706 = vmul.f32 %v1318, %v1318
        %v2707 = vmul.f32 %v1319, %v1319
        %v2708 = vmul.f32 %v1320, %v1320
        %v2709 = vmul.f32 %v1321, %v1321
        %v2710 = vmul.f32 %v1322, %v1322
        %v2711 = vmul.f32 %v1323, %v1323
        %v2712 = vmul.f32 %v1324, %v1324
        %v2713 = vmul.f32 %v1325, %v1325
        %v2714 = vmul.f32 %v1326, %v1326
        %v2715 = vmul.f32 %v1327, %v1327
        %v2716 = vmul.f32 %v1328, %v1328
        %v2717 = vmul.f32 %v1329, %v1329
        %v2718 = vmul.f32 %v1330, %v1330
        %v2719 = vmul.f32 %v1331, %v1331
        %v2720 = vmul.f32 %v1332, %v1332
        %v2721 = vmul.f32 %v1333, %v1333
        %v2722 = vmul.f32 %v1334, %v1334
        %v2723 = vmul.f32 %v1335, %v1335
        %v2724 = vmul.f32 %v1336, %v1336
        %v2725 = vmul.f32 %v1337, %v1337
        %v2726 = vmul.f32 %v1338, %v1338
        %v2727 = vmul.f32 %v1339, %v1339
        %v2728 = vmul.f32 %v1340, %v1340
        %v2729 = vmul.f32 %v1341, %v1341
        %v2730 = vmul.f32 %v1342, %v1342
        %v2731 = vmul.f32 %v1343, %v1343
        %v2732 = vmul.f32 %v1344, %v1344
        %v2733 = vmul.f32 %v1345, %v1345
        %v2734 = vmul.f32 %v1346, %v1346
        %v2735 = vmul.f32 %v1347, %v1347
        %v2736 = vmul.f32 %v1348, %v1348
        %v2737 = vmul.f32 %v1349, %v1349
        %v2738 = vmul.f32 %v1350, %v1350
        %v2739 = vmul.f32 %v1351, %v1351
        %v2740 = vmul.f32 %v1352, %v1352
        %v2741 = vmul.f32 %v1353, %v1353
        %v2742 = vmul.f32 %v1354, %v1354
        %v2743 = vmul.f32 %v1355, %v1355
        %v2744 = vmul.f32 %v1356, %v1356
        %v2745 = vmul.f32 %v1357, %v1357
        %v2746 = vmul.f32 %v1358, %v1358
        %v2747 = vmul.f32 %v1359, %v1359
        %v2748 = vmul.f32 %v1360, %v1360
        %v2749 = vmul.f32 %v1361, %v1361
        %v2750 = vmul.f32 %v1362, %v1362
        %v2751 = vmul.f32 %v1363, %v1363
        %v2752 = vmul.f32 %v1364, %v1364
        %v2753 = vmul.f32 %v1365, %v1365
        %v2754 = vmul.f32 %v1366, %v1366
        %v2755 = vmul.f32 %v1367, %v1367
        %v2756 = vmul.f32 %v1368, %v1368
        %v2757 = vmul.f32 %v1369, %v1369
        %v2758 = vmul.f32 %v1370, %v1370
        %v2759 = vmul.f32 %v1371, %v1371
        %v2760 = vmul.f32 %v1372, %v1372
        %v2761 = vmul.f32 %v1373, %v1373
        %v2762 = vmul.f32 %v1374, %v1374
        %v2763 = vmul.f32 %v1375, %v1375
        %v2764 = vmul.f32 %v1376, %v1376
        %v2765 = vmul.f32 %v1377, %v1377
        %v2766 = vmul.f32 %v1378, %v1378
        %v2767 = vmul.f32 %v1379, %v1379
        %v2768 = vmul.f32 %v1380, %v1380
        %v2769 = vmul.f32 %v1381, %v1381
        %v2770 = vmul.f32 %v1382, %v1382
        %v2771 = vmul.f32 %v1383, %v1383
        %v2772 = vmul.f32 %v1384, %v1384
        %v2773 = vmul.f32 %v1385, %v1385
        %v2774 = vmul.f32 %v1386, %v1386
        %v2775 = vmul.f32 %v1387, %v1387
        %v2776 = vmul.f32 %v1388, %v1388
        %v2777 = vmul.f32 %v1389, %v1389
        %v2778 = vmul.f32 %v1390, %v1390
        %v2779 = vmul.f32 %v1391, %v1391
        %v2780 = vmul.f32 %v1392, %v1392
        %v2781 = vmul.f32 %v1393, %v1393
        %v2782 = vmul.f32 %v1394, %v1394
        %v2783 = vmul.f32 %v1395, %v1395
        %v2784 = vmul.f32 %v1396, %v1396
        %v2785 = vmul.f32 %v1397, %v1397
        %v2786 = vmul.f32 %v1398, %v1398
        %v2787 = vmul.f32 %v1399, %v1399
        %v2788 = vmul.f32 %v1400, %v1400
        %v2789 = vmul.f32 %v1401, %v1401
        %v2790 = vmul.f32 %v1402, %v1402
        %v2791 = vmul.f32 %v1403, %v1403
        %v2792 = vmul.f32 %v1404, %v1404
        %v2793 = vmul.f32 %v1405, %v1405
        %v2794 = vmul.f32 %v1406, %v1406
        %v2795 = vmul.f32 %v1407, %v1407
        %v2796 = vmul.f32 %v1408, %v1408
        %v2797 = vmul.f32 %v1409, %v1409
        %v2798 = vmul.f32 %v1410, %v1410
        %v2799 = vmul.f32 %v1411, %v1411
        %v2800 = vmul.f32 %v1412, %v1412
        %v2801 = vmul.f32 %v1413, %v1413
        %v2802 = vmul.f32 %v1414, %v1414
        %v2803 = vmul.f32 %v1415, %v1415
        %v2804 = vmul.f32 %v1416, %v1416
        %v2805 = vmul.f32 %v1417, %v1417
        %v2806 = vmul.f32 %v1418, %v1418
        %v2807 = vmul.f32 %v1419, %v1419
        %v2808 = vmul.f32 %v1420, %v1420
        %v2809 = vmul.f32 %v1421, %v1421
        %v2810 = vmul.f32 %v1422, %v1422
        %v2811 = vmul.f32 %v1423, %v1423
        %v2812 = vmul.f32 %v1424, %v1424
        %v2813 = vmul.f32 %v1425, %v1425
        %v2814 = vmul.f32 %v1426, %v1426
        %v2815 = vmul.f32 %v1427, %v1427
        %v2816 = vmul.f32 %v1428, %v1428
        %v2817 = vmul.f32 %v1429, %v1429
        %v2818 = vmul.f32 %v1430, %v1430
        %v2819 = vmul.f32 %v1431, %v1431
        %v2820 = vmul.f32 %v1432, %v1432
        %v2821 = vmul.f32 %v1433, %v1433
        %v2822 = vmul.f32 %v1434, %v1434
        %v2823 = vmul.f32 %v1435, %v1435
        %v2824 = vmul.f32 %v1436, %v1436
        %v2825 = vmul.f32 %v1437, %v1437
        %v2826 = vmul.f32 %v1438, %v1438
        %v2827 = vmul.f32 %v1439, %v1439
        %v2828 = vmul.f32 %v1440, %v1440
        %v2829 = vmul.f32 %v1441, %v1441
        %v2830 = vmul.f32 %v1442, %v1442
        %v2831 = vmul.f32 %v1443, %v1443
        %v2832 = vmul.f32 %v1444, %v1444
        %v2833 = vmul.f32 %v1445, %v1445
        %v2834 = vmul.f32 %v1446, %v1446
        %v2835 = vmul.f32 %v1447, %v1447
        %v2836 = vmul.f32 %v1448, %v1448
        %v2837 = vmul.f32 %v1449, %v1449
        %v2838 = vmul.f32 %v1450, %v1450
        %v2839 = vmul.f32 %v1451, %v1451
        %v2840 = vmul.f32 %v1452, %v1452
        %v2841 = vmul.f32 %v1453, %v1453
        %v2842 = vmul.f32 %v1454, %v1454
        %v2843 = vmul.f32 %v1455, %v1455
        %v2844 = vmul.f32 %v1456, %v1456
        %v2845 = vmul.f32 %v1457, %v1457
        %v2846 = vmul.f32 %v1458, %v1458
        %v2847 = vmul.f32 %v1459, %v1459
        %v2848 = vmul.f32 %v1460, %v1460
        %v2849 = vmul.f32 %v1461, %v1461
        %v2850 = vmul.f32 %v1462, %v1462
        %v2851 = vmul.f32 %v1463, %v1463
        %v2852 = vmul.f32 %v1464, %v1464
        %v2853 = vmul.f32 %v1465, %v1465
        %v2854 = vmul.f32 %v1466, %v1466
        %v2855 = vmul.f32 %v1467, %v1467
        %v2856 = vmul.f32 %v1468, %v1468
        %v2857 = vmul.f32 %v1469, %v1469
        %v2858 = vmul.f32 %v1470, %v1470
        %v2859 = vmul.f32 %v1471, %v1471
        %v2860 = vmul.f32 %v1472, %v1472
        %v2861 = vmul.f32 %v1473, %v1473
        %v2862 = vmul.f32 %v1474, %v1474
        %v2863 = vmul.f32 %v1475, %v1475
        %v2864 = vmul.f32 %v1476, %v1476
        %v2865 = vmul.f32 %v1477, %v1477
        %v2866 = vmul.f32 %v1478, %v1478
        %v2867 = vmul.f32 %v1479, %v1479
        %v2868 = vmul.f32 %v1480, %v1480
        %v2869 = vmul.f32 %v1481, %v1481
        %v2870 = vmul.f32 %v1482, %v1482
        %v2871 = vmul.f32 %v1483, %v1483
        %v2872 = vmul.f32 %v1484, %v1484
        %v2873 = vmul.f32 %v1485, %v1485
        %v2874 = vmul.f32 %v1486, %v1486
        %v2875 = vmul.f32 %v1487, %v1487
        %v2876 = vmul.f32 %v1488, %v1488
        %v2877 = vmul.f32 %v1489, %v1489
        %v2878 = vmul.f32 %v1490, %v1490
        %v2879 = vmul.f32 %v2111, %v2111
        %v2880 = vmul.f32 %v2112, %v2112
        %v2881 = vmul.f32 %v2113, %v2113
        %v2882 = vmul.f32 %v2114, %v2114
        %v2883 = vmul.f32 %v2115, %v2115
        %v2884 = vmul.f32 %v2116, %v2116
        %v2885 = vmul.f32 %v2117, %v2117
        %v2886 = vmul.f32 %v2118, %v2118
        %v2887 = vmul.f32 %v2119, %v2119
        %v2888 = vmul.f32 %v2120, %v2120
        %v2889 = vmul.f32 %v2121, %v2121
        %v2890 = vmul.f32 %v2122, %v2122
        %v2891 = vmul.f32 %v2123, %v2123
        %v2892 = vmul.f32 %v2124, %v2124
        %v2893 = vmul.f32 %v2125, %v2125
        %v2894 = vmul.f32 %v2126, %v2126
        %v2895 = vmul.f32 %v2127, %v2127
        %v2896 = vmul.f32 %v2128, %v2128
        %v2897 = vmul.f32 %v2129, %v2129
        %v2898 = vmul.f32 %v2130, %v2130
        %v2899 = vmul.f32 %v2131, %v2131
        %v2900 = vmul.f32 %v2132, %v2132
        %v2901 = vmul.f32 %v2133, %v2133
        %v2902 = vmul.f32 %v2134, %v2134
        %v2903 = vmul.f32 %v2135, %v2135
        %v2904 = vmul.f32 %v2136, %v2136
        %v2905 = vmul.f32 %v2137, %v2137
        %v2906 = vmul.f32 %v2138, %v2138
        %v2907 = vmul.f32 %v2139, %v2139
        %v2908 = vmul.f32 %v2140, %v2140
        %v2909 = vmul.f32 %v2141, %v2141
        %v2910 = vmul.f32 %v2142, %v2142
        %v2911 = vmul.f32 %v2143, %v2143
        %v2912 = vmul.f32 %v2144, %v2144
        %v2913 = vmul.f32 %v2145, %v2145
        %v2914 = vmul.f32 %v2146, %v2146
        %v2915 = vmul.f32 %v2147, %v2147
        %v2916 = vmul.f32 %v2148, %v2148
        %v2917 = vmul.f32 %v2149, %v2149
        %v2918 = vmul.f32 %v2150, %v2150
        %v2919 = vmul.f32 %v2151, %v2151
        %v2920 = vmul.f32 %v2152, %v2152
        %v2921 = vmul.f32 %v2153, %v2153
        %v2922 = vmul.f32 %v2154, %v2154
        %v2923 = vmul.f32 %v2155, %v2155
        %v2924 = vmul.f32 %v2156, %v2156
        %v2925 = vmul.f32 %v2157, %v2157
        %v2926 = vmul.f32 %v2158, %v2158
        %v2927 = vmul.f32 %v2159, %v2159
        %v2928 = vmul.f32 %v2160, %v2160
        %v2929 = vmul.f32 %v2161, %v2161
        %v2930 = vmul.f32 %v2162, %v2162
        %v2931 = vmul.f32 %v2163, %v2163
        %v2932 = vmul.f32 %v2164, %v2164
        %v2933 = vmul.f32 %v2165, %v2165
        %v2934 = vmul.f32 %v2166, %v2166
        %v2935 = vmul.f32 %v2167, %v2167
        %v2936 = vmul.f32 %v2168, %v2168
        %v2937 = vmul.f32 %v2169, %v2169
        %v2938 = vmul.f32 %v2170, %v2170
        %v2939 = vmul.f32 %v2171, %v2171
        %v2940 = vmul.f32 %v2172, %v2172
        %v2941 = vmul.f32 %v2173, %v2173
        %v2942 = vmul.f32 %v2174, %v2174
        %v2943 = vmul.f32 %v2175, %v2175
        %v2944 = vmul.f32 %v2176, %v2176
        %v2945 = vmul.f32 %v2177, %v2177
        %v2946 = vmul.f32 %v2178, %v2178
        %v2947 = vmul.f32 %v2179, %v2179
        %v2948 = vmul.f32 %v2180, %v2180
        %v2949 = vmul.f32 %v2181, %v2181
        %v2950 = vmul.f32 %v2182, %v2182
        %v2951 = vmul.f32 %v2183, %v2183
        %v2952 = vmul.f32 %v2184, %v2184
        %v2953 = vmul.f32 %v2185, %v2185
        %v2954 = vmul.f32 %v2186, %v2186
        %v2955 = vmul.f32 %v2187, %v2187
        %v2956 = vmul.f32 %v2188, %v2188
        %v2957 = vmul.f32 %v2189, %v2189
        %v2958 = vmul.f32 %v2190, %v2190
        %v2959 = vmul.f32 %v2191, %v2191
        %v2960 = vmul.f32 %v2192, %v2192
        %v2961 = vmul.f32 %v2193, %v2193
        %v2962 = vmul.f32 %v2194, %v2194
        %v2963 = vmul.f32 %v2195, %v2195
        %v2964 = vmul.f32 %v2196, %v2196
        %v2965 = vmul.f32 %v2197, %v2197
        %v2966 = vmul.f32 %v2198, %v2198
        %v2967 = vmul.f32 %v2199, %v2199
        %v2968 = vmul.f32 %v2200, %v2200
        %v2969 = vmul.f32 %v2201, %v2201
        %v2970 = vmul.f32 %v2202, %v2202
        %v2971 = vmul.f32 %v2203, %v2203
        %v2972 = vmul.f32 %v2204, %v2204
        %v2973 = vmul.f32 %v2205, %v2205
        %v2974 = vmul.f32 %v2206, %v2206
        %v2975 = vmul.f32 %v2207, %v2207
        %v2976 = vmul.f32 %v2208, %v2208
        %v2977 = vmul.f32 %v2209, %v2209
        %v2978 = vmul.f32 %v2210, %v2210
        %v2979 = vmul.f32 %v2211, %v2211
        %v2980 = vmul.f32 %v2212, %v2212
        %v2981 = vmul.f32 %v2213, %v2213
        %v2982 = vmul.f32 %v2214, %v2214
        %v2983 = vmul.f32 %v2215, %v2215
        %v2984 = vmul.f32 %v2216, %v2216
        %v2985 = vmul.f32 %v2217, %v2217
        %v2986 = vmul.f32 %v2218, %v2218
        %v2987 = vmul.f32 %v2219, %v2219
        %v2988 = vmul.f32 %v2220, %v2220
        %v2989 = vmul.f32 %v2221, %v2221
        %v2990 = vmul.f32 %v2222, %v2222
        %v2991 = vmul.f32 %v2223, %v2223
        %v2992 = vmul.f32 %v2224, %v2224
        %v2993 = vmul.f32 %v2225, %v2225
        %v2994 = vmul.f32 %v2226, %v2226
        %v2995 = vmul.f32 %v2227, %v2227
        %v2996 = vmul.f32 %v2228, %v2228
        %v2997 = vmul.f32 %v2229, %v2229
        %v2998 = vmul.f32 %v2230, %v2230
        %v2999 = vmul.f32 %v2231, %v2231
        %v3000 = vmul.f32 %v2232, %v2232
        %v3001 = vmul.f32 %v2233, %v2233
        %v3002 = vmul.f32 %v2234, %v2234
        %v3003 = vmul.f32 %v2235, %v2235
        %v3004 = vmul.f32 %v2236, %v2236
        %v3005 = vmul.f32 %v2237, %v2237
        %v3006 = vmul.f32 %v2238, %v2238
        %v3007 = vmul.f32 %v2239, %v2239
        %v3008 = vmul.f32 %v2240, %v2240
        %v3009 = vmul.f32 %v2241, %v2241
        %v3010 = vmul.f32 %v2242, %v2242
        %v3011 = vmul.f32 %v2243, %v2243
        %v3012 = vmul.f32 %v2244, %v2244
        %v3013 = vmul.f32 %v2245, %v2245
        %v3014 = vmul.f32 %v2246, %v2246
        %v3015 = vmul.f32 %v2247, %v2247
        %v3016 = vmul.f32 %v2248, %v2248
        %v3017 = vmul.f32 %v2249, %v2249
        %v3018 = vmul.f32 %v2250, %v2250
        %v3019 = vmul.f32 %v2251, %v2251
        %v3020 = vmul.f32 %v2252, %v2252
        %v3021 = vmul.f32 %v2253, %v2253
        %v3022 = vmul.f32 %v2254, %v2254
        %v3023 = vmul.f32 %v2255, %v2255
        %v3024 = vmul.f32 %v2256, %v2256
        %v3025 = vmul.f32 %v2257, %v2257
        %v3026 = vmul.f32 %v2258, %v2258
        %v3027 = vmul.f32 %v2259, %v2259
        %v3028 = vmul.f32 %v2260, %v2260
        %v3029 = vmul.f32 %v2261, %v2261
        %v3030 = vmul.f32 %v2262, %v2262
        %v3031 = vmul.f32 %v2263, %v2263
        %v3032 = vmul.f32 %v2264, %v2264
        %v3033 = vmul.f32 %v2265, %v2265
        %v3034 = vmul.f32 %v2266, %v2266
        %v3035 = vmul.f32 %v2267, %v2267
        %v3036 = vmul.f32 %v2268, %v2268
        %v3037 = vmul.f32 %v2269, %v2269
        %v3038 = vmul.f32 %v2270, %v2270
        %v3039 = vmul.f32 %v2271, %v2271
        %v3040 = vmul.f32 %v2272, %v2272
        %v3041 = vmul.f32 %v2273, %v2273
        %v3042 = vmul.f32 %v2274, %v2274
        %v3043 = vmul.f32 %v2275, %v2275
        %v3044 = vmul.f32 %v2276, %v2276
        %v3045 = vmul.f32 %v2277, %v2277
        %v3046 = vmul.f32 %v2278, %v2278
        %v3047 = vmul.f32 %v2279, %v2279
        %v3048 = vmul.f32 %v2280, %v2280
        %v3049 = vmul.f32 %v2281, %v2281
        %v3050 = vmul.f32 %v2282, %v2282
        %v3051 = vmul.f32 %v2283, %v2283
        %v3052 = vmul.f32 %v2284, %v2284
        %v3053 = vmul.f32 %v2285, %v2285
        %v3054 = vmul.f32 %v2286, %v2286
        %v3055 = vmul.f32 %v2287, %v2287
        %v3056 = vmul.f32 %v2288, %v2288
        %v3057 = vmul.f32 %v2289, %v2289
        %v3058 = vmul.f32 %v2290, %v2290
        %v3059 = vmul.f32 %v2291, %v2291
        %v3060 = vmul.f32 %v2292, %v2292
        %v3061 = vmul.f32 %v2293, %v2293
        %v3062 = vmul.f32 %v2294, %v2294
        %v3063 = vmul.f32 %v2295, %v2295
        %v3064 = vmul.f32 %v2296, %v2296
        %v3065 = vmul.f32 %v2297, %v2297
        %v3066 = vmul.f32 %v2298, %v2298
        %v3067 = vmul.f32 %v2299, %v2299
        %v3068 = vmul.f32 %v2300, %v2300
        %v3069 = vmul.f32 %v2301, %v2301
        %v3070 = vmul.f32 %v2302, %v2302
        %v3071 = vmul.f32 %v2303, %v2303
        %v3072 = vmul.f32 %v2304, %v2304
        %v3073 = vmul.f32 %v2305, %v2305
        %v3074 = vmul.f32 %v2306, %v2306
        %v3075 = vmul.f32 %v2307, %v2307
        %v3076 = vmul.f32 %v2308, %v2308
        %v3077 = vmul.f32 %v2309, %v2309
        %v3078 = vmul.f32 %v2310, %v2310
        %v3079 = vmul.f32 %v2311, %v2311
        %v3080 = vmul.f32 %v2312, %v2312
        %v3081 = vmul.f32 %v2313, %v2313
        %v3082 = vmul.f32 %v2314, %v2314
        %v3083 = vmul.f32 %v2315, %v2315
        %v3084 = vmul.f32 %v2316, %v2316
        %v3085 = vmul.f32 %v2317, %v2317
        %v3086 = vmul.f32 %v2318, %v2318
        %v3087 = vmul.f32 %v2319, %v2319
        %v3088 = vmul.f32 %v2320, %v2320
        %v3089 = vmul.f32 %v2321, %v2321
        %v3090 = vmul.f32 %v2322, %v2322
        %v3091 = vmul.f32 %v2323, %v2323
        %v3092 = vmul.f32 %v2324, %v2324
        %v3093 = vmul.f32 %v2325, %v2325
        %v3094 = vmul.f32 %v2326, %v2326
        %v3095 = vmul.f32 %v2327, %v2327
        %v3096 = vmul.f32 %v2328, %v2328
        %v3097 = vmul.f32 %v2329, %v2329
        %v3098 = vmul.f32 %v2330, %v2330
        %v3099 = vmul.f32 %v2331, %v2331
        %v3100 = vmul.f32 %v2332, %v2332
        %v3101 = vmul.f32 %v2333, %v2333
        %v3102 = vmul.f32 %v2334, %v2334
        %v3103 = vmul.f32 %v2335, %v2335
        %v3104 = vmul.f32 %v2336, %v2336
        %v3105 = vmul.f32 %v2337, %v2337
        %v3106 = vmul.f32 %v2338, %v2338
        %v3107 = vmul.f32 %v2339, %v2339
        %v3108 = vmul.f32 %v2340, %v2340
        %v3109 = vmul.f32 %v2341, %v2341
        %v3110 = vmul.f32 %v2342, %v2342
        %v3111 = vmul.f32 %v2343, %v2343
        %v3112 = vmul.f32 %v2344, %v2344
        %v3113 = vmul.f32 %v2345, %v2345
        %v3114 = vmul.f32 %v2346, %v2346
        %v3115 = vmul.f32 %v2347, %v2347
        %v3116 = vmul.f32 %v2348, %v2348
        %v3117 = vmul.f32 %v2349, %v2349
        %v3118 = vmul.f32 %v2350, %v2350
        %v3119 = vmul.f32 %v2351, %v2351
        %v3120 = vmul.f32 %v2352, %v2352
        %v3121 = vmul.f32 %v2353, %v2353
        %v3122 = vmul.f32 %v2354, %v2354
        %v3123 = vmul.f32 %v2355, %v2355
        %v3124 = vmul.f32 %v2356, %v2356
        %v3125 = vmul.f32 %v2357, %v2357
        %v3126 = vmul.f32 %v2358, %v2358
        %v3127 = vmul.f32 %v2359, %v2359
        %v3128 = vmul.f32 %v2360, %v2360
        %v3129 = vmul.f32 %v2361, %v2361
        %v3130 = vmul.f32 %v2362, %v2362
        %v3131 = vmul.f32 %v2363, %v2363
        %v3132 = vmul.f32 %v2364, %v2364
        %v3133 = vmul.f32 %v2365, %v2365
        %v3134 = vmul.f32 %v2366, %v2366
        %v3135 = vmul.f32 %v2367, %v2367
        %v3136 = vmul.f32 %v2368, %v2368
        %v3137 = vmul.f32 %v2369, %v2369
        %v3138 = vmul.f32 %v2370, %v2370
        %v3139 = vmul.f32 %v2371, %v2371
        %v3140 = vmul.f32 %v2372, %v2372
        %v3141 = vmul.f32 %v2373, %v2373
        %v3142 = vmul.f32 %v2374, %v2374
        %v3143 = vmul.f32 %v2375, %v2375
        %v3144 = vmul.f32 %v2376, %v2376
        %v3145 = vmul.f32 %v2377, %v2377
        %v3146 = vmul.f32 %v2378, %v2378
        %v3147 = vmul.f32 %v2379, %v2379
        %v3148 = vmul.f32 %v2380, %v2380
        %v3149 = vmul.f32 %v2381, %v2381
        %v3150 = vmul.f32 %v2382, %v2382
        %v3151 = vmul.f32 %v2383, %v2383
        %v3152 = vmul.f32 %v2384, %v2384
        %v3153 = vmul.f32 %v2385, %v2385
        %v3154 = vmul.f32 %v2386, %v2386
        %v3155 = vmul.f32 %v2387, %v2387
        %v3156 = vmul.f32 %v2388, %v2388
        %v3157 = vmul.f32 %v2389, %v2389
        %v3158 = vmul.f32 %v2390, %v2390
        %v3159 = vmul.f32 %v2391, %v2391
        %v3160 = vmul.f32 %v2392, %v2392
        %v3161 = vmul.f32 %v2393, %v2393
        %v3162 = vmul.f32 %v2394, %v2394
        %v3163 = vmul.f32 %v2395, %v2395
        %v3164 = vmul.f32 %v2396, %v2396
        %v3165 = vmul.f32 %v2397, %v2397
        %v3166 = vmul.f32 %v2398, %v2398
        %v3167 = vmul.f32 %v2399, %v2399
        %v3168 = vmul.f32 %v2400, %v2400
        %v3169 = vmul.f32 %v2401, %v2401
        %v3170 = vmul.f32 %v2402, %v2402
        %v3171 = vmul.f32 %v2403, %v2403
        %v3172 = vmul.f32 %v2404, %v2404
        %v3173 = vmul.f32 %v2405, %v2405
        %v3174 = vmul.f32 %v2406, %v2406
        %v3175 = vmul.f32 %v2407, %v2407
        %v3176 = vmul.f32 %v2408, %v2408
        %v3177 = vmul.f32 %v2409, %v2409
        %v3178 = vmul.f32 %v2410, %v2410
        %v3179 = vmul.f32 %v2411, %v2411
        %v3180 = vmul.f32 %v2412, %v2412
        %v3181 = vmul.f32 %v2413, %v2413
        %v3182 = vmul.f32 %v2414, %v2414
        %v3183 = vmul.f32 %v2415, %v2415
        %v3184 = vmul.f32 %v2416, %v2416
        %v3185 = vmul.f32 %v2417, %v2417
        %v3186 = vmul.f32 %v2418, %v2418
        %v3187 = vmul.f32 %v2419, %v2419
        %v3188 = vmul.f32 %v2420, %v2420
        %v3189 = vmul.f32 %v2421, %v2421
        %v3190 = vmul.f32 %v2422, %v2422
        %v3191 = vmul.f32 %v2423, %v2423
        %v3192 = vmul.f32 %v2424, %v2424
        %v3193 = vmul.f32 %v2425, %v2425
        %v3194 = vmul.f32 %v2426, %v2426
        %v3195 = vmul.f32 %v2427, %v2427
        %v3196 = vmul.f32 %v2428, %v2428
        %v3197 = vmul.f32 %v2429, %v2429
        %v3198 = vmul.f32 %v2430, %v2430
        %v3199 = vmul.f32 %v2431, %v2431
        %v3200 = vmul.f32 %v2432, %v2432
        %v3201 = vmul.f32 %v2433, %v2433
        %v3202 = vmul.f32 %v2434, %v2434
        %v3203 = vmul.f32 %v2435, %v2435
        %v3204 = vmul.f32 %v2436, %v2436
        %v3205 = vmul.f32 %v2437, %v2437
        %v3206 = vmul.f32 %v2438, %v2438
        %v3207 = vmul.f32 %v2439, %v2439
        %v3208 = vmul.f32 %v2440, %v2440
        %v3209 = vmul.f32 %v2441, %v2441
        %v3210 = vmul.f32 %v2442, %v2442
        %v3211 = vmul.f32 %v2443, %v2443
        %v3212 = vmul.f32 %v2444, %v2444
        %v3213 = vmul.f32 %v2445, %v2445
        %v3214 = vmul.f32 %v2446, %v2446
        %v3215 = vmul.f32 %v2447, %v2447
        %v3216 = vmul.f32 %v2448, %v2448
        %v3217 = vmul.f32 %v2449, %v2449
        %v3218 = vmul.f32 %v2450, %v2450
        %v3219 = vmul.f32 %v2451, %v2451
        %v3220 = vmul.f32 %v2452, %v2452
        %v3221 = vmul.f32 %v2453, %v2453
        %v3222 = vmul.f32 %v2454, %v2454
        %v3223 = vmul.f32 %v2455, %v2455
        %v3224 = vmul.f32 %v2456, %v2456
        %v3225 = vmul.f32 %v2457, %v2457
        %v3226 = vmul.f32 %v2458, %v2458
        %v3227 = vmul.f32 %v2459, %v2459
        %v3228 = vmul.f32 %v2460, %v2460
        %v3229 = vmul.f32 %v2461, %v2461
        %v3230 = vmul.f32 %v2462, %v2462
        %v3231 = vmul.f32 %v2463, %v2463
        %v3232 = vmul.f32 %v2464, %v2464
        %v3233 = vmul.f32 %v2465, %v2465
        %v3234 = vmul.f32 %v2466, %v2466
        %v3235 = vmul.f32 %v2467, %v2467
        %v3236 = vmul.f32 %v2468, %v2468
        %v3237 = vmul.f32 %v2469, %v2469
        %v3238 = vmul.f32 %v2470, %v2470
        %v3239 = vmul.f32 %v2471, %v2471
        %v3240 = vmul.f32 %v2472, %v2472
        %v3241 = vmul.f32 %v2473, %v2473
        %v3242 = vmul.f32 %v2474, %v2474
        %v3243 = vmul.f32 %v2475, %v2475
        %v3244 = vmul.f32 %v2476, %v2476
        %v3245 = vmul.f32 %v2477, %v2477
        %v3246 = vmul.f32 %v2478, %v2478
        %v3247 = vmul.f32 %v2479, %v2479
        %v3248 = vmul.f32 %v2480, %v2480
        %v3249 = vmul.f32 %v2481, %v2481
        %v3250 = vmul.f32 %v2482, %v2482
        %v3251 = vmul.f32 %v2483, %v2483
        %v3252 = vmul.f32 %v2484, %v2484
        %v3253 = vmul.f32 %v2485, %v2485
        %v3254 = vmul.f32 %v2486, %v2486
        %v3255 = vmul.f32 %v2487, %v2487
        %v3256 = vmul.f32 %v2488, %v2488
        %v3257 = vmul.f32 %v2489, %v2489
        %v3258 = vmul.f32 %v2490, %v2490
        %v3259 = vmul.f32 %v2491, %v2491
        %v3260 = vmul.f32 %v2492, %v2492
        %v3261 = vmul.f32 %v2493, %v2493
        %v3262 = vmul.f32 %v2494, %v2494
        %v3263 = vadd.f32 %v2495, %v2879
        %v3264 = vadd.f32 %v2496, %v2880
        %v3265 = vadd.f32 %v2497, %v2881
        %v3266 = vadd.f32 %v2498, %v2882
        %v3267 = vadd.f32 %v2499, %v2883
        %v3268 = vadd.f32 %v2500, %v2884
        %v3269 = vadd.f32 %v2501, %v2885
        %v3270 = vadd.f32 %v2502, %v2886
        %v3271 = vadd.f32 %v2503, %v2887
        %v3272 = vadd.f32 %v2504, %v2888
        %v3273 = vadd.f32 %v2505, %v2889
        %v3274 = vadd.f32 %v2506, %v2890
        %v3275 = vadd.f32 %v2507, %v2891
        %v3276 = vadd.f32 %v2508, %v2892
        %v3277 = vadd.f32 %v2509, %v2893
        %v3278 = vadd.f32 %v2510, %v2894
        %v3279 = vadd.f32 %v2511, %v2895
        %v3280 = vadd.f32 %v2512, %v2896
        %v3281 = vadd.f32 %v2513, %v2897
        %v3282 = vadd.f32 %v2514, %v2898
        %v3283 = vadd.f32 %v2515, %v2899
        %v3284 = vadd.f32 %v2516, %v2900
        %v3285 = vadd.f32 %v2517, %v2901
        %v3286 = vadd.f32 %v2518, %v2902
        %v3287 = vadd.f32 %v2519, %v2903
        %v3288 = vadd.f32 %v2520, %v2904
        %v3289 = vadd.f32 %v2521, %v2905
        %v3290 = vadd.f32 %v2522, %v2906
        %v3291 = vadd.f32 %v2523, %v2907
        %v3292 = vadd.f32 %v2524, %v2908
        %v3293 = vadd.f32 %v2525, %v2909
        %v3294 = vadd.f32 %v2526, %v2910
        %v3295 = vadd.f32 %v2527, %v2911
        %v3296 = vadd.f32 %v2528, %v2912
        %v3297 = vadd.f32 %v2529, %v2913
        %v3298 = vadd.f32 %v2530, %v2914
        %v3299 = vadd.f32 %v2531, %v2915
        %v3300 = vadd.f32 %v2532, %v2916
        %v3301 = vadd.f32 %v2533, %v2917
        %v3302 = vadd.f32 %v2534, %v2918
        %v3303 = vadd.f32 %v2535, %v2919
        %v3304 = vadd.f32 %v2536, %v2920
        %v3305 = vadd.f32 %v2537, %v2921
        %v3306 = vadd.f32 %v2538, %v2922
        %v3307 = vadd.f32 %v2539, %v2923
        %v3308 = vadd.f32 %v2540, %v2924
        %v3309 = vadd.f32 %v2541, %v2925
        %v3310 = vadd.f32 %v2542, %v2926
        %v3311 = vadd.f32 %v2543, %v2927
        %v3312 = vadd.f32 %v2544, %v2928
        %v3313 = vadd.f32 %v2545, %v2929
        %v3314 = vadd.f32 %v2546, %v2930
        %v3315 = vadd.f32 %v2547, %v2931
        %v3316 = vadd.f32 %v2548, %v2932
        %v3317 = vadd.f32 %v2549, %v2933
        %v3318 = vadd.f32 %v2550, %v2934
        %v3319 = vadd.f32 %v2551, %v2935
        %v3320 = vadd.f32 %v2552, %v2936
        %v3321 = vadd.f32 %v2553, %v2937
        %v3322 = vadd.f32 %v2554, %v2938
        %v3323 = vadd.f32 %v2555, %v2939
        %v3324 = vadd.f32 %v2556, %v2940
        %v3325 = vadd.f32 %v2557, %v2941
        %v3326 = vadd.f32 %v2558, %v2942
        %v3327 = vadd.f32 %v2559, %v2943
        %v3328 = vadd.f32 %v2560, %v2944
        %v3329 = vadd.f32 %v2561, %v2945
        %v3330 = vadd.f32 %v2562, %v2946
        %v3331 = vadd.f32 %v2563, %v2947
        %v3332 = vadd.f32 %v2564, %v2948
        %v3333 = vadd.f32 %v2565, %v2949
        %v3334 = vadd.f32 %v2566, %v2950
        %v3335 = vadd.f32 %v2567, %v2951
        %v3336 = vadd.f32 %v2568, %v2952
        %v3337 = vadd.f32 %v2569, %v2953
        %v3338 = vadd.f32 %v2570, %v2954
        %v3339 = vadd.f32 %v2571, %v2955
        %v3340 = vadd.f32 %v2572, %v2956
        %v3341 = vadd.f32 %v2573, %v2957
        %v3342 = vadd.f32 %v2574, %v2958
        %v3343 = vadd.f32 %v2575, %v2959
        %v3344 = vadd.f32 %v2576, %v2960
        %v3345 = vadd.f32 %v2577, %v2961
        %v3346 = vadd.f32 %v2578, %v2962
        %v3347 = vadd.f32 %v2579, %v2963
        %v3348 = vadd.f32 %v2580, %v2964
        %v3349 = vadd.f32 %v2581, %v2965
        %v3350 = vadd.f32 %v2582, %v2966
        %v3351 = vadd.f32 %v2583, %v2967
        %v3352 = vadd.f32 %v2584, %v2968
        %v3353 = vadd.f32 %v2585, %v2969
        %v3354 = vadd.f32 %v2586, %v2970
        %v3355 = vadd.f32 %v2587, %v2971
        %v3356 = vadd.f32 %v2588, %v2972
        %v3357 = vadd.f32 %v2589, %v2973
        %v3358 = vadd.f32 %v2590, %v2974
        %v3359 = vadd.f32 %v2591, %v2975
        %v3360 = vadd.f32 %v2592, %v2976
        %v3361 = vadd.f32 %v2593, %v2977
        %v3362 = vadd.f32 %v2594, %v2978
        %v3363 = vadd.f32 %v2595, %v2979
        %v3364 = vadd.f32 %v2596, %v2980
        %v3365 = vadd.f32 %v2597, %v2981
        %v3366 = vadd.f32 %v2598, %v2982
        %v3367 = vadd.f32 %v2599, %v2983
        %v3368 = vadd.f32 %v2600, %v2984
        %v3369 = vadd.f32 %v2601, %v2985
        %v3370 = vadd.f32 %v2602, %v2986
        %v3371 = vadd.f32 %v2603, %v2987
        %v3372 = vadd.f32 %v2604, %v2988
        %v3373 = vadd.f32 %v2605, %v2989
        %v3374 = vadd.f32 %v2606, %v2990
        %v3375 = vadd.f32 %v2607, %v2991
        %v3376 = vadd.f32 %v2608, %v2992
        %v3377 = vadd.f32 %v2609, %v2993
        %v3378 = vadd.f32 %v2610, %v2994
        %v3379 = vadd.f32 %v2611, %v2995
        %v3380 = vadd.f32 %v2612, %v2996
        %v3381 = vadd.f32 %v2613, %v2997
        %v3382 = vadd.f32 %v2614, %v2998
        %v3383 = vadd.f32 %v2615, %v2999
        %v3384 = vadd.f32 %v2616, %v3000
        %v3385 = vadd.f32 %v2617, %v3001
        %v3386 = vadd.f32 %v2618, %v3002
        %v3387 = vadd.f32 %v2619, %v3003
        %v3388 = vadd.f32 %v2620, %v3004
        %v3389 = vadd.f32 %v2621, %v3005
        %v3390 = vadd.f32 %v2622, %v3006
        %v3391 = vadd.f32 %v2623, %v3007
        %v3392 = vadd.f32 %v2624, %v3008
        %v3393 = vadd.f32 %v2625, %v3009
        %v3394 = vadd.f32 %v2626, %v3010
        %v3395 = vadd.f32 %v2627, %v3011
        %v3396 = vadd.f32 %v2628, %v3012
        %v3397 = vadd.f32 %v2629, %v3013
        %v3398 = vadd.f32 %v2630, %v3014
        %v3399 = vadd.f32 %v2631, %v3015
        %v3400 = vadd.f32 %v2632, %v3016
        %v3401 = vadd.f32 %v2633, %v3017
        %v3402 = vadd.f32 %v2634, %v3018
        %v3403 = vadd.f32 %v2635, %v3019
        %v3404 = vadd.f32 %v2636, %v3020
        %v3405 = vadd.f32 %v2637, %v3021
        %v3406 = vadd.f32 %v2638, %v3022
        %v3407 = vadd.f32 %v2639, %v3023
        %v3408 = vadd.f32 %v2640, %v3024
        %v3409 = vadd.f32 %v2641, %v3025
        %v3410 = vadd.f32 %v2642, %v3026
        %v3411 = vadd.f32 %v2643, %v3027
        %v3412 = vadd.f32 %v2644, %v3028
        %v3413 = vadd.f32 %v2645, %v3029
        %v3414 = vadd.f32 %v2646, %v3030
        %v3415 = vadd.f32 %v2647, %v3031
        %v3416 = vadd.f32 %v2648, %v3032
        %v3417 = vadd.f32 %v2649, %v3033
        %v3418 = vadd.f32 %v2650, %v3034
        %v3419 = vadd.f32 %v2651, %v3035
        %v3420 = vadd.f32 %v2652, %v3036
        %v3421 = vadd.f32 %v2653, %v3037
        %v3422 = vadd.f32 %v2654, %v3038
        %v3423 = vadd.f32 %v2655, %v3039
        %v3424 = vadd.f32 %v2656, %v3040
        %v3425 = vadd.f32 %v2657, %v3041
        %v3426 = vadd.f32 %v2658, %v3042
        %v3427 = vadd.f32 %v2659, %v3043
        %v3428 = vadd.f32 %v2660, %v3044
        %v3429 = vadd.f32 %v2661, %v3045
        %v3430 = vadd.f32 %v2662, %v3046
        %v3431 = vadd.f32 %v2663, %v3047
        %v3432 = vadd.f32 %v2664, %v3048
        %v3433 = vadd.f32 %v2665, %v3049
        %v3434 = vadd.f32 %v2666, %v3050
        %v3435 = vadd.f32 %v2667, %v3051
        %v3436 = vadd.f32 %v2668, %v3052
        %v3437 = vadd.f32 %v2669, %v3053
        %v3438 = vadd.f32 %v2670, %v3054
        %v3439 = vadd.f32 %v2671, %v3055
        %v3440 = vadd.f32 %v2672, %v3056
        %v3441 = vadd.f32 %v2673, %v3057
        %v3442 = vadd.f32 %v2674, %v3058
        %v3443 = vadd.f32 %v2675, %v3059
        %v3444 = vadd.f32 %v2676, %v3060
        %v3445 = vadd.f32 %v2677, %v3061
        %v3446 = vadd.f32 %v2678, %v3062
        %v3447 = vadd.f32 %v2679, %v3063
        %v3448 = vadd.f32 %v2680, %v3064
        %v3449 = vadd.f32 %v2681, %v3065
        %v3450 = vadd.f32 %v2682, %v3066
        %v3451 = vadd.f32 %v2683, %v3067
        %v3452 = vadd.f32 %v2684, %v3068
        %v3453 = vadd.f32 %v2685, %v3069
        %v3454 = vadd.f32 %v2686, %v3070
        %v3455 = vadd.f32 %v2687, %v3071
        %v3456 = vadd.f32 %v2688, %v3072
        %v3457 = vadd.f32 %v2689, %v3073
        %v3458 = vadd.f32 %v2690, %v3074
        %v3459 = vadd.f32 %v2691, %v3075
        %v3460 = vadd.f32 %v2692, %v3076
        %v3461 = vadd.f32 %v2693, %v3077
        %v3462 = vadd.f32 %v2694, %v3078
        %v3463 = vadd.f32 %v2695, %v3079
        %v3464 = vadd.f32 %v2696, %v3080
        %v3465 = vadd.f32 %v2697, %v3081
        %v3466 = vadd.f32 %v2698, %v3082
        %v3467 = vadd.f32 %v2699, %v3083
        %v3468 = vadd.f32 %v2700, %v3084
        %v3469 = vadd.f32 %v2701, %v3085
        %v3470 = vadd.f32 %v2702, %v3086
        %v3471 = vadd.f32 %v2703, %v3087
        %v3472 = vadd.f32 %v2704, %v3088
        %v3473 = vadd.f32 %v2705, %v3089
        %v3474 = vadd.f32 %v2706, %v3090
        %v3475 = vadd.f32 %v2707, %v3091
        %v3476 = vadd.f32 %v2708, %v3092
        %v3477 = vadd.f32 %v2709, %v3093
        %v3478 = vadd.f32 %v2710, %v3094
        %v3479 = vadd.f32 %v2711, %v3095
        %v3480 = vadd.f32 %v2712, %v3096
        %v3481 = vadd.f32 %v2713, %v3097
        %v3482 = vadd.f32 %v2714, %v3098
        %v3483 = vadd.f32 %v2715, %v3099
        %v3484 = vadd.f32 %v2716, %v3100
        %v3485 = vadd.f32 %v2717, %v3101
        %v3486 = vadd.f32 %v2718, %v3102
        %v3487 = vadd.f32 %v2719, %v3103
        %v3488 = vadd.f32 %v2720, %v3104
        %v3489 = vadd.f32 %v2721, %v3105
        %v3490 = vadd.f32 %v2722, %v3106
        %v3491 = vadd.f32 %v2723, %v3107
        %v3492 = vadd.f32 %v2724, %v3108
        %v3493 = vadd.f32 %v2725, %v3109
        %v3494 = vadd.f32 %v2726, %v3110
        %v3495 = vadd.f32 %v2727, %v3111
        %v3496 = vadd.f32 %v2728, %v3112
        %v3497 = vadd.f32 %v2729, %v3113
        %v3498 = vadd.f32 %v2730, %v3114
        %v3499 = vadd.f32 %v2731, %v3115
        %v3500 = vadd.f32 %v2732, %v3116
        %v3501 = vadd.f32 %v2733, %v3117
        %v3502 = vadd.f32 %v2734, %v3118
        %v3503 = vadd.f32 %v2735, %v3119
        %v3504 = vadd.f32 %v2736, %v3120
        %v3505 = vadd.f32 %v2737, %v3121
        %v3506 = vadd.f32 %v2738, %v3122
        %v3507 = vadd.f32 %v2739, %v3123
        %v3508 = vadd.f32 %v2740, %v3124
        %v3509 = vadd.f32 %v2741, %v3125
        %v3510 = vadd.f32 %v2742, %v3126
        %v3511 = vadd.f32 %v2743, %v3127
        %v3512 = vadd.f32 %v2744, %v3128
        %v3513 = vadd.f32 %v2745, %v3129
        %v3514 = vadd.f32 %v2746, %v3130
        %v3515 = vadd.f32 %v2747, %v3131
        %v3516 = vadd.f32 %v2748, %v3132
        %v3517 = vadd.f32 %v2749, %v3133
        %v3518 = vadd.f32 %v2750, %v3134
        %v3519 = vadd.f32 %v2751, %v3135
        %v3520 = vadd.f32 %v2752, %v3136
        %v3521 = vadd.f32 %v2753, %v3137
        %v3522 = vadd.f32 %v2754, %v3138
        %v3523 = vadd.f32 %v2755, %v3139
        %v3524 = vadd.f32 %v2756, %v3140
        %v3525 = vadd.f32 %v2757, %v3141
        %v3526 = vadd.f32 %v2758, %v3142
        %v3527 = vadd.f32 %v2759, %v3143
        %v3528 = vadd.f32 %v2760, %v3144
        %v3529 = vadd.f32 %v2761, %v3145
        %v3530 = vadd.f32 %v2762, %v3146
        %v3531 = vadd.f32 %v2763, %v3147
        %v3532 = vadd.f32 %v2764, %v3148
        %v3533 = vadd.f32 %v2765, %v3149
        %v3534 = vadd.f32 %v2766, %v3150
        %v3535 = vadd.f32 %v2767, %v3151
        %v3536 = vadd.f32 %v2768, %v3152
        %v3537 = vadd.f32 %v2769, %v3153
        %v3538 = vadd.f32 %v2770, %v3154
        %v3539 = vadd.f32 %v2771, %v3155
        %v3540 = vadd.f32 %v2772, %v3156
        %v3541 = vadd.f32 %v2773, %v3157
        %v3542 = vadd.f32 %v2774, %v3158
        %v3543 = vadd.f32 %v2775, %v3159
        %v3544 = vadd.f32 %v2776, %v3160
        %v3545 = vadd.f32 %v2777, %v3161
        %v3546 = vadd.f32 %v2778, %v3162
        %v3547 = vadd.f32 %v2779, %v3163
        %v3548 = vadd.f32 %v2780, %v3164
        %v3549 = vadd.f32 %v2781, %v3165
        %v3550 = vadd.f32 %v2782, %v3166
        %v3551 = vadd.f32 %v2783, %v3167
        %v3552 = vadd.f32 %v2784, %v3168
        %v3553 = vadd.f32 %v2785, %v3169
        %v3554 = vadd.f32 %v2786, %v3170
        %v3555 = vadd.f32 %v2787, %v3171
        %v3556 = vadd.f32 %v2788, %v3172
        %v3557 = vadd.f32 %v2789, %v3173
        %v3558 = vadd.f32 %v2790, %v3174
        %v3559 = vadd.f32 %v2791, %v3175
        %v3560 = vadd.f32 %v2792, %v3176
        %v3561 = vadd.f32 %v2793, %v3177
        %v3562 = vadd.f32 %v2794, %v3178
        %v3563 = vadd.f32 %v2795, %v3179
        %v3564 = vadd.f32 %v2796, %v3180
        %v3565 = vadd.f32 %v2797, %v3181
        %v3566 = vadd.f32 %v2798, %v3182
        %v3567 = vadd.f32 %v2799, %v3183
        %v3568 = vadd.f32 %v2800, %v3184
        %v3569 = vadd.f32 %v2801, %v3185
        %v3570 = vadd.f32 %v2802, %v3186
        %v3571 = vadd.f32 %v2803, %v3187
        %v3572 = vadd.f32 %v2804, %v3188
        %v3573 = vadd.f32 %v2805, %v3189
        %v3574 = vadd.f32 %v2806, %v3190
        %v3575 = vadd.f32 %v2807, %v3191
        %v3576 = vadd.f32 %v2808, %v3192
        %v3577 = vadd.f32 %v2809, %v3193
        %v3578 = vadd.f32 %v2810, %v3194
        %v3579 = vadd.f32 %v2811, %v3195
        %v3580 = vadd.f32 %v2812, %v3196
        %v3581 = vadd.f32 %v2813, %v3197
        %v3582 = vadd.f32 %v2814, %v3198
        %v3583 = vadd.f32 %v2815, %v3199
        %v3584 = vadd.f32 %v2816, %v3200
        %v3585 = vadd.f32 %v2817, %v3201
        %v3586 = vadd.f32 %v2818, %v3202
        %v3587 = vadd.f32 %v2819, %v3203
        %v3588 = vadd.f32 %v2820, %v3204
        %v3589 = vadd.f32 %v2821, %v3205
        %v3590 = vadd.f32 %v2822, %v3206
        %v3591 = vadd.f32 %v2823, %v3207
        %v3592 = vadd.f32 %v2824, %v3208
        %v3593 = vadd.f32 %v2825, %v3209
        %v3594 = vadd.f32 %v2826, %v3210
        %v3595 = vadd.f32 %v2827, %v3211
        %v3596 = vadd.f32 %v2828, %v3212
        %v3597 = vadd.f32 %v2829, %v3213
        %v3598 = vadd.f32 %v2830, %v3214
        %v3599 = vadd.f32 %v2831, %v3215
        %v3600 = vadd.f32 %v2832, %v3216
        %v3601 = vadd.f32 %v2833, %v3217
        %v3602 = vadd.f32 %v2834, %v3218
        %v3603 = vadd.f32 %v2835, %v3219
        %v3604 = vadd.f32 %v2836, %v3220
        %v3605 = vadd.f32 %v2837, %v3221
        %v3606 = vadd.f32 %v2838, %v3222
        %v3607 = vadd.f32 %v2839, %v3223
        %v3608 = vadd.f32 %v2840, %v3224
        %v3609 = vadd.f32 %v2841, %v3225
        %v3610 = vadd.f32 %v2842, %v3226
        %v3611 = vadd.f32 %v2843, %v3227
        %v3612 = vadd.f32 %v2844, %v3228
        %v3613 = vadd.f32 %v2845, %v3229
        %v3614 = vadd.f32 %v2846, %v3230
        %v3615 = vadd.f32 %v2847, %v3231
        %v3616 = vadd.f32 %v2848, %v3232
        %v3617 = vadd.f32 %v2849, %v3233
        %v3618 = vadd.f32 %v2850, %v3234
        %v3619 = vadd.f32 %v2851, %v3235
        %v3620 = vadd.f32 %v2852, %v3236
        %v3621 = vadd.f32 %v2853, %v3237
        %v3622 = vadd.f32 %v2854, %v3238
        %v3623 = vadd.f32 %v2855, %v3239
        %v3624 = vadd.f32 %v2856, %v3240
        %v3625 = vadd.f32 %v2857, %v3241
        %v3626 = vadd.f32 %v2858, %v3242
        %v3627 = vadd.f32 %v2859, %v3243
        %v3628 = vadd.f32 %v2860, %v3244
        %v3629 = vadd.f32 %v2861, %v3245
        %v3630 = vadd.f32 %v2862, %v3246
        %v3631 = vadd.f32 %v2863, %v3247
        %v3632 = vadd.f32 %v2864, %v3248
        %v3633 = vadd.f32 %v2865, %v3249
        %v3634 = vadd.f32 %v2866, %v3250
        %v3635 = vadd.f32 %v2867, %v3251
        %v3636 = vadd.f32 %v2868, %v3252
        %v3637 = vadd.f32 %v2869, %v3253
        %v3638 = vadd.f32 %v2870, %v3254
        %v3639 = vadd.f32 %v2871, %v3255
        %v3640 = vadd.f32 %v2872, %v3256
        %v3641 = vadd.f32 %v2873, %v3257
        %v3642 = vadd.f32 %v2874, %v3258
        %v3643 = vadd.f32 %v2875, %v3259
        %v3644 = vadd.f32 %v2876, %v3260
        %v3645 = vadd.f32 %v2877, %v3261
        %v3646 = vadd.f32 %v2878, %v3262
        %v3647 = vmin.f32 %v3263, %v3264
        %v3648 = vmin.f32 %v3647, %v3265
        %3649 = vmin.xlane.f32.xlu0 %v3648
        %v3650 = vpop.xlane.xlu0 %3649
        %v3651 = vmin.f32 %v3266, %v3267
        %v3652 = vmin.f32 %v3651, %v3268
        %3653 = vmin.xlane.f32.xlu0 %v3652
        %v3654 = vpop.xlane.xlu0 %3653
        %v3655 = vmin.f32 %v3269, %v3270
        %v3656 = vmin.f32 %v3655, %v3271
        %3657 = vmin.xlane.f32.xlu0 %v3656
        %v3658 = vpop.xlane.xlu0 %3657
        %v3659 = vmin.f32 %v3272, %v3273
        %v3660 = vmin.f32 %v3659, %v3274
        %3661 = vmin.xlane.f32.xlu0 %v3660
        %v3662 = vpop.xlane.xlu0 %3661
        %v3663 = vmin.f32 %v3275, %v3276
        %v3664 = vmin.f32 %v3663, %v3277
        %3665 = vmin.xlane.f32.xlu0 %v3664
        %v3666 = vpop.xlane.xlu0 %3665
        %v3667 = vmin.f32 %v3278, %v3279
        %v3668 = vmin.f32 %v3667, %v3280
        %3669 = vmin.xlane.f32.xlu0 %v3668
        %v3670 = vpop.xlane.xlu0 %3669
        %v3671 = vmin.f32 %v3281, %v3282
        %v3672 = vmin.f32 %v3671, %v3283
        %3673 = vmin.xlane.f32.xlu0 %v3672
        %v3674 = vpop.xlane.xlu0 %3673
        %v3675 = vmin.f32 %v3284, %v3285
        %v3676 = vmin.f32 %v3675, %v3286
        %3677 = vmin.xlane.f32.xlu0 %v3676
        %v3678 = vpop.xlane.xlu0 %3677
        %v3679 = vmin.f32 %v3287, %v3288
        %v3680 = vmin.f32 %v3679, %v3289
        %3681 = vmin.xlane.f32.xlu0 %v3680
        %v3682 = vpop.xlane.xlu0 %3681
        %v3683 = vmin.f32 %v3290, %v3291
        %v3684 = vmin.f32 %v3683, %v3292
        %3685 = vmin.xlane.f32.xlu0 %v3684
        %v3686 = vpop.xlane.xlu0 %3685
        %v3687 = vmin.f32 %v3293, %v3294
        %v3688 = vmin.f32 %v3687, %v3295
        %3689 = vmin.xlane.f32.xlu0 %v3688
        %v3690 = vpop.xlane.xlu0 %3689
        %v3691 = vmin.f32 %v3296, %v3297
        %v3692 = vmin.f32 %v3691, %v3298
        %3693 = vmin.xlane.f32.xlu0 %v3692
        %v3694 = vpop.xlane.xlu0 %3693
        %v3695 = vmin.f32 %v3299, %v3300
        %v3696 = vmin.f32 %v3695, %v3301
        %3697 = vmin.xlane.f32.xlu0 %v3696
        %v3698 = vpop.xlane.xlu0 %3697
        %v3699 = vmin.f32 %v3302, %v3303
        %v3700 = vmin.f32 %v3699, %v3304
        %3701 = vmin.xlane.f32.xlu0 %v3700
        %v3702 = vpop.xlane.xlu0 %3701
        %v3703 = vmin.f32 %v3305, %v3306
        %v3704 = vmin.f32 %v3703, %v3307
        %3705 = vmin.xlane.f32.xlu0 %v3704
        %v3706 = vpop.xlane.xlu0 %3705
        %v3707 = vmin.f32 %v3308, %v3309
        %v3708 = vmin.f32 %v3707, %v3310
        %3709 = vmin.xlane.f32.xlu0 %v3708
        %v3710 = vpop.xlane.xlu0 %3709
        %v3711 = vmin.f32 %v3311, %v3312
        %v3712 = vmin.f32 %v3711, %v3313
        %3713 = vmin.xlane.f32.xlu0 %v3712
        %v3714 = vpop.xlane.xlu0 %3713
        %v3715 = vmin.f32 %v3314, %v3315
        %v3716 = vmin.f32 %v3715, %v3316
        %3717 = vmin.xlane.f32.xlu0 %v3716
        %v3718 = vpop.xlane.xlu0 %3717
        %v3719 = vmin.f32 %v3317, %v3318
        %v3720 = vmin.f32 %v3719, %v3319
        %3721 = vmin.xlane.f32.xlu0 %v3720
        %v3722 = vpop.xlane.xlu0 %3721
        %v3723 = vmin.f32 %v3320, %v3321
        %v3724 = vmin.f32 %v3723, %v3322
        %3725 = vmin.xlane.f32.xlu0 %v3724
        %v3726 = vpop.xlane.xlu0 %3725
        %v3727 = vmin.f32 %v3323, %v3324
        %v3728 = vmin.f32 %v3727, %v3325
        %3729 = vmin.xlane.f32.xlu0 %v3728
        %v3730 = vpop.xlane.xlu0 %3729
        %v3731 = vmin.f32 %v3326, %v3327
        %v3732 = vmin.f32 %v3731, %v3328
        %3733 = vmin.xlane.f32.xlu0 %v3732
        %v3734 = vpop.xlane.xlu0 %3733
        %v3735 = vmin.f32 %v3329, %v3330
        %v3736 = vmin.f32 %v3735, %v3331
        %3737 = vmin.xlane.f32.xlu0 %v3736
        %v3738 = vpop.xlane.xlu0 %3737
        %v3739 = vmin.f32 %v3332, %v3333
        %v3740 = vmin.f32 %v3739, %v3334
        %3741 = vmin.xlane.f32.xlu0 %v3740
        %v3742 = vpop.xlane.xlu0 %3741
        %v3743 = vmin.f32 %v3335, %v3336
        %v3744 = vmin.f32 %v3743, %v3337
        %3745 = vmin.xlane.f32.xlu0 %v3744
        %v3746 = vpop.xlane.xlu0 %3745
        %v3747 = vmin.f32 %v3338, %v3339
        %v3748 = vmin.f32 %v3747, %v3340
        %3749 = vmin.xlane.f32.xlu0 %v3748
        %v3750 = vpop.xlane.xlu0 %3749
        %v3751 = vmin.f32 %v3341, %v3342
        %v3752 = vmin.f32 %v3751, %v3343
        %3753 = vmin.xlane.f32.xlu0 %v3752
        %v3754 = vpop.xlane.xlu0 %3753
        %v3755 = vmin.f32 %v3344, %v3345
        %v3756 = vmin.f32 %v3755, %v3346
        %3757 = vmin.xlane.f32.xlu0 %v3756
        %v3758 = vpop.xlane.xlu0 %3757
        %v3759 = vmin.f32 %v3347, %v3348
        %v3760 = vmin.f32 %v3759, %v3349
        %3761 = vmin.xlane.f32.xlu0 %v3760
        %v3762 = vpop.xlane.xlu0 %3761
        %v3763 = vmin.f32 %v3350, %v3351
        %v3764 = vmin.f32 %v3763, %v3352
        %3765 = vmin.xlane.f32.xlu0 %v3764
        %v3766 = vpop.xlane.xlu0 %3765
        %v3767 = vmin.f32 %v3353, %v3354
        %v3768 = vmin.f32 %v3767, %v3355
        %3769 = vmin.xlane.f32.xlu0 %v3768
        %v3770 = vpop.xlane.xlu0 %3769
        %v3771 = vmin.f32 %v3356, %v3357
        %v3772 = vmin.f32 %v3771, %v3358
        %3773 = vmin.xlane.f32.xlu0 %v3772
        %v3774 = vpop.xlane.xlu0 %3773
        %v3775 = vmin.f32 %v3359, %v3360
        %v3776 = vmin.f32 %v3775, %v3361
        %3777 = vmin.xlane.f32.xlu0 %v3776
        %v3778 = vpop.xlane.xlu0 %3777
        %v3779 = vmin.f32 %v3362, %v3363
        %v3780 = vmin.f32 %v3779, %v3364
        %3781 = vmin.xlane.f32.xlu0 %v3780
        %v3782 = vpop.xlane.xlu0 %3781
        %v3783 = vmin.f32 %v3365, %v3366
        %v3784 = vmin.f32 %v3783, %v3367
        %3785 = vmin.xlane.f32.xlu0 %v3784
        %v3786 = vpop.xlane.xlu0 %3785
        %v3787 = vmin.f32 %v3368, %v3369
        %v3788 = vmin.f32 %v3787, %v3370
        %3789 = vmin.xlane.f32.xlu0 %v3788
        %v3790 = vpop.xlane.xlu0 %3789
        %v3791 = vmin.f32 %v3371, %v3372
        %v3792 = vmin.f32 %v3791, %v3373
        %3793 = vmin.xlane.f32.xlu0 %v3792
        %v3794 = vpop.xlane.xlu0 %3793
        %v3795 = vmin.f32 %v3374, %v3375
        %v3796 = vmin.f32 %v3795, %v3376
        %3797 = vmin.xlane.f32.xlu0 %v3796
        %v3798 = vpop.xlane.xlu0 %3797
        %v3799 = vmin.f32 %v3377, %v3378
        %v3800 = vmin.f32 %v3799, %v3379
        %3801 = vmin.xlane.f32.xlu0 %v3800
        %v3802 = vpop.xlane.xlu0 %3801
        %v3803 = vmin.f32 %v3380, %v3381
        %v3804 = vmin.f32 %v3803, %v3382
        %3805 = vmin.xlane.f32.xlu0 %v3804
        %v3806 = vpop.xlane.xlu0 %3805
        %v3807 = vmin.f32 %v3383, %v3384
        %v3808 = vmin.f32 %v3807, %v3385
        %3809 = vmin.xlane.f32.xlu0 %v3808
        %v3810 = vpop.xlane.xlu0 %3809
        %v3811 = vmin.f32 %v3386, %v3387
        %v3812 = vmin.f32 %v3811, %v3388
        %3813 = vmin.xlane.f32.xlu0 %v3812
        %v3814 = vpop.xlane.xlu0 %3813
        %v3815 = vmin.f32 %v3389, %v3390
        %v3816 = vmin.f32 %v3815, %v3391
        %3817 = vmin.xlane.f32.xlu0 %v3816
        %v3818 = vpop.xlane.xlu0 %3817
        %v3819 = vmin.f32 %v3392, %v3393
        %v3820 = vmin.f32 %v3819, %v3394
        %3821 = vmin.xlane.f32.xlu0 %v3820
        %v3822 = vpop.xlane.xlu0 %3821
        %v3823 = vmin.f32 %v3395, %v3396
        %v3824 = vmin.f32 %v3823, %v3397
        %3825 = vmin.xlane.f32.xlu0 %v3824
        %v3826 = vpop.xlane.xlu0 %3825
        %v3827 = vmin.f32 %v3398, %v3399
        %v3828 = vmin.f32 %v3827, %v3400
        %3829 = vmin.xlane.f32.xlu0 %v3828
        %v3830 = vpop.xlane.xlu0 %3829
        %v3831 = vmin.f32 %v3401, %v3402
        %v3832 = vmin.f32 %v3831, %v3403
        %3833 = vmin.xlane.f32.xlu0 %v3832
        %v3834 = vpop.xlane.xlu0 %3833
        %v3835 = vmin.f32 %v3404, %v3405
        %v3836 = vmin.f32 %v3835, %v3406
        %3837 = vmin.xlane.f32.xlu0 %v3836
        %v3838 = vpop.xlane.xlu0 %3837
        %v3839 = vmin.f32 %v3407, %v3408
        %v3840 = vmin.f32 %v3839, %v3409
        %3841 = vmin.xlane.f32.xlu0 %v3840
        %v3842 = vpop.xlane.xlu0 %3841
        %v3843 = vmin.f32 %v3410, %v3411
        %v3844 = vmin.f32 %v3843, %v3412
        %3845 = vmin.xlane.f32.xlu0 %v3844
        %v3846 = vpop.xlane.xlu0 %3845
        %v3847 = vmin.f32 %v3413, %v3414
        %v3848 = vmin.f32 %v3847, %v3415
        %3849 = vmin.xlane.f32.xlu0 %v3848
        %v3850 = vpop.xlane.xlu0 %3849
        %v3851 = vmin.f32 %v3416, %v3417
        %v3852 = vmin.f32 %v3851, %v3418
        %3853 = vmin.xlane.f32.xlu0 %v3852
        %v3854 = vpop.xlane.xlu0 %3853
        %v3855 = vmin.f32 %v3419, %v3420
        %v3856 = vmin.f32 %v3855, %v3421
        %3857 = vmin.xlane.f32.xlu0 %v3856
        %v3858 = vpop.xlane.xlu0 %3857
        %v3859 = vmin.f32 %v3422, %v3423
        %v3860 = vmin.f32 %v3859, %v3424
        %3861 = vmin.xlane.f32.xlu0 %v3860
        %v3862 = vpop.xlane.xlu0 %3861
        %v3863 = vmin.f32 %v3425, %v3426
        %v3864 = vmin.f32 %v3863, %v3427
        %3865 = vmin.xlane.f32.xlu0 %v3864
        %v3866 = vpop.xlane.xlu0 %3865
        %v3867 = vmin.f32 %v3428, %v3429
        %v3868 = vmin.f32 %v3867, %v3430
        %3869 = vmin.xlane.f32.xlu0 %v3868
        %v3870 = vpop.xlane.xlu0 %3869
        %v3871 = vmin.f32 %v3431, %v3432
        %v3872 = vmin.f32 %v3871, %v3433
        %3873 = vmin.xlane.f32.xlu0 %v3872
        %v3874 = vpop.xlane.xlu0 %3873
        %v3875 = vmin.f32 %v3434, %v3435
        %v3876 = vmin.f32 %v3875, %v3436
        %3877 = vmin.xlane.f32.xlu0 %v3876
        %v3878 = vpop.xlane.xlu0 %3877
        %v3879 = vmin.f32 %v3437, %v3438
        %v3880 = vmin.f32 %v3879, %v3439
        %3881 = vmin.xlane.f32.xlu0 %v3880
        %v3882 = vpop.xlane.xlu0 %3881
        %v3883 = vmin.f32 %v3440, %v3441
        %v3884 = vmin.f32 %v3883, %v3442
        %3885 = vmin.xlane.f32.xlu0 %v3884
        %v3886 = vpop.xlane.xlu0 %3885
        %v3887 = vmin.f32 %v3443, %v3444
        %v3888 = vmin.f32 %v3887, %v3445
        %3889 = vmin.xlane.f32.xlu0 %v3888
        %v3890 = vpop.xlane.xlu0 %3889
        %v3891 = vmin.f32 %v3446, %v3447
        %v3892 = vmin.f32 %v3891, %v3448
        %3893 = vmin.xlane.f32.xlu0 %v3892
        %v3894 = vpop.xlane.xlu0 %3893
        %v3895 = vmin.f32 %v3449, %v3450
        %v3896 = vmin.f32 %v3895, %v3451
        %3897 = vmin.xlane.f32.xlu0 %v3896
        %v3898 = vpop.xlane.xlu0 %3897
        %v3899 = vmin.f32 %v3452, %v3453
        %v3900 = vmin.f32 %v3899, %v3454
        %3901 = vmin.xlane.f32.xlu0 %v3900
        %v3902 = vpop.xlane.xlu0 %3901
        %v3903 = vmin.f32 %v3455, %v3456
        %v3904 = vmin.f32 %v3903, %v3457
        %3905 = vmin.xlane.f32.xlu0 %v3904
        %v3906 = vpop.xlane.xlu0 %3905
        %v3907 = vmin.f32 %v3458, %v3459
        %v3908 = vmin.f32 %v3907, %v3460
        %3909 = vmin.xlane.f32.xlu0 %v3908
        %v3910 = vpop.xlane.xlu0 %3909
        %v3911 = vmin.f32 %v3461, %v3462
        %v3912 = vmin.f32 %v3911, %v3463
        %3913 = vmin.xlane.f32.xlu0 %v3912
        %v3914 = vpop.xlane.xlu0 %3913
        %v3915 = vmin.f32 %v3464, %v3465
        %v3916 = vmin.f32 %v3915, %v3466
        %3917 = vmin.xlane.f32.xlu0 %v3916
        %v3918 = vpop.xlane.xlu0 %3917
        %v3919 = vmin.f32 %v3467, %v3468
        %v3920 = vmin.f32 %v3919, %v3469
        %3921 = vmin.xlane.f32.xlu0 %v3920
        %v3922 = vpop.xlane.xlu0 %3921
        %v3923 = vmin.f32 %v3470, %v3471
        %v3924 = vmin.f32 %v3923, %v3472
        %3925 = vmin.xlane.f32.xlu0 %v3924
        %v3926 = vpop.xlane.xlu0 %3925
        %v3927 = vmin.f32 %v3473, %v3474
        %v3928 = vmin.f32 %v3927, %v3475
        %3929 = vmin.xlane.f32.xlu0 %v3928
        %v3930 = vpop.xlane.xlu0 %3929
        %v3931 = vmin.f32 %v3476, %v3477
        %v3932 = vmin.f32 %v3931, %v3478
        %3933 = vmin.xlane.f32.xlu0 %v3932
        %v3934 = vpop.xlane.xlu0 %3933
        %v3935 = vmin.f32 %v3479, %v3480
        %v3936 = vmin.f32 %v3935, %v3481
        %3937 = vmin.xlane.f32.xlu0 %v3936
        %v3938 = vpop.xlane.xlu0 %3937
        %v3939 = vmin.f32 %v3482, %v3483
        %v3940 = vmin.f32 %v3939, %v3484
        %3941 = vmin.xlane.f32.xlu0 %v3940
        %v3942 = vpop.xlane.xlu0 %3941
        %v3943 = vmin.f32 %v3485, %v3486
        %v3944 = vmin.f32 %v3943, %v3487
        %3945 = vmin.xlane.f32.xlu0 %v3944
        %v3946 = vpop.xlane.xlu0 %3945
        %v3947 = vmin.f32 %v3488, %v3489
        %v3948 = vmin.f32 %v3947, %v3490
        %3949 = vmin.xlane.f32.xlu0 %v3948
        %v3950 = vpop.xlane.xlu0 %3949
        %v3951 = vmin.f32 %v3491, %v3492
        %v3952 = vmin.f32 %v3951, %v3493
        %3953 = vmin.xlane.f32.xlu0 %v3952
        %v3954 = vpop.xlane.xlu0 %3953
        %v3955 = vmin.f32 %v3494, %v3495
        %v3956 = vmin.f32 %v3955, %v3496
        %3957 = vmin.xlane.f32.xlu0 %v3956
        %v3958 = vpop.xlane.xlu0 %3957
        %v3959 = vmin.f32 %v3497, %v3498
        %v3960 = vmin.f32 %v3959, %v3499
        %3961 = vmin.xlane.f32.xlu0 %v3960
        %v3962 = vpop.xlane.xlu0 %3961
        %v3963 = vmin.f32 %v3500, %v3501
        %v3964 = vmin.f32 %v3963, %v3502
        %3965 = vmin.xlane.f32.xlu0 %v3964
        %v3966 = vpop.xlane.xlu0 %3965
        %v3967 = vmin.f32 %v3503, %v3504
        %v3968 = vmin.f32 %v3967, %v3505
        %3969 = vmin.xlane.f32.xlu0 %v3968
        %v3970 = vpop.xlane.xlu0 %3969
        %v3971 = vmin.f32 %v3506, %v3507
        %v3972 = vmin.f32 %v3971, %v3508
        %3973 = vmin.xlane.f32.xlu0 %v3972
        %v3974 = vpop.xlane.xlu0 %3973
        %v3975 = vmin.f32 %v3509, %v3510
        %v3976 = vmin.f32 %v3975, %v3511
        %3977 = vmin.xlane.f32.xlu0 %v3976
        %v3978 = vpop.xlane.xlu0 %3977
        %v3979 = vmin.f32 %v3512, %v3513
        %v3980 = vmin.f32 %v3979, %v3514
        %3981 = vmin.xlane.f32.xlu0 %v3980
        %v3982 = vpop.xlane.xlu0 %3981
        %v3983 = vmin.f32 %v3515, %v3516
        %v3984 = vmin.f32 %v3983, %v3517
        %3985 = vmin.xlane.f32.xlu0 %v3984
        %v3986 = vpop.xlane.xlu0 %3985
        %v3987 = vmin.f32 %v3518, %v3519
        %v3988 = vmin.f32 %v3987, %v3520
        %3989 = vmin.xlane.f32.xlu0 %v3988
        %v3990 = vpop.xlane.xlu0 %3989
        %v3991 = vmin.f32 %v3521, %v3522
        %v3992 = vmin.f32 %v3991, %v3523
        %3993 = vmin.xlane.f32.xlu0 %v3992
        %v3994 = vpop.xlane.xlu0 %3993
        %v3995 = vmin.f32 %v3524, %v3525
        %v3996 = vmin.f32 %v3995, %v3526
        %3997 = vmin.xlane.f32.xlu0 %v3996
        %v3998 = vpop.xlane.xlu0 %3997
        %v3999 = vmin.f32 %v3527, %v3528
        %v4000 = vmin.f32 %v3999, %v3529
        %4001 = vmin.xlane.f32.xlu0 %v4000
        %v4002 = vpop.xlane.xlu0 %4001
        %v4003 = vmin.f32 %v3530, %v3531
        %v4004 = vmin.f32 %v4003, %v3532
        %4005 = vmin.xlane.f32.xlu0 %v4004
        %v4006 = vpop.xlane.xlu0 %4005
        %v4007 = vmin.f32 %v3533, %v3534
        %v4008 = vmin.f32 %v4007, %v3535
        %4009 = vmin.xlane.f32.xlu0 %v4008
        %v4010 = vpop.xlane.xlu0 %4009
        %v4011 = vmin.f32 %v3536, %v3537
        %v4012 = vmin.f32 %v4011, %v3538
        %4013 = vmin.xlane.f32.xlu0 %v4012
        %v4014 = vpop.xlane.xlu0 %4013
        %v4015 = vmin.f32 %v3539, %v3540
        %v4016 = vmin.f32 %v4015, %v3541
        %4017 = vmin.xlane.f32.xlu0 %v4016
        %v4018 = vpop.xlane.xlu0 %4017
        %v4019 = vmin.f32 %v3542, %v3543
        %v4020 = vmin.f32 %v4019, %v3544
        %4021 = vmin.xlane.f32.xlu0 %v4020
        %v4022 = vpop.xlane.xlu0 %4021
        %v4023 = vmin.f32 %v3545, %v3546
        %v4024 = vmin.f32 %v4023, %v3547
        %4025 = vmin.xlane.f32.xlu0 %v4024
        %v4026 = vpop.xlane.xlu0 %4025
        %v4027 = vmin.f32 %v3548, %v3549
        %v4028 = vmin.f32 %v4027, %v3550
        %4029 = vmin.xlane.f32.xlu0 %v4028
        %v4030 = vpop.xlane.xlu0 %4029
        %v4031 = vmin.f32 %v3551, %v3552
        %v4032 = vmin.f32 %v4031, %v3553
        %4033 = vmin.xlane.f32.xlu0 %v4032
        %v4034 = vpop.xlane.xlu0 %4033
        %v4035 = vmin.f32 %v3554, %v3555
        %v4036 = vmin.f32 %v4035, %v3556
        %4037 = vmin.xlane.f32.xlu0 %v4036
        %v4038 = vpop.xlane.xlu0 %4037
        %v4039 = vmin.f32 %v3557, %v3558
        %v4040 = vmin.f32 %v4039, %v3559
        %4041 = vmin.xlane.f32.xlu0 %v4040
        %v4042 = vpop.xlane.xlu0 %4041
        %v4043 = vmin.f32 %v3560, %v3561
        %v4044 = vmin.f32 %v4043, %v3562
        %4045 = vmin.xlane.f32.xlu0 %v4044
        %v4046 = vpop.xlane.xlu0 %4045
        %v4047 = vmin.f32 %v3563, %v3564
        %v4048 = vmin.f32 %v4047, %v3565
        %4049 = vmin.xlane.f32.xlu0 %v4048
        %v4050 = vpop.xlane.xlu0 %4049
        %v4051 = vmin.f32 %v3566, %v3567
        %v4052 = vmin.f32 %v4051, %v3568
        %4053 = vmin.xlane.f32.xlu0 %v4052
        %v4054 = vpop.xlane.xlu0 %4053
        %v4055 = vmin.f32 %v3569, %v3570
        %v4056 = vmin.f32 %v4055, %v3571
        %4057 = vmin.xlane.f32.xlu0 %v4056
        %v4058 = vpop.xlane.xlu0 %4057
        %v4059 = vmin.f32 %v3572, %v3573
        %v4060 = vmin.f32 %v4059, %v3574
        %4061 = vmin.xlane.f32.xlu0 %v4060
        %v4062 = vpop.xlane.xlu0 %4061
        %v4063 = vmin.f32 %v3575, %v3576
        %v4064 = vmin.f32 %v4063, %v3577
        %4065 = vmin.xlane.f32.xlu0 %v4064
        %v4066 = vpop.xlane.xlu0 %4065
        %v4067 = vmin.f32 %v3578, %v3579
        %v4068 = vmin.f32 %v4067, %v3580
        %4069 = vmin.xlane.f32.xlu0 %v4068
        %v4070 = vpop.xlane.xlu0 %4069
        %v4071 = vmin.f32 %v3581, %v3582
        %v4072 = vmin.f32 %v4071, %v3583
        %4073 = vmin.xlane.f32.xlu0 %v4072
        %v4074 = vpop.xlane.xlu0 %4073
        %v4075 = vmin.f32 %v3584, %v3585
        %v4076 = vmin.f32 %v4075, %v3586
        %4077 = vmin.xlane.f32.xlu0 %v4076
        %v4078 = vpop.xlane.xlu0 %4077
        %v4079 = vmin.f32 %v3587, %v3588
        %v4080 = vmin.f32 %v4079, %v3589
        %4081 = vmin.xlane.f32.xlu0 %v4080
        %v4082 = vpop.xlane.xlu0 %4081
        %v4083 = vmin.f32 %v3590, %v3591
        %v4084 = vmin.f32 %v4083, %v3592
        %4085 = vmin.xlane.f32.xlu0 %v4084
        %v4086 = vpop.xlane.xlu0 %4085
        %v4087 = vmin.f32 %v3593, %v3594
        %v4088 = vmin.f32 %v4087, %v3595
        %4089 = vmin.xlane.f32.xlu0 %v4088
        %v4090 = vpop.xlane.xlu0 %4089
        %v4091 = vmin.f32 %v3596, %v3597
        %v4092 = vmin.f32 %v4091, %v3598
        %4093 = vmin.xlane.f32.xlu0 %v4092
        %v4094 = vpop.xlane.xlu0 %4093
        %v4095 = vmin.f32 %v3599, %v3600
        %v4096 = vmin.f32 %v4095, %v3601
        %4097 = vmin.xlane.f32.xlu0 %v4096
        %v4098 = vpop.xlane.xlu0 %4097
        %v4099 = vmin.f32 %v3602, %v3603
        %v4100 = vmin.f32 %v4099, %v3604
        %4101 = vmin.xlane.f32.xlu0 %v4100
        %v4102 = vpop.xlane.xlu0 %4101
        %v4103 = vmin.f32 %v3605, %v3606
        %v4104 = vmin.f32 %v4103, %v3607
        %4105 = vmin.xlane.f32.xlu0 %v4104
        %v4106 = vpop.xlane.xlu0 %4105
        %v4107 = vmin.f32 %v3608, %v3609
        %v4108 = vmin.f32 %v4107, %v3610
        %4109 = vmin.xlane.f32.xlu0 %v4108
        %v4110 = vpop.xlane.xlu0 %4109
        %v4111 = vmin.f32 %v3611, %v3612
        %v4112 = vmin.f32 %v4111, %v3613
        %4113 = vmin.xlane.f32.xlu0 %v4112
        %v4114 = vpop.xlane.xlu0 %4113
        %v4115 = vmin.f32 %v3614, %v3615
        %v4116 = vmin.f32 %v4115, %v3616
        %4117 = vmin.xlane.f32.xlu0 %v4116
        %v4118 = vpop.xlane.xlu0 %4117
        %v4119 = vmin.f32 %v3617, %v3618
        %v4120 = vmin.f32 %v4119, %v3619
        %4121 = vmin.xlane.f32.xlu0 %v4120
        %v4122 = vpop.xlane.xlu0 %4121
        %v4123 = vmin.f32 %v3620, %v3621
        %v4124 = vmin.f32 %v4123, %v3622
        %4125 = vmin.xlane.f32.xlu0 %v4124
        %v4126 = vpop.xlane.xlu0 %4125
        %v4127 = vmin.f32 %v3623, %v3624
        %v4128 = vmin.f32 %v4127, %v3625
        %4129 = vmin.xlane.f32.xlu0 %v4128
        %v4130 = vpop.xlane.xlu0 %4129
        %v4131 = vmin.f32 %v3626, %v3627
        %v4132 = vmin.f32 %v4131, %v3628
        %4133 = vmin.xlane.f32.xlu0 %v4132
        %v4134 = vpop.xlane.xlu0 %4133
        %v4135 = vmin.f32 %v3629, %v3630
        %v4136 = vmin.f32 %v4135, %v3631
        %4137 = vmin.xlane.f32.xlu0 %v4136
        %v4138 = vpop.xlane.xlu0 %4137
        %v4139 = vmin.f32 %v3632, %v3633
        %v4140 = vmin.f32 %v4139, %v3634
        %4141 = vmin.xlane.f32.xlu0 %v4140
        %v4142 = vpop.xlane.xlu0 %4141
        %v4143 = vmin.f32 %v3635, %v3636
        %v4144 = vmin.f32 %v4143, %v3637
        %4145 = vmin.xlane.f32.xlu0 %v4144
        %v4146 = vpop.xlane.xlu0 %4145
        %v4147 = vmin.f32 %v3638, %v3639
        %v4148 = vmin.f32 %v4147, %v3640
        %4149 = vmin.xlane.f32.xlu0 %v4148
        %v4150 = vpop.xlane.xlu0 %4149
        %v4151 = vmin.f32 %v3641, %v3642
        %v4152 = vmin.f32 %v4151, %v3643
        %4153 = vmin.xlane.f32.xlu0 %v4152
        %v4154 = vpop.xlane.xlu0 %4153
        %v4155 = vmin.f32 %v3644, %v3645
        %v4156 = vmin.f32 %v4155, %v3646
        %4157 = vmin.xlane.f32.xlu0 %v4156
        %v4158 = vpop.xlane.xlu0 %4157
        %v4159 = vmin.f32 %v3263, %v3266
        %v4160 = vmin.f32 %v4159, %v3269
        %v4161 = vmin.f32 %v4160, %v3272
        %v4162 = vmin.f32 %v4161, %v3275
        %v4163 = vmin.f32 %v4162, %v3278
        %v4164 = vmin.f32 %v4163, %v3281
        %v4165 = vmin.f32 %v4164, %v3284
        %v4166 = vmin.f32 %v4165, %v3287
        %v4167 = vmin.f32 %v4166, %v3290
        %v4168 = vmin.f32 %v4167, %v3293
        %v4169 = vmin.f32 %v4168, %v3296
        %v4170 = vmin.f32 %v4169, %v3299
        %v4171 = vmin.f32 %v4170, %v3302
        %v4172 = vmin.f32 %v4171, %v3305
        %v4173 = vmin.f32 %v4172, %v3308
        %v4174 = vmin.f32 %v4173, %v3311
        %v4175 = vmin.f32 %v4174, %v3314
        %v4176 = vmin.f32 %v4175, %v3317
        %v4177 = vmin.f32 %v4176, %v3320
        %v4178 = vmin.f32 %v4177, %v3323
        %v4179 = vmin.f32 %v4178, %v3326
        %v4180 = vmin.f32 %v4179, %v3329
        %v4181 = vmin.f32 %v4180, %v3332
        %v4182 = vmin.f32 %v4181, %v3335
        %v4183 = vmin.f32 %v4182, %v3338
        %v4184 = vmin.f32 %v4183, %v3341
        %v4185 = vmin.f32 %v4184, %v3344
        %v4186 = vmin.f32 %v4185, %v3347
        %v4187 = vmin.f32 %v4186, %v3350
        %v4188 = vmin.f32 %v4187, %v3353
        %v4189 = vmin.f32 %v4188, %v3356
        %v4190 = vrot.slane %v4189, 4
        %v4191 = vmin.f32 %v4189, %v4190
        %v4192 = vrot.slane %v4191, 2
        %v4193 = vmin.f32 %v4191, %v4192
        %v4194 = vrot.slane %v4193, 1
        %v4195 = vmin.f32 %v4193, %v4194
        %v4196 = vmin.f32 %v3264, %v3267
        %v4197 = vmin.f32 %v4196, %v3270
        %v4198 = vmin.f32 %v4197, %v3273
        %v4199 = vmin.f32 %v4198, %v3276
        %v4200 = vmin.f32 %v4199, %v3279
        %v4201 = vmin.f32 %v4200, %v3282
        %v4202 = vmin.f32 %v4201, %v3285
        %v4203 = vmin.f32 %v4202, %v3288
        %v4204 = vmin.f32 %v4203, %v3291
        %v4205 = vmin.f32 %v4204, %v3294
        %v4206 = vmin.f32 %v4205, %v3297
        %v4207 = vmin.f32 %v4206, %v3300
        %v4208 = vmin.f32 %v4207, %v3303
        %v4209 = vmin.f32 %v4208, %v3306
        %v4210 = vmin.f32 %v4209, %v3309
        %v4211 = vmin.f32 %v4210, %v3312
        %v4212 = vmin.f32 %v4211, %v3315
        %v4213 = vmin.f32 %v4212, %v3318
        %v4214 = vmin.f32 %v4213, %v3321
        %v4215 = vmin.f32 %v4214, %v3324
        %v4216 = vmin.f32 %v4215, %v3327
        %v4217 = vmin.f32 %v4216, %v3330
        %v4218 = vmin.f32 %v4217, %v3333
        %v4219 = vmin.f32 %v4218, %v3336
        %v4220 = vmin.f32 %v4219, %v3339
        %v4221 = vmin.f32 %v4220, %v3342
        %v4222 = vmin.f32 %v4221, %v3345
        %v4223 = vmin.f32 %v4222, %v3348
        %v4224 = vmin.f32 %v4223, %v3351
        %v4225 = vmin.f32 %v4224, %v3354
        %v4226 = vmin.f32 %v4225, %v3357
        %v4227 = vrot.slane %v4226, 4
        %v4228 = vmin.f32 %v4226, %v4227
        %v4229 = vrot.slane %v4228, 2
        %v4230 = vmin.f32 %v4228, %v4229
        %v4231 = vrot.slane %v4230, 1
        %v4232 = vmin.f32 %v4230, %v4231
        %v4233 = vmin.f32 %v3265, %v3268
        %v4234 = vmin.f32 %v4233, %v3271
        %v4235 = vmin.f32 %v4234, %v3274
        %v4236 = vmin.f32 %v4235, %v3277
        %v4237 = vmin.f32 %v4236, %v3280
        %v4238 = vmin.f32 %v4237, %v3283
        %v4239 = vmin.f32 %v4238, %v3286
        %v4240 = vmin.f32 %v4239, %v3289
        %v4241 = vmin.f32 %v4240, %v3292
        %v4242 = vmin.f32 %v4241, %v3295
        %v4243 = vmin.f32 %v4242, %v3298
        %v4244 = vmin.f32 %v4243, %v3301
        %v4245 = vmin.f32 %v4244, %v3304
        %v4246 = vmin.f32 %v4245, %v3307
        %v4247 = vmin.f32 %v4246, %v3310
        %v4248 = vmin.f32 %v4247, %v3313
        %v4249 = vmin.f32 %v4248, %v3316
        %v4250 = vmin.f32 %v4249, %v3319
        %v4251 = vmin.f32 %v4250, %v3322
        %v4252 = vmin.f32 %v4251, %v3325
        %v4253 = vmin.f32 %v4252, %v3328
        %v4254 = vmin.f32 %v4253, %v3331
        %v4255 = vmin.f32 %v4254, %v3334
        %v4256 = vmin.f32 %v4255, %v3337
        %v4257 = vmin.f32 %v4256, %v3340
        %v4258 = vmin.f32 %v4257, %v3343
        %v4259 = vmin.f32 %v4258, %v3346
        %v4260 = vmin.f32 %v4259, %v3349
        %v4261 = vmin.f32 %v4260, %v3352
        %v4262 = vmin.f32 %v4261, %v3355
        %v4263 = vmin.f32 %v4262, %v3358
        %v4264 = vrot.slane %v4263, 4
        %v4265 = vmin.f32 %v4263, %v4264
        %v4266 = vrot.slane %v4265, 2
        %v4267 = vmin.f32 %v4265, %v4266
        %v4268 = vrot.slane %v4267, 1
        %v4269 = vmin.f32 %v4267, %v4268
        %v4270 = vmin.f32 %v3359, %v3362
        %v4271 = vmin.f32 %v4270, %v3365
        %v4272 = vmin.f32 %v4271, %v3368
        %v4273 = vmin.f32 %v4272, %v3371
        %v4274 = vmin.f32 %v4273, %v3374
        %v4275 = vmin.f32 %v4274, %v3377
        %v4276 = vmin.f32 %v4275, %v3380
        %v4277 = vmin.f32 %v4276, %v3383
        %v4278 = vmin.f32 %v4277, %v3386
        %v4279 = vmin.f32 %v4278, %v3389
        %v4280 = vmin.f32 %v4279, %v3392
        %v4281 = vmin.f32 %v4280, %v3395
        %v4282 = vmin.f32 %v4281, %v3398
        %v4283 = vmin.f32 %v4282, %v3401
        %v4284 = vmin.f32 %v4283, %v3404
        %v4285 = vmin.f32 %v4284, %v3407
        %v4286 = vmin.f32 %v4285, %v3410
        %v4287 = vmin.f32 %v4286, %v3413
        %v4288 = vmin.f32 %v4287, %v3416
        %v4289 = vmin.f32 %v4288, %v3419
        %v4290 = vmin.f32 %v4289, %v3422
        %v4291 = vmin.f32 %v4290, %v3425
        %v4292 = vmin.f32 %v4291, %v3428
        %v4293 = vmin.f32 %v4292, %v3431
        %v4294 = vmin.f32 %v4293, %v3434
        %v4295 = vmin.f32 %v4294, %v3437
        %v4296 = vmin.f32 %v4295, %v3440
        %v4297 = vmin.f32 %v4296, %v3443
        %v4298 = vmin.f32 %v4297, %v3446
        %v4299 = vmin.f32 %v4298, %v3449
        %v4300 = vmin.f32 %v4299, %v3452
        %v4301 = vrot.slane %v4300, 4
        %v4302 = vmin.f32 %v4300, %v4301
        %v4303 = vrot.slane %v4302, 2
        %v4304 = vmin.f32 %v4302, %v4303
        %v4305 = vrot.slane %v4304, 1
        %v4306 = vmin.f32 %v4304, %v4305
        %v4307 = vmin.f32 %v3360, %v3363
        %v4308 = vmin.f32 %v4307, %v3366
        %v4309 = vmin.f32 %v4308, %v3369
        %v4310 = vmin.f32 %v4309, %v3372
        %v4311 = vmin.f32 %v4310, %v3375
        %v4312 = vmin.f32 %v4311, %v3378
        %v4313 = vmin.f32 %v4312, %v3381
        %v4314 = vmin.f32 %v4313, %v3384
        %v4315 = vmin.f32 %v4314, %v3387
        %v4316 = vmin.f32 %v4315, %v3390
        %v4317 = vmin.f32 %v4316, %v3393
        %v4318 = vmin.f32 %v4317, %v3396
        %v4319 = vmin.f32 %v4318, %v3399
        %v4320 = vmin.f32 %v4319, %v3402
        %v4321 = vmin.f32 %v4320, %v3405
        %v4322 = vmin.f32 %v4321, %v3408
        %v4323 = vmin.f32 %v4322, %v3411
        %v4324 = vmin.f32 %v4323, %v3414
        %v4325 = vmin.f32 %v4324, %v3417
        %v4326 = vmin.f32 %v4325, %v3420
        %v4327 = vmin.f32 %v4326, %v3423
        %v4328 = vmin.f32 %v4327, %v3426
        %v4329 = vmin.f32 %v4328, %v3429
        %v4330 = vmin.f32 %v4329, %v3432
        %v4331 = vmin.f32 %v4330, %v3435
        %v4332 = vmin.f32 %v4331, %v3438
        %v4333 = vmin.f32 %v4332, %v3441
        %v4334 = vmin.f32 %v4333, %v3444
        %v4335 = vmin.f32 %v4334, %v3447
        %v4336 = vmin.f32 %v4335, %v3450
        %v4337 = vmin.f32 %v4336, %v3453
        %v4338 = vrot.slane %v4337, 4
        %v4339 = vmin.f32 %v4337, %v4338
        %v4340 = vrot.slane %v4339, 2
        %v4341 = vmin.f32 %v4339, %v4340
        %v4342 = vrot.slane %v4341, 1
        %v4343 = vmin.f32 %v4341, %v4342
        %v4344 = vmin.f32 %v3361, %v3364
        %v4345 = vmin.f32 %v4344, %v3367
        %v4346 = vmin.f32 %v4345, %v3370
        %v4347 = vmin.f32 %v4346, %v3373
        %v4348 = vmin.f32 %v4347, %v3376
        %v4349 = vmin.f32 %v4348, %v3379
        %v4350 = vmin.f32 %v4349, %v3382
        %v4351 = vmin.f32 %v4350, %v3385
        %v4352 = vmin.f32 %v4351, %v3388
        %v4353 = vmin.f32 %v4352, %v3391
        %v4354 = vmin.f32 %v4353, %v3394
        %v4355 = vmin.f32 %v4354, %v3397
        %v4356 = vmin.f32 %v4355, %v3400
        %v4357 = vmin.f32 %v4356, %v3403
        %v4358 = vmin.f32 %v4357, %v3406
        %v4359 = vmin.f32 %v4358, %v3409
        %v4360 = vmin.f32 %v4359, %v3412
        %v4361 = vmin.f32 %v4360, %v3415
        %v4362 = vmin.f32 %v4361, %v3418
        %v4363 = vmin.f32 %v4362, %v3421
        %v4364 = vmin.f32 %v4363, %v3424
        %v4365 = vmin.f32 %v4364, %v3427
        %v4366 = vmin.f32 %v4365, %v3430
        %v4367 = vmin.f32 %v4366, %v3433
        %v4368 = vmin.f32 %v4367, %v3436
        %v4369 = vmin.f32 %v4368, %v3439
        %v4370 = vmin.f32 %v4369, %v3442
        %v4371 = vmin.f32 %v4370, %v3445
        %v4372 = vmin.f32 %v4371, %v3448
        %v4373 = vmin.f32 %v4372, %v3451
        %v4374 = vmin.f32 %v4373, %v3454
        %v4375 = vrot.slane %v4374, 4
        %v4376 = vmin.f32 %v4374, %v4375
        %v4377 = vrot.slane %v4376, 2
        %v4378 = vmin.f32 %v4376, %v4377
        %v4379 = vrot.slane %v4378, 1
        %v4380 = vmin.f32 %v4378, %v4379
        %v4381 = vmin.f32 %v3455, %v3458
        %v4382 = vmin.f32 %v4381, %v3461
        %v4383 = vmin.f32 %v4382, %v3464
        %v4384 = vmin.f32 %v4383, %v3467
        %v4385 = vmin.f32 %v4384, %v3470
        %v4386 = vmin.f32 %v4385, %v3473
        %v4387 = vmin.f32 %v4386, %v3476
        %v4388 = vmin.f32 %v4387, %v3479
        %v4389 = vmin.f32 %v4388, %v3482
        %v4390 = vmin.f32 %v4389, %v3485
        %v4391 = vmin.f32 %v4390, %v3488
        %v4392 = vmin.f32 %v4391, %v3491
        %v4393 = vmin.f32 %v4392, %v3494
        %v4394 = vmin.f32 %v4393, %v3497
        %v4395 = vmin.f32 %v4394, %v3500
        %v4396 = vmin.f32 %v4395, %v3503
        %v4397 = vmin.f32 %v4396, %v3506
        %v4398 = vmin.f32 %v4397, %v3509
        %v4399 = vmin.f32 %v4398, %v3512
        %v4400 = vmin.f32 %v4399, %v3515
        %v4401 = vmin.f32 %v4400, %v3518
        %v4402 = vmin.f32 %v4401, %v3521
        %v4403 = vmin.f32 %v4402, %v3524
        %v4404 = vmin.f32 %v4403, %v3527
        %v4405 = vmin.f32 %v4404, %v3530
        %v4406 = vmin.f32 %v4405, %v3533
        %v4407 = vmin.f32 %v4406, %v3536
        %v4408 = vmin.f32 %v4407, %v3539
        %v4409 = vmin.f32 %v4408, %v3542
        %v4410 = vmin.f32 %v4409, %v3545
        %v4411 = vmin.f32 %v4410, %v3548
        %v4412 = vrot.slane %v4411, 4
        %v4413 = vmin.f32 %v4411, %v4412
        %v4414 = vrot.slane %v4413, 2
        %v4415 = vmin.f32 %v4413, %v4414
        %v4416 = vrot.slane %v4415, 1
        %v4417 = vmin.f32 %v4415, %v4416
        %v4418 = vmin.f32 %v3456, %v3459
        %v4419 = vmin.f32 %v4418, %v3462
        %v4420 = vmin.f32 %v4419, %v3465
        %v4421 = vmin.f32 %v4420, %v3468
        %v4422 = vmin.f32 %v4421, %v3471
        %v4423 = vmin.f32 %v4422, %v3474
        %v4424 = vmin.f32 %v4423, %v3477
        %v4425 = vmin.f32 %v4424, %v3480
        %v4426 = vmin.f32 %v4425, %v3483
        %v4427 = vmin.f32 %v4426, %v3486
        %v4428 = vmin.f32 %v4427, %v3489
        %v4429 = vmin.f32 %v4428, %v3492
        %v4430 = vmin.f32 %v4429, %v3495
        %v4431 = vmin.f32 %v4430, %v3498
        %v4432 = vmin.f32 %v4431, %v3501
        %v4433 = vmin.f32 %v4432, %v3504
        %v4434 = vmin.f32 %v4433, %v3507
        %v4435 = vmin.f32 %v4434, %v3510
        %v4436 = vmin.f32 %v4435, %v3513
        %v4437 = vmin.f32 %v4436, %v3516
        %v4438 = vmin.f32 %v4437, %v3519
        %v4439 = vmin.f32 %v4438, %v3522
        %v4440 = vmin.f32 %v4439, %v3525
        %v4441 = vmin.f32 %v4440, %v3528
        %v4442 = vmin.f32 %v4441, %v3531
        %v4443 = vmin.f32 %v4442, %v3534
        %v4444 = vmin.f32 %v4443, %v3537
        %v4445 = vmin.f32 %v4444, %v3540
        %v4446 = vmin.f32 %v4445, %v3543
        %v4447 = vmin.f32 %v4446, %v3546
        %v4448 = vmin.f32 %v4447, %v3549
        %v4449 = vrot.slane %v4448, 4
        %v4450 = vmin.f32 %v4448, %v4449
        %v4451 = vrot.slane %v4450, 2
        %v4452 = vmin.f32 %v4450, %v4451
        %v4453 = vrot.slane %v4452, 1
        %v4454 = vmin.f32 %v4452, %v4453
        %v4455 = vmin.f32 %v3457, %v3460
        %v4456 = vmin.f32 %v4455, %v3463
        %v4457 = vmin.f32 %v4456, %v3466
        %v4458 = vmin.f32 %v4457, %v3469
        %v4459 = vmin.f32 %v4458, %v3472
        %v4460 = vmin.f32 %v4459, %v3475
        %v4461 = vmin.f32 %v4460, %v3478
        %v4462 = vmin.f32 %v4461, %v3481
        %v4463 = vmin.f32 %v4462, %v3484
        %v4464 = vmin.f32 %v4463, %v3487
        %v4465 = vmin.f32 %v4464, %v3490
        %v4466 = vmin.f32 %v4465, %v3493
        %v4467 = vmin.f32 %v4466, %v3496
        %v4468 = vmin.f32 %v4467, %v3499
        %v4469 = vmin.f32 %v4468, %v3502
        %v4470 = vmin.f32 %v4469, %v3505
        %v4471 = vmin.f32 %v4470, %v3508
        %v4472 = vmin.f32 %v4471, %v3511
        %v4473 = vmin.f32 %v4472, %v3514
        %v4474 = vmin.f32 %v4473, %v3517
        %v4475 = vmin.f32 %v4474, %v3520
        %v4476 = vmin.f32 %v4475, %v3523
        %v4477 = vmin.f32 %v4476, %v3526
        %v4478 = vmin.f32 %v4477, %v3529
        %v4479 = vmin.f32 %v4478, %v3532
        %v4480 = vmin.f32 %v4479, %v3535
        %v4481 = vmin.f32 %v4480, %v3538
        %v4482 = vmin.f32 %v4481, %v3541
        %v4483 = vmin.f32 %v4482, %v3544
        %v4484 = vmin.f32 %v4483, %v3547
        %v4485 = vmin.f32 %v4484, %v3550
        %v4486 = vrot.slane %v4485, 4
        %v4487 = vmin.f32 %v4485, %v4486
        %v4488 = vrot.slane %v4487, 2
        %v4489 = vmin.f32 %v4487, %v4488
        %v4490 = vrot.slane %v4489, 1
        %v4491 = vmin.f32 %v4489, %v4490
        %v4492 = vmin.f32 %v3551, %v3554
        %v4493 = vmin.f32 %v4492, %v3557
        %v4494 = vmin.f32 %v4493, %v3560
        %v4495 = vmin.f32 %v4494, %v3563
        %v4496 = vmin.f32 %v4495, %v3566
        %v4497 = vmin.f32 %v4496, %v3569
        %v4498 = vmin.f32 %v4497, %v3572
        %v4499 = vmin.f32 %v4498, %v3575
        %v4500 = vmin.f32 %v4499, %v3578
        %v4501 = vmin.f32 %v4500, %v3581
        %v4502 = vmin.f32 %v4501, %v3584
        %v4503 = vmin.f32 %v4502, %v3587
        %v4504 = vmin.f32 %v4503, %v3590
        %v4505 = vmin.f32 %v4504, %v3593
        %v4506 = vmin.f32 %v4505, %v3596
        %v4507 = vmin.f32 %v4506, %v3599
        %v4508 = vmin.f32 %v4507, %v3602
        %v4509 = vmin.f32 %v4508, %v3605
        %v4510 = vmin.f32 %v4509, %v3608
        %v4511 = vmin.f32 %v4510, %v3611
        %v4512 = vmin.f32 %v4511, %v3614
        %v4513 = vmin.f32 %v4512, %v3617
        %v4514 = vmin.f32 %v4513, %v3620
        %v4515 = vmin.f32 %v4514, %v3623
        %v4516 = vmin.f32 %v4515, %v3626
        %v4517 = vmin.f32 %v4516, %v3629
        %v4518 = vmin.f32 %v4517, %v3632
        %v4519 = vmin.f32 %v4518, %v3635
        %v4520 = vmin.f32 %v4519, %v3638
        %v4521 = vmin.f32 %v4520, %v3641
        %v4522 = vmin.f32 %v4521, %v3644
        %v4523 = vrot.slane %v4522, 4
        %v4524 = vmin.f32 %v4522, %v4523
        %v4525 = vrot.slane %v4524, 2
        %v4526 = vmin.f32 %v4524, %v4525
        %v4527 = vrot.slane %v4526, 1
        %v4528 = vmin.f32 %v4526, %v4527
        %v4529 = vmin.f32 %v3552, %v3555
        %v4530 = vmin.f32 %v4529, %v3558
        %v4531 = vmin.f32 %v4530, %v3561
        %v4532 = vmin.f32 %v4531, %v3564
        %v4533 = vmin.f32 %v4532, %v3567
        %v4534 = vmin.f32 %v4533, %v3570
        %v4535 = vmin.f32 %v4534, %v3573
        %v4536 = vmin.f32 %v4535, %v3576
        %v4537 = vmin.f32 %v4536, %v3579
        %v4538 = vmin.f32 %v4537, %v3582
        %v4539 = vmin.f32 %v4538, %v3585
        %v4540 = vmin.f32 %v4539, %v3588
        %v4541 = vmin.f32 %v4540, %v3591
        %v4542 = vmin.f32 %v4541, %v3594
        %v4543 = vmin.f32 %v4542, %v3597
        %v4544 = vmin.f32 %v4543, %v3600
        %v4545 = vmin.f32 %v4544, %v3603
        %v4546 = vmin.f32 %v4545, %v3606
        %v4547 = vmin.f32 %v4546, %v3609
        %v4548 = vmin.f32 %v4547, %v3612
        %v4549 = vmin.f32 %v4548, %v3615
        %v4550 = vmin.f32 %v4549, %v3618
        %v4551 = vmin.f32 %v4550, %v3621
        %v4552 = vmin.f32 %v4551, %v3624
        %v4553 = vmin.f32 %v4552, %v3627
        %v4554 = vmin.f32 %v4553, %v3630
        %v4555 = vmin.f32 %v4554, %v3633
        %v4556 = vmin.f32 %v4555, %v3636
        %v4557 = vmin.f32 %v4556, %v3639
        %v4558 = vmin.f32 %v4557, %v3642
        %v4559 = vmin.f32 %v4558, %v3645
        %v4560 = vrot.slane %v4559, 4
        %v4561 = vmin.f32 %v4559, %v4560
        %v4562 = vrot.slane %v4561, 2
        %v4563 = vmin.f32 %v4561, %v4562
        %v4564 = vrot.slane %v4563, 1
        %v4565 = vmin.f32 %v4563, %v4564
        %v4566 = vmin.f32 %v3553, %v3556
        %v4567 = vmin.f32 %v4566, %v3559
        %v4568 = vmin.f32 %v4567, %v3562
        %v4569 = vmin.f32 %v4568, %v3565
        %v4570 = vmin.f32 %v4569, %v3568
        %v4571 = vmin.f32 %v4570, %v3571
        %v4572 = vmin.f32 %v4571, %v3574
        %v4573 = vmin.f32 %v4572, %v3577
        %v4574 = vmin.f32 %v4573, %v3580
        %v4575 = vmin.f32 %v4574, %v3583
        %v4576 = vmin.f32 %v4575, %v3586
        %v4577 = vmin.f32 %v4576, %v3589
        %v4578 = vmin.f32 %v4577, %v3592
        %v4579 = vmin.f32 %v4578, %v3595
        %v4580 = vmin.f32 %v4579, %v3598
        %v4581 = vmin.f32 %v4580, %v3601
        %v4582 = vmin.f32 %v4581, %v3604
        %v4583 = vmin.f32 %v4582, %v3607
        %v4584 = vmin.f32 %v4583, %v3610
        %v4585 = vmin.f32 %v4584, %v3613
        %v4586 = vmin.f32 %v4585, %v3616
        %v4587 = vmin.f32 %v4586, %v3619
        %v4588 = vmin.f32 %v4587, %v3622
        %v4589 = vmin.f32 %v4588, %v3625
        %v4590 = vmin.f32 %v4589, %v3628
        %v4591 = vmin.f32 %v4590, %v3631
        %v4592 = vmin.f32 %v4591, %v3634
        %v4593 = vmin.f32 %v4592, %v3637
        %v4594 = vmin.f32 %v4593, %v3640
        %v4595 = vmin.f32 %v4594, %v3643
        %v4596 = vmin.f32 %v4595, %v3646
        %v4597 = vrot.slane %v4596, 4
        %v4598 = vmin.f32 %v4596, %v4597
        %v4599 = vrot.slane %v4598, 2
        %v4600 = vmin.f32 %v4598, %v4599
        %v4601 = vrot.slane %v4600, 1
        %v4602 = vmin.f32 %v4600, %v4601
        %p4603 = scmp.eq.s32.totalorder %s23, 0
        // Predicated region
        $region29: #{tpu_custom_call.1} parent=27 // pred_check
          %p4604 = pneg %p4603
        $region30: #{tpu_custom_call.1} parent=27 // pred_check_branch
          %4606 = sbr.rel (%p4604) target = $region32
        $region31: #{tpu_custom_call.1} parent=27 // pred_region
          %v4736 = vunpack.c.l.s4 839922192
          %v4737 = vunpack.c.0.s8 %v4736
          %v4738 = vlaneseq
          %v4739 = vshrl.u32 %v4738, 7
          %v4740 = vsub.s32 %v4737, %v4739
          %v4741 = vrot.slane %v3650, %v4740
          %v4743 = vunpack.c.l.s4 1985246804
          %v4744 = vunpack.c.0.s8 %v4743
          %v4745 = vlaneseq
          %v4746 = vshrl.u32 %v4745, 7
          %v4747 = vsub.s32 %v4744, %v4746
          %v4748 = vrot.slane %v3650, %v4747
          %v4750 = vunpack.c.l.s4 839922192
          %v4751 = vunpack.c.0.s8 %v4750
          %v4752 = vlaneseq
          %v4753 = vshrl.u32 %v4752, 7
          %v4754 = vsub.s32 %v4751, %v4753
          %v4755 = vrot.slane %v3654, %v4754
          %v4757 = vunpack.c.l.s4 1985246804
          %v4758 = vunpack.c.0.s8 %v4757
          %v4759 = vlaneseq
          %v4760 = vshrl.u32 %v4759, 7
          %v4761 = vsub.s32 %v4758, %v4760
          %v4762 = vrot.slane %v3654, %v4761
          %v4764 = vunpack.c.l.s4 839922192
          %v4765 = vunpack.c.0.s8 %v4764
          %v4766 = vlaneseq
          %v4767 = vshrl.u32 %v4766, 7
          %v4768 = vsub.s32 %v4765, %v4767
          %v4769 = vrot.slane %v3658, %v4768
          %v4771 = vunpack.c.l.s4 1985246804
          %v4772 = vunpack.c.0.s8 %v4771
          %v4773 = vlaneseq
          %v4774 = vshrl.u32 %v4773, 7
          %v4775 = vsub.s32 %v4772, %v4774
          %v4776 = vrot.slane %v3658, %v4775
          %v4778 = vunpack.c.l.s4 839922192
          %v4779 = vunpack.c.0.s8 %v4778
          %v4780 = vlaneseq
          %v4781 = vshrl.u32 %v4780, 7
          %v4782 = vsub.s32 %v4779, %v4781
          %v4783 = vrot.slane %v3662, %v4782
          %v4785 = vunpack.c.l.s4 1985246804
          %v4786 = vunpack.c.0.s8 %v4785
          %v4787 = vlaneseq
          %v4788 = vshrl.u32 %v4787, 7
          %v4789 = vsub.s32 %v4786, %v4788
          %v4790 = vrot.slane %v3662, %v4789
          %v4792 = vunpack.c.l.s4 839922192
          %v4793 = vunpack.c.0.s8 %v4792
          %v4794 = vlaneseq
          %v4795 = vshrl.u32 %v4794, 7
          %v4796 = vsub.s32 %v4793, %v4795
          %v4797 = vrot.slane %v3666, %v4796
          %v4799 = vunpack.c.l.s4 1985246804
          %v4800 = vunpack.c.0.s8 %v4799
          %v4801 = vlaneseq
          %v4802 = vshrl.u32 %v4801, 7
          %v4803 = vsub.s32 %v4800, %v4802
          %v4804 = vrot.slane %v3666, %v4803
          %v4806 = vunpack.c.l.s4 839922192
          %v4807 = vunpack.c.0.s8 %v4806
          %v4808 = vlaneseq
          %v4809 = vshrl.u32 %v4808, 7
          %v4810 = vsub.s32 %v4807, %v4809
          %v4811 = vrot.slane %v3670, %v4810
          %v4813 = vunpack.c.l.s4 1985246804
          %v4814 = vunpack.c.0.s8 %v4813
          %v4815 = vlaneseq
          %v4816 = vshrl.u32 %v4815, 7
          %v4817 = vsub.s32 %v4814, %v4816
          %v4818 = vrot.slane %v3670, %v4817
          %v4820 = vunpack.c.l.s4 839922192
          %v4821 = vunpack.c.0.s8 %v4820
          %v4822 = vlaneseq
          %v4823 = vshrl.u32 %v4822, 7
          %v4824 = vsub.s32 %v4821, %v4823
          %v4825 = vrot.slane %v3674, %v4824
          %v4827 = vunpack.c.l.s4 1985246804
          %v4828 = vunpack.c.0.s8 %v4827
          %v4829 = vlaneseq
          %v4830 = vshrl.u32 %v4829, 7
          %v4831 = vsub.s32 %v4828, %v4830
          %v4832 = vrot.slane %v3674, %v4831
          %v4834 = vunpack.c.l.s4 839922192
          %v4835 = vunpack.c.0.s8 %v4834
          %v4836 = vlaneseq
          %v4837 = vshrl.u32 %v4836, 7
          %v4838 = vsub.s32 %v4835, %v4837
          %v4839 = vrot.slane %v3678, %v4838
          %v4841 = vunpack.c.l.s4 1985246804
          %v4842 = vunpack.c.0.s8 %v4841
          %v4843 = vlaneseq
          %v4844 = vshrl.u32 %v4843, 7
          %v4845 = vsub.s32 %v4842, %v4844
          %v4846 = vrot.slane %v3678, %v4845
          %v4848 = vunpack.c.l.s4 839922192
          %v4849 = vunpack.c.0.s8 %v4848
          %v4850 = vlaneseq
          %v4851 = vshrl.u32 %v4850, 7
          %v4852 = vsub.s32 %v4849, %v4851
          %v4853 = vrot.slane %v3682, %v4852
          %v4855 = vunpack.c.l.s4 1985246804
          %v4856 = vunpack.c.0.s8 %v4855
          %v4857 = vlaneseq
          %v4858 = vshrl.u32 %v4857, 7
          %v4859 = vsub.s32 %v4856, %v4858
          %v4860 = vrot.slane %v3682, %v4859
          %v4862 = vunpack.c.l.s4 839922192
          %v4863 = vunpack.c.0.s8 %v4862
          %v4864 = vlaneseq
          %v4865 = vshrl.u32 %v4864, 7
          %v4866 = vsub.s32 %v4863, %v4865
          %v4867 = vrot.slane %v3686, %v4866
          %v4869 = vunpack.c.l.s4 1985246804
          %v4870 = vunpack.c.0.s8 %v4869
          %v4871 = vlaneseq
          %v4872 = vshrl.u32 %v4871, 7
          %v4873 = vsub.s32 %v4870, %v4872
          %v4874 = vrot.slane %v3686, %v4873
          %v4876 = vunpack.c.l.s4 839922192
          %v4877 = vunpack.c.0.s8 %v4876
          %v4878 = vlaneseq
          %v4879 = vshrl.u32 %v4878, 7
          %v4880 = vsub.s32 %v4877, %v4879
          %v4881 = vrot.slane %v3690, %v4880
          %v4883 = vunpack.c.l.s4 1985246804
          %v4884 = vunpack.c.0.s8 %v4883
          %v4885 = vlaneseq
          %v4886 = vshrl.u32 %v4885, 7
          %v4887 = vsub.s32 %v4884, %v4886
          %v4888 = vrot.slane %v3690, %v4887
          %v4890 = vunpack.c.l.s4 839922192
          %v4891 = vunpack.c.0.s8 %v4890
          %v4892 = vlaneseq
          %v4893 = vshrl.u32 %v4892, 7
          %v4894 = vsub.s32 %v4891, %v4893
          %v4895 = vrot.slane %v3694, %v4894
          %v4897 = vunpack.c.l.s4 1985246804
          %v4898 = vunpack.c.0.s8 %v4897
          %v4899 = vlaneseq
          %v4900 = vshrl.u32 %v4899, 7
          %v4901 = vsub.s32 %v4898, %v4900
          %v4902 = vrot.slane %v3694, %v4901
          %v4904 = vunpack.c.l.s4 839922192
          %v4905 = vunpack.c.0.s8 %v4904
          %v4906 = vlaneseq
          %v4907 = vshrl.u32 %v4906, 7
          %v4908 = vsub.s32 %v4905, %v4907
          %v4909 = vrot.slane %v3698, %v4908
          %v4911 = vunpack.c.l.s4 1985246804
          %v4912 = vunpack.c.0.s8 %v4911
          %v4913 = vlaneseq
          %v4914 = vshrl.u32 %v4913, 7
          %v4915 = vsub.s32 %v4912, %v4914
          %v4916 = vrot.slane %v3698, %v4915
          %v4918 = vunpack.c.l.s4 839922192
          %v4919 = vunpack.c.0.s8 %v4918
          %v4920 = vlaneseq
          %v4921 = vshrl.u32 %v4920, 7
          %v4922 = vsub.s32 %v4919, %v4921
          %v4923 = vrot.slane %v3702, %v4922
          %v4925 = vunpack.c.l.s4 1985246804
          %v4926 = vunpack.c.0.s8 %v4925
          %v4927 = vlaneseq
          %v4928 = vshrl.u32 %v4927, 7
          %v4929 = vsub.s32 %v4926, %v4928
          %v4930 = vrot.slane %v3702, %v4929
          %v4932 = vunpack.c.l.s4 839922192
          %v4933 = vunpack.c.0.s8 %v4932
          %v4934 = vlaneseq
          %v4935 = vshrl.u32 %v4934, 7
          %v4936 = vsub.s32 %v4933, %v4935
          %v4937 = vrot.slane %v3706, %v4936
          %v4939 = vunpack.c.l.s4 1985246804
          %v4940 = vunpack.c.0.s8 %v4939
          %v4941 = vlaneseq
          %v4942 = vshrl.u32 %v4941, 7
          %v4943 = vsub.s32 %v4940, %v4942
          %v4944 = vrot.slane %v3706, %v4943
          %v4946 = vunpack.c.l.s4 839922192
          %v4947 = vunpack.c.0.s8 %v4946
          %v4948 = vlaneseq
          %v4949 = vshrl.u32 %v4948, 7
          %v4950 = vsub.s32 %v4947, %v4949
          %v4951 = vrot.slane %v3710, %v4950
          %v4953 = vunpack.c.l.s4 1985246804
          %v4954 = vunpack.c.0.s8 %v4953
          %v4955 = vlaneseq
          %v4956 = vshrl.u32 %v4955, 7
          %v4957 = vsub.s32 %v4954, %v4956
          %v4958 = vrot.slane %v3710, %v4957
          %v4960 = vunpack.c.l.s4 839922192
          %v4961 = vunpack.c.0.s8 %v4960
          %v4962 = vlaneseq
          %v4963 = vshrl.u32 %v4962, 7
          %v4964 = vsub.s32 %v4961, %v4963
          %v4965 = vrot.slane %v3714, %v4964
          %v4967 = vunpack.c.l.s4 1985246804
          %v4968 = vunpack.c.0.s8 %v4967
          %v4969 = vlaneseq
          %v4970 = vshrl.u32 %v4969, 7
          %v4971 = vsub.s32 %v4968, %v4970
          %v4972 = vrot.slane %v3714, %v4971
          %v4974 = vunpack.c.l.s4 839922192
          %v4975 = vunpack.c.0.s8 %v4974
          %v4976 = vlaneseq
          %v4977 = vshrl.u32 %v4976, 7
          %v4978 = vsub.s32 %v4975, %v4977
          %v4979 = vrot.slane %v3718, %v4978
          %v4981 = vunpack.c.l.s4 1985246804
          %v4982 = vunpack.c.0.s8 %v4981
          %v4983 = vlaneseq
          %v4984 = vshrl.u32 %v4983, 7
          %v4985 = vsub.s32 %v4982, %v4984
          %v4986 = vrot.slane %v3718, %v4985
          %v4988 = vunpack.c.l.s4 839922192
          %v4989 = vunpack.c.0.s8 %v4988
          %v4990 = vlaneseq
          %v4991 = vshrl.u32 %v4990, 7
          %v4992 = vsub.s32 %v4989, %v4991
          %v4993 = vrot.slane %v3722, %v4992
          %v4995 = vunpack.c.l.s4 1985246804
          %v4996 = vunpack.c.0.s8 %v4995
          %v4997 = vlaneseq
          %v4998 = vshrl.u32 %v4997, 7
          %v4999 = vsub.s32 %v4996, %v4998
          %v5000 = vrot.slane %v3722, %v4999
          %v5002 = vunpack.c.l.s4 839922192
          %v5003 = vunpack.c.0.s8 %v5002
          %v5004 = vlaneseq
          %v5005 = vshrl.u32 %v5004, 7
          %v5006 = vsub.s32 %v5003, %v5005
          %v5007 = vrot.slane %v3726, %v5006
          %v5009 = vunpack.c.l.s4 1985246804
          %v5010 = vunpack.c.0.s8 %v5009
          %v5011 = vlaneseq
          %v5012 = vshrl.u32 %v5011, 7
          %v5013 = vsub.s32 %v5010, %v5012
          %v5014 = vrot.slane %v3726, %v5013
          %v5016 = vunpack.c.l.s4 839922192
          %v5017 = vunpack.c.0.s8 %v5016
          %v5018 = vlaneseq
          %v5019 = vshrl.u32 %v5018, 7
          %v5020 = vsub.s32 %v5017, %v5019
          %v5021 = vrot.slane %v3730, %v5020
          %v5023 = vunpack.c.l.s4 1985246804
          %v5024 = vunpack.c.0.s8 %v5023
          %v5025 = vlaneseq
          %v5026 = vshrl.u32 %v5025, 7
          %v5027 = vsub.s32 %v5024, %v5026
          %v5028 = vrot.slane %v3730, %v5027
          %v5030 = vunpack.c.l.s4 839922192
          %v5031 = vunpack.c.0.s8 %v5030
          %v5032 = vlaneseq
          %v5033 = vshrl.u32 %v5032, 7
          %v5034 = vsub.s32 %v5031, %v5033
          %v5035 = vrot.slane %v3734, %v5034
          %v5037 = vunpack.c.l.s4 1985246804
          %v5038 = vunpack.c.0.s8 %v5037
          %v5039 = vlaneseq
          %v5040 = vshrl.u32 %v5039, 7
          %v5041 = vsub.s32 %v5038, %v5040
          %v5042 = vrot.slane %v3734, %v5041
          %v5044 = vunpack.c.l.s4 839922192
          %v5045 = vunpack.c.0.s8 %v5044
          %v5046 = vlaneseq
          %v5047 = vshrl.u32 %v5046, 7
          %v5048 = vsub.s32 %v5045, %v5047
          %v5049 = vrot.slane %v3738, %v5048
          %v5051 = vunpack.c.l.s4 1985246804
          %v5052 = vunpack.c.0.s8 %v5051
          %v5053 = vlaneseq
          %v5054 = vshrl.u32 %v5053, 7
          %v5055 = vsub.s32 %v5052, %v5054
          %v5056 = vrot.slane %v3738, %v5055
          %v5058 = vunpack.c.l.s4 839922192
          %v5059 = vunpack.c.0.s8 %v5058
          %v5060 = vlaneseq
          %v5061 = vshrl.u32 %v5060, 7
          %v5062 = vsub.s32 %v5059, %v5061
          %v5063 = vrot.slane %v3742, %v5062
          %v5065 = vunpack.c.l.s4 1985246804
          %v5066 = vunpack.c.0.s8 %v5065
          %v5067 = vlaneseq
          %v5068 = vshrl.u32 %v5067, 7
          %v5069 = vsub.s32 %v5066, %v5068
          %v5070 = vrot.slane %v3742, %v5069
          %v5072 = vunpack.c.l.s4 839922192
          %v5073 = vunpack.c.0.s8 %v5072
          %v5074 = vlaneseq
          %v5075 = vshrl.u32 %v5074, 7
          %v5076 = vsub.s32 %v5073, %v5075
          %v5077 = vrot.slane %v3746, %v5076
          %v5079 = vunpack.c.l.s4 1985246804
          %v5080 = vunpack.c.0.s8 %v5079
          %v5081 = vlaneseq
          %v5082 = vshrl.u32 %v5081, 7
          %v5083 = vsub.s32 %v5080, %v5082
          %v5084 = vrot.slane %v3746, %v5083
          %v5086 = vunpack.c.l.s4 839922192
          %v5087 = vunpack.c.0.s8 %v5086
          %v5088 = vlaneseq
          %v5089 = vshrl.u32 %v5088, 7
          %v5090 = vsub.s32 %v5087, %v5089
          %v5091 = vrot.slane %v3750, %v5090
          %v5093 = vunpack.c.l.s4 1985246804
          %v5094 = vunpack.c.0.s8 %v5093
          %v5095 = vlaneseq
          %v5096 = vshrl.u32 %v5095, 7
          %v5097 = vsub.s32 %v5094, %v5096
          %v5098 = vrot.slane %v3750, %v5097
          %v5100 = vunpack.c.l.s4 839922192
          %v5101 = vunpack.c.0.s8 %v5100
          %v5102 = vlaneseq
          %v5103 = vshrl.u32 %v5102, 7
          %v5104 = vsub.s32 %v5101, %v5103
          %v5105 = vrot.slane %v3754, %v5104
          %v5107 = vunpack.c.l.s4 1985246804
          %v5108 = vunpack.c.0.s8 %v5107
          %v5109 = vlaneseq
          %v5110 = vshrl.u32 %v5109, 7
          %v5111 = vsub.s32 %v5108, %v5110
          %v5112 = vrot.slane %v3754, %v5111
          %v5114 = vunpack.c.l.s4 839922192
          %v5115 = vunpack.c.0.s8 %v5114
          %v5116 = vlaneseq
          %v5117 = vshrl.u32 %v5116, 7
          %v5118 = vsub.s32 %v5115, %v5117
          %v5119 = vrot.slane %v3758, %v5118
          %v5121 = vunpack.c.l.s4 1985246804
          %v5122 = vunpack.c.0.s8 %v5121
          %v5123 = vlaneseq
          %v5124 = vshrl.u32 %v5123, 7
          %v5125 = vsub.s32 %v5122, %v5124
          %v5126 = vrot.slane %v3758, %v5125
          %v5128 = vunpack.c.l.s4 839922192
          %v5129 = vunpack.c.0.s8 %v5128
          %v5130 = vlaneseq
          %v5131 = vshrl.u32 %v5130, 7
          %v5132 = vsub.s32 %v5129, %v5131
          %v5133 = vrot.slane %v3762, %v5132
          %v5135 = vunpack.c.l.s4 1985246804
          %v5136 = vunpack.c.0.s8 %v5135
          %v5137 = vlaneseq
          %v5138 = vshrl.u32 %v5137, 7
          %v5139 = vsub.s32 %v5136, %v5138
          %v5140 = vrot.slane %v3762, %v5139
          %v5142 = vunpack.c.l.s4 839922192
          %v5143 = vunpack.c.0.s8 %v5142
          %v5144 = vlaneseq
          %v5145 = vshrl.u32 %v5144, 7
          %v5146 = vsub.s32 %v5143, %v5145
          %v5147 = vrot.slane %v3766, %v5146
          %v5149 = vunpack.c.l.s4 1985246804
          %v5150 = vunpack.c.0.s8 %v5149
          %v5151 = vlaneseq
          %v5152 = vshrl.u32 %v5151, 7
          %v5153 = vsub.s32 %v5150, %v5152
          %v5154 = vrot.slane %v3766, %v5153
          %v5156 = vunpack.c.l.s4 839922192
          %v5157 = vunpack.c.0.s8 %v5156
          %v5158 = vlaneseq
          %v5159 = vshrl.u32 %v5158, 7
          %v5160 = vsub.s32 %v5157, %v5159
          %v5161 = vrot.slane %v3770, %v5160
          %v5163 = vunpack.c.l.s4 1985246804
          %v5164 = vunpack.c.0.s8 %v5163
          %v5165 = vlaneseq
          %v5166 = vshrl.u32 %v5165, 7
          %v5167 = vsub.s32 %v5164, %v5166
          %v5168 = vrot.slane %v3770, %v5167
          %v5170 = vunpack.c.l.s4 839922192
          %v5171 = vunpack.c.0.s8 %v5170
          %v5172 = vlaneseq
          %v5173 = vshrl.u32 %v5172, 7
          %v5174 = vsub.s32 %v5171, %v5173
          %v5175 = vrot.slane %v3774, %v5174
          %v5177 = vunpack.c.l.s4 1985246804
          %v5178 = vunpack.c.0.s8 %v5177
          %v5179 = vlaneseq
          %v5180 = vshrl.u32 %v5179, 7
          %v5181 = vsub.s32 %v5178, %v5180
          %v5182 = vrot.slane %v3774, %v5181
          %v5184 = vunpack.c.l.s4 839922192
          %v5185 = vunpack.c.0.s8 %v5184
          %v5186 = vlaneseq
          %v5187 = vshrl.u32 %v5186, 7
          %v5188 = vsub.s32 %v5185, %v5187
          %v5189 = vrot.slane %v3778, %v5188
          %v5191 = vunpack.c.l.s4 1985246804
          %v5192 = vunpack.c.0.s8 %v5191
          %v5193 = vlaneseq
          %v5194 = vshrl.u32 %v5193, 7
          %v5195 = vsub.s32 %v5192, %v5194
          %v5196 = vrot.slane %v3778, %v5195
          %v5198 = vunpack.c.l.s4 839922192
          %v5199 = vunpack.c.0.s8 %v5198
          %v5200 = vlaneseq
          %v5201 = vshrl.u32 %v5200, 7
          %v5202 = vsub.s32 %v5199, %v5201
          %v5203 = vrot.slane %v3782, %v5202
          %v5205 = vunpack.c.l.s4 1985246804
          %v5206 = vunpack.c.0.s8 %v5205
          %v5207 = vlaneseq
          %v5208 = vshrl.u32 %v5207, 7
          %v5209 = vsub.s32 %v5206, %v5208
          %v5210 = vrot.slane %v3782, %v5209
          %v5212 = vunpack.c.l.s4 839922192
          %v5213 = vunpack.c.0.s8 %v5212
          %v5214 = vlaneseq
          %v5215 = vshrl.u32 %v5214, 7
          %v5216 = vsub.s32 %v5213, %v5215
          %v5217 = vrot.slane %v3786, %v5216
          %v5219 = vunpack.c.l.s4 1985246804
          %v5220 = vunpack.c.0.s8 %v5219
          %v5221 = vlaneseq
          %v5222 = vshrl.u32 %v5221, 7
          %v5223 = vsub.s32 %v5220, %v5222
          %v5224 = vrot.slane %v3786, %v5223
          %v5226 = vunpack.c.l.s4 839922192
          %v5227 = vunpack.c.0.s8 %v5226
          %v5228 = vlaneseq
          %v5229 = vshrl.u32 %v5228, 7
          %v5230 = vsub.s32 %v5227, %v5229
          %v5231 = vrot.slane %v3790, %v5230
          %v5233 = vunpack.c.l.s4 1985246804
          %v5234 = vunpack.c.0.s8 %v5233
          %v5235 = vlaneseq
          %v5236 = vshrl.u32 %v5235, 7
          %v5237 = vsub.s32 %v5234, %v5236
          %v5238 = vrot.slane %v3790, %v5237
          %v5240 = vunpack.c.l.s4 839922192
          %v5241 = vunpack.c.0.s8 %v5240
          %v5242 = vlaneseq
          %v5243 = vshrl.u32 %v5242, 7
          %v5244 = vsub.s32 %v5241, %v5243
          %v5245 = vrot.slane %v3794, %v5244
          %v5247 = vunpack.c.l.s4 1985246804
          %v5248 = vunpack.c.0.s8 %v5247
          %v5249 = vlaneseq
          %v5250 = vshrl.u32 %v5249, 7
          %v5251 = vsub.s32 %v5248, %v5250
          %v5252 = vrot.slane %v3794, %v5251
          %v5254 = vunpack.c.l.s4 839922192
          %v5255 = vunpack.c.0.s8 %v5254
          %v5256 = vlaneseq
          %v5257 = vshrl.u32 %v5256, 7
          %v5258 = vsub.s32 %v5255, %v5257
          %v5259 = vrot.slane %v3798, %v5258
          %v5261 = vunpack.c.l.s4 1985246804
          %v5262 = vunpack.c.0.s8 %v5261
          %v5263 = vlaneseq
          %v5264 = vshrl.u32 %v5263, 7
          %v5265 = vsub.s32 %v5262, %v5264
          %v5266 = vrot.slane %v3798, %v5265
          %v5268 = vunpack.c.l.s4 839922192
          %v5269 = vunpack.c.0.s8 %v5268
          %v5270 = vlaneseq
          %v5271 = vshrl.u32 %v5270, 7
          %v5272 = vsub.s32 %v5269, %v5271
          %v5273 = vrot.slane %v3802, %v5272
          %v5275 = vunpack.c.l.s4 1985246804
          %v5276 = vunpack.c.0.s8 %v5275
          %v5277 = vlaneseq
          %v5278 = vshrl.u32 %v5277, 7
          %v5279 = vsub.s32 %v5276, %v5278
          %v5280 = vrot.slane %v3802, %v5279
          %v5282 = vunpack.c.l.s4 839922192
          %v5283 = vunpack.c.0.s8 %v5282
          %v5284 = vlaneseq
          %v5285 = vshrl.u32 %v5284, 7
          %v5286 = vsub.s32 %v5283, %v5285
          %v5287 = vrot.slane %v3806, %v5286
          %v5289 = vunpack.c.l.s4 1985246804
          %v5290 = vunpack.c.0.s8 %v5289
          %v5291 = vlaneseq
          %v5292 = vshrl.u32 %v5291, 7
          %v5293 = vsub.s32 %v5290, %v5292
          %v5294 = vrot.slane %v3806, %v5293
          %v5296 = vunpack.c.l.s4 839922192
          %v5297 = vunpack.c.0.s8 %v5296
          %v5298 = vlaneseq
          %v5299 = vshrl.u32 %v5298, 7
          %v5300 = vsub.s32 %v5297, %v5299
          %v5301 = vrot.slane %v3810, %v5300
          %v5303 = vunpack.c.l.s4 1985246804
          %v5304 = vunpack.c.0.s8 %v5303
          %v5305 = vlaneseq
          %v5306 = vshrl.u32 %v5305, 7
          %v5307 = vsub.s32 %v5304, %v5306
          %v5308 = vrot.slane %v3810, %v5307
          %v5310 = vunpack.c.l.s4 839922192
          %v5311 = vunpack.c.0.s8 %v5310
          %v5312 = vlaneseq
          %v5313 = vshrl.u32 %v5312, 7
          %v5314 = vsub.s32 %v5311, %v5313
          %v5315 = vrot.slane %v3814, %v5314
          %v5317 = vunpack.c.l.s4 1985246804
          %v5318 = vunpack.c.0.s8 %v5317
          %v5319 = vlaneseq
          %v5320 = vshrl.u32 %v5319, 7
          %v5321 = vsub.s32 %v5318, %v5320
          %v5322 = vrot.slane %v3814, %v5321
          %v5324 = vunpack.c.l.s4 839922192
          %v5325 = vunpack.c.0.s8 %v5324
          %v5326 = vlaneseq
          %v5327 = vshrl.u32 %v5326, 7
          %v5328 = vsub.s32 %v5325, %v5327
          %v5329 = vrot.slane %v3818, %v5328
          %v5331 = vunpack.c.l.s4 1985246804
          %v5332 = vunpack.c.0.s8 %v5331
          %v5333 = vlaneseq
          %v5334 = vshrl.u32 %v5333, 7
          %v5335 = vsub.s32 %v5332, %v5334
          %v5336 = vrot.slane %v3818, %v5335
          %v5338 = vunpack.c.l.s4 839922192
          %v5339 = vunpack.c.0.s8 %v5338
          %v5340 = vlaneseq
          %v5341 = vshrl.u32 %v5340, 7
          %v5342 = vsub.s32 %v5339, %v5341
          %v5343 = vrot.slane %v3822, %v5342
          %v5345 = vunpack.c.l.s4 1985246804
          %v5346 = vunpack.c.0.s8 %v5345
          %v5347 = vlaneseq
          %v5348 = vshrl.u32 %v5347, 7
          %v5349 = vsub.s32 %v5346, %v5348
          %v5350 = vrot.slane %v3822, %v5349
          %v5352 = vunpack.c.l.s4 839922192
          %v5353 = vunpack.c.0.s8 %v5352
          %v5354 = vlaneseq
          %v5355 = vshrl.u32 %v5354, 7
          %v5356 = vsub.s32 %v5353, %v5355
          %v5357 = vrot.slane %v3826, %v5356
          %v5359 = vunpack.c.l.s4 1985246804
          %v5360 = vunpack.c.0.s8 %v5359
          %v5361 = vlaneseq
          %v5362 = vshrl.u32 %v5361, 7
          %v5363 = vsub.s32 %v5360, %v5362
          %v5364 = vrot.slane %v3826, %v5363
          %v5366 = vunpack.c.l.s4 839922192
          %v5367 = vunpack.c.0.s8 %v5366
          %v5368 = vlaneseq
          %v5369 = vshrl.u32 %v5368, 7
          %v5370 = vsub.s32 %v5367, %v5369
          %v5371 = vrot.slane %v3830, %v5370
          %v5373 = vunpack.c.l.s4 1985246804
          %v5374 = vunpack.c.0.s8 %v5373
          %v5375 = vlaneseq
          %v5376 = vshrl.u32 %v5375, 7
          %v5377 = vsub.s32 %v5374, %v5376
          %v5378 = vrot.slane %v3830, %v5377
          %v5380 = vunpack.c.l.s4 839922192
          %v5381 = vunpack.c.0.s8 %v5380
          %v5382 = vlaneseq
          %v5383 = vshrl.u32 %v5382, 7
          %v5384 = vsub.s32 %v5381, %v5383
          %v5385 = vrot.slane %v3834, %v5384
          %v5387 = vunpack.c.l.s4 1985246804
          %v5388 = vunpack.c.0.s8 %v5387
          %v5389 = vlaneseq
          %v5390 = vshrl.u32 %v5389, 7
          %v5391 = vsub.s32 %v5388, %v5390
          %v5392 = vrot.slane %v3834, %v5391
          %v5394 = vunpack.c.l.s4 839922192
          %v5395 = vunpack.c.0.s8 %v5394
          %v5396 = vlaneseq
          %v5397 = vshrl.u32 %v5396, 7
          %v5398 = vsub.s32 %v5395, %v5397
          %v5399 = vrot.slane %v3838, %v5398
          %v5401 = vunpack.c.l.s4 1985246804
          %v5402 = vunpack.c.0.s8 %v5401
          %v5403 = vlaneseq
          %v5404 = vshrl.u32 %v5403, 7
          %v5405 = vsub.s32 %v5402, %v5404
          %v5406 = vrot.slane %v3838, %v5405
          %v5408 = vunpack.c.l.s4 839922192
          %v5409 = vunpack.c.0.s8 %v5408
          %v5410 = vlaneseq
          %v5411 = vshrl.u32 %v5410, 7
          %v5412 = vsub.s32 %v5409, %v5411
          %v5413 = vrot.slane %v3842, %v5412
          %v5415 = vunpack.c.l.s4 1985246804
          %v5416 = vunpack.c.0.s8 %v5415
          %v5417 = vlaneseq
          %v5418 = vshrl.u32 %v5417, 7
          %v5419 = vsub.s32 %v5416, %v5418
          %v5420 = vrot.slane %v3842, %v5419
          %v5422 = vunpack.c.l.s4 839922192
          %v5423 = vunpack.c.0.s8 %v5422
          %v5424 = vlaneseq
          %v5425 = vshrl.u32 %v5424, 7
          %v5426 = vsub.s32 %v5423, %v5425
          %v5427 = vrot.slane %v3846, %v5426
          %v5429 = vunpack.c.l.s4 1985246804
          %v5430 = vunpack.c.0.s8 %v5429
          %v5431 = vlaneseq
          %v5432 = vshrl.u32 %v5431, 7
          %v5433 = vsub.s32 %v5430, %v5432
          %v5434 = vrot.slane %v3846, %v5433
          %v5436 = vunpack.c.l.s4 839922192
          %v5437 = vunpack.c.0.s8 %v5436
          %v5438 = vlaneseq
          %v5439 = vshrl.u32 %v5438, 7
          %v5440 = vsub.s32 %v5437, %v5439
          %v5441 = vrot.slane %v3850, %v5440
          %v5443 = vunpack.c.l.s4 1985246804
          %v5444 = vunpack.c.0.s8 %v5443
          %v5445 = vlaneseq
          %v5446 = vshrl.u32 %v5445, 7
          %v5447 = vsub.s32 %v5444, %v5446
          %v5448 = vrot.slane %v3850, %v5447
          %v5450 = vunpack.c.l.s4 839922192
          %v5451 = vunpack.c.0.s8 %v5450
          %v5452 = vlaneseq
          %v5453 = vshrl.u32 %v5452, 7
          %v5454 = vsub.s32 %v5451, %v5453
          %v5455 = vrot.slane %v3854, %v5454
          %v5457 = vunpack.c.l.s4 1985246804
          %v5458 = vunpack.c.0.s8 %v5457
          %v5459 = vlaneseq
          %v5460 = vshrl.u32 %v5459, 7
          %v5461 = vsub.s32 %v5458, %v5460
          %v5462 = vrot.slane %v3854, %v5461
          %v5464 = vunpack.c.l.s4 839922192
          %v5465 = vunpack.c.0.s8 %v5464
          %v5466 = vlaneseq
          %v5467 = vshrl.u32 %v5466, 7
          %v5468 = vsub.s32 %v5465, %v5467
          %v5469 = vrot.slane %v3858, %v5468
          %v5471 = vunpack.c.l.s4 1985246804
          %v5472 = vunpack.c.0.s8 %v5471
          %v5473 = vlaneseq
          %v5474 = vshrl.u32 %v5473, 7
          %v5475 = vsub.s32 %v5472, %v5474
          %v5476 = vrot.slane %v3858, %v5475
          %v5478 = vunpack.c.l.s4 839922192
          %v5479 = vunpack.c.0.s8 %v5478
          %v5480 = vlaneseq
          %v5481 = vshrl.u32 %v5480, 7
          %v5482 = vsub.s32 %v5479, %v5481
          %v5483 = vrot.slane %v3862, %v5482
          %v5485 = vunpack.c.l.s4 1985246804
          %v5486 = vunpack.c.0.s8 %v5485
          %v5487 = vlaneseq
          %v5488 = vshrl.u32 %v5487, 7
          %v5489 = vsub.s32 %v5486, %v5488
          %v5490 = vrot.slane %v3862, %v5489
          %v5492 = vunpack.c.l.s4 839922192
          %v5493 = vunpack.c.0.s8 %v5492
          %v5494 = vlaneseq
          %v5495 = vshrl.u32 %v5494, 7
          %v5496 = vsub.s32 %v5493, %v5495
          %v5497 = vrot.slane %v3866, %v5496
          %v5499 = vunpack.c.l.s4 1985246804
          %v5500 = vunpack.c.0.s8 %v5499
          %v5501 = vlaneseq
          %v5502 = vshrl.u32 %v5501, 7
          %v5503 = vsub.s32 %v5500, %v5502
          %v5504 = vrot.slane %v3866, %v5503
          %v5506 = vunpack.c.l.s4 839922192
          %v5507 = vunpack.c.0.s8 %v5506
          %v5508 = vlaneseq
          %v5509 = vshrl.u32 %v5508, 7
          %v5510 = vsub.s32 %v5507, %v5509
          %v5511 = vrot.slane %v3870, %v5510
          %v5513 = vunpack.c.l.s4 1985246804
          %v5514 = vunpack.c.0.s8 %v5513
          %v5515 = vlaneseq
          %v5516 = vshrl.u32 %v5515, 7
          %v5517 = vsub.s32 %v5514, %v5516
          %v5518 = vrot.slane %v3870, %v5517
          %v5520 = vunpack.c.l.s4 839922192
          %v5521 = vunpack.c.0.s8 %v5520
          %v5522 = vlaneseq
          %v5523 = vshrl.u32 %v5522, 7
          %v5524 = vsub.s32 %v5521, %v5523
          %v5525 = vrot.slane %v3874, %v5524
          %v5527 = vunpack.c.l.s4 1985246804
          %v5528 = vunpack.c.0.s8 %v5527
          %v5529 = vlaneseq
          %v5530 = vshrl.u32 %v5529, 7
          %v5531 = vsub.s32 %v5528, %v5530
          %v5532 = vrot.slane %v3874, %v5531
          %v5534 = vunpack.c.l.s4 839922192
          %v5535 = vunpack.c.0.s8 %v5534
          %v5536 = vlaneseq
          %v5537 = vshrl.u32 %v5536, 7
          %v5538 = vsub.s32 %v5535, %v5537
          %v5539 = vrot.slane %v3878, %v5538
          %v5541 = vunpack.c.l.s4 1985246804
          %v5542 = vunpack.c.0.s8 %v5541
          %v5543 = vlaneseq
          %v5544 = vshrl.u32 %v5543, 7
          %v5545 = vsub.s32 %v5542, %v5544
          %v5546 = vrot.slane %v3878, %v5545
          %v5548 = vunpack.c.l.s4 839922192
          %v5549 = vunpack.c.0.s8 %v5548
          %v5550 = vlaneseq
          %v5551 = vshrl.u32 %v5550, 7
          %v5552 = vsub.s32 %v5549, %v5551
          %v5553 = vrot.slane %v3882, %v5552
          %v5555 = vunpack.c.l.s4 1985246804
          %v5556 = vunpack.c.0.s8 %v5555
          %v5557 = vlaneseq
          %v5558 = vshrl.u32 %v5557, 7
          %v5559 = vsub.s32 %v5556, %v5558
          %v5560 = vrot.slane %v3882, %v5559
          %v5562 = vunpack.c.l.s4 839922192
          %v5563 = vunpack.c.0.s8 %v5562
          %v5564 = vlaneseq
          %v5565 = vshrl.u32 %v5564, 7
          %v5566 = vsub.s32 %v5563, %v5565
          %v5567 = vrot.slane %v3886, %v5566
          %v5569 = vunpack.c.l.s4 1985246804
          %v5570 = vunpack.c.0.s8 %v5569
          %v5571 = vlaneseq
          %v5572 = vshrl.u32 %v5571, 7
          %v5573 = vsub.s32 %v5570, %v5572
          %v5574 = vrot.slane %v3886, %v5573
          %v5576 = vunpack.c.l.s4 839922192
          %v5577 = vunpack.c.0.s8 %v5576
          %v5578 = vlaneseq
          %v5579 = vshrl.u32 %v5578, 7
          %v5580 = vsub.s32 %v5577, %v5579
          %v5581 = vrot.slane %v3890, %v5580
          %v5583 = vunpack.c.l.s4 1985246804
          %v5584 = vunpack.c.0.s8 %v5583
          %v5585 = vlaneseq
          %v5586 = vshrl.u32 %v5585, 7
          %v5587 = vsub.s32 %v5584, %v5586
          %v5588 = vrot.slane %v3890, %v5587
          %v5590 = vunpack.c.l.s4 839922192
          %v5591 = vunpack.c.0.s8 %v5590
          %v5592 = vlaneseq
          %v5593 = vshrl.u32 %v5592, 7
          %v5594 = vsub.s32 %v5591, %v5593
          %v5595 = vrot.slane %v3894, %v5594
          %v5597 = vunpack.c.l.s4 1985246804
          %v5598 = vunpack.c.0.s8 %v5597
          %v5599 = vlaneseq
          %v5600 = vshrl.u32 %v5599, 7
          %v5601 = vsub.s32 %v5598, %v5600
          %v5602 = vrot.slane %v3894, %v5601
          %v5604 = vunpack.c.l.s4 839922192
          %v5605 = vunpack.c.0.s8 %v5604
          %v5606 = vlaneseq
          %v5607 = vshrl.u32 %v5606, 7
          %v5608 = vsub.s32 %v5605, %v5607
          %v5609 = vrot.slane %v3898, %v5608
          %v5611 = vunpack.c.l.s4 1985246804
          %v5612 = vunpack.c.0.s8 %v5611
          %v5613 = vlaneseq
          %v5614 = vshrl.u32 %v5613, 7
          %v5615 = vsub.s32 %v5612, %v5614
          %v5616 = vrot.slane %v3898, %v5615
          %v5618 = vunpack.c.l.s4 839922192
          %v5619 = vunpack.c.0.s8 %v5618
          %v5620 = vlaneseq
          %v5621 = vshrl.u32 %v5620, 7
          %v5622 = vsub.s32 %v5619, %v5621
          %v5623 = vrot.slane %v3902, %v5622
          %v5625 = vunpack.c.l.s4 1985246804
          %v5626 = vunpack.c.0.s8 %v5625
          %v5627 = vlaneseq
          %v5628 = vshrl.u32 %v5627, 7
          %v5629 = vsub.s32 %v5626, %v5628
          %v5630 = vrot.slane %v3902, %v5629
          %v5632 = vunpack.c.l.s4 839922192
          %v5633 = vunpack.c.0.s8 %v5632
          %v5634 = vlaneseq
          %v5635 = vshrl.u32 %v5634, 7
          %v5636 = vsub.s32 %v5633, %v5635
          %v5637 = vrot.slane %v3906, %v5636
          %v5639 = vunpack.c.l.s4 1985246804
          %v5640 = vunpack.c.0.s8 %v5639
          %v5641 = vlaneseq
          %v5642 = vshrl.u32 %v5641, 7
          %v5643 = vsub.s32 %v5640, %v5642
          %v5644 = vrot.slane %v3906, %v5643
          %v5646 = vunpack.c.l.s4 839922192
          %v5647 = vunpack.c.0.s8 %v5646
          %v5648 = vlaneseq
          %v5649 = vshrl.u32 %v5648, 7
          %v5650 = vsub.s32 %v5647, %v5649
          %v5651 = vrot.slane %v3910, %v5650
          %v5653 = vunpack.c.l.s4 1985246804
          %v5654 = vunpack.c.0.s8 %v5653
          %v5655 = vlaneseq
          %v5656 = vshrl.u32 %v5655, 7
          %v5657 = vsub.s32 %v5654, %v5656
          %v5658 = vrot.slane %v3910, %v5657
          %v5660 = vunpack.c.l.s4 839922192
          %v5661 = vunpack.c.0.s8 %v5660
          %v5662 = vlaneseq
          %v5663 = vshrl.u32 %v5662, 7
          %v5664 = vsub.s32 %v5661, %v5663
          %v5665 = vrot.slane %v3914, %v5664
          %v5667 = vunpack.c.l.s4 1985246804
          %v5668 = vunpack.c.0.s8 %v5667
          %v5669 = vlaneseq
          %v5670 = vshrl.u32 %v5669, 7
          %v5671 = vsub.s32 %v5668, %v5670
          %v5672 = vrot.slane %v3914, %v5671
          %v5674 = vunpack.c.l.s4 839922192
          %v5675 = vunpack.c.0.s8 %v5674
          %v5676 = vlaneseq
          %v5677 = vshrl.u32 %v5676, 7
          %v5678 = vsub.s32 %v5675, %v5677
          %v5679 = vrot.slane %v3918, %v5678
          %v5681 = vunpack.c.l.s4 1985246804
          %v5682 = vunpack.c.0.s8 %v5681
          %v5683 = vlaneseq
          %v5684 = vshrl.u32 %v5683, 7
          %v5685 = vsub.s32 %v5682, %v5684
          %v5686 = vrot.slane %v3918, %v5685
          %v5688 = vunpack.c.l.s4 839922192
          %v5689 = vunpack.c.0.s8 %v5688
          %v5690 = vlaneseq
          %v5691 = vshrl.u32 %v5690, 7
          %v5692 = vsub.s32 %v5689, %v5691
          %v5693 = vrot.slane %v3922, %v5692
          %v5695 = vunpack.c.l.s4 1985246804
          %v5696 = vunpack.c.0.s8 %v5695
          %v5697 = vlaneseq
          %v5698 = vshrl.u32 %v5697, 7
          %v5699 = vsub.s32 %v5696, %v5698
          %v5700 = vrot.slane %v3922, %v5699
          %v5702 = vunpack.c.l.s4 839922192
          %v5703 = vunpack.c.0.s8 %v5702
          %v5704 = vlaneseq
          %v5705 = vshrl.u32 %v5704, 7
          %v5706 = vsub.s32 %v5703, %v5705
          %v5707 = vrot.slane %v3926, %v5706
          %v5709 = vunpack.c.l.s4 1985246804
          %v5710 = vunpack.c.0.s8 %v5709
          %v5711 = vlaneseq
          %v5712 = vshrl.u32 %v5711, 7
          %v5713 = vsub.s32 %v5710, %v5712
          %v5714 = vrot.slane %v3926, %v5713
          %v5716 = vunpack.c.l.s4 839922192
          %v5717 = vunpack.c.0.s8 %v5716
          %v5718 = vlaneseq
          %v5719 = vshrl.u32 %v5718, 7
          %v5720 = vsub.s32 %v5717, %v5719
          %v5721 = vrot.slane %v3930, %v5720
          %v5723 = vunpack.c.l.s4 1985246804
          %v5724 = vunpack.c.0.s8 %v5723
          %v5725 = vlaneseq
          %v5726 = vshrl.u32 %v5725, 7
          %v5727 = vsub.s32 %v5724, %v5726
          %v5728 = vrot.slane %v3930, %v5727
          %v5730 = vunpack.c.l.s4 839922192
          %v5731 = vunpack.c.0.s8 %v5730
          %v5732 = vlaneseq
          %v5733 = vshrl.u32 %v5732, 7
          %v5734 = vsub.s32 %v5731, %v5733
          %v5735 = vrot.slane %v3934, %v5734
          %v5737 = vunpack.c.l.s4 1985246804
          %v5738 = vunpack.c.0.s8 %v5737
          %v5739 = vlaneseq
          %v5740 = vshrl.u32 %v5739, 7
          %v5741 = vsub.s32 %v5738, %v5740
          %v5742 = vrot.slane %v3934, %v5741
          %v5744 = vunpack.c.l.s4 839922192
          %v5745 = vunpack.c.0.s8 %v5744
          %v5746 = vlaneseq
          %v5747 = vshrl.u32 %v5746, 7
          %v5748 = vsub.s32 %v5745, %v5747
          %v5749 = vrot.slane %v3938, %v5748
          %v5751 = vunpack.c.l.s4 1985246804
          %v5752 = vunpack.c.0.s8 %v5751
          %v5753 = vlaneseq
          %v5754 = vshrl.u32 %v5753, 7
          %v5755 = vsub.s32 %v5752, %v5754
          %v5756 = vrot.slane %v3938, %v5755
          %v5758 = vunpack.c.l.s4 839922192
          %v5759 = vunpack.c.0.s8 %v5758
          %v5760 = vlaneseq
          %v5761 = vshrl.u32 %v5760, 7
          %v5762 = vsub.s32 %v5759, %v5761
          %v5763 = vrot.slane %v3942, %v5762
          %v5765 = vunpack.c.l.s4 1985246804
          %v5766 = vunpack.c.0.s8 %v5765
          %v5767 = vlaneseq
          %v5768 = vshrl.u32 %v5767, 7
          %v5769 = vsub.s32 %v5766, %v5768
          %v5770 = vrot.slane %v3942, %v5769
          %v5772 = vunpack.c.l.s4 839922192
          %v5773 = vunpack.c.0.s8 %v5772
          %v5774 = vlaneseq
          %v5775 = vshrl.u32 %v5774, 7
          %v5776 = vsub.s32 %v5773, %v5775
          %v5777 = vrot.slane %v3946, %v5776
          %v5779 = vunpack.c.l.s4 1985246804
          %v5780 = vunpack.c.0.s8 %v5779
          %v5781 = vlaneseq
          %v5782 = vshrl.u32 %v5781, 7
          %v5783 = vsub.s32 %v5780, %v5782
          %v5784 = vrot.slane %v3946, %v5783
          %v5786 = vunpack.c.l.s4 839922192
          %v5787 = vunpack.c.0.s8 %v5786
          %v5788 = vlaneseq
          %v5789 = vshrl.u32 %v5788, 7
          %v5790 = vsub.s32 %v5787, %v5789
          %v5791 = vrot.slane %v3950, %v5790
          %v5793 = vunpack.c.l.s4 1985246804
          %v5794 = vunpack.c.0.s8 %v5793
          %v5795 = vlaneseq
          %v5796 = vshrl.u32 %v5795, 7
          %v5797 = vsub.s32 %v5794, %v5796
          %v5798 = vrot.slane %v3950, %v5797
          %v5800 = vunpack.c.l.s4 839922192
          %v5801 = vunpack.c.0.s8 %v5800
          %v5802 = vlaneseq
          %v5803 = vshrl.u32 %v5802, 7
          %v5804 = vsub.s32 %v5801, %v5803
          %v5805 = vrot.slane %v3954, %v5804
          %v5807 = vunpack.c.l.s4 1985246804
          %v5808 = vunpack.c.0.s8 %v5807
          %v5809 = vlaneseq
          %v5810 = vshrl.u32 %v5809, 7
          %v5811 = vsub.s32 %v5808, %v5810
          %v5812 = vrot.slane %v3954, %v5811
          %v5814 = vunpack.c.l.s4 839922192
          %v5815 = vunpack.c.0.s8 %v5814
          %v5816 = vlaneseq
          %v5817 = vshrl.u32 %v5816, 7
          %v5818 = vsub.s32 %v5815, %v5817
          %v5819 = vrot.slane %v3958, %v5818
          %v5821 = vunpack.c.l.s4 1985246804
          %v5822 = vunpack.c.0.s8 %v5821
          %v5823 = vlaneseq
          %v5824 = vshrl.u32 %v5823, 7
          %v5825 = vsub.s32 %v5822, %v5824
          %v5826 = vrot.slane %v3958, %v5825
          %v5828 = vunpack.c.l.s4 839922192
          %v5829 = vunpack.c.0.s8 %v5828
          %v5830 = vlaneseq
          %v5831 = vshrl.u32 %v5830, 7
          %v5832 = vsub.s32 %v5829, %v5831
          %v5833 = vrot.slane %v3962, %v5832
          %v5835 = vunpack.c.l.s4 1985246804
          %v5836 = vunpack.c.0.s8 %v5835
          %v5837 = vlaneseq
          %v5838 = vshrl.u32 %v5837, 7
          %v5839 = vsub.s32 %v5836, %v5838
          %v5840 = vrot.slane %v3962, %v5839
          %v5842 = vunpack.c.l.s4 839922192
          %v5843 = vunpack.c.0.s8 %v5842
          %v5844 = vlaneseq
          %v5845 = vshrl.u32 %v5844, 7
          %v5846 = vsub.s32 %v5843, %v5845
          %v5847 = vrot.slane %v3966, %v5846
          %v5849 = vunpack.c.l.s4 1985246804
          %v5850 = vunpack.c.0.s8 %v5849
          %v5851 = vlaneseq
          %v5852 = vshrl.u32 %v5851, 7
          %v5853 = vsub.s32 %v5850, %v5852
          %v5854 = vrot.slane %v3966, %v5853
          %v5856 = vunpack.c.l.s4 839922192
          %v5857 = vunpack.c.0.s8 %v5856
          %v5858 = vlaneseq
          %v5859 = vshrl.u32 %v5858, 7
          %v5860 = vsub.s32 %v5857, %v5859
          %v5861 = vrot.slane %v3970, %v5860
          %v5863 = vunpack.c.l.s4 1985246804
          %v5864 = vunpack.c.0.s8 %v5863
          %v5865 = vlaneseq
          %v5866 = vshrl.u32 %v5865, 7
          %v5867 = vsub.s32 %v5864, %v5866
          %v5868 = vrot.slane %v3970, %v5867
          %v5870 = vunpack.c.l.s4 839922192
          %v5871 = vunpack.c.0.s8 %v5870
          %v5872 = vlaneseq
          %v5873 = vshrl.u32 %v5872, 7
          %v5874 = vsub.s32 %v5871, %v5873
          %v5875 = vrot.slane %v3974, %v5874
          %v5877 = vunpack.c.l.s4 1985246804
          %v5878 = vunpack.c.0.s8 %v5877
          %v5879 = vlaneseq
          %v5880 = vshrl.u32 %v5879, 7
          %v5881 = vsub.s32 %v5878, %v5880
          %v5882 = vrot.slane %v3974, %v5881
          %v5884 = vunpack.c.l.s4 839922192
          %v5885 = vunpack.c.0.s8 %v5884
          %v5886 = vlaneseq
          %v5887 = vshrl.u32 %v5886, 7
          %v5888 = vsub.s32 %v5885, %v5887
          %v5889 = vrot.slane %v3978, %v5888
          %v5891 = vunpack.c.l.s4 1985246804
          %v5892 = vunpack.c.0.s8 %v5891
          %v5893 = vlaneseq
          %v5894 = vshrl.u32 %v5893, 7
          %v5895 = vsub.s32 %v5892, %v5894
          %v5896 = vrot.slane %v3978, %v5895
          %v5898 = vunpack.c.l.s4 839922192
          %v5899 = vunpack.c.0.s8 %v5898
          %v5900 = vlaneseq
          %v5901 = vshrl.u32 %v5900, 7
          %v5902 = vsub.s32 %v5899, %v5901
          %v5903 = vrot.slane %v3982, %v5902
          %v5905 = vunpack.c.l.s4 1985246804
          %v5906 = vunpack.c.0.s8 %v5905
          %v5907 = vlaneseq
          %v5908 = vshrl.u32 %v5907, 7
          %v5909 = vsub.s32 %v5906, %v5908
          %v5910 = vrot.slane %v3982, %v5909
          %v5912 = vunpack.c.l.s4 839922192
          %v5913 = vunpack.c.0.s8 %v5912
          %v5914 = vlaneseq
          %v5915 = vshrl.u32 %v5914, 7
          %v5916 = vsub.s32 %v5913, %v5915
          %v5917 = vrot.slane %v3986, %v5916
          %v5919 = vunpack.c.l.s4 1985246804
          %v5920 = vunpack.c.0.s8 %v5919
          %v5921 = vlaneseq
          %v5922 = vshrl.u32 %v5921, 7
          %v5923 = vsub.s32 %v5920, %v5922
          %v5924 = vrot.slane %v3986, %v5923
          %v5926 = vunpack.c.l.s4 839922192
          %v5927 = vunpack.c.0.s8 %v5926
          %v5928 = vlaneseq
          %v5929 = vshrl.u32 %v5928, 7
          %v5930 = vsub.s32 %v5927, %v5929
          %v5931 = vrot.slane %v3990, %v5930
          %v5933 = vunpack.c.l.s4 1985246804
          %v5934 = vunpack.c.0.s8 %v5933
          %v5935 = vlaneseq
          %v5936 = vshrl.u32 %v5935, 7
          %v5937 = vsub.s32 %v5934, %v5936
          %v5938 = vrot.slane %v3990, %v5937
          %v5940 = vunpack.c.l.s4 839922192
          %v5941 = vunpack.c.0.s8 %v5940
          %v5942 = vlaneseq
          %v5943 = vshrl.u32 %v5942, 7
          %v5944 = vsub.s32 %v5941, %v5943
          %v5945 = vrot.slane %v3994, %v5944
          %v5947 = vunpack.c.l.s4 1985246804
          %v5948 = vunpack.c.0.s8 %v5947
          %v5949 = vlaneseq
          %v5950 = vshrl.u32 %v5949, 7
          %v5951 = vsub.s32 %v5948, %v5950
          %v5952 = vrot.slane %v3994, %v5951
          %v5954 = vunpack.c.l.s4 839922192
          %v5955 = vunpack.c.0.s8 %v5954
          %v5956 = vlaneseq
          %v5957 = vshrl.u32 %v5956, 7
          %v5958 = vsub.s32 %v5955, %v5957
          %v5959 = vrot.slane %v3998, %v5958
          %v5961 = vunpack.c.l.s4 1985246804
          %v5962 = vunpack.c.0.s8 %v5961
          %v5963 = vlaneseq
          %v5964 = vshrl.u32 %v5963, 7
          %v5965 = vsub.s32 %v5962, %v5964
          %v5966 = vrot.slane %v3998, %v5965
          %v5968 = vunpack.c.l.s4 839922192
          %v5969 = vunpack.c.0.s8 %v5968
          %v5970 = vlaneseq
          %v5971 = vshrl.u32 %v5970, 7
          %v5972 = vsub.s32 %v5969, %v5971
          %v5973 = vrot.slane %v4002, %v5972
          %v5975 = vunpack.c.l.s4 1985246804
          %v5976 = vunpack.c.0.s8 %v5975
          %v5977 = vlaneseq
          %v5978 = vshrl.u32 %v5977, 7
          %v5979 = vsub.s32 %v5976, %v5978
          %v5980 = vrot.slane %v4002, %v5979
          %v5982 = vunpack.c.l.s4 839922192
          %v5983 = vunpack.c.0.s8 %v5982
          %v5984 = vlaneseq
          %v5985 = vshrl.u32 %v5984, 7
          %v5986 = vsub.s32 %v5983, %v5985
          %v5987 = vrot.slane %v4006, %v5986
          %v5989 = vunpack.c.l.s4 1985246804
          %v5990 = vunpack.c.0.s8 %v5989
          %v5991 = vlaneseq
          %v5992 = vshrl.u32 %v5991, 7
          %v5993 = vsub.s32 %v5990, %v5992
          %v5994 = vrot.slane %v4006, %v5993
          %v5996 = vunpack.c.l.s4 839922192
          %v5997 = vunpack.c.0.s8 %v5996
          %v5998 = vlaneseq
          %v5999 = vshrl.u32 %v5998, 7
          %v6000 = vsub.s32 %v5997, %v5999
          %v6001 = vrot.slane %v4010, %v6000
          %v6003 = vunpack.c.l.s4 1985246804
          %v6004 = vunpack.c.0.s8 %v6003
          %v6005 = vlaneseq
          %v6006 = vshrl.u32 %v6005, 7
          %v6007 = vsub.s32 %v6004, %v6006
          %v6008 = vrot.slane %v4010, %v6007
          %v6010 = vunpack.c.l.s4 839922192
          %v6011 = vunpack.c.0.s8 %v6010
          %v6012 = vlaneseq
          %v6013 = vshrl.u32 %v6012, 7
          %v6014 = vsub.s32 %v6011, %v6013
          %v6015 = vrot.slane %v4014, %v6014
          %v6017 = vunpack.c.l.s4 1985246804
          %v6018 = vunpack.c.0.s8 %v6017
          %v6019 = vlaneseq
          %v6020 = vshrl.u32 %v6019, 7
          %v6021 = vsub.s32 %v6018, %v6020
          %v6022 = vrot.slane %v4014, %v6021
          %v6024 = vunpack.c.l.s4 839922192
          %v6025 = vunpack.c.0.s8 %v6024
          %v6026 = vlaneseq
          %v6027 = vshrl.u32 %v6026, 7
          %v6028 = vsub.s32 %v6025, %v6027
          %v6029 = vrot.slane %v4018, %v6028
          %v6031 = vunpack.c.l.s4 1985246804
          %v6032 = vunpack.c.0.s8 %v6031
          %v6033 = vlaneseq
          %v6034 = vshrl.u32 %v6033, 7
          %v6035 = vsub.s32 %v6032, %v6034
          %v6036 = vrot.slane %v4018, %v6035
          %v6038 = vunpack.c.l.s4 839922192
          %v6039 = vunpack.c.0.s8 %v6038
          %v6040 = vlaneseq
          %v6041 = vshrl.u32 %v6040, 7
          %v6042 = vsub.s32 %v6039, %v6041
          %v6043 = vrot.slane %v4022, %v6042
          %v6045 = vunpack.c.l.s4 1985246804
          %v6046 = vunpack.c.0.s8 %v6045
          %v6047 = vlaneseq
          %v6048 = vshrl.u32 %v6047, 7
          %v6049 = vsub.s32 %v6046, %v6048
          %v6050 = vrot.slane %v4022, %v6049
          %v6052 = vunpack.c.l.s4 839922192
          %v6053 = vunpack.c.0.s8 %v6052
          %v6054 = vlaneseq
          %v6055 = vshrl.u32 %v6054, 7
          %v6056 = vsub.s32 %v6053, %v6055
          %v6057 = vrot.slane %v4026, %v6056
          %v6059 = vunpack.c.l.s4 1985246804
          %v6060 = vunpack.c.0.s8 %v6059
          %v6061 = vlaneseq
          %v6062 = vshrl.u32 %v6061, 7
          %v6063 = vsub.s32 %v6060, %v6062
          %v6064 = vrot.slane %v4026, %v6063
          %v6066 = vunpack.c.l.s4 839922192
          %v6067 = vunpack.c.0.s8 %v6066
          %v6068 = vlaneseq
          %v6069 = vshrl.u32 %v6068, 7
          %v6070 = vsub.s32 %v6067, %v6069
          %v6071 = vrot.slane %v4030, %v6070
          %v6073 = vunpack.c.l.s4 1985246804
          %v6074 = vunpack.c.0.s8 %v6073
          %v6075 = vlaneseq
          %v6076 = vshrl.u32 %v6075, 7
          %v6077 = vsub.s32 %v6074, %v6076
          %v6078 = vrot.slane %v4030, %v6077
          %v6080 = vunpack.c.l.s4 839922192
          %v6081 = vunpack.c.0.s8 %v6080
          %v6082 = vlaneseq
          %v6083 = vshrl.u32 %v6082, 7
          %v6084 = vsub.s32 %v6081, %v6083
          %v6085 = vrot.slane %v4034, %v6084
          %v6087 = vunpack.c.l.s4 1985246804
          %v6088 = vunpack.c.0.s8 %v6087
          %v6089 = vlaneseq
          %v6090 = vshrl.u32 %v6089, 7
          %v6091 = vsub.s32 %v6088, %v6090
          %v6092 = vrot.slane %v4034, %v6091
          %v6094 = vunpack.c.l.s4 839922192
          %v6095 = vunpack.c.0.s8 %v6094
          %v6096 = vlaneseq
          %v6097 = vshrl.u32 %v6096, 7
          %v6098 = vsub.s32 %v6095, %v6097
          %v6099 = vrot.slane %v4038, %v6098
          %v6101 = vunpack.c.l.s4 1985246804
          %v6102 = vunpack.c.0.s8 %v6101
          %v6103 = vlaneseq
          %v6104 = vshrl.u32 %v6103, 7
          %v6105 = vsub.s32 %v6102, %v6104
          %v6106 = vrot.slane %v4038, %v6105
          %v6108 = vunpack.c.l.s4 839922192
          %v6109 = vunpack.c.0.s8 %v6108
          %v6110 = vlaneseq
          %v6111 = vshrl.u32 %v6110, 7
          %v6112 = vsub.s32 %v6109, %v6111
          %v6113 = vrot.slane %v4042, %v6112
          %v6115 = vunpack.c.l.s4 1985246804
          %v6116 = vunpack.c.0.s8 %v6115
          %v6117 = vlaneseq
          %v6118 = vshrl.u32 %v6117, 7
          %v6119 = vsub.s32 %v6116, %v6118
          %v6120 = vrot.slane %v4042, %v6119
          %v6122 = vunpack.c.l.s4 839922192
          %v6123 = vunpack.c.0.s8 %v6122
          %v6124 = vlaneseq
          %v6125 = vshrl.u32 %v6124, 7
          %v6126 = vsub.s32 %v6123, %v6125
          %v6127 = vrot.slane %v4046, %v6126
          %v6129 = vunpack.c.l.s4 1985246804
          %v6130 = vunpack.c.0.s8 %v6129
          %v6131 = vlaneseq
          %v6132 = vshrl.u32 %v6131, 7
          %v6133 = vsub.s32 %v6130, %v6132
          %v6134 = vrot.slane %v4046, %v6133
          %v6136 = vunpack.c.l.s4 839922192
          %v6137 = vunpack.c.0.s8 %v6136
          %v6138 = vlaneseq
          %v6139 = vshrl.u32 %v6138, 7
          %v6140 = vsub.s32 %v6137, %v6139
          %v6141 = vrot.slane %v4050, %v6140
          %v6143 = vunpack.c.l.s4 1985246804
          %v6144 = vunpack.c.0.s8 %v6143
          %v6145 = vlaneseq
          %v6146 = vshrl.u32 %v6145, 7
          %v6147 = vsub.s32 %v6144, %v6146
          %v6148 = vrot.slane %v4050, %v6147
          %v6150 = vunpack.c.l.s4 839922192
          %v6151 = vunpack.c.0.s8 %v6150
          %v6152 = vlaneseq
          %v6153 = vshrl.u32 %v6152, 7
          %v6154 = vsub.s32 %v6151, %v6153
          %v6155 = vrot.slane %v4054, %v6154
          %v6157 = vunpack.c.l.s4 1985246804
          %v6158 = vunpack.c.0.s8 %v6157
          %v6159 = vlaneseq
          %v6160 = vshrl.u32 %v6159, 7
          %v6161 = vsub.s32 %v6158, %v6160
          %v6162 = vrot.slane %v4054, %v6161
          %v6164 = vunpack.c.l.s4 839922192
          %v6165 = vunpack.c.0.s8 %v6164
          %v6166 = vlaneseq
          %v6167 = vshrl.u32 %v6166, 7
          %v6168 = vsub.s32 %v6165, %v6167
          %v6169 = vrot.slane %v4058, %v6168
          %v6171 = vunpack.c.l.s4 1985246804
          %v6172 = vunpack.c.0.s8 %v6171
          %v6173 = vlaneseq
          %v6174 = vshrl.u32 %v6173, 7
          %v6175 = vsub.s32 %v6172, %v6174
          %v6176 = vrot.slane %v4058, %v6175
          %v6178 = vunpack.c.l.s4 839922192
          %v6179 = vunpack.c.0.s8 %v6178
          %v6180 = vlaneseq
          %v6181 = vshrl.u32 %v6180, 7
          %v6182 = vsub.s32 %v6179, %v6181
          %v6183 = vrot.slane %v4062, %v6182
          %v6185 = vunpack.c.l.s4 1985246804
          %v6186 = vunpack.c.0.s8 %v6185
          %v6187 = vlaneseq
          %v6188 = vshrl.u32 %v6187, 7
          %v6189 = vsub.s32 %v6186, %v6188
          %v6190 = vrot.slane %v4062, %v6189
          %v6192 = vunpack.c.l.s4 839922192
          %v6193 = vunpack.c.0.s8 %v6192
          %v6194 = vlaneseq
          %v6195 = vshrl.u32 %v6194, 7
          %v6196 = vsub.s32 %v6193, %v6195
          %v6197 = vrot.slane %v4066, %v6196
          %v6199 = vunpack.c.l.s4 1985246804
          %v6200 = vunpack.c.0.s8 %v6199
          %v6201 = vlaneseq
          %v6202 = vshrl.u32 %v6201, 7
          %v6203 = vsub.s32 %v6200, %v6202
          %v6204 = vrot.slane %v4066, %v6203
          %v6206 = vunpack.c.l.s4 839922192
          %v6207 = vunpack.c.0.s8 %v6206
          %v6208 = vlaneseq
          %v6209 = vshrl.u32 %v6208, 7
          %v6210 = vsub.s32 %v6207, %v6209
          %v6211 = vrot.slane %v4070, %v6210
          %v6213 = vunpack.c.l.s4 1985246804
          %v6214 = vunpack.c.0.s8 %v6213
          %v6215 = vlaneseq
          %v6216 = vshrl.u32 %v6215, 7
          %v6217 = vsub.s32 %v6214, %v6216
          %v6218 = vrot.slane %v4070, %v6217
          %v6220 = vunpack.c.l.s4 839922192
          %v6221 = vunpack.c.0.s8 %v6220
          %v6222 = vlaneseq
          %v6223 = vshrl.u32 %v6222, 7
          %v6224 = vsub.s32 %v6221, %v6223
          %v6225 = vrot.slane %v4074, %v6224
          %v6227 = vunpack.c.l.s4 1985246804
          %v6228 = vunpack.c.0.s8 %v6227
          %v6229 = vlaneseq
          %v6230 = vshrl.u32 %v6229, 7
          %v6231 = vsub.s32 %v6228, %v6230
          %v6232 = vrot.slane %v4074, %v6231
          %v6234 = vunpack.c.l.s4 839922192
          %v6235 = vunpack.c.0.s8 %v6234
          %v6236 = vlaneseq
          %v6237 = vshrl.u32 %v6236, 7
          %v6238 = vsub.s32 %v6235, %v6237
          %v6239 = vrot.slane %v4078, %v6238
          %v6241 = vunpack.c.l.s4 1985246804
          %v6242 = vunpack.c.0.s8 %v6241
          %v6243 = vlaneseq
          %v6244 = vshrl.u32 %v6243, 7
          %v6245 = vsub.s32 %v6242, %v6244
          %v6246 = vrot.slane %v4078, %v6245
          %v6248 = vunpack.c.l.s4 839922192
          %v6249 = vunpack.c.0.s8 %v6248
          %v6250 = vlaneseq
          %v6251 = vshrl.u32 %v6250, 7
          %v6252 = vsub.s32 %v6249, %v6251
          %v6253 = vrot.slane %v4082, %v6252
          %v6255 = vunpack.c.l.s4 1985246804
          %v6256 = vunpack.c.0.s8 %v6255
          %v6257 = vlaneseq
          %v6258 = vshrl.u32 %v6257, 7
          %v6259 = vsub.s32 %v6256, %v6258
          %v6260 = vrot.slane %v4082, %v6259
          %v6262 = vunpack.c.l.s4 839922192
          %v6263 = vunpack.c.0.s8 %v6262
          %v6264 = vlaneseq
          %v6265 = vshrl.u32 %v6264, 7
          %v6266 = vsub.s32 %v6263, %v6265
          %v6267 = vrot.slane %v4086, %v6266
          %v6269 = vunpack.c.l.s4 1985246804
          %v6270 = vunpack.c.0.s8 %v6269
          %v6271 = vlaneseq
          %v6272 = vshrl.u32 %v6271, 7
          %v6273 = vsub.s32 %v6270, %v6272
          %v6274 = vrot.slane %v4086, %v6273
          %v6276 = vunpack.c.l.s4 839922192
          %v6277 = vunpack.c.0.s8 %v6276
          %v6278 = vlaneseq
          %v6279 = vshrl.u32 %v6278, 7
          %v6280 = vsub.s32 %v6277, %v6279
          %v6281 = vrot.slane %v4090, %v6280
          %v6283 = vunpack.c.l.s4 1985246804
          %v6284 = vunpack.c.0.s8 %v6283
          %v6285 = vlaneseq
          %v6286 = vshrl.u32 %v6285, 7
          %v6287 = vsub.s32 %v6284, %v6286
          %v6288 = vrot.slane %v4090, %v6287
          %v6290 = vunpack.c.l.s4 839922192
          %v6291 = vunpack.c.0.s8 %v6290
          %v6292 = vlaneseq
          %v6293 = vshrl.u32 %v6292, 7
          %v6294 = vsub.s32 %v6291, %v6293
          %v6295 = vrot.slane %v4094, %v6294
          %v6297 = vunpack.c.l.s4 1985246804
          %v6298 = vunpack.c.0.s8 %v6297
          %v6299 = vlaneseq
          %v6300 = vshrl.u32 %v6299, 7
          %v6301 = vsub.s32 %v6298, %v6300
          %v6302 = vrot.slane %v4094, %v6301
          %v6304 = vunpack.c.l.s4 839922192
          %v6305 = vunpack.c.0.s8 %v6304
          %v6306 = vlaneseq
          %v6307 = vshrl.u32 %v6306, 7
          %v6308 = vsub.s32 %v6305, %v6307
          %v6309 = vrot.slane %v4098, %v6308
          %v6311 = vunpack.c.l.s4 1985246804
          %v6312 = vunpack.c.0.s8 %v6311
          %v6313 = vlaneseq
          %v6314 = vshrl.u32 %v6313, 7
          %v6315 = vsub.s32 %v6312, %v6314
          %v6316 = vrot.slane %v4098, %v6315
          %v6318 = vunpack.c.l.s4 839922192
          %v6319 = vunpack.c.0.s8 %v6318
          %v6320 = vlaneseq
          %v6321 = vshrl.u32 %v6320, 7
          %v6322 = vsub.s32 %v6319, %v6321
          %v6323 = vrot.slane %v4102, %v6322
          %v6325 = vunpack.c.l.s4 1985246804
          %v6326 = vunpack.c.0.s8 %v6325
          %v6327 = vlaneseq
          %v6328 = vshrl.u32 %v6327, 7
          %v6329 = vsub.s32 %v6326, %v6328
          %v6330 = vrot.slane %v4102, %v6329
          %v6332 = vunpack.c.l.s4 839922192
          %v6333 = vunpack.c.0.s8 %v6332
          %v6334 = vlaneseq
          %v6335 = vshrl.u32 %v6334, 7
          %v6336 = vsub.s32 %v6333, %v6335
          %v6337 = vrot.slane %v4106, %v6336
          %v6339 = vunpack.c.l.s4 1985246804
          %v6340 = vunpack.c.0.s8 %v6339
          %v6341 = vlaneseq
          %v6342 = vshrl.u32 %v6341, 7
          %v6343 = vsub.s32 %v6340, %v6342
          %v6344 = vrot.slane %v4106, %v6343
          %v6346 = vunpack.c.l.s4 839922192
          %v6347 = vunpack.c.0.s8 %v6346
          %v6348 = vlaneseq
          %v6349 = vshrl.u32 %v6348, 7
          %v6350 = vsub.s32 %v6347, %v6349
          %v6351 = vrot.slane %v4110, %v6350
          %v6353 = vunpack.c.l.s4 1985246804
          %v6354 = vunpack.c.0.s8 %v6353
          %v6355 = vlaneseq
          %v6356 = vshrl.u32 %v6355, 7
          %v6357 = vsub.s32 %v6354, %v6356
          %v6358 = vrot.slane %v4110, %v6357
          %v6360 = vunpack.c.l.s4 839922192
          %v6361 = vunpack.c.0.s8 %v6360
          %v6362 = vlaneseq
          %v6363 = vshrl.u32 %v6362, 7
          %v6364 = vsub.s32 %v6361, %v6363
          %v6365 = vrot.slane %v4114, %v6364
          %v6367 = vunpack.c.l.s4 1985246804
          %v6368 = vunpack.c.0.s8 %v6367
          %v6369 = vlaneseq
          %v6370 = vshrl.u32 %v6369, 7
          %v6371 = vsub.s32 %v6368, %v6370
          %v6372 = vrot.slane %v4114, %v6371
          %v6374 = vunpack.c.l.s4 839922192
          %v6375 = vunpack.c.0.s8 %v6374
          %v6376 = vlaneseq
          %v6377 = vshrl.u32 %v6376, 7
          %v6378 = vsub.s32 %v6375, %v6377
          %v6379 = vrot.slane %v4118, %v6378
          %v6381 = vunpack.c.l.s4 1985246804
          %v6382 = vunpack.c.0.s8 %v6381
          %v6383 = vlaneseq
          %v6384 = vshrl.u32 %v6383, 7
          %v6385 = vsub.s32 %v6382, %v6384
          %v6386 = vrot.slane %v4118, %v6385
          %v6388 = vunpack.c.l.s4 839922192
          %v6389 = vunpack.c.0.s8 %v6388
          %v6390 = vlaneseq
          %v6391 = vshrl.u32 %v6390, 7
          %v6392 = vsub.s32 %v6389, %v6391
          %v6393 = vrot.slane %v4122, %v6392
          %v6395 = vunpack.c.l.s4 1985246804
          %v6396 = vunpack.c.0.s8 %v6395
          %v6397 = vlaneseq
          %v6398 = vshrl.u32 %v6397, 7
          %v6399 = vsub.s32 %v6396, %v6398
          %v6400 = vrot.slane %v4122, %v6399
          %v6402 = vunpack.c.l.s4 839922192
          %v6403 = vunpack.c.0.s8 %v6402
          %v6404 = vlaneseq
          %v6405 = vshrl.u32 %v6404, 7
          %v6406 = vsub.s32 %v6403, %v6405
          %v6407 = vrot.slane %v4126, %v6406
          %v6409 = vunpack.c.l.s4 1985246804
          %v6410 = vunpack.c.0.s8 %v6409
          %v6411 = vlaneseq
          %v6412 = vshrl.u32 %v6411, 7
          %v6413 = vsub.s32 %v6410, %v6412
          %v6414 = vrot.slane %v4126, %v6413
          %v6416 = vunpack.c.l.s4 839922192
          %v6417 = vunpack.c.0.s8 %v6416
          %v6418 = vlaneseq
          %v6419 = vshrl.u32 %v6418, 7
          %v6420 = vsub.s32 %v6417, %v6419
          %v6421 = vrot.slane %v4130, %v6420
          %v6423 = vunpack.c.l.s4 1985246804
          %v6424 = vunpack.c.0.s8 %v6423
          %v6425 = vlaneseq
          %v6426 = vshrl.u32 %v6425, 7
          %v6427 = vsub.s32 %v6424, %v6426
          %v6428 = vrot.slane %v4130, %v6427
          %v6430 = vunpack.c.l.s4 839922192
          %v6431 = vunpack.c.0.s8 %v6430
          %v6432 = vlaneseq
          %v6433 = vshrl.u32 %v6432, 7
          %v6434 = vsub.s32 %v6431, %v6433
          %v6435 = vrot.slane %v4134, %v6434
          %v6437 = vunpack.c.l.s4 1985246804
          %v6438 = vunpack.c.0.s8 %v6437
          %v6439 = vlaneseq
          %v6440 = vshrl.u32 %v6439, 7
          %v6441 = vsub.s32 %v6438, %v6440
          %v6442 = vrot.slane %v4134, %v6441
          %v6444 = vunpack.c.l.s4 839922192
          %v6445 = vunpack.c.0.s8 %v6444
          %v6446 = vlaneseq
          %v6447 = vshrl.u32 %v6446, 7
          %v6448 = vsub.s32 %v6445, %v6447
          %v6449 = vrot.slane %v4138, %v6448
          %v6451 = vunpack.c.l.s4 1985246804
          %v6452 = vunpack.c.0.s8 %v6451
          %v6453 = vlaneseq
          %v6454 = vshrl.u32 %v6453, 7
          %v6455 = vsub.s32 %v6452, %v6454
          %v6456 = vrot.slane %v4138, %v6455
          %v6458 = vunpack.c.l.s4 839922192
          %v6459 = vunpack.c.0.s8 %v6458
          %v6460 = vlaneseq
          %v6461 = vshrl.u32 %v6460, 7
          %v6462 = vsub.s32 %v6459, %v6461
          %v6463 = vrot.slane %v4142, %v6462
          %v6465 = vunpack.c.l.s4 1985246804
          %v6466 = vunpack.c.0.s8 %v6465
          %v6467 = vlaneseq
          %v6468 = vshrl.u32 %v6467, 7
          %v6469 = vsub.s32 %v6466, %v6468
          %v6470 = vrot.slane %v4142, %v6469
          %v6472 = vunpack.c.l.s4 839922192
          %v6473 = vunpack.c.0.s8 %v6472
          %v6474 = vlaneseq
          %v6475 = vshrl.u32 %v6474, 7
          %v6476 = vsub.s32 %v6473, %v6475
          %v6477 = vrot.slane %v4146, %v6476
          %v6479 = vunpack.c.l.s4 1985246804
          %v6480 = vunpack.c.0.s8 %v6479
          %v6481 = vlaneseq
          %v6482 = vshrl.u32 %v6481, 7
          %v6483 = vsub.s32 %v6480, %v6482
          %v6484 = vrot.slane %v4146, %v6483
          %v6486 = vunpack.c.l.s4 839922192
          %v6487 = vunpack.c.0.s8 %v6486
          %v6488 = vlaneseq
          %v6489 = vshrl.u32 %v6488, 7
          %v6490 = vsub.s32 %v6487, %v6489
          %v6491 = vrot.slane %v4150, %v6490
          %v6493 = vunpack.c.l.s4 1985246804
          %v6494 = vunpack.c.0.s8 %v6493
          %v6495 = vlaneseq
          %v6496 = vshrl.u32 %v6495, 7
          %v6497 = vsub.s32 %v6494, %v6496
          %v6498 = vrot.slane %v4150, %v6497
          %v6500 = vunpack.c.l.s4 839922192
          %v6501 = vunpack.c.0.s8 %v6500
          %v6502 = vlaneseq
          %v6503 = vshrl.u32 %v6502, 7
          %v6504 = vsub.s32 %v6501, %v6503
          %v6505 = vrot.slane %v4154, %v6504
          %v6507 = vunpack.c.l.s4 1985246804
          %v6508 = vunpack.c.0.s8 %v6507
          %v6509 = vlaneseq
          %v6510 = vshrl.u32 %v6509, 7
          %v6511 = vsub.s32 %v6508, %v6510
          %v6512 = vrot.slane %v4154, %v6511
          %v6514 = vunpack.c.l.s4 839922192
          %v6515 = vunpack.c.0.s8 %v6514
          %v6516 = vlaneseq
          %v6517 = vshrl.u32 %v6516, 7
          %v6518 = vsub.s32 %v6515, %v6517
          %v6519 = vrot.slane %v4158, %v6518
          %v6521 = vunpack.c.l.s4 1985246804
          %v6522 = vunpack.c.0.s8 %v6521
          %v6523 = vlaneseq
          %v6524 = vshrl.u32 %v6523, 7
          %v6525 = vsub.s32 %v6522, %v6524
          %v6526 = vrot.slane %v4158, %v6525
          %v6527 = vcombine.low %v4741, %v4748
          %v6528 = vcombine.low %v4755, %v4762
          %v6529 = vcombine.low %v4769, %v4776
          %v6530 = vcombine.low %v4783, %v4790
          %v6531 = vcombine.low %v4797, %v4804
          %v6532 = vcombine.low %v4811, %v4818
          %v6533 = vcombine.low %v4825, %v4832
          %v6534 = vcombine.low %v4839, %v4846
          %v6535 = vcombine.low %v4853, %v4860
          %v6536 = vcombine.low %v4867, %v4874
          %v6537 = vcombine.low %v4881, %v4888
          %v6538 = vcombine.low %v4895, %v4902
          %v6539 = vcombine.low %v4909, %v4916
          %v6540 = vcombine.low %v4923, %v4930
          %v6541 = vcombine.low %v4937, %v4944
          %v6542 = vcombine.low %v4951, %v4958
          %v6543 = vcombine.low %v4965, %v4972
          %v6544 = vcombine.low %v4979, %v4986
          %v6545 = vcombine.low %v4993, %v5000
          %v6546 = vcombine.low %v5007, %v5014
          %v6547 = vcombine.low %v5021, %v5028
          %v6548 = vcombine.low %v5035, %v5042
          %v6549 = vcombine.low %v5049, %v5056
          %v6550 = vcombine.low %v5063, %v5070
          %v6551 = vcombine.low %v5077, %v5084
          %v6552 = vcombine.low %v5091, %v5098
          %v6553 = vcombine.low %v5105, %v5112
          %v6554 = vcombine.low %v5119, %v5126
          %v6555 = vcombine.low %v5133, %v5140
          %v6556 = vcombine.low %v5147, %v5154
          %v6557 = vcombine.low %v5161, %v5168
          %v6558 = vcombine.low %v5175, %v5182
          %v6559 = vcombine.low %v5189, %v5196
          %v6560 = vcombine.low %v5203, %v5210
          %v6561 = vcombine.low %v5217, %v5224
          %v6562 = vcombine.low %v5231, %v5238
          %v6563 = vcombine.low %v5245, %v5252
          %v6564 = vcombine.low %v5259, %v5266
          %v6565 = vcombine.low %v5273, %v5280
          %v6566 = vcombine.low %v5287, %v5294
          %v6567 = vcombine.low %v5301, %v5308
          %v6568 = vcombine.low %v5315, %v5322
          %v6569 = vcombine.low %v5329, %v5336
          %v6570 = vcombine.low %v5343, %v5350
          %v6571 = vcombine.low %v5357, %v5364
          %v6572 = vcombine.low %v5371, %v5378
          %v6573 = vcombine.low %v5385, %v5392
          %v6574 = vcombine.low %v5399, %v5406
          %v6575 = vcombine.low %v5413, %v5420
          %v6576 = vcombine.low %v5427, %v5434
          %v6577 = vcombine.low %v5441, %v5448
          %v6578 = vcombine.low %v5455, %v5462
          %v6579 = vcombine.low %v5469, %v5476
          %v6580 = vcombine.low %v5483, %v5490
          %v6581 = vcombine.low %v5497, %v5504
          %v6582 = vcombine.low %v5511, %v5518
          %v6583 = vcombine.low %v5525, %v5532
          %v6584 = vcombine.low %v5539, %v5546
          %v6585 = vcombine.low %v5553, %v5560
          %v6586 = vcombine.low %v5567, %v5574
          %v6587 = vcombine.low %v5581, %v5588
          %v6588 = vcombine.low %v5595, %v5602
          %v6589 = vcombine.low %v5609, %v5616
          %v6590 = vcombine.low %v5623, %v5630
          %v6591 = vcombine.low %v5637, %v5644
          %v6592 = vcombine.low %v5651, %v5658
          %v6593 = vcombine.low %v5665, %v5672
          %v6594 = vcombine.low %v5679, %v5686
          %v6595 = vcombine.low %v5693, %v5700
          %v6596 = vcombine.low %v5707, %v5714
          %v6597 = vcombine.low %v5721, %v5728
          %v6598 = vcombine.low %v5735, %v5742
          %v6599 = vcombine.low %v5749, %v5756
          %v6600 = vcombine.low %v5763, %v5770
          %v6601 = vcombine.low %v5777, %v5784
          %v6602 = vcombine.low %v5791, %v5798
          %v6603 = vcombine.low %v5805, %v5812
          %v6604 = vcombine.low %v5819, %v5826
          %v6605 = vcombine.low %v5833, %v5840
          %v6606 = vcombine.low %v5847, %v5854
          %v6607 = vcombine.low %v5861, %v5868
          %v6608 = vcombine.low %v5875, %v5882
          %v6609 = vcombine.low %v5889, %v5896
          %v6610 = vcombine.low %v5903, %v5910
          %v6611 = vcombine.low %v5917, %v5924
          %v6612 = vcombine.low %v5931, %v5938
          %v6613 = vcombine.low %v5945, %v5952
          %v6614 = vcombine.low %v5959, %v5966
          %v6615 = vcombine.low %v5973, %v5980
          %v6616 = vcombine.low %v5987, %v5994
          %v6617 = vcombine.low %v6001, %v6008
          %v6618 = vcombine.low %v6015, %v6022
          %v6619 = vcombine.low %v6029, %v6036
          %v6620 = vcombine.low %v6043, %v6050
          %v6621 = vcombine.low %v6057, %v6064
          %v6622 = vcombine.low %v6071, %v6078
          %v6623 = vcombine.low %v6085, %v6092
          %v6624 = vcombine.low %v6099, %v6106
          %v6625 = vcombine.low %v6113, %v6120
          %v6626 = vcombine.low %v6127, %v6134
          %v6627 = vcombine.low %v6141, %v6148
          %v6628 = vcombine.low %v6155, %v6162
          %v6629 = vcombine.low %v6169, %v6176
          %v6630 = vcombine.low %v6183, %v6190
          %v6631 = vcombine.low %v6197, %v6204
          %v6632 = vcombine.low %v6211, %v6218
          %v6633 = vcombine.low %v6225, %v6232
          %v6634 = vcombine.low %v6239, %v6246
          %v6635 = vcombine.low %v6253, %v6260
          %v6636 = vcombine.low %v6267, %v6274
          %v6637 = vcombine.low %v6281, %v6288
          %v6638 = vcombine.low %v6295, %v6302
          %v6639 = vcombine.low %v6309, %v6316
          %v6640 = vcombine.low %v6323, %v6330
          %v6641 = vcombine.low %v6337, %v6344
          %v6642 = vcombine.low %v6351, %v6358
          %v6643 = vcombine.low %v6365, %v6372
          %v6644 = vcombine.low %v6379, %v6386
          %v6645 = vcombine.low %v6393, %v6400
          %v6646 = vcombine.low %v6407, %v6414
          %v6647 = vcombine.low %v6421, %v6428
          %v6648 = vcombine.low %v6435, %v6442
          %v6649 = vcombine.low %v6449, %v6456
          %v6650 = vcombine.low %v6463, %v6470
          %v6651 = vcombine.low %v6477, %v6484
          %v6652 = vcombine.low %v6491, %v6498
          %v6653 = vcombine.low %v6505, %v6512
          %v6654 = vcombine.low %v6519, %v6526
          %6655 = vset.pattern.permute.xlu0 0
          %6656 = vperm.xlu0 %6655, %v6527
          %v6657 = vpop.permute.xlu0 %6656
          %6658 = vset.pattern.permute.xlu0 0
          %6659 = vperm.xlu0 %6658, %v6528
          %v6660 = vpop.permute.xlu0 %6659
          %6661 = vset.pattern.permute.xlu0 0
          %6662 = vperm.xlu0 %6661, %v6529
          %v6663 = vpop.permute.xlu0 %6662
          %6664 = vset.pattern.permute.xlu0 0
          %6665 = vperm.xlu0 %6664, %v6530
          %v6666 = vpop.permute.xlu0 %6665
          %6667 = vset.pattern.permute.xlu0 0
          %6668 = vperm.xlu0 %6667, %v6531
          %v6669 = vpop.permute.xlu0 %6668
          %6670 = vset.pattern.permute.xlu0 0
          %6671 = vperm.xlu0 %6670, %v6532
          %v6672 = vpop.permute.xlu0 %6671
          %6673 = vset.pattern.permute.xlu0 0
          %6674 = vperm.xlu0 %6673, %v6533
          %v6675 = vpop.permute.xlu0 %6674
          %6676 = vset.pattern.permute.xlu0 0
          %6677 = vperm.xlu0 %6676, %v6534
          %v6678 = vpop.permute.xlu0 %6677
          %6679 = vset.pattern.permute.xlu0 0
          %6680 = vperm.xlu0 %6679, %v6535
          %v6681 = vpop.permute.xlu0 %6680
          %6682 = vset.pattern.permute.xlu0 0
          %6683 = vperm.xlu0 %6682, %v6536
          %v6684 = vpop.permute.xlu0 %6683
          %6685 = vset.pattern.permute.xlu0 0
          %6686 = vperm.xlu0 %6685, %v6537
          %v6687 = vpop.permute.xlu0 %6686
          %6688 = vset.pattern.permute.xlu0 0
          %6689 = vperm.xlu0 %6688, %v6538
          %v6690 = vpop.permute.xlu0 %6689
          %6691 = vset.pattern.permute.xlu0 0
          %6692 = vperm.xlu0 %6691, %v6539
          %v6693 = vpop.permute.xlu0 %6692
          %6694 = vset.pattern.permute.xlu0 0
          %6695 = vperm.xlu0 %6694, %v6540
          %v6696 = vpop.permute.xlu0 %6695
          %6697 = vset.pattern.permute.xlu0 0
          %6698 = vperm.xlu0 %6697, %v6541
          %v6699 = vpop.permute.xlu0 %6698
          %6700 = vset.pattern.permute.xlu0 0
          %6701 = vperm.xlu0 %6700, %v6542
          %v6702 = vpop.permute.xlu0 %6701
          %6703 = vset.pattern.permute.xlu0 0
          %6704 = vperm.xlu0 %6703, %v6543
          %v6705 = vpop.permute.xlu0 %6704
          %6706 = vset.pattern.permute.xlu0 0
          %6707 = vperm.xlu0 %6706, %v6544
          %v6708 = vpop.permute.xlu0 %6707
          %6709 = vset.pattern.permute.xlu0 0
          %6710 = vperm.xlu0 %6709, %v6545
          %v6711 = vpop.permute.xlu0 %6710
          %6712 = vset.pattern.permute.xlu0 0
          %6713 = vperm.xlu0 %6712, %v6546
          %v6714 = vpop.permute.xlu0 %6713
          %6715 = vset.pattern.permute.xlu0 0
          %6716 = vperm.xlu0 %6715, %v6547
          %v6717 = vpop.permute.xlu0 %6716
          %6718 = vset.pattern.permute.xlu0 0
          %6719 = vperm.xlu0 %6718, %v6548
          %v6720 = vpop.permute.xlu0 %6719
          %6721 = vset.pattern.permute.xlu0 0
          %6722 = vperm.xlu0 %6721, %v6549
          %v6723 = vpop.permute.xlu0 %6722
          %6724 = vset.pattern.permute.xlu0 0
          %6725 = vperm.xlu0 %6724, %v6550
          %v6726 = vpop.permute.xlu0 %6725
          %6727 = vset.pattern.permute.xlu0 0
          %6728 = vperm.xlu0 %6727, %v6551
          %v6729 = vpop.permute.xlu0 %6728
          %6730 = vset.pattern.permute.xlu0 0
          %6731 = vperm.xlu0 %6730, %v6552
          %v6732 = vpop.permute.xlu0 %6731
          %6733 = vset.pattern.permute.xlu0 0
          %6734 = vperm.xlu0 %6733, %v6553
          %v6735 = vpop.permute.xlu0 %6734
          %6736 = vset.pattern.permute.xlu0 0
          %6737 = vperm.xlu0 %6736, %v6554
          %v6738 = vpop.permute.xlu0 %6737
          %6739 = vset.pattern.permute.xlu0 0
          %6740 = vperm.xlu0 %6739, %v6555
          %v6741 = vpop.permute.xlu0 %6740
          %6742 = vset.pattern.permute.xlu0 0
          %6743 = vperm.xlu0 %6742, %v6556
          %v6744 = vpop.permute.xlu0 %6743
          %6745 = vset.pattern.permute.xlu0 0
          %6746 = vperm.xlu0 %6745, %v6557
          %v6747 = vpop.permute.xlu0 %6746
          %6748 = vset.pattern.permute.xlu0 0
          %6749 = vperm.xlu0 %6748, %v6558
          %v6750 = vpop.permute.xlu0 %6749
          %6751 = vset.pattern.permute.xlu0 0
          %6752 = vperm.xlu0 %6751, %v6559
          %v6753 = vpop.permute.xlu0 %6752
          %6754 = vset.pattern.permute.xlu0 0
          %6755 = vperm.xlu0 %6754, %v6560
          %v6756 = vpop.permute.xlu0 %6755
          %6757 = vset.pattern.permute.xlu0 0
          %6758 = vperm.xlu0 %6757, %v6561
          %v6759 = vpop.permute.xlu0 %6758
          %6760 = vset.pattern.permute.xlu0 0
          %6761 = vperm.xlu0 %6760, %v6562
          %v6762 = vpop.permute.xlu0 %6761
          %6763 = vset.pattern.permute.xlu0 0
          %6764 = vperm.xlu0 %6763, %v6563
          %v6765 = vpop.permute.xlu0 %6764
          %6766 = vset.pattern.permute.xlu0 0
          %6767 = vperm.xlu0 %6766, %v6564
          %v6768 = vpop.permute.xlu0 %6767
          %6769 = vset.pattern.permute.xlu0 0
          %6770 = vperm.xlu0 %6769, %v6565
          %v6771 = vpop.permute.xlu0 %6770
          %6772 = vset.pattern.permute.xlu0 0
          %6773 = vperm.xlu0 %6772, %v6566
          %v6774 = vpop.permute.xlu0 %6773
          %6775 = vset.pattern.permute.xlu0 0
          %6776 = vperm.xlu0 %6775, %v6567
          %v6777 = vpop.permute.xlu0 %6776
          %6778 = vset.pattern.permute.xlu0 0
          %6779 = vperm.xlu0 %6778, %v6568
          %v6780 = vpop.permute.xlu0 %6779
          %6781 = vset.pattern.permute.xlu0 0
          %6782 = vperm.xlu0 %6781, %v6569
          %v6783 = vpop.permute.xlu0 %6782
          %6784 = vset.pattern.permute.xlu0 0
          %6785 = vperm.xlu0 %6784, %v6570
          %v6786 = vpop.permute.xlu0 %6785
          %6787 = vset.pattern.permute.xlu0 0
          %6788 = vperm.xlu0 %6787, %v6571
          %v6789 = vpop.permute.xlu0 %6788
          %6790 = vset.pattern.permute.xlu0 0
          %6791 = vperm.xlu0 %6790, %v6572
          %v6792 = vpop.permute.xlu0 %6791
          %6793 = vset.pattern.permute.xlu0 0
          %6794 = vperm.xlu0 %6793, %v6573
          %v6795 = vpop.permute.xlu0 %6794
          %6796 = vset.pattern.permute.xlu0 0
          %6797 = vperm.xlu0 %6796, %v6574
          %v6798 = vpop.permute.xlu0 %6797
          %6799 = vset.pattern.permute.xlu0 0
          %6800 = vperm.xlu0 %6799, %v6575
          %v6801 = vpop.permute.xlu0 %6800
          %6802 = vset.pattern.permute.xlu0 0
          %6803 = vperm.xlu0 %6802, %v6576
          %v6804 = vpop.permute.xlu0 %6803
          %6805 = vset.pattern.permute.xlu0 0
          %6806 = vperm.xlu0 %6805, %v6577
          %v6807 = vpop.permute.xlu0 %6806
          %6808 = vset.pattern.permute.xlu0 0
          %6809 = vperm.xlu0 %6808, %v6578
          %v6810 = vpop.permute.xlu0 %6809
          %6811 = vset.pattern.permute.xlu0 0
          %6812 = vperm.xlu0 %6811, %v6579
          %v6813 = vpop.permute.xlu0 %6812
          %6814 = vset.pattern.permute.xlu0 0
          %6815 = vperm.xlu0 %6814, %v6580
          %v6816 = vpop.permute.xlu0 %6815
          %6817 = vset.pattern.permute.xlu0 0
          %6818 = vperm.xlu0 %6817, %v6581
          %v6819 = vpop.permute.xlu0 %6818
          %6820 = vset.pattern.permute.xlu0 0
          %6821 = vperm.xlu0 %6820, %v6582
          %v6822 = vpop.permute.xlu0 %6821
          %6823 = vset.pattern.permute.xlu0 0
          %6824 = vperm.xlu0 %6823, %v6583
          %v6825 = vpop.permute.xlu0 %6824
          %6826 = vset.pattern.permute.xlu0 0
          %6827 = vperm.xlu0 %6826, %v6584
          %v6828 = vpop.permute.xlu0 %6827
          %6829 = vset.pattern.permute.xlu0 0
          %6830 = vperm.xlu0 %6829, %v6585
          %v6831 = vpop.permute.xlu0 %6830
          %6832 = vset.pattern.permute.xlu0 0
          %6833 = vperm.xlu0 %6832, %v6586
          %v6834 = vpop.permute.xlu0 %6833
          %6835 = vset.pattern.permute.xlu0 0
          %6836 = vperm.xlu0 %6835, %v6587
          %v6837 = vpop.permute.xlu0 %6836
          %6838 = vset.pattern.permute.xlu0 0
          %6839 = vperm.xlu0 %6838, %v6588
          %v6840 = vpop.permute.xlu0 %6839
          %6841 = vset.pattern.permute.xlu0 0
          %6842 = vperm.xlu0 %6841, %v6589
          %v6843 = vpop.permute.xlu0 %6842
          %6844 = vset.pattern.permute.xlu0 0
          %6845 = vperm.xlu0 %6844, %v6590
          %v6846 = vpop.permute.xlu0 %6845
          %6847 = vset.pattern.permute.xlu0 0
          %6848 = vperm.xlu0 %6847, %v6591
          %v6849 = vpop.permute.xlu0 %6848
          %6850 = vset.pattern.permute.xlu0 0
          %6851 = vperm.xlu0 %6850, %v6592
          %v6852 = vpop.permute.xlu0 %6851
          %6853 = vset.pattern.permute.xlu0 0
          %6854 = vperm.xlu0 %6853, %v6593
          %v6855 = vpop.permute.xlu0 %6854
          %6856 = vset.pattern.permute.xlu0 0
          %6857 = vperm.xlu0 %6856, %v6594
          %v6858 = vpop.permute.xlu0 %6857
          %6859 = vset.pattern.permute.xlu0 0
          %6860 = vperm.xlu0 %6859, %v6595
          %v6861 = vpop.permute.xlu0 %6860
          %6862 = vset.pattern.permute.xlu0 0
          %6863 = vperm.xlu0 %6862, %v6596
          %v6864 = vpop.permute.xlu0 %6863
          %6865 = vset.pattern.permute.xlu0 0
          %6866 = vperm.xlu0 %6865, %v6597
          %v6867 = vpop.permute.xlu0 %6866
          %6868 = vset.pattern.permute.xlu0 0
          %6869 = vperm.xlu0 %6868, %v6598
          %v6870 = vpop.permute.xlu0 %6869
          %6871 = vset.pattern.permute.xlu0 0
          %6872 = vperm.xlu0 %6871, %v6599
          %v6873 = vpop.permute.xlu0 %6872
          %6874 = vset.pattern.permute.xlu0 0
          %6875 = vperm.xlu0 %6874, %v6600
          %v6876 = vpop.permute.xlu0 %6875
          %6877 = vset.pattern.permute.xlu0 0
          %6878 = vperm.xlu0 %6877, %v6601
          %v6879 = vpop.permute.xlu0 %6878
          %6880 = vset.pattern.permute.xlu0 0
          %6881 = vperm.xlu0 %6880, %v6602
          %v6882 = vpop.permute.xlu0 %6881
          %6883 = vset.pattern.permute.xlu0 0
          %6884 = vperm.xlu0 %6883, %v6603
          %v6885 = vpop.permute.xlu0 %6884
          %6886 = vset.pattern.permute.xlu0 0
          %6887 = vperm.xlu0 %6886, %v6604
          %v6888 = vpop.permute.xlu0 %6887
          %6889 = vset.pattern.permute.xlu0 0
          %6890 = vperm.xlu0 %6889, %v6605
          %v6891 = vpop.permute.xlu0 %6890
          %6892 = vset.pattern.permute.xlu0 0
          %6893 = vperm.xlu0 %6892, %v6606
          %v6894 = vpop.permute.xlu0 %6893
          %6895 = vset.pattern.permute.xlu0 0
          %6896 = vperm.xlu0 %6895, %v6607
          %v6897 = vpop.permute.xlu0 %6896
          %6898 = vset.pattern.permute.xlu0 0
          %6899 = vperm.xlu0 %6898, %v6608
          %v6900 = vpop.permute.xlu0 %6899
          %6901 = vset.pattern.permute.xlu0 0
          %6902 = vperm.xlu0 %6901, %v6609
          %v6903 = vpop.permute.xlu0 %6902
          %6904 = vset.pattern.permute.xlu0 0
          %6905 = vperm.xlu0 %6904, %v6610
          %v6906 = vpop.permute.xlu0 %6905
          %6907 = vset.pattern.permute.xlu0 0
          %6908 = vperm.xlu0 %6907, %v6611
          %v6909 = vpop.permute.xlu0 %6908
          %6910 = vset.pattern.permute.xlu0 0
          %6911 = vperm.xlu0 %6910, %v6612
          %v6912 = vpop.permute.xlu0 %6911
          %6913 = vset.pattern.permute.xlu0 0
          %6914 = vperm.xlu0 %6913, %v6613
          %v6915 = vpop.permute.xlu0 %6914
          %6916 = vset.pattern.permute.xlu0 0
          %6917 = vperm.xlu0 %6916, %v6614
          %v6918 = vpop.permute.xlu0 %6917
          %6919 = vset.pattern.permute.xlu0 0
          %6920 = vperm.xlu0 %6919, %v6615
          %v6921 = vpop.permute.xlu0 %6920
          %6922 = vset.pattern.permute.xlu0 0
          %6923 = vperm.xlu0 %6922, %v6616
          %v6924 = vpop.permute.xlu0 %6923
          %6925 = vset.pattern.permute.xlu0 0
          %6926 = vperm.xlu0 %6925, %v6617
          %v6927 = vpop.permute.xlu0 %6926
          %6928 = vset.pattern.permute.xlu0 0
          %6929 = vperm.xlu0 %6928, %v6618
          %v6930 = vpop.permute.xlu0 %6929
          %6931 = vset.pattern.permute.xlu0 0
          %6932 = vperm.xlu0 %6931, %v6619
          %v6933 = vpop.permute.xlu0 %6932
          %6934 = vset.pattern.permute.xlu0 0
          %6935 = vperm.xlu0 %6934, %v6620
          %v6936 = vpop.permute.xlu0 %6935
          %6937 = vset.pattern.permute.xlu0 0
          %6938 = vperm.xlu0 %6937, %v6621
          %v6939 = vpop.permute.xlu0 %6938
          %6940 = vset.pattern.permute.xlu0 0
          %6941 = vperm.xlu0 %6940, %v6622
          %v6942 = vpop.permute.xlu0 %6941
          %6943 = vset.pattern.permute.xlu0 0
          %6944 = vperm.xlu0 %6943, %v6623
          %v6945 = vpop.permute.xlu0 %6944
          %6946 = vset.pattern.permute.xlu0 0
          %6947 = vperm.xlu0 %6946, %v6624
          %v6948 = vpop.permute.xlu0 %6947
          %6949 = vset.pattern.permute.xlu0 0
          %6950 = vperm.xlu0 %6949, %v6625
          %v6951 = vpop.permute.xlu0 %6950
          %6952 = vset.pattern.permute.xlu0 0
          %6953 = vperm.xlu0 %6952, %v6626
          %v6954 = vpop.permute.xlu0 %6953
          %6955 = vset.pattern.permute.xlu0 0
          %6956 = vperm.xlu0 %6955, %v6627
          %v6957 = vpop.permute.xlu0 %6956
          %6958 = vset.pattern.permute.xlu0 0
          %6959 = vperm.xlu0 %6958, %v6628
          %v6960 = vpop.permute.xlu0 %6959
          %6961 = vset.pattern.permute.xlu0 0
          %6962 = vperm.xlu0 %6961, %v6629
          %v6963 = vpop.permute.xlu0 %6962
          %6964 = vset.pattern.permute.xlu0 0
          %6965 = vperm.xlu0 %6964, %v6630
          %v6966 = vpop.permute.xlu0 %6965
          %6967 = vset.pattern.permute.xlu0 0
          %6968 = vperm.xlu0 %6967, %v6631
          %v6969 = vpop.permute.xlu0 %6968
          %6970 = vset.pattern.permute.xlu0 0
          %6971 = vperm.xlu0 %6970, %v6632
          %v6972 = vpop.permute.xlu0 %6971
          %6973 = vset.pattern.permute.xlu0 0
          %6974 = vperm.xlu0 %6973, %v6633
          %v6975 = vpop.permute.xlu0 %6974
          %6976 = vset.pattern.permute.xlu0 0
          %6977 = vperm.xlu0 %6976, %v6634
          %v6978 = vpop.permute.xlu0 %6977
          %6979 = vset.pattern.permute.xlu0 0
          %6980 = vperm.xlu0 %6979, %v6635
          %v6981 = vpop.permute.xlu0 %6980
          %6982 = vset.pattern.permute.xlu0 0
          %6983 = vperm.xlu0 %6982, %v6636
          %v6984 = vpop.permute.xlu0 %6983
          %6985 = vset.pattern.permute.xlu0 0
          %6986 = vperm.xlu0 %6985, %v6637
          %v6987 = vpop.permute.xlu0 %6986
          %6988 = vset.pattern.permute.xlu0 0
          %6989 = vperm.xlu0 %6988, %v6638
          %v6990 = vpop.permute.xlu0 %6989
          %6991 = vset.pattern.permute.xlu0 0
          %6992 = vperm.xlu0 %6991, %v6639
          %v6993 = vpop.permute.xlu0 %6992
          %6994 = vset.pattern.permute.xlu0 0
          %6995 = vperm.xlu0 %6994, %v6640
          %v6996 = vpop.permute.xlu0 %6995
          %6997 = vset.pattern.permute.xlu0 0
          %6998 = vperm.xlu0 %6997, %v6641
          %v6999 = vpop.permute.xlu0 %6998
          %7000 = vset.pattern.permute.xlu0 0
          %7001 = vperm.xlu0 %7000, %v6642
          %v7002 = vpop.permute.xlu0 %7001
          %7003 = vset.pattern.permute.xlu0 0
          %7004 = vperm.xlu0 %7003, %v6643
          %v7005 = vpop.permute.xlu0 %7004
          %7006 = vset.pattern.permute.xlu0 0
          %7007 = vperm.xlu0 %7006, %v6644
          %v7008 = vpop.permute.xlu0 %7007
          %7009 = vset.pattern.permute.xlu0 0
          %7010 = vperm.xlu0 %7009, %v6645
          %v7011 = vpop.permute.xlu0 %7010
          %7012 = vset.pattern.permute.xlu0 0
          %7013 = vperm.xlu0 %7012, %v6646
          %v7014 = vpop.permute.xlu0 %7013
          %7015 = vset.pattern.permute.xlu0 0
          %7016 = vperm.xlu0 %7015, %v6647
          %v7017 = vpop.permute.xlu0 %7016
          %7018 = vset.pattern.permute.xlu0 0
          %7019 = vperm.xlu0 %7018, %v6648
          %v7020 = vpop.permute.xlu0 %7019
          %7021 = vset.pattern.permute.xlu0 0
          %7022 = vperm.xlu0 %7021, %v6649
          %v7023 = vpop.permute.xlu0 %7022
          %7024 = vset.pattern.permute.xlu0 0
          %7025 = vperm.xlu0 %7024, %v6650
          %v7026 = vpop.permute.xlu0 %7025
          %7027 = vset.pattern.permute.xlu0 0
          %7028 = vperm.xlu0 %7027, %v6651
          %v7029 = vpop.permute.xlu0 %7028
          %7030 = vset.pattern.permute.xlu0 0
          %7031 = vperm.xlu0 %7030, %v6652
          %v7032 = vpop.permute.xlu0 %7031
          %7033 = vset.pattern.permute.xlu0 0
          %7034 = vperm.xlu0 %7033, %v6653
          %v7035 = vpop.permute.xlu0 %7034
          %7036 = vset.pattern.permute.xlu0 0
          %7037 = vperm.xlu0 %7036, %v6654
          %v7038 = vpop.permute.xlu0 %7037
          %v7039 = vlaneseq
          %v7040 = vand.u32 %v7039, 127
          %v7041 = vlaneseq
          %v7042 = vshrl.u32 %v7041, 7
          %v7043 = vsub.s32 %v7040, %v7042
          %v7044 = vrot.slane %v6657, %v7043
          %v7045 = vadd.s32 %v7040, 4294967288
          %v7046 = vlaneseq
          %v7047 = vshrl.u32 %v7046, 7
          %v7048 = vsub.s32 %v7045, %v7047
          %v7049 = vrot.slane %v6660, %v7048
          %vm7050 = vcmask 130112
          %v7051 = vsel %vm7050, %v7049, %v7044
          %v7052 = vadd.s32 %v7040, 4294967280
          %v7053 = vlaneseq
          %v7054 = vshrl.u32 %v7053, 7
          %v7055 = vsub.s32 %v7052, %v7054
          %v7056 = vrot.slane %v6663, %v7055
          %vm7057 = vcmask 195712
          %v7058 = vsel %vm7057, %v7056, %v7051
          %v7059 = vadd.s32 %v7040, 4294967272
          %v7060 = vlaneseq
          %v7061 = vshrl.u32 %v7060, 7
          %v7062 = vsub.s32 %v7059, %v7061
          %v7063 = vrot.slane %v6666, %v7062
          %vm7064 = vcmask 261312
          %v7065 = vsel %vm7064, %v7063, %v7058
          %v7066 = vadd.s32 %v7040, 4294967264
          %v7067 = vlaneseq
          %v7068 = vshrl.u32 %v7067, 7
          %v7069 = vsub.s32 %v7066, %v7068
          %v7070 = vrot.slane %v6669, %v7069
          %vm7071 = vcmask 326912
          %v7072 = vsel %vm7071, %v7070, %v7065
          %v7073 = vadd.s32 %v7040, 4294967256
          %v7074 = vlaneseq
          %v7075 = vshrl.u32 %v7074, 7
          %v7076 = vsub.s32 %v7073, %v7075
          %v7077 = vrot.slane %v6672, %v7076
          %vm7078 = vcmask 392512
          %v7079 = vsel %vm7078, %v7077, %v7072
          %v7080 = vadd.s32 %v7040, 4294967248
          %v7081 = vlaneseq
          %v7082 = vshrl.u32 %v7081, 7
          %v7083 = vsub.s32 %v7080, %v7082
          %v7084 = vrot.slane %v6675, %v7083
          %vm7085 = vcmask 458112
          %v7086 = vsel %vm7085, %v7084, %v7079
          %v7087 = vadd.s32 %v7040, 4294967240
          %v7088 = vlaneseq
          %v7089 = vshrl.u32 %v7088, 7
          %v7090 = vsub.s32 %v7087, %v7089
          %v7091 = vrot.slane %v6678, %v7090
          %vm7092 = vcmask 523712
          %v7093 = vsel %vm7092, %v7091, %v7086
          %v7094 = vadd.s32 %v7040, 4294967232
          %v7095 = vlaneseq
          %v7096 = vshrl.u32 %v7095, 7
          %v7097 = vsub.s32 %v7094, %v7096
          %v7098 = vrot.slane %v6681, %v7097
          %vm7099 = vcmask 589312
          %v7100 = vsel %vm7099, %v7098, %v7093
          %v7101 = vadd.s32 %v7040, 4294967224
          %v7102 = vlaneseq
          %v7103 = vshrl.u32 %v7102, 7
          %v7104 = vsub.s32 %v7101, %v7103
          %v7105 = vrot.slane %v6684, %v7104
          %vm7106 = vcmask 654912
          %v7107 = vsel %vm7106, %v7105, %v7100
          %v7108 = vadd.s32 %v7040, 4294967216
          %v7109 = vlaneseq
          %v7110 = vshrl.u32 %v7109, 7
          %v7111 = vsub.s32 %v7108, %v7110
          %v7112 = vrot.slane %v6687, %v7111
          %vm7113 = vcmask 720512
          %v7114 = vsel %vm7113, %v7112, %v7107
          %v7115 = vadd.s32 %v7040, 4294967208
          %v7116 = vlaneseq
          %v7117 = vshrl.u32 %v7116, 7
          %v7118 = vsub.s32 %v7115, %v7117
          %v7119 = vrot.slane %v6690, %v7118
          %vm7120 = vcmask 786112
          %v7121 = vsel %vm7120, %v7119, %v7114
          %v7122 = vadd.s32 %v7040, 4294967200
          %v7123 = vlaneseq
          %v7124 = vshrl.u32 %v7123, 7
          %v7125 = vsub.s32 %v7122, %v7124
          %v7126 = vrot.slane %v6693, %v7125
          %vm7127 = vcmask 851712
          %v7128 = vsel %vm7127, %v7126, %v7121
          %v7129 = vadd.s32 %v7040, 4294967192
          %v7130 = vlaneseq
          %v7131 = vshrl.u32 %v7130, 7
          %v7132 = vsub.s32 %v7129, %v7131
          %v7133 = vrot.slane %v6696, %v7132
          %vm7134 = vcmask 917312
          %v7135 = vsel %vm7134, %v7133, %v7128
          %v7136 = vadd.s32 %v7040, 4294967184
          %v7137 = vlaneseq
          %v7138 = vshrl.u32 %v7137, 7
          %v7139 = vsub.s32 %v7136, %v7138
          %v7140 = vrot.slane %v6699, %v7139
          %vm7141 = vcmask 982912
          %v7142 = vsel %vm7141, %v7140, %v7135
          %v7143 = vadd.s32 %v7040, 4294967176
          %v7144 = vlaneseq
          %v7145 = vshrl.u32 %v7144, 7
          %v7146 = vsub.s32 %v7143, %v7145
          %v7147 = vrot.slane %v6702, %v7146
          %vm7148 = vcmask 1048512
          %v7149 = vsel %vm7148, %v7147, %v7142
          %v7150 = vlaneseq
          %v7151 = vshrl.u32 %v7150, 7
          %v7152 = vsub.s32 %v7040, %v7151
          %v7153 = vrot.slane %v6705, %v7152
          %v7154 = vlaneseq
          %v7155 = vshrl.u32 %v7154, 7
          %v7156 = vsub.s32 %v7045, %v7155
          %v7157 = vrot.slane %v6708, %v7156
          %v7158 = vsel %vm7050, %v7157, %v7153
          %v7159 = vlaneseq
          %v7160 = vshrl.u32 %v7159, 7
          %v7161 = vsub.s32 %v7052, %v7160
          %v7162 = vrot.slane %v6711, %v7161
          %v7163 = vsel %vm7057, %v7162, %v7158
          %v7164 = vlaneseq
          %v7165 = vshrl.u32 %v7164, 7
          %v7166 = vsub.s32 %v7059, %v7165
          %v7167 = vrot.slane %v6714, %v7166
          %v7168 = vsel %vm7064, %v7167, %v7163
          %v7169 = vlaneseq
          %v7170 = vshrl.u32 %v7169, 7
          %v7171 = vsub.s32 %v7066, %v7170
          %v7172 = vrot.slane %v6717, %v7171
          %v7173 = vsel %vm7071, %v7172, %v7168
          %v7174 = vlaneseq
          %v7175 = vshrl.u32 %v7174, 7
          %v7176 = vsub.s32 %v7073, %v7175
          %v7177 = vrot.slane %v6720, %v7176
          %v7178 = vsel %vm7078, %v7177, %v7173
          %v7179 = vlaneseq
          %v7180 = vshrl.u32 %v7179, 7
          %v7181 = vsub.s32 %v7080, %v7180
          %v7182 = vrot.slane %v6723, %v7181
          %v7183 = vsel %vm7085, %v7182, %v7178
          %v7184 = vlaneseq
          %v7185 = vshrl.u32 %v7184, 7
          %v7186 = vsub.s32 %v7087, %v7185
          %v7187 = vrot.slane %v6726, %v7186
          %v7188 = vsel %vm7092, %v7187, %v7183
          %v7189 = vlaneseq
          %v7190 = vshrl.u32 %v7189, 7
          %v7191 = vsub.s32 %v7094, %v7190
          %v7192 = vrot.slane %v6729, %v7191
          %v7193 = vsel %vm7099, %v7192, %v7188
          %v7194 = vlaneseq
          %v7195 = vshrl.u32 %v7194, 7
          %v7196 = vsub.s32 %v7101, %v7195
          %v7197 = vrot.slane %v6732, %v7196
          %v7198 = vsel %vm7106, %v7197, %v7193
          %v7199 = vlaneseq
          %v7200 = vshrl.u32 %v7199, 7
          %v7201 = vsub.s32 %v7108, %v7200
          %v7202 = vrot.slane %v6735, %v7201
          %v7203 = vsel %vm7113, %v7202, %v7198
          %v7204 = vlaneseq
          %v7205 = vshrl.u32 %v7204, 7
          %v7206 = vsub.s32 %v7115, %v7205
          %v7207 = vrot.slane %v6738, %v7206
          %v7208 = vsel %vm7120, %v7207, %v7203
          %v7209 = vlaneseq
          %v7210 = vshrl.u32 %v7209, 7
          %v7211 = vsub.s32 %v7122, %v7210
          %v7212 = vrot.slane %v6741, %v7211
          %v7213 = vsel %vm7127, %v7212, %v7208
          %v7214 = vlaneseq
          %v7215 = vshrl.u32 %v7214, 7
          %v7216 = vsub.s32 %v7129, %v7215
          %v7217 = vrot.slane %v6744, %v7216
          %v7218 = vsel %vm7134, %v7217, %v7213
          %v7219 = vlaneseq
          %v7220 = vshrl.u32 %v7219, 7
          %v7221 = vsub.s32 %v7136, %v7220
          %v7222 = vrot.slane %v6747, %v7221
          %v7223 = vsel %vm7141, %v7222, %v7218
          %v7224 = vlaneseq
          %v7225 = vshrl.u32 %v7224, 7
          %v7226 = vsub.s32 %v7143, %v7225
          %v7227 = vrot.slane %v6750, %v7226
          %v7228 = vsel %vm7148, %v7227, %v7223
          %v7229 = vlaneseq
          %v7230 = vshrl.u32 %v7229, 7
          %v7231 = vsub.s32 %v7040, %v7230
          %v7232 = vrot.slane %v6753, %v7231
          %v7233 = vlaneseq
          %v7234 = vshrl.u32 %v7233, 7
          %v7235 = vsub.s32 %v7045, %v7234
          %v7236 = vrot.slane %v6756, %v7235
          %v7237 = vsel %vm7050, %v7236, %v7232
          %v7238 = vlaneseq
          %v7239 = vshrl.u32 %v7238, 7
          %v7240 = vsub.s32 %v7052, %v7239
          %v7241 = vrot.slane %v6759, %v7240
          %v7242 = vsel %vm7057, %v7241, %v7237
          %v7243 = vlaneseq
          %v7244 = vshrl.u32 %v7243, 7
          %v7245 = vsub.s32 %v7059, %v7244
          %v7246 = vrot.slane %v6762, %v7245
          %v7247 = vsel %vm7064, %v7246, %v7242
          %v7248 = vlaneseq
          %v7249 = vshrl.u32 %v7248, 7
          %v7250 = vsub.s32 %v7066, %v7249
          %v7251 = vrot.slane %v6765, %v7250
          %v7252 = vsel %vm7071, %v7251, %v7247
          %v7253 = vlaneseq
          %v7254 = vshrl.u32 %v7253, 7
          %v7255 = vsub.s32 %v7073, %v7254
          %v7256 = vrot.slane %v6768, %v7255
          %v7257 = vsel %vm7078, %v7256, %v7252
          %v7258 = vlaneseq
          %v7259 = vshrl.u32 %v7258, 7
          %v7260 = vsub.s32 %v7080, %v7259
          %v7261 = vrot.slane %v6771, %v7260
          %v7262 = vsel %vm7085, %v7261, %v7257
          %v7263 = vlaneseq
          %v7264 = vshrl.u32 %v7263, 7
          %v7265 = vsub.s32 %v7087, %v7264
          %v7266 = vrot.slane %v6774, %v7265
          %v7267 = vsel %vm7092, %v7266, %v7262
          %v7268 = vlaneseq
          %v7269 = vshrl.u32 %v7268, 7
          %v7270 = vsub.s32 %v7094, %v7269
          %v7271 = vrot.slane %v6777, %v7270
          %v7272 = vsel %vm7099, %v7271, %v7267
          %v7273 = vlaneseq
          %v7274 = vshrl.u32 %v7273, 7
          %v7275 = vsub.s32 %v7101, %v7274
          %v7276 = vrot.slane %v6780, %v7275
          %v7277 = vsel %vm7106, %v7276, %v7272
          %v7278 = vlaneseq
          %v7279 = vshrl.u32 %v7278, 7
          %v7280 = vsub.s32 %v7108, %v7279
          %v7281 = vrot.slane %v6783, %v7280
          %v7282 = vsel %vm7113, %v7281, %v7277
          %v7283 = vlaneseq
          %v7284 = vshrl.u32 %v7283, 7
          %v7285 = vsub.s32 %v7115, %v7284
          %v7286 = vrot.slane %v6786, %v7285
          %v7287 = vsel %vm7120, %v7286, %v7282
          %v7288 = vlaneseq
          %v7289 = vshrl.u32 %v7288, 7
          %v7290 = vsub.s32 %v7122, %v7289
          %v7291 = vrot.slane %v6789, %v7290
          %v7292 = vsel %vm7127, %v7291, %v7287
          %v7293 = vlaneseq
          %v7294 = vshrl.u32 %v7293, 7
          %v7295 = vsub.s32 %v7129, %v7294
          %v7296 = vrot.slane %v6792, %v7295
          %v7297 = vsel %vm7134, %v7296, %v7292
          %v7298 = vlaneseq
          %v7299 = vshrl.u32 %v7298, 7
          %v7300 = vsub.s32 %v7136, %v7299
          %v7301 = vrot.slane %v6795, %v7300
          %v7302 = vsel %vm7141, %v7301, %v7297
          %v7303 = vlaneseq
          %v7304 = vshrl.u32 %v7303, 7
          %v7305 = vsub.s32 %v7143, %v7304
          %v7306 = vrot.slane %v6798, %v7305
          %v7307 = vsel %vm7148, %v7306, %v7302
          %v7308 = vlaneseq
          %v7309 = vshrl.u32 %v7308, 7
          %v7310 = vsub.s32 %v7040, %v7309
          %v7311 = vrot.slane %v6801, %v7310
          %v7312 = vlaneseq
          %v7313 = vshrl.u32 %v7312, 7
          %v7314 = vsub.s32 %v7045, %v7313
          %v7315 = vrot.slane %v6804, %v7314
          %v7316 = vsel %vm7050, %v7315, %v7311
          %v7317 = vlaneseq
          %v7318 = vshrl.u32 %v7317, 7
          %v7319 = vsub.s32 %v7052, %v7318
          %v7320 = vrot.slane %v6807, %v7319
          %v7321 = vsel %vm7057, %v7320, %v7316
          %v7322 = vlaneseq
          %v7323 = vshrl.u32 %v7322, 7
          %v7324 = vsub.s32 %v7059, %v7323
          %v7325 = vrot.slane %v6810, %v7324
          %v7326 = vsel %vm7064, %v7325, %v7321
          %v7327 = vlaneseq
          %v7328 = vshrl.u32 %v7327, 7
          %v7329 = vsub.s32 %v7066, %v7328
          %v7330 = vrot.slane %v6813, %v7329
          %v7331 = vsel %vm7071, %v7330, %v7326
          %v7332 = vlaneseq
          %v7333 = vshrl.u32 %v7332, 7
          %v7334 = vsub.s32 %v7073, %v7333
          %v7335 = vrot.slane %v6816, %v7334
          %v7336 = vsel %vm7078, %v7335, %v7331
          %v7337 = vlaneseq
          %v7338 = vshrl.u32 %v7337, 7
          %v7339 = vsub.s32 %v7080, %v7338
          %v7340 = vrot.slane %v6819, %v7339
          %v7341 = vsel %vm7085, %v7340, %v7336
          %v7342 = vlaneseq
          %v7343 = vshrl.u32 %v7342, 7
          %v7344 = vsub.s32 %v7087, %v7343
          %v7345 = vrot.slane %v6822, %v7344
          %v7346 = vsel %vm7092, %v7345, %v7341
          %v7347 = vlaneseq
          %v7348 = vshrl.u32 %v7347, 7
          %v7349 = vsub.s32 %v7094, %v7348
          %v7350 = vrot.slane %v6825, %v7349
          %v7351 = vsel %vm7099, %v7350, %v7346
          %v7352 = vlaneseq
          %v7353 = vshrl.u32 %v7352, 7
          %v7354 = vsub.s32 %v7101, %v7353
          %v7355 = vrot.slane %v6828, %v7354
          %v7356 = vsel %vm7106, %v7355, %v7351
          %v7357 = vlaneseq
          %v7358 = vshrl.u32 %v7357, 7
          %v7359 = vsub.s32 %v7108, %v7358
          %v7360 = vrot.slane %v6831, %v7359
          %v7361 = vsel %vm7113, %v7360, %v7356
          %v7362 = vlaneseq
          %v7363 = vshrl.u32 %v7362, 7
          %v7364 = vsub.s32 %v7115, %v7363
          %v7365 = vrot.slane %v6834, %v7364
          %v7366 = vsel %vm7120, %v7365, %v7361
          %v7367 = vlaneseq
          %v7368 = vshrl.u32 %v7367, 7
          %v7369 = vsub.s32 %v7122, %v7368
          %v7370 = vrot.slane %v6837, %v7369
          %v7371 = vsel %vm7127, %v7370, %v7366
          %v7372 = vlaneseq
          %v7373 = vshrl.u32 %v7372, 7
          %v7374 = vsub.s32 %v7129, %v7373
          %v7375 = vrot.slane %v6840, %v7374
          %v7376 = vsel %vm7134, %v7375, %v7371
          %v7377 = vlaneseq
          %v7378 = vshrl.u32 %v7377, 7
          %v7379 = vsub.s32 %v7136, %v7378
          %v7380 = vrot.slane %v6843, %v7379
          %v7381 = vsel %vm7141, %v7380, %v7376
          %v7382 = vlaneseq
          %v7383 = vshrl.u32 %v7382, 7
          %v7384 = vsub.s32 %v7143, %v7383
          %v7385 = vrot.slane %v6846, %v7384
          %v7386 = vsel %vm7148, %v7385, %v7381
          %v7387 = vlaneseq
          %v7388 = vshrl.u32 %v7387, 7
          %v7389 = vsub.s32 %v7040, %v7388
          %v7390 = vrot.slane %v6849, %v7389
          %v7391 = vlaneseq
          %v7392 = vshrl.u32 %v7391, 7
          %v7393 = vsub.s32 %v7045, %v7392
          %v7394 = vrot.slane %v6852, %v7393
          %v7395 = vsel %vm7050, %v7394, %v7390
          %v7396 = vlaneseq
          %v7397 = vshrl.u32 %v7396, 7
          %v7398 = vsub.s32 %v7052, %v7397
          %v7399 = vrot.slane %v6855, %v7398
          %v7400 = vsel %vm7057, %v7399, %v7395
          %v7401 = vlaneseq
          %v7402 = vshrl.u32 %v7401, 7
          %v7403 = vsub.s32 %v7059, %v7402
          %v7404 = vrot.slane %v6858, %v7403
          %v7405 = vsel %vm7064, %v7404, %v7400
          %v7406 = vlaneseq
          %v7407 = vshrl.u32 %v7406, 7
          %v7408 = vsub.s32 %v7066, %v7407
          %v7409 = vrot.slane %v6861, %v7408
          %v7410 = vsel %vm7071, %v7409, %v7405
          %v7411 = vlaneseq
          %v7412 = vshrl.u32 %v7411, 7
          %v7413 = vsub.s32 %v7073, %v7412
          %v7414 = vrot.slane %v6864, %v7413
          %v7415 = vsel %vm7078, %v7414, %v7410
          %v7416 = vlaneseq
          %v7417 = vshrl.u32 %v7416, 7
          %v7418 = vsub.s32 %v7080, %v7417
          %v7419 = vrot.slane %v6867, %v7418
          %v7420 = vsel %vm7085, %v7419, %v7415
          %v7421 = vlaneseq
          %v7422 = vshrl.u32 %v7421, 7
          %v7423 = vsub.s32 %v7087, %v7422
          %v7424 = vrot.slane %v6870, %v7423
          %v7425 = vsel %vm7092, %v7424, %v7420
          %v7426 = vlaneseq
          %v7427 = vshrl.u32 %v7426, 7
          %v7428 = vsub.s32 %v7094, %v7427
          %v7429 = vrot.slane %v6873, %v7428
          %v7430 = vsel %vm7099, %v7429, %v7425
          %v7431 = vlaneseq
          %v7432 = vshrl.u32 %v7431, 7
          %v7433 = vsub.s32 %v7101, %v7432
          %v7434 = vrot.slane %v6876, %v7433
          %v7435 = vsel %vm7106, %v7434, %v7430
          %v7436 = vlaneseq
          %v7437 = vshrl.u32 %v7436, 7
          %v7438 = vsub.s32 %v7108, %v7437
          %v7439 = vrot.slane %v6879, %v7438
          %v7440 = vsel %vm7113, %v7439, %v7435
          %v7441 = vlaneseq
          %v7442 = vshrl.u32 %v7441, 7
          %v7443 = vsub.s32 %v7115, %v7442
          %v7444 = vrot.slane %v6882, %v7443
          %v7445 = vsel %vm7120, %v7444, %v7440
          %v7446 = vlaneseq
          %v7447 = vshrl.u32 %v7446, 7
          %v7448 = vsub.s32 %v7122, %v7447
          %v7449 = vrot.slane %v6885, %v7448
          %v7450 = vsel %vm7127, %v7449, %v7445
          %v7451 = vlaneseq
          %v7452 = vshrl.u32 %v7451, 7
          %v7453 = vsub.s32 %v7129, %v7452
          %v7454 = vrot.slane %v6888, %v7453
          %v7455 = vsel %vm7134, %v7454, %v7450
          %v7456 = vlaneseq
          %v7457 = vshrl.u32 %v7456, 7
          %v7458 = vsub.s32 %v7136, %v7457
          %v7459 = vrot.slane %v6891, %v7458
          %v7460 = vsel %vm7141, %v7459, %v7455
          %v7461 = vlaneseq
          %v7462 = vshrl.u32 %v7461, 7
          %v7463 = vsub.s32 %v7143, %v7462
          %v7464 = vrot.slane %v6894, %v7463
          %v7465 = vsel %vm7148, %v7464, %v7460
          %v7466 = vlaneseq
          %v7467 = vshrl.u32 %v7466, 7
          %v7468 = vsub.s32 %v7040, %v7467
          %v7469 = vrot.slane %v6897, %v7468
          %v7470 = vlaneseq
          %v7471 = vshrl.u32 %v7470, 7
          %v7472 = vsub.s32 %v7045, %v7471
          %v7473 = vrot.slane %v6900, %v7472
          %v7474 = vsel %vm7050, %v7473, %v7469
          %v7475 = vlaneseq
          %v7476 = vshrl.u32 %v7475, 7
          %v7477 = vsub.s32 %v7052, %v7476
          %v7478 = vrot.slane %v6903, %v7477
          %v7479 = vsel %vm7057, %v7478, %v7474
          %v7480 = vlaneseq
          %v7481 = vshrl.u32 %v7480, 7
          %v7482 = vsub.s32 %v7059, %v7481
          %v7483 = vrot.slane %v6906, %v7482
          %v7484 = vsel %vm7064, %v7483, %v7479
          %v7485 = vlaneseq
          %v7486 = vshrl.u32 %v7485, 7
          %v7487 = vsub.s32 %v7066, %v7486
          %v7488 = vrot.slane %v6909, %v7487
          %v7489 = vsel %vm7071, %v7488, %v7484
          %v7490 = vlaneseq
          %v7491 = vshrl.u32 %v7490, 7
          %v7492 = vsub.s32 %v7073, %v7491
          %v7493 = vrot.slane %v6912, %v7492
          %v7494 = vsel %vm7078, %v7493, %v7489
          %v7495 = vlaneseq
          %v7496 = vshrl.u32 %v7495, 7
          %v7497 = vsub.s32 %v7080, %v7496
          %v7498 = vrot.slane %v6915, %v7497
          %v7499 = vsel %vm7085, %v7498, %v7494
          %v7500 = vlaneseq
          %v7501 = vshrl.u32 %v7500, 7
          %v7502 = vsub.s32 %v7087, %v7501
          %v7503 = vrot.slane %v6918, %v7502
          %v7504 = vsel %vm7092, %v7503, %v7499
          %v7505 = vlaneseq
          %v7506 = vshrl.u32 %v7505, 7
          %v7507 = vsub.s32 %v7094, %v7506
          %v7508 = vrot.slane %v6921, %v7507
          %v7509 = vsel %vm7099, %v7508, %v7504
          %v7510 = vlaneseq
          %v7511 = vshrl.u32 %v7510, 7
          %v7512 = vsub.s32 %v7101, %v7511
          %v7513 = vrot.slane %v6924, %v7512
          %v7514 = vsel %vm7106, %v7513, %v7509
          %v7515 = vlaneseq
          %v7516 = vshrl.u32 %v7515, 7
          %v7517 = vsub.s32 %v7108, %v7516
          %v7518 = vrot.slane %v6927, %v7517
          %v7519 = vsel %vm7113, %v7518, %v7514
          %v7520 = vlaneseq
          %v7521 = vshrl.u32 %v7520, 7
          %v7522 = vsub.s32 %v7115, %v7521
          %v7523 = vrot.slane %v6930, %v7522
          %v7524 = vsel %vm7120, %v7523, %v7519
          %v7525 = vlaneseq
          %v7526 = vshrl.u32 %v7525, 7
          %v7527 = vsub.s32 %v7122, %v7526
          %v7528 = vrot.slane %v6933, %v7527
          %v7529 = vsel %vm7127, %v7528, %v7524
          %v7530 = vlaneseq
          %v7531 = vshrl.u32 %v7530, 7
          %v7532 = vsub.s32 %v7129, %v7531
          %v7533 = vrot.slane %v6936, %v7532
          %v7534 = vsel %vm7134, %v7533, %v7529
          %v7535 = vlaneseq
          %v7536 = vshrl.u32 %v7535, 7
          %v7537 = vsub.s32 %v7136, %v7536
          %v7538 = vrot.slane %v6939, %v7537
          %v7539 = vsel %vm7141, %v7538, %v7534
          %v7540 = vlaneseq
          %v7541 = vshrl.u32 %v7540, 7
          %v7542 = vsub.s32 %v7143, %v7541
          %v7543 = vrot.slane %v6942, %v7542
          %v7544 = vsel %vm7148, %v7543, %v7539
          %v7545 = vlaneseq
          %v7546 = vshrl.u32 %v7545, 7
          %v7547 = vsub.s32 %v7040, %v7546
          %v7548 = vrot.slane %v6945, %v7547
          %v7549 = vlaneseq
          %v7550 = vshrl.u32 %v7549, 7
          %v7551 = vsub.s32 %v7045, %v7550
          %v7552 = vrot.slane %v6948, %v7551
          %v7553 = vsel %vm7050, %v7552, %v7548
          %v7554 = vlaneseq
          %v7555 = vshrl.u32 %v7554, 7
          %v7556 = vsub.s32 %v7052, %v7555
          %v7557 = vrot.slane %v6951, %v7556
          %v7558 = vsel %vm7057, %v7557, %v7553
          %v7559 = vlaneseq
          %v7560 = vshrl.u32 %v7559, 7
          %v7561 = vsub.s32 %v7059, %v7560
          %v7562 = vrot.slane %v6954, %v7561
          %v7563 = vsel %vm7064, %v7562, %v7558
          %v7564 = vlaneseq
          %v7565 = vshrl.u32 %v7564, 7
          %v7566 = vsub.s32 %v7066, %v7565
          %v7567 = vrot.slane %v6957, %v7566
          %v7568 = vsel %vm7071, %v7567, %v7563
          %v7569 = vlaneseq
          %v7570 = vshrl.u32 %v7569, 7
          %v7571 = vsub.s32 %v7073, %v7570
          %v7572 = vrot.slane %v6960, %v7571
          %v7573 = vsel %vm7078, %v7572, %v7568
          %v7574 = vlaneseq
          %v7575 = vshrl.u32 %v7574, 7
          %v7576 = vsub.s32 %v7080, %v7575
          %v7577 = vrot.slane %v6963, %v7576
          %v7578 = vsel %vm7085, %v7577, %v7573
          %v7579 = vlaneseq
          %v7580 = vshrl.u32 %v7579, 7
          %v7581 = vsub.s32 %v7087, %v7580
          %v7582 = vrot.slane %v6966, %v7581
          %v7583 = vsel %vm7092, %v7582, %v7578
          %v7584 = vlaneseq
          %v7585 = vshrl.u32 %v7584, 7
          %v7586 = vsub.s32 %v7094, %v7585
          %v7587 = vrot.slane %v6969, %v7586
          %v7588 = vsel %vm7099, %v7587, %v7583
          %v7589 = vlaneseq
          %v7590 = vshrl.u32 %v7589, 7
          %v7591 = vsub.s32 %v7101, %v7590
          %v7592 = vrot.slane %v6972, %v7591
          %v7593 = vsel %vm7106, %v7592, %v7588
          %v7594 = vlaneseq
          %v7595 = vshrl.u32 %v7594, 7
          %v7596 = vsub.s32 %v7108, %v7595
          %v7597 = vrot.slane %v6975, %v7596
          %v7598 = vsel %vm7113, %v7597, %v7593
          %v7599 = vlaneseq
          %v7600 = vshrl.u32 %v7599, 7
          %v7601 = vsub.s32 %v7115, %v7600
          %v7602 = vrot.slane %v6978, %v7601
          %v7603 = vsel %vm7120, %v7602, %v7598
          %v7604 = vlaneseq
          %v7605 = vshrl.u32 %v7604, 7
          %v7606 = vsub.s32 %v7122, %v7605
          %v7607 = vrot.slane %v6981, %v7606
          %v7608 = vsel %vm7127, %v7607, %v7603
          %v7609 = vlaneseq
          %v7610 = vshrl.u32 %v7609, 7
          %v7611 = vsub.s32 %v7129, %v7610
          %v7612 = vrot.slane %v6984, %v7611
          %v7613 = vsel %vm7134, %v7612, %v7608
          %v7614 = vlaneseq
          %v7615 = vshrl.u32 %v7614, 7
          %v7616 = vsub.s32 %v7136, %v7615
          %v7617 = vrot.slane %v6987, %v7616
          %v7618 = vsel %vm7141, %v7617, %v7613
          %v7619 = vlaneseq
          %v7620 = vshrl.u32 %v7619, 7
          %v7621 = vsub.s32 %v7143, %v7620
          %v7622 = vrot.slane %v6990, %v7621
          %v7623 = vsel %vm7148, %v7622, %v7618
          %v7624 = vlaneseq
          %v7625 = vshrl.u32 %v7624, 7
          %v7626 = vsub.s32 %v7040, %v7625
          %v7627 = vrot.slane %v6993, %v7626
          %v7628 = vlaneseq
          %v7629 = vshrl.u32 %v7628, 7
          %v7630 = vsub.s32 %v7045, %v7629
          %v7631 = vrot.slane %v6996, %v7630
          %v7632 = vsel %vm7050, %v7631, %v7627
          %v7633 = vlaneseq
          %v7634 = vshrl.u32 %v7633, 7
          %v7635 = vsub.s32 %v7052, %v7634
          %v7636 = vrot.slane %v6999, %v7635
          %v7637 = vsel %vm7057, %v7636, %v7632
          %v7638 = vlaneseq
          %v7639 = vshrl.u32 %v7638, 7
          %v7640 = vsub.s32 %v7059, %v7639
          %v7641 = vrot.slane %v7002, %v7640
          %v7642 = vsel %vm7064, %v7641, %v7637
          %v7643 = vlaneseq
          %v7644 = vshrl.u32 %v7643, 7
          %v7645 = vsub.s32 %v7066, %v7644
          %v7646 = vrot.slane %v7005, %v7645
          %v7647 = vsel %vm7071, %v7646, %v7642
          %v7648 = vlaneseq
          %v7649 = vshrl.u32 %v7648, 7
          %v7650 = vsub.s32 %v7073, %v7649
          %v7651 = vrot.slane %v7008, %v7650
          %v7652 = vsel %vm7078, %v7651, %v7647
          %v7653 = vlaneseq
          %v7654 = vshrl.u32 %v7653, 7
          %v7655 = vsub.s32 %v7080, %v7654
          %v7656 = vrot.slane %v7011, %v7655
          %v7657 = vsel %vm7085, %v7656, %v7652
          %v7658 = vlaneseq
          %v7659 = vshrl.u32 %v7658, 7
          %v7660 = vsub.s32 %v7087, %v7659
          %v7661 = vrot.slane %v7014, %v7660
          %v7662 = vsel %vm7092, %v7661, %v7657
          %v7663 = vlaneseq
          %v7664 = vshrl.u32 %v7663, 7
          %v7665 = vsub.s32 %v7094, %v7664
          %v7666 = vrot.slane %v7017, %v7665
          %v7667 = vsel %vm7099, %v7666, %v7662
          %v7668 = vlaneseq
          %v7669 = vshrl.u32 %v7668, 7
          %v7670 = vsub.s32 %v7101, %v7669
          %v7671 = vrot.slane %v7020, %v7670
          %v7672 = vsel %vm7106, %v7671, %v7667
          %v7673 = vlaneseq
          %v7674 = vshrl.u32 %v7673, 7
          %v7675 = vsub.s32 %v7108, %v7674
          %v7676 = vrot.slane %v7023, %v7675
          %v7677 = vsel %vm7113, %v7676, %v7672
          %v7678 = vlaneseq
          %v7679 = vshrl.u32 %v7678, 7
          %v7680 = vsub.s32 %v7115, %v7679
          %v7681 = vrot.slane %v7026, %v7680
          %v7682 = vsel %vm7120, %v7681, %v7677
          %v7683 = vlaneseq
          %v7684 = vshrl.u32 %v7683, 7
          %v7685 = vsub.s32 %v7122, %v7684
          %v7686 = vrot.slane %v7029, %v7685
          %v7687 = vsel %vm7127, %v7686, %v7682
          %v7688 = vlaneseq
          %v7689 = vshrl.u32 %v7688, 7
          %v7690 = vsub.s32 %v7129, %v7689
          %v7691 = vrot.slane %v7032, %v7690
          %v7692 = vsel %vm7134, %v7691, %v7687
          %v7693 = vlaneseq
          %v7694 = vshrl.u32 %v7693, 7
          %v7695 = vsub.s32 %v7136, %v7694
          %v7696 = vrot.slane %v7035, %v7695
          %v7697 = vsel %vm7141, %v7696, %v7692
          %v7698 = vlaneseq
          %v7699 = vshrl.u32 %v7698, 7
          %v7700 = vsub.s32 %v7143, %v7699
          %v7701 = vrot.slane %v7038, %v7700
          %v7702 = vsel %vm7148, %v7701, %v7697
          %vm7703 = vcmask 1041409
          %v7704 = vsel %vm7703, %v7307, %v7149
          %vm7705 = vcmask 1042434
          %v7706 = vsel %vm7705, %v7465, %v7704
          %vm7707 = vcmask 1043459
          %v7708 = vsel %vm7707, %v7623, %v7706
          %v7709 = vsel %vm7703, %v7386, %v7228
          %v7710 = vsel %vm7705, %v7544, %v7709
          %v7711 = vsel %vm7707, %v7702, %v7710
          %v7712 = vcombine.low %v7708, %v7711
          %7714 = vst [vmem:[#allocation2] sm:$0xff] %v7712
        $region32: #{tpu_custom_call.1} parent=27 // pred_fallthru
          _
        %p7715 = scmp.gt.s32.totalorder %s23, 0
        // Predicated region
        $region33: #{tpu_custom_call.1} parent=27 // pred_check
          %p7716 = pneg %p7715
        $region34: #{tpu_custom_call.1} parent=27 // pred_check_branch
          %7718 = sbr.rel (%p7716) target = $region36
        $region35: #{tpu_custom_call.1} parent=27 // pred_region
          %v7719 = vld [vmem:[#allocation2] sm:$0xff]
          %v7849 = vunpack.c.l.s4 839922192
          %v7850 = vunpack.c.0.s8 %v7849
          %v7851 = vlaneseq
          %v7852 = vshrl.u32 %v7851, 7
          %v7853 = vsub.s32 %v7850, %v7852
          %v7854 = vrot.slane %v3650, %v7853
          %v7856 = vunpack.c.l.s4 1985246804
          %v7857 = vunpack.c.0.s8 %v7856
          %v7858 = vlaneseq
          %v7859 = vshrl.u32 %v7858, 7
          %v7860 = vsub.s32 %v7857, %v7859
          %v7861 = vrot.slane %v3650, %v7860
          %v7863 = vunpack.c.l.s4 839922192
          %v7864 = vunpack.c.0.s8 %v7863
          %v7865 = vlaneseq
          %v7866 = vshrl.u32 %v7865, 7
          %v7867 = vsub.s32 %v7864, %v7866
          %v7868 = vrot.slane %v3654, %v7867
          %v7870 = vunpack.c.l.s4 1985246804
          %v7871 = vunpack.c.0.s8 %v7870
          %v7872 = vlaneseq
          %v7873 = vshrl.u32 %v7872, 7
          %v7874 = vsub.s32 %v7871, %v7873
          %v7875 = vrot.slane %v3654, %v7874
          %v7877 = vunpack.c.l.s4 839922192
          %v7878 = vunpack.c.0.s8 %v7877
          %v7879 = vlaneseq
          %v7880 = vshrl.u32 %v7879, 7
          %v7881 = vsub.s32 %v7878, %v7880
          %v7882 = vrot.slane %v3658, %v7881
          %v7884 = vunpack.c.l.s4 1985246804
          %v7885 = vunpack.c.0.s8 %v7884
          %v7886 = vlaneseq
          %v7887 = vshrl.u32 %v7886, 7
          %v7888 = vsub.s32 %v7885, %v7887
          %v7889 = vrot.slane %v3658, %v7888
          %v7891 = vunpack.c.l.s4 839922192
          %v7892 = vunpack.c.0.s8 %v7891
          %v7893 = vlaneseq
          %v7894 = vshrl.u32 %v7893, 7
          %v7895 = vsub.s32 %v7892, %v7894
          %v7896 = vrot.slane %v3662, %v7895
          %v7898 = vunpack.c.l.s4 1985246804
          %v7899 = vunpack.c.0.s8 %v7898
          %v7900 = vlaneseq
          %v7901 = vshrl.u32 %v7900, 7
          %v7902 = vsub.s32 %v7899, %v7901
          %v7903 = vrot.slane %v3662, %v7902
          %v7905 = vunpack.c.l.s4 839922192
          %v7906 = vunpack.c.0.s8 %v7905
          %v7907 = vlaneseq
          %v7908 = vshrl.u32 %v7907, 7
          %v7909 = vsub.s32 %v7906, %v7908
          %v7910 = vrot.slane %v3666, %v7909
          %v7912 = vunpack.c.l.s4 1985246804
          %v7913 = vunpack.c.0.s8 %v7912
          %v7914 = vlaneseq
          %v7915 = vshrl.u32 %v7914, 7
          %v7916 = vsub.s32 %v7913, %v7915
          %v7917 = vrot.slane %v3666, %v7916
          %v7919 = vunpack.c.l.s4 839922192
          %v7920 = vunpack.c.0.s8 %v7919
          %v7921 = vlaneseq
          %v7922 = vshrl.u32 %v7921, 7
          %v7923 = vsub.s32 %v7920, %v7922
          %v7924 = vrot.slane %v3670, %v7923
          %v7926 = vunpack.c.l.s4 1985246804
          %v7927 = vunpack.c.0.s8 %v7926
          %v7928 = vlaneseq
          %v7929 = vshrl.u32 %v7928, 7
          %v7930 = vsub.s32 %v7927, %v7929
          %v7931 = vrot.slane %v3670, %v7930
          %v7933 = vunpack.c.l.s4 839922192
          %v7934 = vunpack.c.0.s8 %v7933
          %v7935 = vlaneseq
          %v7936 = vshrl.u32 %v7935, 7
          %v7937 = vsub.s32 %v7934, %v7936
          %v7938 = vrot.slane %v3674, %v7937
          %v7940 = vunpack.c.l.s4 1985246804
          %v7941 = vunpack.c.0.s8 %v7940
          %v7942 = vlaneseq
          %v7943 = vshrl.u32 %v7942, 7
          %v7944 = vsub.s32 %v7941, %v7943
          %v7945 = vrot.slane %v3674, %v7944
          %v7947 = vunpack.c.l.s4 839922192
          %v7948 = vunpack.c.0.s8 %v7947
          %v7949 = vlaneseq
          %v7950 = vshrl.u32 %v7949, 7
          %v7951 = vsub.s32 %v7948, %v7950
          %v7952 = vrot.slane %v3678, %v7951
          %v7954 = vunpack.c.l.s4 1985246804
          %v7955 = vunpack.c.0.s8 %v7954
          %v7956 = vlaneseq
          %v7957 = vshrl.u32 %v7956, 7
          %v7958 = vsub.s32 %v7955, %v7957
          %v7959 = vrot.slane %v3678, %v7958
          %v7961 = vunpack.c.l.s4 839922192
          %v7962 = vunpack.c.0.s8 %v7961
          %v7963 = vlaneseq
          %v7964 = vshrl.u32 %v7963, 7
          %v7965 = vsub.s32 %v7962, %v7964
          %v7966 = vrot.slane %v3682, %v7965
          %v7968 = vunpack.c.l.s4 1985246804
          %v7969 = vunpack.c.0.s8 %v7968
          %v7970 = vlaneseq
          %v7971 = vshrl.u32 %v7970, 7
          %v7972 = vsub.s32 %v7969, %v7971
          %v7973 = vrot.slane %v3682, %v7972
          %v7975 = vunpack.c.l.s4 839922192
          %v7976 = vunpack.c.0.s8 %v7975
          %v7977 = vlaneseq
          %v7978 = vshrl.u32 %v7977, 7
          %v7979 = vsub.s32 %v7976, %v7978
          %v7980 = vrot.slane %v3686, %v7979
          %v7982 = vunpack.c.l.s4 1985246804
          %v7983 = vunpack.c.0.s8 %v7982
          %v7984 = vlaneseq
          %v7985 = vshrl.u32 %v7984, 7
          %v7986 = vsub.s32 %v7983, %v7985
          %v7987 = vrot.slane %v3686, %v7986
          %v7989 = vunpack.c.l.s4 839922192
          %v7990 = vunpack.c.0.s8 %v7989
          %v7991 = vlaneseq
          %v7992 = vshrl.u32 %v7991, 7
          %v7993 = vsub.s32 %v7990, %v7992
          %v7994 = vrot.slane %v3690, %v7993
          %v7996 = vunpack.c.l.s4 1985246804
          %v7997 = vunpack.c.0.s8 %v7996
          %v7998 = vlaneseq
          %v7999 = vshrl.u32 %v7998, 7
          %v8000 = vsub.s32 %v7997, %v7999
          %v8001 = vrot.slane %v3690, %v8000
          %v8003 = vunpack.c.l.s4 839922192
          %v8004 = vunpack.c.0.s8 %v8003
          %v8005 = vlaneseq
          %v8006 = vshrl.u32 %v8005, 7
          %v8007 = vsub.s32 %v8004, %v8006
          %v8008 = vrot.slane %v3694, %v8007
          %v8010 = vunpack.c.l.s4 1985246804
          %v8011 = vunpack.c.0.s8 %v8010
          %v8012 = vlaneseq
          %v8013 = vshrl.u32 %v8012, 7
          %v8014 = vsub.s32 %v8011, %v8013
          %v8015 = vrot.slane %v3694, %v8014
          %v8017 = vunpack.c.l.s4 839922192
          %v8018 = vunpack.c.0.s8 %v8017
          %v8019 = vlaneseq
          %v8020 = vshrl.u32 %v8019, 7
          %v8021 = vsub.s32 %v8018, %v8020
          %v8022 = vrot.slane %v3698, %v8021
          %v8024 = vunpack.c.l.s4 1985246804
          %v8025 = vunpack.c.0.s8 %v8024
          %v8026 = vlaneseq
          %v8027 = vshrl.u32 %v8026, 7
          %v8028 = vsub.s32 %v8025, %v8027
          %v8029 = vrot.slane %v3698, %v8028
          %v8031 = vunpack.c.l.s4 839922192
          %v8032 = vunpack.c.0.s8 %v8031
          %v8033 = vlaneseq
          %v8034 = vshrl.u32 %v8033, 7
          %v8035 = vsub.s32 %v8032, %v8034
          %v8036 = vrot.slane %v3702, %v8035
          %v8038 = vunpack.c.l.s4 1985246804
          %v8039 = vunpack.c.0.s8 %v8038
          %v8040 = vlaneseq
          %v8041 = vshrl.u32 %v8040, 7
          %v8042 = vsub.s32 %v8039, %v8041
          %v8043 = vrot.slane %v3702, %v8042
          %v8045 = vunpack.c.l.s4 839922192
          %v8046 = vunpack.c.0.s8 %v8045
          %v8047 = vlaneseq
          %v8048 = vshrl.u32 %v8047, 7
          %v8049 = vsub.s32 %v8046, %v8048
          %v8050 = vrot.slane %v3706, %v8049
          %v8052 = vunpack.c.l.s4 1985246804
          %v8053 = vunpack.c.0.s8 %v8052
          %v8054 = vlaneseq
          %v8055 = vshrl.u32 %v8054, 7
          %v8056 = vsub.s32 %v8053, %v8055
          %v8057 = vrot.slane %v3706, %v8056
          %v8059 = vunpack.c.l.s4 839922192
          %v8060 = vunpack.c.0.s8 %v8059
          %v8061 = vlaneseq
          %v8062 = vshrl.u32 %v8061, 7
          %v8063 = vsub.s32 %v8060, %v8062
          %v8064 = vrot.slane %v3710, %v8063
          %v8066 = vunpack.c.l.s4 1985246804
          %v8067 = vunpack.c.0.s8 %v8066
          %v8068 = vlaneseq
          %v8069 = vshrl.u32 %v8068, 7
          %v8070 = vsub.s32 %v8067, %v8069
          %v8071 = vrot.slane %v3710, %v8070
          %v8073 = vunpack.c.l.s4 839922192
          %v8074 = vunpack.c.0.s8 %v8073
          %v8075 = vlaneseq
          %v8076 = vshrl.u32 %v8075, 7
          %v8077 = vsub.s32 %v8074, %v8076
          %v8078 = vrot.slane %v3714, %v8077
          %v8080 = vunpack.c.l.s4 1985246804
          %v8081 = vunpack.c.0.s8 %v8080
          %v8082 = vlaneseq
          %v8083 = vshrl.u32 %v8082, 7
          %v8084 = vsub.s32 %v8081, %v8083
          %v8085 = vrot.slane %v3714, %v8084
          %v8087 = vunpack.c.l.s4 839922192
          %v8088 = vunpack.c.0.s8 %v8087
          %v8089 = vlaneseq
          %v8090 = vshrl.u32 %v8089, 7
          %v8091 = vsub.s32 %v8088, %v8090
          %v8092 = vrot.slane %v3718, %v8091
          %v8094 = vunpack.c.l.s4 1985246804
          %v8095 = vunpack.c.0.s8 %v8094
          %v8096 = vlaneseq
          %v8097 = vshrl.u32 %v8096, 7
          %v8098 = vsub.s32 %v8095, %v8097
          %v8099 = vrot.slane %v3718, %v8098
          %v8101 = vunpack.c.l.s4 839922192
          %v8102 = vunpack.c.0.s8 %v8101
          %v8103 = vlaneseq
          %v8104 = vshrl.u32 %v8103, 7
          %v8105 = vsub.s32 %v8102, %v8104
          %v8106 = vrot.slane %v3722, %v8105
          %v8108 = vunpack.c.l.s4 1985246804
          %v8109 = vunpack.c.0.s8 %v8108
          %v8110 = vlaneseq
          %v8111 = vshrl.u32 %v8110, 7
          %v8112 = vsub.s32 %v8109, %v8111
          %v8113 = vrot.slane %v3722, %v8112
          %v8115 = vunpack.c.l.s4 839922192
          %v8116 = vunpack.c.0.s8 %v8115
          %v8117 = vlaneseq
          %v8118 = vshrl.u32 %v8117, 7
          %v8119 = vsub.s32 %v8116, %v8118
          %v8120 = vrot.slane %v3726, %v8119
          %v8122 = vunpack.c.l.s4 1985246804
          %v8123 = vunpack.c.0.s8 %v8122
          %v8124 = vlaneseq
          %v8125 = vshrl.u32 %v8124, 7
          %v8126 = vsub.s32 %v8123, %v8125
          %v8127 = vrot.slane %v3726, %v8126
          %v8129 = vunpack.c.l.s4 839922192
          %v8130 = vunpack.c.0.s8 %v8129
          %v8131 = vlaneseq
          %v8132 = vshrl.u32 %v8131, 7
          %v8133 = vsub.s32 %v8130, %v8132
          %v8134 = vrot.slane %v3730, %v8133
          %v8136 = vunpack.c.l.s4 1985246804
          %v8137 = vunpack.c.0.s8 %v8136
          %v8138 = vlaneseq
          %v8139 = vshrl.u32 %v8138, 7
          %v8140 = vsub.s32 %v8137, %v8139
          %v8141 = vrot.slane %v3730, %v8140
          %v8143 = vunpack.c.l.s4 839922192
          %v8144 = vunpack.c.0.s8 %v8143
          %v8145 = vlaneseq
          %v8146 = vshrl.u32 %v8145, 7
          %v8147 = vsub.s32 %v8144, %v8146
          %v8148 = vrot.slane %v3734, %v8147
          %v8150 = vunpack.c.l.s4 1985246804
          %v8151 = vunpack.c.0.s8 %v8150
          %v8152 = vlaneseq
          %v8153 = vshrl.u32 %v8152, 7
          %v8154 = vsub.s32 %v8151, %v8153
          %v8155 = vrot.slane %v3734, %v8154
          %v8157 = vunpack.c.l.s4 839922192
          %v8158 = vunpack.c.0.s8 %v8157
          %v8159 = vlaneseq
          %v8160 = vshrl.u32 %v8159, 7
          %v8161 = vsub.s32 %v8158, %v8160
          %v8162 = vrot.slane %v3738, %v8161
          %v8164 = vunpack.c.l.s4 1985246804
          %v8165 = vunpack.c.0.s8 %v8164
          %v8166 = vlaneseq
          %v8167 = vshrl.u32 %v8166, 7
          %v8168 = vsub.s32 %v8165, %v8167
          %v8169 = vrot.slane %v3738, %v8168
          %v8171 = vunpack.c.l.s4 839922192
          %v8172 = vunpack.c.0.s8 %v8171
          %v8173 = vlaneseq
          %v8174 = vshrl.u32 %v8173, 7
          %v8175 = vsub.s32 %v8172, %v8174
          %v8176 = vrot.slane %v3742, %v8175
          %v8178 = vunpack.c.l.s4 1985246804
          %v8179 = vunpack.c.0.s8 %v8178
          %v8180 = vlaneseq
          %v8181 = vshrl.u32 %v8180, 7
          %v8182 = vsub.s32 %v8179, %v8181
          %v8183 = vrot.slane %v3742, %v8182
          %v8185 = vunpack.c.l.s4 839922192
          %v8186 = vunpack.c.0.s8 %v8185
          %v8187 = vlaneseq
          %v8188 = vshrl.u32 %v8187, 7
          %v8189 = vsub.s32 %v8186, %v8188
          %v8190 = vrot.slane %v3746, %v8189
          %v8192 = vunpack.c.l.s4 1985246804
          %v8193 = vunpack.c.0.s8 %v8192
          %v8194 = vlaneseq
          %v8195 = vshrl.u32 %v8194, 7
          %v8196 = vsub.s32 %v8193, %v8195
          %v8197 = vrot.slane %v3746, %v8196
          %v8199 = vunpack.c.l.s4 839922192
          %v8200 = vunpack.c.0.s8 %v8199
          %v8201 = vlaneseq
          %v8202 = vshrl.u32 %v8201, 7
          %v8203 = vsub.s32 %v8200, %v8202
          %v8204 = vrot.slane %v3750, %v8203
          %v8206 = vunpack.c.l.s4 1985246804
          %v8207 = vunpack.c.0.s8 %v8206
          %v8208 = vlaneseq
          %v8209 = vshrl.u32 %v8208, 7
          %v8210 = vsub.s32 %v8207, %v8209
          %v8211 = vrot.slane %v3750, %v8210
          %v8213 = vunpack.c.l.s4 839922192
          %v8214 = vunpack.c.0.s8 %v8213
          %v8215 = vlaneseq
          %v8216 = vshrl.u32 %v8215, 7
          %v8217 = vsub.s32 %v8214, %v8216
          %v8218 = vrot.slane %v3754, %v8217
          %v8220 = vunpack.c.l.s4 1985246804
          %v8221 = vunpack.c.0.s8 %v8220
          %v8222 = vlaneseq
          %v8223 = vshrl.u32 %v8222, 7
          %v8224 = vsub.s32 %v8221, %v8223
          %v8225 = vrot.slane %v3754, %v8224
          %v8227 = vunpack.c.l.s4 839922192
          %v8228 = vunpack.c.0.s8 %v8227
          %v8229 = vlaneseq
          %v8230 = vshrl.u32 %v8229, 7
          %v8231 = vsub.s32 %v8228, %v8230
          %v8232 = vrot.slane %v3758, %v8231
          %v8234 = vunpack.c.l.s4 1985246804
          %v8235 = vunpack.c.0.s8 %v8234
          %v8236 = vlaneseq
          %v8237 = vshrl.u32 %v8236, 7
          %v8238 = vsub.s32 %v8235, %v8237
          %v8239 = vrot.slane %v3758, %v8238
          %v8241 = vunpack.c.l.s4 839922192
          %v8242 = vunpack.c.0.s8 %v8241
          %v8243 = vlaneseq
          %v8244 = vshrl.u32 %v8243, 7
          %v8245 = vsub.s32 %v8242, %v8244
          %v8246 = vrot.slane %v3762, %v8245
          %v8248 = vunpack.c.l.s4 1985246804
          %v8249 = vunpack.c.0.s8 %v8248
          %v8250 = vlaneseq
          %v8251 = vshrl.u32 %v8250, 7
          %v8252 = vsub.s32 %v8249, %v8251
          %v8253 = vrot.slane %v3762, %v8252
          %v8255 = vunpack.c.l.s4 839922192
          %v8256 = vunpack.c.0.s8 %v8255
          %v8257 = vlaneseq
          %v8258 = vshrl.u32 %v8257, 7
          %v8259 = vsub.s32 %v8256, %v8258
          %v8260 = vrot.slane %v3766, %v8259
          %v8262 = vunpack.c.l.s4 1985246804
          %v8263 = vunpack.c.0.s8 %v8262
          %v8264 = vlaneseq
          %v8265 = vshrl.u32 %v8264, 7
          %v8266 = vsub.s32 %v8263, %v8265
          %v8267 = vrot.slane %v3766, %v8266
          %v8269 = vunpack.c.l.s4 839922192
          %v8270 = vunpack.c.0.s8 %v8269
          %v8271 = vlaneseq
          %v8272 = vshrl.u32 %v8271, 7
          %v8273 = vsub.s32 %v8270, %v8272
          %v8274 = vrot.slane %v3770, %v8273
          %v8276 = vunpack.c.l.s4 1985246804
          %v8277 = vunpack.c.0.s8 %v8276
          %v8278 = vlaneseq
          %v8279 = vshrl.u32 %v8278, 7
          %v8280 = vsub.s32 %v8277, %v8279
          %v8281 = vrot.slane %v3770, %v8280
          %v8283 = vunpack.c.l.s4 839922192
          %v8284 = vunpack.c.0.s8 %v8283
          %v8285 = vlaneseq
          %v8286 = vshrl.u32 %v8285, 7
          %v8287 = vsub.s32 %v8284, %v8286
          %v8288 = vrot.slane %v3774, %v8287
          %v8290 = vunpack.c.l.s4 1985246804
          %v8291 = vunpack.c.0.s8 %v8290
          %v8292 = vlaneseq
          %v8293 = vshrl.u32 %v8292, 7
          %v8294 = vsub.s32 %v8291, %v8293
          %v8295 = vrot.slane %v3774, %v8294
          %v8297 = vunpack.c.l.s4 839922192
          %v8298 = vunpack.c.0.s8 %v8297
          %v8299 = vlaneseq
          %v8300 = vshrl.u32 %v8299, 7
          %v8301 = vsub.s32 %v8298, %v8300
          %v8302 = vrot.slane %v3778, %v8301
          %v8304 = vunpack.c.l.s4 1985246804
          %v8305 = vunpack.c.0.s8 %v8304
          %v8306 = vlaneseq
          %v8307 = vshrl.u32 %v8306, 7
          %v8308 = vsub.s32 %v8305, %v8307
          %v8309 = vrot.slane %v3778, %v8308
          %v8311 = vunpack.c.l.s4 839922192
          %v8312 = vunpack.c.0.s8 %v8311
          %v8313 = vlaneseq
          %v8314 = vshrl.u32 %v8313, 7
          %v8315 = vsub.s32 %v8312, %v8314
          %v8316 = vrot.slane %v3782, %v8315
          %v8318 = vunpack.c.l.s4 1985246804
          %v8319 = vunpack.c.0.s8 %v8318
          %v8320 = vlaneseq
          %v8321 = vshrl.u32 %v8320, 7
          %v8322 = vsub.s32 %v8319, %v8321
          %v8323 = vrot.slane %v3782, %v8322
          %v8325 = vunpack.c.l.s4 839922192
          %v8326 = vunpack.c.0.s8 %v8325
          %v8327 = vlaneseq
          %v8328 = vshrl.u32 %v8327, 7
          %v8329 = vsub.s32 %v8326, %v8328
          %v8330 = vrot.slane %v3786, %v8329
          %v8332 = vunpack.c.l.s4 1985246804
          %v8333 = vunpack.c.0.s8 %v8332
          %v8334 = vlaneseq
          %v8335 = vshrl.u32 %v8334, 7
          %v8336 = vsub.s32 %v8333, %v8335
          %v8337 = vrot.slane %v3786, %v8336
          %v8339 = vunpack.c.l.s4 839922192
          %v8340 = vunpack.c.0.s8 %v8339
          %v8341 = vlaneseq
          %v8342 = vshrl.u32 %v8341, 7
          %v8343 = vsub.s32 %v8340, %v8342
          %v8344 = vrot.slane %v3790, %v8343
          %v8346 = vunpack.c.l.s4 1985246804
          %v8347 = vunpack.c.0.s8 %v8346
          %v8348 = vlaneseq
          %v8349 = vshrl.u32 %v8348, 7
          %v8350 = vsub.s32 %v8347, %v8349
          %v8351 = vrot.slane %v3790, %v8350
          %v8353 = vunpack.c.l.s4 839922192
          %v8354 = vunpack.c.0.s8 %v8353
          %v8355 = vlaneseq
          %v8356 = vshrl.u32 %v8355, 7
          %v8357 = vsub.s32 %v8354, %v8356
          %v8358 = vrot.slane %v3794, %v8357
          %v8360 = vunpack.c.l.s4 1985246804
          %v8361 = vunpack.c.0.s8 %v8360
          %v8362 = vlaneseq
          %v8363 = vshrl.u32 %v8362, 7
          %v8364 = vsub.s32 %v8361, %v8363
          %v8365 = vrot.slane %v3794, %v8364
          %v8367 = vunpack.c.l.s4 839922192
          %v8368 = vunpack.c.0.s8 %v8367
          %v8369 = vlaneseq
          %v8370 = vshrl.u32 %v8369, 7
          %v8371 = vsub.s32 %v8368, %v8370
          %v8372 = vrot.slane %v3798, %v8371
          %v8374 = vunpack.c.l.s4 1985246804
          %v8375 = vunpack.c.0.s8 %v8374
          %v8376 = vlaneseq
          %v8377 = vshrl.u32 %v8376, 7
          %v8378 = vsub.s32 %v8375, %v8377
          %v8379 = vrot.slane %v3798, %v8378
          %v8381 = vunpack.c.l.s4 839922192
          %v8382 = vunpack.c.0.s8 %v8381
          %v8383 = vlaneseq
          %v8384 = vshrl.u32 %v8383, 7
          %v8385 = vsub.s32 %v8382, %v8384
          %v8386 = vrot.slane %v3802, %v8385
          %v8388 = vunpack.c.l.s4 1985246804
          %v8389 = vunpack.c.0.s8 %v8388
          %v8390 = vlaneseq
          %v8391 = vshrl.u32 %v8390, 7
          %v8392 = vsub.s32 %v8389, %v8391
          %v8393 = vrot.slane %v3802, %v8392
          %v8395 = vunpack.c.l.s4 839922192
          %v8396 = vunpack.c.0.s8 %v8395
          %v8397 = vlaneseq
          %v8398 = vshrl.u32 %v8397, 7
          %v8399 = vsub.s32 %v8396, %v8398
          %v8400 = vrot.slane %v3806, %v8399
          %v8402 = vunpack.c.l.s4 1985246804
          %v8403 = vunpack.c.0.s8 %v8402
          %v8404 = vlaneseq
          %v8405 = vshrl.u32 %v8404, 7
          %v8406 = vsub.s32 %v8403, %v8405
          %v8407 = vrot.slane %v3806, %v8406
          %v8409 = vunpack.c.l.s4 839922192
          %v8410 = vunpack.c.0.s8 %v8409
          %v8411 = vlaneseq
          %v8412 = vshrl.u32 %v8411, 7
          %v8413 = vsub.s32 %v8410, %v8412
          %v8414 = vrot.slane %v3810, %v8413
          %v8416 = vunpack.c.l.s4 1985246804
          %v8417 = vunpack.c.0.s8 %v8416
          %v8418 = vlaneseq
          %v8419 = vshrl.u32 %v8418, 7
          %v8420 = vsub.s32 %v8417, %v8419
          %v8421 = vrot.slane %v3810, %v8420
          %v8423 = vunpack.c.l.s4 839922192
          %v8424 = vunpack.c.0.s8 %v8423
          %v8425 = vlaneseq
          %v8426 = vshrl.u32 %v8425, 7
          %v8427 = vsub.s32 %v8424, %v8426
          %v8428 = vrot.slane %v3814, %v8427
          %v8430 = vunpack.c.l.s4 1985246804
          %v8431 = vunpack.c.0.s8 %v8430
          %v8432 = vlaneseq
          %v8433 = vshrl.u32 %v8432, 7
          %v8434 = vsub.s32 %v8431, %v8433
          %v8435 = vrot.slane %v3814, %v8434
          %v8437 = vunpack.c.l.s4 839922192
          %v8438 = vunpack.c.0.s8 %v8437
          %v8439 = vlaneseq
          %v8440 = vshrl.u32 %v8439, 7
          %v8441 = vsub.s32 %v8438, %v8440
          %v8442 = vrot.slane %v3818, %v8441
          %v8444 = vunpack.c.l.s4 1985246804
          %v8445 = vunpack.c.0.s8 %v8444
          %v8446 = vlaneseq
          %v8447 = vshrl.u32 %v8446, 7
          %v8448 = vsub.s32 %v8445, %v8447
          %v8449 = vrot.slane %v3818, %v8448
          %v8451 = vunpack.c.l.s4 839922192
          %v8452 = vunpack.c.0.s8 %v8451
          %v8453 = vlaneseq
          %v8454 = vshrl.u32 %v8453, 7
          %v8455 = vsub.s32 %v8452, %v8454
          %v8456 = vrot.slane %v3822, %v8455
          %v8458 = vunpack.c.l.s4 1985246804
          %v8459 = vunpack.c.0.s8 %v8458
          %v8460 = vlaneseq
          %v8461 = vshrl.u32 %v8460, 7
          %v8462 = vsub.s32 %v8459, %v8461
          %v8463 = vrot.slane %v3822, %v8462
          %v8465 = vunpack.c.l.s4 839922192
          %v8466 = vunpack.c.0.s8 %v8465
          %v8467 = vlaneseq
          %v8468 = vshrl.u32 %v8467, 7
          %v8469 = vsub.s32 %v8466, %v8468
          %v8470 = vrot.slane %v3826, %v8469
          %v8472 = vunpack.c.l.s4 1985246804
          %v8473 = vunpack.c.0.s8 %v8472
          %v8474 = vlaneseq
          %v8475 = vshrl.u32 %v8474, 7
          %v8476 = vsub.s32 %v8473, %v8475
          %v8477 = vrot.slane %v3826, %v8476
          %v8479 = vunpack.c.l.s4 839922192
          %v8480 = vunpack.c.0.s8 %v8479
          %v8481 = vlaneseq
          %v8482 = vshrl.u32 %v8481, 7
          %v8483 = vsub.s32 %v8480, %v8482
          %v8484 = vrot.slane %v3830, %v8483
          %v8486 = vunpack.c.l.s4 1985246804
          %v8487 = vunpack.c.0.s8 %v8486
          %v8488 = vlaneseq
          %v8489 = vshrl.u32 %v8488, 7
          %v8490 = vsub.s32 %v8487, %v8489
          %v8491 = vrot.slane %v3830, %v8490
          %v8493 = vunpack.c.l.s4 839922192
          %v8494 = vunpack.c.0.s8 %v8493
          %v8495 = vlaneseq
          %v8496 = vshrl.u32 %v8495, 7
          %v8497 = vsub.s32 %v8494, %v8496
          %v8498 = vrot.slane %v3834, %v8497
          %v8500 = vunpack.c.l.s4 1985246804
          %v8501 = vunpack.c.0.s8 %v8500
          %v8502 = vlaneseq
          %v8503 = vshrl.u32 %v8502, 7
          %v8504 = vsub.s32 %v8501, %v8503
          %v8505 = vrot.slane %v3834, %v8504
          %v8507 = vunpack.c.l.s4 839922192
          %v8508 = vunpack.c.0.s8 %v8507
          %v8509 = vlaneseq
          %v8510 = vshrl.u32 %v8509, 7
          %v8511 = vsub.s32 %v8508, %v8510
          %v8512 = vrot.slane %v3838, %v8511
          %v8514 = vunpack.c.l.s4 1985246804
          %v8515 = vunpack.c.0.s8 %v8514
          %v8516 = vlaneseq
          %v8517 = vshrl.u32 %v8516, 7
          %v8518 = vsub.s32 %v8515, %v8517
          %v8519 = vrot.slane %v3838, %v8518
          %v8521 = vunpack.c.l.s4 839922192
          %v8522 = vunpack.c.0.s8 %v8521
          %v8523 = vlaneseq
          %v8524 = vshrl.u32 %v8523, 7
          %v8525 = vsub.s32 %v8522, %v8524
          %v8526 = vrot.slane %v3842, %v8525
          %v8528 = vunpack.c.l.s4 1985246804
          %v8529 = vunpack.c.0.s8 %v8528
          %v8530 = vlaneseq
          %v8531 = vshrl.u32 %v8530, 7
          %v8532 = vsub.s32 %v8529, %v8531
          %v8533 = vrot.slane %v3842, %v8532
          %v8535 = vunpack.c.l.s4 839922192
          %v8536 = vunpack.c.0.s8 %v8535
          %v8537 = vlaneseq
          %v8538 = vshrl.u32 %v8537, 7
          %v8539 = vsub.s32 %v8536, %v8538
          %v8540 = vrot.slane %v3846, %v8539
          %v8542 = vunpack.c.l.s4 1985246804
          %v8543 = vunpack.c.0.s8 %v8542
          %v8544 = vlaneseq
          %v8545 = vshrl.u32 %v8544, 7
          %v8546 = vsub.s32 %v8543, %v8545
          %v8547 = vrot.slane %v3846, %v8546
          %v8549 = vunpack.c.l.s4 839922192
          %v8550 = vunpack.c.0.s8 %v8549
          %v8551 = vlaneseq
          %v8552 = vshrl.u32 %v8551, 7
          %v8553 = vsub.s32 %v8550, %v8552
          %v8554 = vrot.slane %v3850, %v8553
          %v8556 = vunpack.c.l.s4 1985246804
          %v8557 = vunpack.c.0.s8 %v8556
          %v8558 = vlaneseq
          %v8559 = vshrl.u32 %v8558, 7
          %v8560 = vsub.s32 %v8557, %v8559
          %v8561 = vrot.slane %v3850, %v8560
          %v8563 = vunpack.c.l.s4 839922192
          %v8564 = vunpack.c.0.s8 %v8563
          %v8565 = vlaneseq
          %v8566 = vshrl.u32 %v8565, 7
          %v8567 = vsub.s32 %v8564, %v8566
          %v8568 = vrot.slane %v3854, %v8567
          %v8570 = vunpack.c.l.s4 1985246804
          %v8571 = vunpack.c.0.s8 %v8570
          %v8572 = vlaneseq
          %v8573 = vshrl.u32 %v8572, 7
          %v8574 = vsub.s32 %v8571, %v8573
          %v8575 = vrot.slane %v3854, %v8574
          %v8577 = vunpack.c.l.s4 839922192
          %v8578 = vunpack.c.0.s8 %v8577
          %v8579 = vlaneseq
          %v8580 = vshrl.u32 %v8579, 7
          %v8581 = vsub.s32 %v8578, %v8580
          %v8582 = vrot.slane %v3858, %v8581
          %v8584 = vunpack.c.l.s4 1985246804
          %v8585 = vunpack.c.0.s8 %v8584
          %v8586 = vlaneseq
          %v8587 = vshrl.u32 %v8586, 7
          %v8588 = vsub.s32 %v8585, %v8587
          %v8589 = vrot.slane %v3858, %v8588
          %v8591 = vunpack.c.l.s4 839922192
          %v8592 = vunpack.c.0.s8 %v8591
          %v8593 = vlaneseq
          %v8594 = vshrl.u32 %v8593, 7
          %v8595 = vsub.s32 %v8592, %v8594
          %v8596 = vrot.slane %v3862, %v8595
          %v8598 = vunpack.c.l.s4 1985246804
          %v8599 = vunpack.c.0.s8 %v8598
          %v8600 = vlaneseq
          %v8601 = vshrl.u32 %v8600, 7
          %v8602 = vsub.s32 %v8599, %v8601
          %v8603 = vrot.slane %v3862, %v8602
          %v8605 = vunpack.c.l.s4 839922192
          %v8606 = vunpack.c.0.s8 %v8605
          %v8607 = vlaneseq
          %v8608 = vshrl.u32 %v8607, 7
          %v8609 = vsub.s32 %v8606, %v8608
          %v8610 = vrot.slane %v3866, %v8609
          %v8612 = vunpack.c.l.s4 1985246804
          %v8613 = vunpack.c.0.s8 %v8612
          %v8614 = vlaneseq
          %v8615 = vshrl.u32 %v8614, 7
          %v8616 = vsub.s32 %v8613, %v8615
          %v8617 = vrot.slane %v3866, %v8616
          %v8619 = vunpack.c.l.s4 839922192
          %v8620 = vunpack.c.0.s8 %v8619
          %v8621 = vlaneseq
          %v8622 = vshrl.u32 %v8621, 7
          %v8623 = vsub.s32 %v8620, %v8622
          %v8624 = vrot.slane %v3870, %v8623
          %v8626 = vunpack.c.l.s4 1985246804
          %v8627 = vunpack.c.0.s8 %v8626
          %v8628 = vlaneseq
          %v8629 = vshrl.u32 %v8628, 7
          %v8630 = vsub.s32 %v8627, %v8629
          %v8631 = vrot.slane %v3870, %v8630
          %v8633 = vunpack.c.l.s4 839922192
          %v8634 = vunpack.c.0.s8 %v8633
          %v8635 = vlaneseq
          %v8636 = vshrl.u32 %v8635, 7
          %v8637 = vsub.s32 %v8634, %v8636
          %v8638 = vrot.slane %v3874, %v8637
          %v8640 = vunpack.c.l.s4 1985246804
          %v8641 = vunpack.c.0.s8 %v8640
          %v8642 = vlaneseq
          %v8643 = vshrl.u32 %v8642, 7
          %v8644 = vsub.s32 %v8641, %v8643
          %v8645 = vrot.slane %v3874, %v8644
          %v8647 = vunpack.c.l.s4 839922192
          %v8648 = vunpack.c.0.s8 %v8647
          %v8649 = vlaneseq
          %v8650 = vshrl.u32 %v8649, 7
          %v8651 = vsub.s32 %v8648, %v8650
          %v8652 = vrot.slane %v3878, %v8651
          %v8654 = vunpack.c.l.s4 1985246804
          %v8655 = vunpack.c.0.s8 %v8654
          %v8656 = vlaneseq
          %v8657 = vshrl.u32 %v8656, 7
          %v8658 = vsub.s32 %v8655, %v8657
          %v8659 = vrot.slane %v3878, %v8658
          %v8661 = vunpack.c.l.s4 839922192
          %v8662 = vunpack.c.0.s8 %v8661
          %v8663 = vlaneseq
          %v8664 = vshrl.u32 %v8663, 7
          %v8665 = vsub.s32 %v8662, %v8664
          %v8666 = vrot.slane %v3882, %v8665
          %v8668 = vunpack.c.l.s4 1985246804
          %v8669 = vunpack.c.0.s8 %v8668
          %v8670 = vlaneseq
          %v8671 = vshrl.u32 %v8670, 7
          %v8672 = vsub.s32 %v8669, %v8671
          %v8673 = vrot.slane %v3882, %v8672
          %v8675 = vunpack.c.l.s4 839922192
          %v8676 = vunpack.c.0.s8 %v8675
          %v8677 = vlaneseq
          %v8678 = vshrl.u32 %v8677, 7
          %v8679 = vsub.s32 %v8676, %v8678
          %v8680 = vrot.slane %v3886, %v8679
          %v8682 = vunpack.c.l.s4 1985246804
          %v8683 = vunpack.c.0.s8 %v8682
          %v8684 = vlaneseq
          %v8685 = vshrl.u32 %v8684, 7
          %v8686 = vsub.s32 %v8683, %v8685
          %v8687 = vrot.slane %v3886, %v8686
          %v8689 = vunpack.c.l.s4 839922192
          %v8690 = vunpack.c.0.s8 %v8689
          %v8691 = vlaneseq
          %v8692 = vshrl.u32 %v8691, 7
          %v8693 = vsub.s32 %v8690, %v8692
          %v8694 = vrot.slane %v3890, %v8693
          %v8696 = vunpack.c.l.s4 1985246804
          %v8697 = vunpack.c.0.s8 %v8696
          %v8698 = vlaneseq
          %v8699 = vshrl.u32 %v8698, 7
          %v8700 = vsub.s32 %v8697, %v8699
          %v8701 = vrot.slane %v3890, %v8700
          %v8703 = vunpack.c.l.s4 839922192
          %v8704 = vunpack.c.0.s8 %v8703
          %v8705 = vlaneseq
          %v8706 = vshrl.u32 %v8705, 7
          %v8707 = vsub.s32 %v8704, %v8706
          %v8708 = vrot.slane %v3894, %v8707
          %v8710 = vunpack.c.l.s4 1985246804
          %v8711 = vunpack.c.0.s8 %v8710
          %v8712 = vlaneseq
          %v8713 = vshrl.u32 %v8712, 7
          %v8714 = vsub.s32 %v8711, %v8713
          %v8715 = vrot.slane %v3894, %v8714
          %v8717 = vunpack.c.l.s4 839922192
          %v8718 = vunpack.c.0.s8 %v8717
          %v8719 = vlaneseq
          %v8720 = vshrl.u32 %v8719, 7
          %v8721 = vsub.s32 %v8718, %v8720
          %v8722 = vrot.slane %v3898, %v8721
          %v8724 = vunpack.c.l.s4 1985246804
          %v8725 = vunpack.c.0.s8 %v8724
          %v8726 = vlaneseq
          %v8727 = vshrl.u32 %v8726, 7
          %v8728 = vsub.s32 %v8725, %v8727
          %v8729 = vrot.slane %v3898, %v8728
          %v8731 = vunpack.c.l.s4 839922192
          %v8732 = vunpack.c.0.s8 %v8731
          %v8733 = vlaneseq
          %v8734 = vshrl.u32 %v8733, 7
          %v8735 = vsub.s32 %v8732, %v8734
          %v8736 = vrot.slane %v3902, %v8735
          %v8738 = vunpack.c.l.s4 1985246804
          %v8739 = vunpack.c.0.s8 %v8738
          %v8740 = vlaneseq
          %v8741 = vshrl.u32 %v8740, 7
          %v8742 = vsub.s32 %v8739, %v8741
          %v8743 = vrot.slane %v3902, %v8742
          %v8745 = vunpack.c.l.s4 839922192
          %v8746 = vunpack.c.0.s8 %v8745
          %v8747 = vlaneseq
          %v8748 = vshrl.u32 %v8747, 7
          %v8749 = vsub.s32 %v8746, %v8748
          %v8750 = vrot.slane %v3906, %v8749
          %v8752 = vunpack.c.l.s4 1985246804
          %v8753 = vunpack.c.0.s8 %v8752
          %v8754 = vlaneseq
          %v8755 = vshrl.u32 %v8754, 7
          %v8756 = vsub.s32 %v8753, %v8755
          %v8757 = vrot.slane %v3906, %v8756
          %v8759 = vunpack.c.l.s4 839922192
          %v8760 = vunpack.c.0.s8 %v8759
          %v8761 = vlaneseq
          %v8762 = vshrl.u32 %v8761, 7
          %v8763 = vsub.s32 %v8760, %v8762
          %v8764 = vrot.slane %v3910, %v8763
          %v8766 = vunpack.c.l.s4 1985246804
          %v8767 = vunpack.c.0.s8 %v8766
          %v8768 = vlaneseq
          %v8769 = vshrl.u32 %v8768, 7
          %v8770 = vsub.s32 %v8767, %v8769
          %v8771 = vrot.slane %v3910, %v8770
          %v8773 = vunpack.c.l.s4 839922192
          %v8774 = vunpack.c.0.s8 %v8773
          %v8775 = vlaneseq
          %v8776 = vshrl.u32 %v8775, 7
          %v8777 = vsub.s32 %v8774, %v8776
          %v8778 = vrot.slane %v3914, %v8777
          %v8780 = vunpack.c.l.s4 1985246804
          %v8781 = vunpack.c.0.s8 %v8780
          %v8782 = vlaneseq
          %v8783 = vshrl.u32 %v8782, 7
          %v8784 = vsub.s32 %v8781, %v8783
          %v8785 = vrot.slane %v3914, %v8784
          %v8787 = vunpack.c.l.s4 839922192
          %v8788 = vunpack.c.0.s8 %v8787
          %v8789 = vlaneseq
          %v8790 = vshrl.u32 %v8789, 7
          %v8791 = vsub.s32 %v8788, %v8790
          %v8792 = vrot.slane %v3918, %v8791
          %v8794 = vunpack.c.l.s4 1985246804
          %v8795 = vunpack.c.0.s8 %v8794
          %v8796 = vlaneseq
          %v8797 = vshrl.u32 %v8796, 7
          %v8798 = vsub.s32 %v8795, %v8797
          %v8799 = vrot.slane %v3918, %v8798
          %v8801 = vunpack.c.l.s4 839922192
          %v8802 = vunpack.c.0.s8 %v8801
          %v8803 = vlaneseq
          %v8804 = vshrl.u32 %v8803, 7
          %v8805 = vsub.s32 %v8802, %v8804
          %v8806 = vrot.slane %v3922, %v8805
          %v8808 = vunpack.c.l.s4 1985246804
          %v8809 = vunpack.c.0.s8 %v8808
          %v8810 = vlaneseq
          %v8811 = vshrl.u32 %v8810, 7
          %v8812 = vsub.s32 %v8809, %v8811
          %v8813 = vrot.slane %v3922, %v8812
          %v8815 = vunpack.c.l.s4 839922192
          %v8816 = vunpack.c.0.s8 %v8815
          %v8817 = vlaneseq
          %v8818 = vshrl.u32 %v8817, 7
          %v8819 = vsub.s32 %v8816, %v8818
          %v8820 = vrot.slane %v3926, %v8819
          %v8822 = vunpack.c.l.s4 1985246804
          %v8823 = vunpack.c.0.s8 %v8822
          %v8824 = vlaneseq
          %v8825 = vshrl.u32 %v8824, 7
          %v8826 = vsub.s32 %v8823, %v8825
          %v8827 = vrot.slane %v3926, %v8826
          %v8829 = vunpack.c.l.s4 839922192
          %v8830 = vunpack.c.0.s8 %v8829
          %v8831 = vlaneseq
          %v8832 = vshrl.u32 %v8831, 7
          %v8833 = vsub.s32 %v8830, %v8832
          %v8834 = vrot.slane %v3930, %v8833
          %v8836 = vunpack.c.l.s4 1985246804
          %v8837 = vunpack.c.0.s8 %v8836
          %v8838 = vlaneseq
          %v8839 = vshrl.u32 %v8838, 7
          %v8840 = vsub.s32 %v8837, %v8839
          %v8841 = vrot.slane %v3930, %v8840
          %v8843 = vunpack.c.l.s4 839922192
          %v8844 = vunpack.c.0.s8 %v8843
          %v8845 = vlaneseq
          %v8846 = vshrl.u32 %v8845, 7
          %v8847 = vsub.s32 %v8844, %v8846
          %v8848 = vrot.slane %v3934, %v8847
          %v8850 = vunpack.c.l.s4 1985246804
          %v8851 = vunpack.c.0.s8 %v8850
          %v8852 = vlaneseq
          %v8853 = vshrl.u32 %v8852, 7
          %v8854 = vsub.s32 %v8851, %v8853
          %v8855 = vrot.slane %v3934, %v8854
          %v8857 = vunpack.c.l.s4 839922192
          %v8858 = vunpack.c.0.s8 %v8857
          %v8859 = vlaneseq
          %v8860 = vshrl.u32 %v8859, 7
          %v8861 = vsub.s32 %v8858, %v8860
          %v8862 = vrot.slane %v3938, %v8861
          %v8864 = vunpack.c.l.s4 1985246804
          %v8865 = vunpack.c.0.s8 %v8864
          %v8866 = vlaneseq
          %v8867 = vshrl.u32 %v8866, 7
          %v8868 = vsub.s32 %v8865, %v8867
          %v8869 = vrot.slane %v3938, %v8868
          %v8871 = vunpack.c.l.s4 839922192
          %v8872 = vunpack.c.0.s8 %v8871
          %v8873 = vlaneseq
          %v8874 = vshrl.u32 %v8873, 7
          %v8875 = vsub.s32 %v8872, %v8874
          %v8876 = vrot.slane %v3942, %v8875
          %v8878 = vunpack.c.l.s4 1985246804
          %v8879 = vunpack.c.0.s8 %v8878
          %v8880 = vlaneseq
          %v8881 = vshrl.u32 %v8880, 7
          %v8882 = vsub.s32 %v8879, %v8881
          %v8883 = vrot.slane %v3942, %v8882
          %v8885 = vunpack.c.l.s4 839922192
          %v8886 = vunpack.c.0.s8 %v8885
          %v8887 = vlaneseq
          %v8888 = vshrl.u32 %v8887, 7
          %v8889 = vsub.s32 %v8886, %v8888
          %v8890 = vrot.slane %v3946, %v8889
          %v8892 = vunpack.c.l.s4 1985246804
          %v8893 = vunpack.c.0.s8 %v8892
          %v8894 = vlaneseq
          %v8895 = vshrl.u32 %v8894, 7
          %v8896 = vsub.s32 %v8893, %v8895
          %v8897 = vrot.slane %v3946, %v8896
          %v8899 = vunpack.c.l.s4 839922192
          %v8900 = vunpack.c.0.s8 %v8899
          %v8901 = vlaneseq
          %v8902 = vshrl.u32 %v8901, 7
          %v8903 = vsub.s32 %v8900, %v8902
          %v8904 = vrot.slane %v3950, %v8903
          %v8906 = vunpack.c.l.s4 1985246804
          %v8907 = vunpack.c.0.s8 %v8906
          %v8908 = vlaneseq
          %v8909 = vshrl.u32 %v8908, 7
          %v8910 = vsub.s32 %v8907, %v8909
          %v8911 = vrot.slane %v3950, %v8910
          %v8913 = vunpack.c.l.s4 839922192
          %v8914 = vunpack.c.0.s8 %v8913
          %v8915 = vlaneseq
          %v8916 = vshrl.u32 %v8915, 7
          %v8917 = vsub.s32 %v8914, %v8916
          %v8918 = vrot.slane %v3954, %v8917
          %v8920 = vunpack.c.l.s4 1985246804
          %v8921 = vunpack.c.0.s8 %v8920
          %v8922 = vlaneseq
          %v8923 = vshrl.u32 %v8922, 7
          %v8924 = vsub.s32 %v8921, %v8923
          %v8925 = vrot.slane %v3954, %v8924
          %v8927 = vunpack.c.l.s4 839922192
          %v8928 = vunpack.c.0.s8 %v8927
          %v8929 = vlaneseq
          %v8930 = vshrl.u32 %v8929, 7
          %v8931 = vsub.s32 %v8928, %v8930
          %v8932 = vrot.slane %v3958, %v8931
          %v8934 = vunpack.c.l.s4 1985246804
          %v8935 = vunpack.c.0.s8 %v8934
          %v8936 = vlaneseq
          %v8937 = vshrl.u32 %v8936, 7
          %v8938 = vsub.s32 %v8935, %v8937
          %v8939 = vrot.slane %v3958, %v8938
          %v8941 = vunpack.c.l.s4 839922192
          %v8942 = vunpack.c.0.s8 %v8941
          %v8943 = vlaneseq
          %v8944 = vshrl.u32 %v8943, 7
          %v8945 = vsub.s32 %v8942, %v8944
          %v8946 = vrot.slane %v3962, %v8945
          %v8948 = vunpack.c.l.s4 1985246804
          %v8949 = vunpack.c.0.s8 %v8948
          %v8950 = vlaneseq
          %v8951 = vshrl.u32 %v8950, 7
          %v8952 = vsub.s32 %v8949, %v8951
          %v8953 = vrot.slane %v3962, %v8952
          %v8955 = vunpack.c.l.s4 839922192
          %v8956 = vunpack.c.0.s8 %v8955
          %v8957 = vlaneseq
          %v8958 = vshrl.u32 %v8957, 7
          %v8959 = vsub.s32 %v8956, %v8958
          %v8960 = vrot.slane %v3966, %v8959
          %v8962 = vunpack.c.l.s4 1985246804
          %v8963 = vunpack.c.0.s8 %v8962
          %v8964 = vlaneseq
          %v8965 = vshrl.u32 %v8964, 7
          %v8966 = vsub.s32 %v8963, %v8965
          %v8967 = vrot.slane %v3966, %v8966
          %v8969 = vunpack.c.l.s4 839922192
          %v8970 = vunpack.c.0.s8 %v8969
          %v8971 = vlaneseq
          %v8972 = vshrl.u32 %v8971, 7
          %v8973 = vsub.s32 %v8970, %v8972
          %v8974 = vrot.slane %v3970, %v8973
          %v8976 = vunpack.c.l.s4 1985246804
          %v8977 = vunpack.c.0.s8 %v8976
          %v8978 = vlaneseq
          %v8979 = vshrl.u32 %v8978, 7
          %v8980 = vsub.s32 %v8977, %v8979
          %v8981 = vrot.slane %v3970, %v8980
          %v8983 = vunpack.c.l.s4 839922192
          %v8984 = vunpack.c.0.s8 %v8983
          %v8985 = vlaneseq
          %v8986 = vshrl.u32 %v8985, 7
          %v8987 = vsub.s32 %v8984, %v8986
          %v8988 = vrot.slane %v3974, %v8987
          %v8990 = vunpack.c.l.s4 1985246804
          %v8991 = vunpack.c.0.s8 %v8990
          %v8992 = vlaneseq
          %v8993 = vshrl.u32 %v8992, 7
          %v8994 = vsub.s32 %v8991, %v8993
          %v8995 = vrot.slane %v3974, %v8994
          %v8997 = vunpack.c.l.s4 839922192
          %v8998 = vunpack.c.0.s8 %v8997
          %v8999 = vlaneseq
          %v9000 = vshrl.u32 %v8999, 7
          %v9001 = vsub.s32 %v8998, %v9000
          %v9002 = vrot.slane %v3978, %v9001
          %v9004 = vunpack.c.l.s4 1985246804
          %v9005 = vunpack.c.0.s8 %v9004
          %v9006 = vlaneseq
          %v9007 = vshrl.u32 %v9006, 7
          %v9008 = vsub.s32 %v9005, %v9007
          %v9009 = vrot.slane %v3978, %v9008
          %v9011 = vunpack.c.l.s4 839922192
          %v9012 = vunpack.c.0.s8 %v9011
          %v9013 = vlaneseq
          %v9014 = vshrl.u32 %v9013, 7
          %v9015 = vsub.s32 %v9012, %v9014
          %v9016 = vrot.slane %v3982, %v9015
          %v9018 = vunpack.c.l.s4 1985246804
          %v9019 = vunpack.c.0.s8 %v9018
          %v9020 = vlaneseq
          %v9021 = vshrl.u32 %v9020, 7
          %v9022 = vsub.s32 %v9019, %v9021
          %v9023 = vrot.slane %v3982, %v9022
          %v9025 = vunpack.c.l.s4 839922192
          %v9026 = vunpack.c.0.s8 %v9025
          %v9027 = vlaneseq
          %v9028 = vshrl.u32 %v9027, 7
          %v9029 = vsub.s32 %v9026, %v9028
          %v9030 = vrot.slane %v3986, %v9029
          %v9032 = vunpack.c.l.s4 1985246804
          %v9033 = vunpack.c.0.s8 %v9032
          %v9034 = vlaneseq
          %v9035 = vshrl.u32 %v9034, 7
          %v9036 = vsub.s32 %v9033, %v9035
          %v9037 = vrot.slane %v3986, %v9036
          %v9039 = vunpack.c.l.s4 839922192
          %v9040 = vunpack.c.0.s8 %v9039
          %v9041 = vlaneseq
          %v9042 = vshrl.u32 %v9041, 7
          %v9043 = vsub.s32 %v9040, %v9042
          %v9044 = vrot.slane %v3990, %v9043
          %v9046 = vunpack.c.l.s4 1985246804
          %v9047 = vunpack.c.0.s8 %v9046
          %v9048 = vlaneseq
          %v9049 = vshrl.u32 %v9048, 7
          %v9050 = vsub.s32 %v9047, %v9049
          %v9051 = vrot.slane %v3990, %v9050
          %v9053 = vunpack.c.l.s4 839922192
          %v9054 = vunpack.c.0.s8 %v9053
          %v9055 = vlaneseq
          %v9056 = vshrl.u32 %v9055, 7
          %v9057 = vsub.s32 %v9054, %v9056
          %v9058 = vrot.slane %v3994, %v9057
          %v9060 = vunpack.c.l.s4 1985246804
          %v9061 = vunpack.c.0.s8 %v9060
          %v9062 = vlaneseq
          %v9063 = vshrl.u32 %v9062, 7
          %v9064 = vsub.s32 %v9061, %v9063
          %v9065 = vrot.slane %v3994, %v9064
          %v9067 = vunpack.c.l.s4 839922192
          %v9068 = vunpack.c.0.s8 %v9067
          %v9069 = vlaneseq
          %v9070 = vshrl.u32 %v9069, 7
          %v9071 = vsub.s32 %v9068, %v9070
          %v9072 = vrot.slane %v3998, %v9071
          %v9074 = vunpack.c.l.s4 1985246804
          %v9075 = vunpack.c.0.s8 %v9074
          %v9076 = vlaneseq
          %v9077 = vshrl.u32 %v9076, 7
          %v9078 = vsub.s32 %v9075, %v9077
          %v9079 = vrot.slane %v3998, %v9078
          %v9081 = vunpack.c.l.s4 839922192
          %v9082 = vunpack.c.0.s8 %v9081
          %v9083 = vlaneseq
          %v9084 = vshrl.u32 %v9083, 7
          %v9085 = vsub.s32 %v9082, %v9084
          %v9086 = vrot.slane %v4002, %v9085
          %v9088 = vunpack.c.l.s4 1985246804
          %v9089 = vunpack.c.0.s8 %v9088
          %v9090 = vlaneseq
          %v9091 = vshrl.u32 %v9090, 7
          %v9092 = vsub.s32 %v9089, %v9091
          %v9093 = vrot.slane %v4002, %v9092
          %v9095 = vunpack.c.l.s4 839922192
          %v9096 = vunpack.c.0.s8 %v9095
          %v9097 = vlaneseq
          %v9098 = vshrl.u32 %v9097, 7
          %v9099 = vsub.s32 %v9096, %v9098
          %v9100 = vrot.slane %v4006, %v9099
          %v9102 = vunpack.c.l.s4 1985246804
          %v9103 = vunpack.c.0.s8 %v9102
          %v9104 = vlaneseq
          %v9105 = vshrl.u32 %v9104, 7
          %v9106 = vsub.s32 %v9103, %v9105
          %v9107 = vrot.slane %v4006, %v9106
          %v9109 = vunpack.c.l.s4 839922192
          %v9110 = vunpack.c.0.s8 %v9109
          %v9111 = vlaneseq
          %v9112 = vshrl.u32 %v9111, 7
          %v9113 = vsub.s32 %v9110, %v9112
          %v9114 = vrot.slane %v4010, %v9113
          %v9116 = vunpack.c.l.s4 1985246804
          %v9117 = vunpack.c.0.s8 %v9116
          %v9118 = vlaneseq
          %v9119 = vshrl.u32 %v9118, 7
          %v9120 = vsub.s32 %v9117, %v9119
          %v9121 = vrot.slane %v4010, %v9120
          %v9123 = vunpack.c.l.s4 839922192
          %v9124 = vunpack.c.0.s8 %v9123
          %v9125 = vlaneseq
          %v9126 = vshrl.u32 %v9125, 7
          %v9127 = vsub.s32 %v9124, %v9126
          %v9128 = vrot.slane %v4014, %v9127
          %v9130 = vunpack.c.l.s4 1985246804
          %v9131 = vunpack.c.0.s8 %v9130
          %v9132 = vlaneseq
          %v9133 = vshrl.u32 %v9132, 7
          %v9134 = vsub.s32 %v9131, %v9133
          %v9135 = vrot.slane %v4014, %v9134
          %v9137 = vunpack.c.l.s4 839922192
          %v9138 = vunpack.c.0.s8 %v9137
          %v9139 = vlaneseq
          %v9140 = vshrl.u32 %v9139, 7
          %v9141 = vsub.s32 %v9138, %v9140
          %v9142 = vrot.slane %v4018, %v9141
          %v9144 = vunpack.c.l.s4 1985246804
          %v9145 = vunpack.c.0.s8 %v9144
          %v9146 = vlaneseq
          %v9147 = vshrl.u32 %v9146, 7
          %v9148 = vsub.s32 %v9145, %v9147
          %v9149 = vrot.slane %v4018, %v9148
          %v9151 = vunpack.c.l.s4 839922192
          %v9152 = vunpack.c.0.s8 %v9151
          %v9153 = vlaneseq
          %v9154 = vshrl.u32 %v9153, 7
          %v9155 = vsub.s32 %v9152, %v9154
          %v9156 = vrot.slane %v4022, %v9155
          %v9158 = vunpack.c.l.s4 1985246804
          %v9159 = vunpack.c.0.s8 %v9158
          %v9160 = vlaneseq
          %v9161 = vshrl.u32 %v9160, 7
          %v9162 = vsub.s32 %v9159, %v9161
          %v9163 = vrot.slane %v4022, %v9162
          %v9165 = vunpack.c.l.s4 839922192
          %v9166 = vunpack.c.0.s8 %v9165
          %v9167 = vlaneseq
          %v9168 = vshrl.u32 %v9167, 7
          %v9169 = vsub.s32 %v9166, %v9168
          %v9170 = vrot.slane %v4026, %v9169
          %v9172 = vunpack.c.l.s4 1985246804
          %v9173 = vunpack.c.0.s8 %v9172
          %v9174 = vlaneseq
          %v9175 = vshrl.u32 %v9174, 7
          %v9176 = vsub.s32 %v9173, %v9175
          %v9177 = vrot.slane %v4026, %v9176
          %v9179 = vunpack.c.l.s4 839922192
          %v9180 = vunpack.c.0.s8 %v9179
          %v9181 = vlaneseq
          %v9182 = vshrl.u32 %v9181, 7
          %v9183 = vsub.s32 %v9180, %v9182
          %v9184 = vrot.slane %v4030, %v9183
          %v9186 = vunpack.c.l.s4 1985246804
          %v9187 = vunpack.c.0.s8 %v9186
          %v9188 = vlaneseq
          %v9189 = vshrl.u32 %v9188, 7
          %v9190 = vsub.s32 %v9187, %v9189
          %v9191 = vrot.slane %v4030, %v9190
          %v9193 = vunpack.c.l.s4 839922192
          %v9194 = vunpack.c.0.s8 %v9193
          %v9195 = vlaneseq
          %v9196 = vshrl.u32 %v9195, 7
          %v9197 = vsub.s32 %v9194, %v9196
          %v9198 = vrot.slane %v4034, %v9197
          %v9200 = vunpack.c.l.s4 1985246804
          %v9201 = vunpack.c.0.s8 %v9200
          %v9202 = vlaneseq
          %v9203 = vshrl.u32 %v9202, 7
          %v9204 = vsub.s32 %v9201, %v9203
          %v9205 = vrot.slane %v4034, %v9204
          %v9207 = vunpack.c.l.s4 839922192
          %v9208 = vunpack.c.0.s8 %v9207
          %v9209 = vlaneseq
          %v9210 = vshrl.u32 %v9209, 7
          %v9211 = vsub.s32 %v9208, %v9210
          %v9212 = vrot.slane %v4038, %v9211
          %v9214 = vunpack.c.l.s4 1985246804
          %v9215 = vunpack.c.0.s8 %v9214
          %v9216 = vlaneseq
          %v9217 = vshrl.u32 %v9216, 7
          %v9218 = vsub.s32 %v9215, %v9217
          %v9219 = vrot.slane %v4038, %v9218
          %v9221 = vunpack.c.l.s4 839922192
          %v9222 = vunpack.c.0.s8 %v9221
          %v9223 = vlaneseq
          %v9224 = vshrl.u32 %v9223, 7
          %v9225 = vsub.s32 %v9222, %v9224
          %v9226 = vrot.slane %v4042, %v9225
          %v9228 = vunpack.c.l.s4 1985246804
          %v9229 = vunpack.c.0.s8 %v9228
          %v9230 = vlaneseq
          %v9231 = vshrl.u32 %v9230, 7
          %v9232 = vsub.s32 %v9229, %v9231
          %v9233 = vrot.slane %v4042, %v9232
          %v9235 = vunpack.c.l.s4 839922192
          %v9236 = vunpack.c.0.s8 %v9235
          %v9237 = vlaneseq
          %v9238 = vshrl.u32 %v9237, 7
          %v9239 = vsub.s32 %v9236, %v9238
          %v9240 = vrot.slane %v4046, %v9239
          %v9242 = vunpack.c.l.s4 1985246804
          %v9243 = vunpack.c.0.s8 %v9242
          %v9244 = vlaneseq
          %v9245 = vshrl.u32 %v9244, 7
          %v9246 = vsub.s32 %v9243, %v9245
          %v9247 = vrot.slane %v4046, %v9246
          %v9249 = vunpack.c.l.s4 839922192
          %v9250 = vunpack.c.0.s8 %v9249
          %v9251 = vlaneseq
          %v9252 = vshrl.u32 %v9251, 7
          %v9253 = vsub.s32 %v9250, %v9252
          %v9254 = vrot.slane %v4050, %v9253
          %v9256 = vunpack.c.l.s4 1985246804
          %v9257 = vunpack.c.0.s8 %v9256
          %v9258 = vlaneseq
          %v9259 = vshrl.u32 %v9258, 7
          %v9260 = vsub.s32 %v9257, %v9259
          %v9261 = vrot.slane %v4050, %v9260
          %v9263 = vunpack.c.l.s4 839922192
          %v9264 = vunpack.c.0.s8 %v9263
          %v9265 = vlaneseq
          %v9266 = vshrl.u32 %v9265, 7
          %v9267 = vsub.s32 %v9264, %v9266
          %v9268 = vrot.slane %v4054, %v9267
          %v9270 = vunpack.c.l.s4 1985246804
          %v9271 = vunpack.c.0.s8 %v9270
          %v9272 = vlaneseq
          %v9273 = vshrl.u32 %v9272, 7
          %v9274 = vsub.s32 %v9271, %v9273
          %v9275 = vrot.slane %v4054, %v9274
          %v9277 = vunpack.c.l.s4 839922192
          %v9278 = vunpack.c.0.s8 %v9277
          %v9279 = vlaneseq
          %v9280 = vshrl.u32 %v9279, 7
          %v9281 = vsub.s32 %v9278, %v9280
          %v9282 = vrot.slane %v4058, %v9281
          %v9284 = vunpack.c.l.s4 1985246804
          %v9285 = vunpack.c.0.s8 %v9284
          %v9286 = vlaneseq
          %v9287 = vshrl.u32 %v9286, 7
          %v9288 = vsub.s32 %v9285, %v9287
          %v9289 = vrot.slane %v4058, %v9288
          %v9291 = vunpack.c.l.s4 839922192
          %v9292 = vunpack.c.0.s8 %v9291
          %v9293 = vlaneseq
          %v9294 = vshrl.u32 %v9293, 7
          %v9295 = vsub.s32 %v9292, %v9294
          %v9296 = vrot.slane %v4062, %v9295
          %v9298 = vunpack.c.l.s4 1985246804
          %v9299 = vunpack.c.0.s8 %v9298
          %v9300 = vlaneseq
          %v9301 = vshrl.u32 %v9300, 7
          %v9302 = vsub.s32 %v9299, %v9301
          %v9303 = vrot.slane %v4062, %v9302
          %v9305 = vunpack.c.l.s4 839922192
          %v9306 = vunpack.c.0.s8 %v9305
          %v9307 = vlaneseq
          %v9308 = vshrl.u32 %v9307, 7
          %v9309 = vsub.s32 %v9306, %v9308
          %v9310 = vrot.slane %v4066, %v9309
          %v9312 = vunpack.c.l.s4 1985246804
          %v9313 = vunpack.c.0.s8 %v9312
          %v9314 = vlaneseq
          %v9315 = vshrl.u32 %v9314, 7
          %v9316 = vsub.s32 %v9313, %v9315
          %v9317 = vrot.slane %v4066, %v9316
          %v9319 = vunpack.c.l.s4 839922192
          %v9320 = vunpack.c.0.s8 %v9319
          %v9321 = vlaneseq
          %v9322 = vshrl.u32 %v9321, 7
          %v9323 = vsub.s32 %v9320, %v9322
          %v9324 = vrot.slane %v4070, %v9323
          %v9326 = vunpack.c.l.s4 1985246804
          %v9327 = vunpack.c.0.s8 %v9326
          %v9328 = vlaneseq
          %v9329 = vshrl.u32 %v9328, 7
          %v9330 = vsub.s32 %v9327, %v9329
          %v9331 = vrot.slane %v4070, %v9330
          %v9333 = vunpack.c.l.s4 839922192
          %v9334 = vunpack.c.0.s8 %v9333
          %v9335 = vlaneseq
          %v9336 = vshrl.u32 %v9335, 7
          %v9337 = vsub.s32 %v9334, %v9336
          %v9338 = vrot.slane %v4074, %v9337
          %v9340 = vunpack.c.l.s4 1985246804
          %v9341 = vunpack.c.0.s8 %v9340
          %v9342 = vlaneseq
          %v9343 = vshrl.u32 %v9342, 7
          %v9344 = vsub.s32 %v9341, %v9343
          %v9345 = vrot.slane %v4074, %v9344
          %v9347 = vunpack.c.l.s4 839922192
          %v9348 = vunpack.c.0.s8 %v9347
          %v9349 = vlaneseq
          %v9350 = vshrl.u32 %v9349, 7
          %v9351 = vsub.s32 %v9348, %v9350
          %v9352 = vrot.slane %v4078, %v9351
          %v9354 = vunpack.c.l.s4 1985246804
          %v9355 = vunpack.c.0.s8 %v9354
          %v9356 = vlaneseq
          %v9357 = vshrl.u32 %v9356, 7
          %v9358 = vsub.s32 %v9355, %v9357
          %v9359 = vrot.slane %v4078, %v9358
          %v9361 = vunpack.c.l.s4 839922192
          %v9362 = vunpack.c.0.s8 %v9361
          %v9363 = vlaneseq
          %v9364 = vshrl.u32 %v9363, 7
          %v9365 = vsub.s32 %v9362, %v9364
          %v9366 = vrot.slane %v4082, %v9365
          %v9368 = vunpack.c.l.s4 1985246804
          %v9369 = vunpack.c.0.s8 %v9368
          %v9370 = vlaneseq
          %v9371 = vshrl.u32 %v9370, 7
          %v9372 = vsub.s32 %v9369, %v9371
          %v9373 = vrot.slane %v4082, %v9372
          %v9375 = vunpack.c.l.s4 839922192
          %v9376 = vunpack.c.0.s8 %v9375
          %v9377 = vlaneseq
          %v9378 = vshrl.u32 %v9377, 7
          %v9379 = vsub.s32 %v9376, %v9378
          %v9380 = vrot.slane %v4086, %v9379
          %v9382 = vunpack.c.l.s4 1985246804
          %v9383 = vunpack.c.0.s8 %v9382
          %v9384 = vlaneseq
          %v9385 = vshrl.u32 %v9384, 7
          %v9386 = vsub.s32 %v9383, %v9385
          %v9387 = vrot.slane %v4086, %v9386
          %v9389 = vunpack.c.l.s4 839922192
          %v9390 = vunpack.c.0.s8 %v9389
          %v9391 = vlaneseq
          %v9392 = vshrl.u32 %v9391, 7
          %v9393 = vsub.s32 %v9390, %v9392
          %v9394 = vrot.slane %v4090, %v9393
          %v9396 = vunpack.c.l.s4 1985246804
          %v9397 = vunpack.c.0.s8 %v9396
          %v9398 = vlaneseq
          %v9399 = vshrl.u32 %v9398, 7
          %v9400 = vsub.s32 %v9397, %v9399
          %v9401 = vrot.slane %v4090, %v9400
          %v9403 = vunpack.c.l.s4 839922192
          %v9404 = vunpack.c.0.s8 %v9403
          %v9405 = vlaneseq
          %v9406 = vshrl.u32 %v9405, 7
          %v9407 = vsub.s32 %v9404, %v9406
          %v9408 = vrot.slane %v4094, %v9407
          %v9410 = vunpack.c.l.s4 1985246804
          %v9411 = vunpack.c.0.s8 %v9410
          %v9412 = vlaneseq
          %v9413 = vshrl.u32 %v9412, 7
          %v9414 = vsub.s32 %v9411, %v9413
          %v9415 = vrot.slane %v4094, %v9414
          %v9417 = vunpack.c.l.s4 839922192
          %v9418 = vunpack.c.0.s8 %v9417
          %v9419 = vlaneseq
          %v9420 = vshrl.u32 %v9419, 7
          %v9421 = vsub.s32 %v9418, %v9420
          %v9422 = vrot.slane %v4098, %v9421
          %v9424 = vunpack.c.l.s4 1985246804
          %v9425 = vunpack.c.0.s8 %v9424
          %v9426 = vlaneseq
          %v9427 = vshrl.u32 %v9426, 7
          %v9428 = vsub.s32 %v9425, %v9427
          %v9429 = vrot.slane %v4098, %v9428
          %v9431 = vunpack.c.l.s4 839922192
          %v9432 = vunpack.c.0.s8 %v9431
          %v9433 = vlaneseq
          %v9434 = vshrl.u32 %v9433, 7
          %v9435 = vsub.s32 %v9432, %v9434
          %v9436 = vrot.slane %v4102, %v9435
          %v9438 = vunpack.c.l.s4 1985246804
          %v9439 = vunpack.c.0.s8 %v9438
          %v9440 = vlaneseq
          %v9441 = vshrl.u32 %v9440, 7
          %v9442 = vsub.s32 %v9439, %v9441
          %v9443 = vrot.slane %v4102, %v9442
          %v9445 = vunpack.c.l.s4 839922192
          %v9446 = vunpack.c.0.s8 %v9445
          %v9447 = vlaneseq
          %v9448 = vshrl.u32 %v9447, 7
          %v9449 = vsub.s32 %v9446, %v9448
          %v9450 = vrot.slane %v4106, %v9449
          %v9452 = vunpack.c.l.s4 1985246804
          %v9453 = vunpack.c.0.s8 %v9452
          %v9454 = vlaneseq
          %v9455 = vshrl.u32 %v9454, 7
          %v9456 = vsub.s32 %v9453, %v9455
          %v9457 = vrot.slane %v4106, %v9456
          %v9459 = vunpack.c.l.s4 839922192
          %v9460 = vunpack.c.0.s8 %v9459
          %v9461 = vlaneseq
          %v9462 = vshrl.u32 %v9461, 7
          %v9463 = vsub.s32 %v9460, %v9462
          %v9464 = vrot.slane %v4110, %v9463
          %v9466 = vunpack.c.l.s4 1985246804
          %v9467 = vunpack.c.0.s8 %v9466
          %v9468 = vlaneseq
          %v9469 = vshrl.u32 %v9468, 7
          %v9470 = vsub.s32 %v9467, %v9469
          %v9471 = vrot.slane %v4110, %v9470
          %v9473 = vunpack.c.l.s4 839922192
          %v9474 = vunpack.c.0.s8 %v9473
          %v9475 = vlaneseq
          %v9476 = vshrl.u32 %v9475, 7
          %v9477 = vsub.s32 %v9474, %v9476
          %v9478 = vrot.slane %v4114, %v9477
          %v9480 = vunpack.c.l.s4 1985246804
          %v9481 = vunpack.c.0.s8 %v9480
          %v9482 = vlaneseq
          %v9483 = vshrl.u32 %v9482, 7
          %v9484 = vsub.s32 %v9481, %v9483
          %v9485 = vrot.slane %v4114, %v9484
          %v9487 = vunpack.c.l.s4 839922192
          %v9488 = vunpack.c.0.s8 %v9487
          %v9489 = vlaneseq
          %v9490 = vshrl.u32 %v9489, 7
          %v9491 = vsub.s32 %v9488, %v9490
          %v9492 = vrot.slane %v4118, %v9491
          %v9494 = vunpack.c.l.s4 1985246804
          %v9495 = vunpack.c.0.s8 %v9494
          %v9496 = vlaneseq
          %v9497 = vshrl.u32 %v9496, 7
          %v9498 = vsub.s32 %v9495, %v9497
          %v9499 = vrot.slane %v4118, %v9498
          %v9501 = vunpack.c.l.s4 839922192
          %v9502 = vunpack.c.0.s8 %v9501
          %v9503 = vlaneseq
          %v9504 = vshrl.u32 %v9503, 7
          %v9505 = vsub.s32 %v9502, %v9504
          %v9506 = vrot.slane %v4122, %v9505
          %v9508 = vunpack.c.l.s4 1985246804
          %v9509 = vunpack.c.0.s8 %v9508
          %v9510 = vlaneseq
          %v9511 = vshrl.u32 %v9510, 7
          %v9512 = vsub.s32 %v9509, %v9511
          %v9513 = vrot.slane %v4122, %v9512
          %v9515 = vunpack.c.l.s4 839922192
          %v9516 = vunpack.c.0.s8 %v9515
          %v9517 = vlaneseq
          %v9518 = vshrl.u32 %v9517, 7
          %v9519 = vsub.s32 %v9516, %v9518
          %v9520 = vrot.slane %v4126, %v9519
          %v9522 = vunpack.c.l.s4 1985246804
          %v9523 = vunpack.c.0.s8 %v9522
          %v9524 = vlaneseq
          %v9525 = vshrl.u32 %v9524, 7
          %v9526 = vsub.s32 %v9523, %v9525
          %v9527 = vrot.slane %v4126, %v9526
          %v9529 = vunpack.c.l.s4 839922192
          %v9530 = vunpack.c.0.s8 %v9529
          %v9531 = vlaneseq
          %v9532 = vshrl.u32 %v9531, 7
          %v9533 = vsub.s32 %v9530, %v9532
          %v9534 = vrot.slane %v4130, %v9533
          %v9536 = vunpack.c.l.s4 1985246804
          %v9537 = vunpack.c.0.s8 %v9536
          %v9538 = vlaneseq
          %v9539 = vshrl.u32 %v9538, 7
          %v9540 = vsub.s32 %v9537, %v9539
          %v9541 = vrot.slane %v4130, %v9540
          %v9543 = vunpack.c.l.s4 839922192
          %v9544 = vunpack.c.0.s8 %v9543
          %v9545 = vlaneseq
          %v9546 = vshrl.u32 %v9545, 7
          %v9547 = vsub.s32 %v9544, %v9546
          %v9548 = vrot.slane %v4134, %v9547
          %v9550 = vunpack.c.l.s4 1985246804
          %v9551 = vunpack.c.0.s8 %v9550
          %v9552 = vlaneseq
          %v9553 = vshrl.u32 %v9552, 7
          %v9554 = vsub.s32 %v9551, %v9553
          %v9555 = vrot.slane %v4134, %v9554
          %v9557 = vunpack.c.l.s4 839922192
          %v9558 = vunpack.c.0.s8 %v9557
          %v9559 = vlaneseq
          %v9560 = vshrl.u32 %v9559, 7
          %v9561 = vsub.s32 %v9558, %v9560
          %v9562 = vrot.slane %v4138, %v9561
          %v9564 = vunpack.c.l.s4 1985246804
          %v9565 = vunpack.c.0.s8 %v9564
          %v9566 = vlaneseq
          %v9567 = vshrl.u32 %v9566, 7
          %v9568 = vsub.s32 %v9565, %v9567
          %v9569 = vrot.slane %v4138, %v9568
          %v9571 = vunpack.c.l.s4 839922192
          %v9572 = vunpack.c.0.s8 %v9571
          %v9573 = vlaneseq
          %v9574 = vshrl.u32 %v9573, 7
          %v9575 = vsub.s32 %v9572, %v9574
          %v9576 = vrot.slane %v4142, %v9575
          %v9578 = vunpack.c.l.s4 1985246804
          %v9579 = vunpack.c.0.s8 %v9578
          %v9580 = vlaneseq
          %v9581 = vshrl.u32 %v9580, 7
          %v9582 = vsub.s32 %v9579, %v9581
          %v9583 = vrot.slane %v4142, %v9582
          %v9585 = vunpack.c.l.s4 839922192
          %v9586 = vunpack.c.0.s8 %v9585
          %v9587 = vlaneseq
          %v9588 = vshrl.u32 %v9587, 7
          %v9589 = vsub.s32 %v9586, %v9588
          %v9590 = vrot.slane %v4146, %v9589
          %v9592 = vunpack.c.l.s4 1985246804
          %v9593 = vunpack.c.0.s8 %v9592
          %v9594 = vlaneseq
          %v9595 = vshrl.u32 %v9594, 7
          %v9596 = vsub.s32 %v9593, %v9595
          %v9597 = vrot.slane %v4146, %v9596
          %v9599 = vunpack.c.l.s4 839922192
          %v9600 = vunpack.c.0.s8 %v9599
          %v9601 = vlaneseq
          %v9602 = vshrl.u32 %v9601, 7
          %v9603 = vsub.s32 %v9600, %v9602
          %v9604 = vrot.slane %v4150, %v9603
          %v9606 = vunpack.c.l.s4 1985246804
          %v9607 = vunpack.c.0.s8 %v9606
          %v9608 = vlaneseq
          %v9609 = vshrl.u32 %v9608, 7
          %v9610 = vsub.s32 %v9607, %v9609
          %v9611 = vrot.slane %v4150, %v9610
          %v9613 = vunpack.c.l.s4 839922192
          %v9614 = vunpack.c.0.s8 %v9613
          %v9615 = vlaneseq
          %v9616 = vshrl.u32 %v9615, 7
          %v9617 = vsub.s32 %v9614, %v9616
          %v9618 = vrot.slane %v4154, %v9617
          %v9620 = vunpack.c.l.s4 1985246804
          %v9621 = vunpack.c.0.s8 %v9620
          %v9622 = vlaneseq
          %v9623 = vshrl.u32 %v9622, 7
          %v9624 = vsub.s32 %v9621, %v9623
          %v9625 = vrot.slane %v4154, %v9624
          %v9627 = vunpack.c.l.s4 839922192
          %v9628 = vunpack.c.0.s8 %v9627
          %v9629 = vlaneseq
          %v9630 = vshrl.u32 %v9629, 7
          %v9631 = vsub.s32 %v9628, %v9630
          %v9632 = vrot.slane %v4158, %v9631
          %v9634 = vunpack.c.l.s4 1985246804
          %v9635 = vunpack.c.0.s8 %v9634
          %v9636 = vlaneseq
          %v9637 = vshrl.u32 %v9636, 7
          %v9638 = vsub.s32 %v9635, %v9637
          %v9639 = vrot.slane %v4158, %v9638
          %v9640 = vcombine.low %v7854, %v7861
          %v9641 = vcombine.low %v7868, %v7875
          %v9642 = vcombine.low %v7882, %v7889
          %v9643 = vcombine.low %v7896, %v7903
          %v9644 = vcombine.low %v7910, %v7917
          %v9645 = vcombine.low %v7924, %v7931
          %v9646 = vcombine.low %v7938, %v7945
          %v9647 = vcombine.low %v7952, %v7959
          %v9648 = vcombine.low %v7966, %v7973
          %v9649 = vcombine.low %v7980, %v7987
          %v9650 = vcombine.low %v7994, %v8001
          %v9651 = vcombine.low %v8008, %v8015
          %v9652 = vcombine.low %v8022, %v8029
          %v9653 = vcombine.low %v8036, %v8043
          %v9654 = vcombine.low %v8050, %v8057
          %v9655 = vcombine.low %v8064, %v8071
          %v9656 = vcombine.low %v8078, %v8085
          %v9657 = vcombine.low %v8092, %v8099
          %v9658 = vcombine.low %v8106, %v8113
          %v9659 = vcombine.low %v8120, %v8127
          %v9660 = vcombine.low %v8134, %v8141
          %v9661 = vcombine.low %v8148, %v8155
          %v9662 = vcombine.low %v8162, %v8169
          %v9663 = vcombine.low %v8176, %v8183
          %v9664 = vcombine.low %v8190, %v8197
          %v9665 = vcombine.low %v8204, %v8211
          %v9666 = vcombine.low %v8218, %v8225
          %v9667 = vcombine.low %v8232, %v8239
          %v9668 = vcombine.low %v8246, %v8253
          %v9669 = vcombine.low %v8260, %v8267
          %v9670 = vcombine.low %v8274, %v8281
          %v9671 = vcombine.low %v8288, %v8295
          %v9672 = vcombine.low %v8302, %v8309
          %v9673 = vcombine.low %v8316, %v8323
          %v9674 = vcombine.low %v8330, %v8337
          %v9675 = vcombine.low %v8344, %v8351
          %v9676 = vcombine.low %v8358, %v8365
          %v9677 = vcombine.low %v8372, %v8379
          %v9678 = vcombine.low %v8386, %v8393
          %v9679 = vcombine.low %v8400, %v8407
          %v9680 = vcombine.low %v8414, %v8421
          %v9681 = vcombine.low %v8428, %v8435
          %v9682 = vcombine.low %v8442, %v8449
          %v9683 = vcombine.low %v8456, %v8463
          %v9684 = vcombine.low %v8470, %v8477
          %v9685 = vcombine.low %v8484, %v8491
          %v9686 = vcombine.low %v8498, %v8505
          %v9687 = vcombine.low %v8512, %v8519
          %v9688 = vcombine.low %v8526, %v8533
          %v9689 = vcombine.low %v8540, %v8547
          %v9690 = vcombine.low %v8554, %v8561
          %v9691 = vcombine.low %v8568, %v8575
          %v9692 = vcombine.low %v8582, %v8589
          %v9693 = vcombine.low %v8596, %v8603
          %v9694 = vcombine.low %v8610, %v8617
          %v9695 = vcombine.low %v8624, %v8631
          %v9696 = vcombine.low %v8638, %v8645
          %v9697 = vcombine.low %v8652, %v8659
          %v9698 = vcombine.low %v8666, %v8673
          %v9699 = vcombine.low %v8680, %v8687
          %v9700 = vcombine.low %v8694, %v8701
          %v9701 = vcombine.low %v8708, %v8715
          %v9702 = vcombine.low %v8722, %v8729
          %v9703 = vcombine.low %v8736, %v8743
          %v9704 = vcombine.low %v8750, %v8757
          %v9705 = vcombine.low %v8764, %v8771
          %v9706 = vcombine.low %v8778, %v8785
          %v9707 = vcombine.low %v8792, %v8799
          %v9708 = vcombine.low %v8806, %v8813
          %v9709 = vcombine.low %v8820, %v8827
          %v9710 = vcombine.low %v8834, %v8841
          %v9711 = vcombine.low %v8848, %v8855
          %v9712 = vcombine.low %v8862, %v8869
          %v9713 = vcombine.low %v8876, %v8883
          %v9714 = vcombine.low %v8890, %v8897
          %v9715 = vcombine.low %v8904, %v8911
          %v9716 = vcombine.low %v8918, %v8925
          %v9717 = vcombine.low %v8932, %v8939
          %v9718 = vcombine.low %v8946, %v8953
          %v9719 = vcombine.low %v8960, %v8967
          %v9720 = vcombine.low %v8974, %v8981
          %v9721 = vcombine.low %v8988, %v8995
          %v9722 = vcombine.low %v9002, %v9009
          %v9723 = vcombine.low %v9016, %v9023
          %v9724 = vcombine.low %v9030, %v9037
          %v9725 = vcombine.low %v9044, %v9051
          %v9726 = vcombine.low %v9058, %v9065
          %v9727 = vcombine.low %v9072, %v9079
          %v9728 = vcombine.low %v9086, %v9093
          %v9729 = vcombine.low %v9100, %v9107
          %v9730 = vcombine.low %v9114, %v9121
          %v9731 = vcombine.low %v9128, %v9135
          %v9732 = vcombine.low %v9142, %v9149
          %v9733 = vcombine.low %v9156, %v9163
          %v9734 = vcombine.low %v9170, %v9177
          %v9735 = vcombine.low %v9184, %v9191
          %v9736 = vcombine.low %v9198, %v9205
          %v9737 = vcombine.low %v9212, %v9219
          %v9738 = vcombine.low %v9226, %v9233
          %v9739 = vcombine.low %v9240, %v9247
          %v9740 = vcombine.low %v9254, %v9261
          %v9741 = vcombine.low %v9268, %v9275
          %v9742 = vcombine.low %v9282, %v9289
          %v9743 = vcombine.low %v9296, %v9303
          %v9744 = vcombine.low %v9310, %v9317
          %v9745 = vcombine.low %v9324, %v9331
          %v9746 = vcombine.low %v9338, %v9345
          %v9747 = vcombine.low %v9352, %v9359
          %v9748 = vcombine.low %v9366, %v9373
          %v9749 = vcombine.low %v9380, %v9387
          %v9750 = vcombine.low %v9394, %v9401
          %v9751 = vcombine.low %v9408, %v9415
          %v9752 = vcombine.low %v9422, %v9429
          %v9753 = vcombine.low %v9436, %v9443
          %v9754 = vcombine.low %v9450, %v9457
          %v9755 = vcombine.low %v9464, %v9471
          %v9756 = vcombine.low %v9478, %v9485
          %v9757 = vcombine.low %v9492, %v9499
          %v9758 = vcombine.low %v9506, %v9513
          %v9759 = vcombine.low %v9520, %v9527
          %v9760 = vcombine.low %v9534, %v9541
          %v9761 = vcombine.low %v9548, %v9555
          %v9762 = vcombine.low %v9562, %v9569
          %v9763 = vcombine.low %v9576, %v9583
          %v9764 = vcombine.low %v9590, %v9597
          %v9765 = vcombine.low %v9604, %v9611
          %v9766 = vcombine.low %v9618, %v9625
          %v9767 = vcombine.low %v9632, %v9639
          %9768 = vset.pattern.permute.xlu0 0
          %9769 = vperm.xlu0 %9768, %v9640
          %v9770 = vpop.permute.xlu0 %9769
          %9771 = vset.pattern.permute.xlu0 0
          %9772 = vperm.xlu0 %9771, %v9641
          %v9773 = vpop.permute.xlu0 %9772
          %9774 = vset.pattern.permute.xlu0 0
          %9775 = vperm.xlu0 %9774, %v9642
          %v9776 = vpop.permute.xlu0 %9775
          %9777 = vset.pattern.permute.xlu0 0
          %9778 = vperm.xlu0 %9777, %v9643
          %v9779 = vpop.permute.xlu0 %9778
          %9780 = vset.pattern.permute.xlu0 0
          %9781 = vperm.xlu0 %9780, %v9644
          %v9782 = vpop.permute.xlu0 %9781
          %9783 = vset.pattern.permute.xlu0 0
          %9784 = vperm.xlu0 %9783, %v9645
          %v9785 = vpop.permute.xlu0 %9784
          %9786 = vset.pattern.permute.xlu0 0
          %9787 = vperm.xlu0 %9786, %v9646
          %v9788 = vpop.permute.xlu0 %9787
          %9789 = vset.pattern.permute.xlu0 0
          %9790 = vperm.xlu0 %9789, %v9647
          %v9791 = vpop.permute.xlu0 %9790
          %9792 = vset.pattern.permute.xlu0 0
          %9793 = vperm.xlu0 %9792, %v9648
          %v9794 = vpop.permute.xlu0 %9793
          %9795 = vset.pattern.permute.xlu0 0
          %9796 = vperm.xlu0 %9795, %v9649
          %v9797 = vpop.permute.xlu0 %9796
          %9798 = vset.pattern.permute.xlu0 0
          %9799 = vperm.xlu0 %9798, %v9650
          %v9800 = vpop.permute.xlu0 %9799
          %9801 = vset.pattern.permute.xlu0 0
          %9802 = vperm.xlu0 %9801, %v9651
          %v9803 = vpop.permute.xlu0 %9802
          %9804 = vset.pattern.permute.xlu0 0
          %9805 = vperm.xlu0 %9804, %v9652
          %v9806 = vpop.permute.xlu0 %9805
          %9807 = vset.pattern.permute.xlu0 0
          %9808 = vperm.xlu0 %9807, %v9653
          %v9809 = vpop.permute.xlu0 %9808
          %9810 = vset.pattern.permute.xlu0 0
          %9811 = vperm.xlu0 %9810, %v9654
          %v9812 = vpop.permute.xlu0 %9811
          %9813 = vset.pattern.permute.xlu0 0
          %9814 = vperm.xlu0 %9813, %v9655
          %v9815 = vpop.permute.xlu0 %9814
          %9816 = vset.pattern.permute.xlu0 0
          %9817 = vperm.xlu0 %9816, %v9656
          %v9818 = vpop.permute.xlu0 %9817
          %9819 = vset.pattern.permute.xlu0 0
          %9820 = vperm.xlu0 %9819, %v9657
          %v9821 = vpop.permute.xlu0 %9820
          %9822 = vset.pattern.permute.xlu0 0
          %9823 = vperm.xlu0 %9822, %v9658
          %v9824 = vpop.permute.xlu0 %9823
          %9825 = vset.pattern.permute.xlu0 0
          %9826 = vperm.xlu0 %9825, %v9659
          %v9827 = vpop.permute.xlu0 %9826
          %9828 = vset.pattern.permute.xlu0 0
          %9829 = vperm.xlu0 %9828, %v9660
          %v9830 = vpop.permute.xlu0 %9829
          %9831 = vset.pattern.permute.xlu0 0
          %9832 = vperm.xlu0 %9831, %v9661
          %v9833 = vpop.permute.xlu0 %9832
          %9834 = vset.pattern.permute.xlu0 0
          %9835 = vperm.xlu0 %9834, %v9662
          %v9836 = vpop.permute.xlu0 %9835
          %9837 = vset.pattern.permute.xlu0 0
          %9838 = vperm.xlu0 %9837, %v9663
          %v9839 = vpop.permute.xlu0 %9838
          %9840 = vset.pattern.permute.xlu0 0
          %9841 = vperm.xlu0 %9840, %v9664
          %v9842 = vpop.permute.xlu0 %9841
          %9843 = vset.pattern.permute.xlu0 0
          %9844 = vperm.xlu0 %9843, %v9665
          %v9845 = vpop.permute.xlu0 %9844
          %9846 = vset.pattern.permute.xlu0 0
          %9847 = vperm.xlu0 %9846, %v9666
          %v9848 = vpop.permute.xlu0 %9847
          %9849 = vset.pattern.permute.xlu0 0
          %9850 = vperm.xlu0 %9849, %v9667
          %v9851 = vpop.permute.xlu0 %9850
          %9852 = vset.pattern.permute.xlu0 0
          %9853 = vperm.xlu0 %9852, %v9668
          %v9854 = vpop.permute.xlu0 %9853
          %9855 = vset.pattern.permute.xlu0 0
          %9856 = vperm.xlu0 %9855, %v9669
          %v9857 = vpop.permute.xlu0 %9856
          %9858 = vset.pattern.permute.xlu0 0
          %9859 = vperm.xlu0 %9858, %v9670
          %v9860 = vpop.permute.xlu0 %9859
          %9861 = vset.pattern.permute.xlu0 0
          %9862 = vperm.xlu0 %9861, %v9671
          %v9863 = vpop.permute.xlu0 %9862
          %9864 = vset.pattern.permute.xlu0 0
          %9865 = vperm.xlu0 %9864, %v9672
          %v9866 = vpop.permute.xlu0 %9865
          %9867 = vset.pattern.permute.xlu0 0
          %9868 = vperm.xlu0 %9867, %v9673
          %v9869 = vpop.permute.xlu0 %9868
          %9870 = vset.pattern.permute.xlu0 0
          %9871 = vperm.xlu0 %9870, %v9674
          %v9872 = vpop.permute.xlu0 %9871
          %9873 = vset.pattern.permute.xlu0 0
          %9874 = vperm.xlu0 %9873, %v9675
          %v9875 = vpop.permute.xlu0 %9874
          %9876 = vset.pattern.permute.xlu0 0
          %9877 = vperm.xlu0 %9876, %v9676
          %v9878 = vpop.permute.xlu0 %9877
          %9879 = vset.pattern.permute.xlu0 0
          %9880 = vperm.xlu0 %9879, %v9677
          %v9881 = vpop.permute.xlu0 %9880
          %9882 = vset.pattern.permute.xlu0 0
          %9883 = vperm.xlu0 %9882, %v9678
          %v9884 = vpop.permute.xlu0 %9883
          %9885 = vset.pattern.permute.xlu0 0
          %9886 = vperm.xlu0 %9885, %v9679
          %v9887 = vpop.permute.xlu0 %9886
          %9888 = vset.pattern.permute.xlu0 0
          %9889 = vperm.xlu0 %9888, %v9680
          %v9890 = vpop.permute.xlu0 %9889
          %9891 = vset.pattern.permute.xlu0 0
          %9892 = vperm.xlu0 %9891, %v9681
          %v9893 = vpop.permute.xlu0 %9892
          %9894 = vset.pattern.permute.xlu0 0
          %9895 = vperm.xlu0 %9894, %v9682
          %v9896 = vpop.permute.xlu0 %9895
          %9897 = vset.pattern.permute.xlu0 0
          %9898 = vperm.xlu0 %9897, %v9683
          %v9899 = vpop.permute.xlu0 %9898
          %9900 = vset.pattern.permute.xlu0 0
          %9901 = vperm.xlu0 %9900, %v9684
          %v9902 = vpop.permute.xlu0 %9901
          %9903 = vset.pattern.permute.xlu0 0
          %9904 = vperm.xlu0 %9903, %v9685
          %v9905 = vpop.permute.xlu0 %9904
          %9906 = vset.pattern.permute.xlu0 0
          %9907 = vperm.xlu0 %9906, %v9686
          %v9908 = vpop.permute.xlu0 %9907
          %9909 = vset.pattern.permute.xlu0 0
          %9910 = vperm.xlu0 %9909, %v9687
          %v9911 = vpop.permute.xlu0 %9910
          %9912 = vset.pattern.permute.xlu0 0
          %9913 = vperm.xlu0 %9912, %v9688
          %v9914 = vpop.permute.xlu0 %9913
          %9915 = vset.pattern.permute.xlu0 0
          %9916 = vperm.xlu0 %9915, %v9689
          %v9917 = vpop.permute.xlu0 %9916
          %9918 = vset.pattern.permute.xlu0 0
          %9919 = vperm.xlu0 %9918, %v9690
          %v9920 = vpop.permute.xlu0 %9919
          %9921 = vset.pattern.permute.xlu0 0
          %9922 = vperm.xlu0 %9921, %v9691
          %v9923 = vpop.permute.xlu0 %9922
          %9924 = vset.pattern.permute.xlu0 0
          %9925 = vperm.xlu0 %9924, %v9692
          %v9926 = vpop.permute.xlu0 %9925
          %9927 = vset.pattern.permute.xlu0 0
          %9928 = vperm.xlu0 %9927, %v9693
          %v9929 = vpop.permute.xlu0 %9928
          %9930 = vset.pattern.permute.xlu0 0
          %9931 = vperm.xlu0 %9930, %v9694
          %v9932 = vpop.permute.xlu0 %9931
          %9933 = vset.pattern.permute.xlu0 0
          %9934 = vperm.xlu0 %9933, %v9695
          %v9935 = vpop.permute.xlu0 %9934
          %9936 = vset.pattern.permute.xlu0 0
          %9937 = vperm.xlu0 %9936, %v9696
          %v9938 = vpop.permute.xlu0 %9937
          %9939 = vset.pattern.permute.xlu0 0
          %9940 = vperm.xlu0 %9939, %v9697
          %v9941 = vpop.permute.xlu0 %9940
          %9942 = vset.pattern.permute.xlu0 0
          %9943 = vperm.xlu0 %9942, %v9698
          %v9944 = vpop.permute.xlu0 %9943
          %9945 = vset.pattern.permute.xlu0 0
          %9946 = vperm.xlu0 %9945, %v9699
          %v9947 = vpop.permute.xlu0 %9946
          %9948 = vset.pattern.permute.xlu0 0
          %9949 = vperm.xlu0 %9948, %v9700
          %v9950 = vpop.permute.xlu0 %9949
          %9951 = vset.pattern.permute.xlu0 0
          %9952 = vperm.xlu0 %9951, %v9701
          %v9953 = vpop.permute.xlu0 %9952
          %9954 = vset.pattern.permute.xlu0 0
          %9955 = vperm.xlu0 %9954, %v9702
          %v9956 = vpop.permute.xlu0 %9955
          %9957 = vset.pattern.permute.xlu0 0
          %9958 = vperm.xlu0 %9957, %v9703
          %v9959 = vpop.permute.xlu0 %9958
          %9960 = vset.pattern.permute.xlu0 0
          %9961 = vperm.xlu0 %9960, %v9704
          %v9962 = vpop.permute.xlu0 %9961
          %9963 = vset.pattern.permute.xlu0 0
          %9964 = vperm.xlu0 %9963, %v9705
          %v9965 = vpop.permute.xlu0 %9964
          %9966 = vset.pattern.permute.xlu0 0
          %9967 = vperm.xlu0 %9966, %v9706
          %v9968 = vpop.permute.xlu0 %9967
          %9969 = vset.pattern.permute.xlu0 0
          %9970 = vperm.xlu0 %9969, %v9707
          %v9971 = vpop.permute.xlu0 %9970
          %9972 = vset.pattern.permute.xlu0 0
          %9973 = vperm.xlu0 %9972, %v9708
          %v9974 = vpop.permute.xlu0 %9973
          %9975 = vset.pattern.permute.xlu0 0
          %9976 = vperm.xlu0 %9975, %v9709
          %v9977 = vpop.permute.xlu0 %9976
          %9978 = vset.pattern.permute.xlu0 0
          %9979 = vperm.xlu0 %9978, %v9710
          %v9980 = vpop.permute.xlu0 %9979
          %9981 = vset.pattern.permute.xlu0 0
          %9982 = vperm.xlu0 %9981, %v9711
          %v9983 = vpop.permute.xlu0 %9982
          %9984 = vset.pattern.permute.xlu0 0
          %9985 = vperm.xlu0 %9984, %v9712
          %v9986 = vpop.permute.xlu0 %9985
          %9987 = vset.pattern.permute.xlu0 0
          %9988 = vperm.xlu0 %9987, %v9713
          %v9989 = vpop.permute.xlu0 %9988
          %9990 = vset.pattern.permute.xlu0 0
          %9991 = vperm.xlu0 %9990, %v9714
          %v9992 = vpop.permute.xlu0 %9991
          %9993 = vset.pattern.permute.xlu0 0
          %9994 = vperm.xlu0 %9993, %v9715
          %v9995 = vpop.permute.xlu0 %9994
          %9996 = vset.pattern.permute.xlu0 0
          %9997 = vperm.xlu0 %9996, %v9716
          %v9998 = vpop.permute.xlu0 %9997
          %9999 = vset.pattern.permute.xlu0 0
          %10000 = vperm.xlu0 %9999, %v9717
          %v10001 = vpop.permute.xlu0 %10000
          %10002 = vset.pattern.permute.xlu0 0
          %10003 = vperm.xlu0 %10002, %v9718
          %v10004 = vpop.permute.xlu0 %10003
          %10005 = vset.pattern.permute.xlu0 0
          %10006 = vperm.xlu0 %10005, %v9719
          %v10007 = vpop.permute.xlu0 %10006
          %10008 = vset.pattern.permute.xlu0 0
          %10009 = vperm.xlu0 %10008, %v9720
          %v10010 = vpop.permute.xlu0 %10009
          %10011 = vset.pattern.permute.xlu0 0
          %10012 = vperm.xlu0 %10011, %v9721
          %v10013 = vpop.permute.xlu0 %10012
          %10014 = vset.pattern.permute.xlu0 0
          %10015 = vperm.xlu0 %10014, %v9722
          %v10016 = vpop.permute.xlu0 %10015
          %10017 = vset.pattern.permute.xlu0 0
          %10018 = vperm.xlu0 %10017, %v9723
          %v10019 = vpop.permute.xlu0 %10018
          %10020 = vset.pattern.permute.xlu0 0
          %10021 = vperm.xlu0 %10020, %v9724
          %v10022 = vpop.permute.xlu0 %10021
          %10023 = vset.pattern.permute.xlu0 0
          %10024 = vperm.xlu0 %10023, %v9725
          %v10025 = vpop.permute.xlu0 %10024
          %10026 = vset.pattern.permute.xlu0 0
          %10027 = vperm.xlu0 %10026, %v9726
          %v10028 = vpop.permute.xlu0 %10027
          %10029 = vset.pattern.permute.xlu0 0
          %10030 = vperm.xlu0 %10029, %v9727
          %v10031 = vpop.permute.xlu0 %10030
          %10032 = vset.pattern.permute.xlu0 0
          %10033 = vperm.xlu0 %10032, %v9728
          %v10034 = vpop.permute.xlu0 %10033
          %10035 = vset.pattern.permute.xlu0 0
          %10036 = vperm.xlu0 %10035, %v9729
          %v10037 = vpop.permute.xlu0 %10036
          %10038 = vset.pattern.permute.xlu0 0
          %10039 = vperm.xlu0 %10038, %v9730
          %v10040 = vpop.permute.xlu0 %10039
          %10041 = vset.pattern.permute.xlu0 0
          %10042 = vperm.xlu0 %10041, %v9731
          %v10043 = vpop.permute.xlu0 %10042
          %10044 = vset.pattern.permute.xlu0 0
          %10045 = vperm.xlu0 %10044, %v9732
          %v10046 = vpop.permute.xlu0 %10045
          %10047 = vset.pattern.permute.xlu0 0
          %10048 = vperm.xlu0 %10047, %v9733
          %v10049 = vpop.permute.xlu0 %10048
          %10050 = vset.pattern.permute.xlu0 0
          %10051 = vperm.xlu0 %10050, %v9734
          %v10052 = vpop.permute.xlu0 %10051
          %10053 = vset.pattern.permute.xlu0 0
          %10054 = vperm.xlu0 %10053, %v9735
          %v10055 = vpop.permute.xlu0 %10054
          %10056 = vset.pattern.permute.xlu0 0
          %10057 = vperm.xlu0 %10056, %v9736
          %v10058 = vpop.permute.xlu0 %10057
          %10059 = vset.pattern.permute.xlu0 0
          %10060 = vperm.xlu0 %10059, %v9737
          %v10061 = vpop.permute.xlu0 %10060
          %10062 = vset.pattern.permute.xlu0 0
          %10063 = vperm.xlu0 %10062, %v9738
          %v10064 = vpop.permute.xlu0 %10063
          %10065 = vset.pattern.permute.xlu0 0
          %10066 = vperm.xlu0 %10065, %v9739
          %v10067 = vpop.permute.xlu0 %10066
          %10068 = vset.pattern.permute.xlu0 0
          %10069 = vperm.xlu0 %10068, %v9740
          %v10070 = vpop.permute.xlu0 %10069
          %10071 = vset.pattern.permute.xlu0 0
          %10072 = vperm.xlu0 %10071, %v9741
          %v10073 = vpop.permute.xlu0 %10072
          %10074 = vset.pattern.permute.xlu0 0
          %10075 = vperm.xlu0 %10074, %v9742
          %v10076 = vpop.permute.xlu0 %10075
          %10077 = vset.pattern.permute.xlu0 0
          %10078 = vperm.xlu0 %10077, %v9743
          %v10079 = vpop.permute.xlu0 %10078
          %10080 = vset.pattern.permute.xlu0 0
          %10081 = vperm.xlu0 %10080, %v9744
          %v10082 = vpop.permute.xlu0 %10081
          %10083 = vset.pattern.permute.xlu0 0
          %10084 = vperm.xlu0 %10083, %v9745
          %v10085 = vpop.permute.xlu0 %10084
          %10086 = vset.pattern.permute.xlu0 0
          %10087 = vperm.xlu0 %10086, %v9746
          %v10088 = vpop.permute.xlu0 %10087
          %10089 = vset.pattern.permute.xlu0 0
          %10090 = vperm.xlu0 %10089, %v9747
          %v10091 = vpop.permute.xlu0 %10090
          %10092 = vset.pattern.permute.xlu0 0
          %10093 = vperm.xlu0 %10092, %v9748
          %v10094 = vpop.permute.xlu0 %10093
          %10095 = vset.pattern.permute.xlu0 0
          %10096 = vperm.xlu0 %10095, %v9749
          %v10097 = vpop.permute.xlu0 %10096
          %10098 = vset.pattern.permute.xlu0 0
          %10099 = vperm.xlu0 %10098, %v9750
          %v10100 = vpop.permute.xlu0 %10099
          %10101 = vset.pattern.permute.xlu0 0
          %10102 = vperm.xlu0 %10101, %v9751
          %v10103 = vpop.permute.xlu0 %10102
          %10104 = vset.pattern.permute.xlu0 0
          %10105 = vperm.xlu0 %10104, %v9752
          %v10106 = vpop.permute.xlu0 %10105
          %10107 = vset.pattern.permute.xlu0 0
          %10108 = vperm.xlu0 %10107, %v9753
          %v10109 = vpop.permute.xlu0 %10108
          %10110 = vset.pattern.permute.xlu0 0
          %10111 = vperm.xlu0 %10110, %v9754
          %v10112 = vpop.permute.xlu0 %10111
          %10113 = vset.pattern.permute.xlu0 0
          %10114 = vperm.xlu0 %10113, %v9755
          %v10115 = vpop.permute.xlu0 %10114
          %10116 = vset.pattern.permute.xlu0 0
          %10117 = vperm.xlu0 %10116, %v9756
          %v10118 = vpop.permute.xlu0 %10117
          %10119 = vset.pattern.permute.xlu0 0
          %10120 = vperm.xlu0 %10119, %v9757
          %v10121 = vpop.permute.xlu0 %10120
          %10122 = vset.pattern.permute.xlu0 0
          %10123 = vperm.xlu0 %10122, %v9758
          %v10124 = vpop.permute.xlu0 %10123
          %10125 = vset.pattern.permute.xlu0 0
          %10126 = vperm.xlu0 %10125, %v9759
          %v10127 = vpop.permute.xlu0 %10126
          %10128 = vset.pattern.permute.xlu0 0
          %10129 = vperm.xlu0 %10128, %v9760
          %v10130 = vpop.permute.xlu0 %10129
          %10131 = vset.pattern.permute.xlu0 0
          %10132 = vperm.xlu0 %10131, %v9761
          %v10133 = vpop.permute.xlu0 %10132
          %10134 = vset.pattern.permute.xlu0 0
          %10135 = vperm.xlu0 %10134, %v9762
          %v10136 = vpop.permute.xlu0 %10135
          %10137 = vset.pattern.permute.xlu0 0
          %10138 = vperm.xlu0 %10137, %v9763
          %v10139 = vpop.permute.xlu0 %10138
          %10140 = vset.pattern.permute.xlu0 0
          %10141 = vperm.xlu0 %10140, %v9764
          %v10142 = vpop.permute.xlu0 %10141
          %10143 = vset.pattern.permute.xlu0 0
          %10144 = vperm.xlu0 %10143, %v9765
          %v10145 = vpop.permute.xlu0 %10144
          %10146 = vset.pattern.permute.xlu0 0
          %10147 = vperm.xlu0 %10146, %v9766
          %v10148 = vpop.permute.xlu0 %10147
          %10149 = vset.pattern.permute.xlu0 0
          %10150 = vperm.xlu0 %10149, %v9767
          %v10151 = vpop.permute.xlu0 %10150
          %v10152 = vlaneseq
          %v10153 = vand.u32 %v10152, 127
          %v10154 = vlaneseq
          %v10155 = vshrl.u32 %v10154, 7
          %v10156 = vsub.s32 %v10153, %v10155
          %v10157 = vrot.slane %v9770, %v10156
          %v10158 = vadd.s32 %v10153, 4294967288
          %v10159 = vlaneseq
          %v10160 = vshrl.u32 %v10159, 7
          %v10161 = vsub.s32 %v10158, %v10160
          %v10162 = vrot.slane %v9773, %v10161
          %vm10163 = vcmask 130112
          %v10164 = vsel %vm10163, %v10162, %v10157
          %v10165 = vadd.s32 %v10153, 4294967280
          %v10166 = vlaneseq
          %v10167 = vshrl.u32 %v10166, 7
          %v10168 = vsub.s32 %v10165, %v10167
          %v10169 = vrot.slane %v9776, %v10168
          %vm10170 = vcmask 195712
          %v10171 = vsel %vm10170, %v10169, %v10164
          %v10172 = vadd.s32 %v10153, 4294967272
          %v10173 = vlaneseq
          %v10174 = vshrl.u32 %v10173, 7
          %v10175 = vsub.s32 %v10172, %v10174
          %v10176 = vrot.slane %v9779, %v10175
          %vm10177 = vcmask 261312
          %v10178 = vsel %vm10177, %v10176, %v10171
          %v10179 = vadd.s32 %v10153, 4294967264
          %v10180 = vlaneseq
          %v10181 = vshrl.u32 %v10180, 7
          %v10182 = vsub.s32 %v10179, %v10181
          %v10183 = vrot.slane %v9782, %v10182
          %vm10184 = vcmask 326912
          %v10185 = vsel %vm10184, %v10183, %v10178
          %v10186 = vadd.s32 %v10153, 4294967256
          %v10187 = vlaneseq
          %v10188 = vshrl.u32 %v10187, 7
          %v10189 = vsub.s32 %v10186, %v10188
          %v10190 = vrot.slane %v9785, %v10189
          %vm10191 = vcmask 392512
          %v10192 = vsel %vm10191, %v10190, %v10185
          %v10193 = vadd.s32 %v10153, 4294967248
          %v10194 = vlaneseq
          %v10195 = vshrl.u32 %v10194, 7
          %v10196 = vsub.s32 %v10193, %v10195
          %v10197 = vrot.slane %v9788, %v10196
          %vm10198 = vcmask 458112
          %v10199 = vsel %vm10198, %v10197, %v10192
          %v10200 = vadd.s32 %v10153, 4294967240
          %v10201 = vlaneseq
          %v10202 = vshrl.u32 %v10201, 7
          %v10203 = vsub.s32 %v10200, %v10202
          %v10204 = vrot.slane %v9791, %v10203
          %vm10205 = vcmask 523712
          %v10206 = vsel %vm10205, %v10204, %v10199
          %v10207 = vadd.s32 %v10153, 4294967232
          %v10208 = vlaneseq
          %v10209 = vshrl.u32 %v10208, 7
          %v10210 = vsub.s32 %v10207, %v10209
          %v10211 = vrot.slane %v9794, %v10210
          %vm10212 = vcmask 589312
          %v10213 = vsel %vm10212, %v10211, %v10206
          %v10214 = vadd.s32 %v10153, 4294967224
          %v10215 = vlaneseq
          %v10216 = vshrl.u32 %v10215, 7
          %v10217 = vsub.s32 %v10214, %v10216
          %v10218 = vrot.slane %v9797, %v10217
          %vm10219 = vcmask 654912
          %v10220 = vsel %vm10219, %v10218, %v10213
          %v10221 = vadd.s32 %v10153, 4294967216
          %v10222 = vlaneseq
          %v10223 = vshrl.u32 %v10222, 7
          %v10224 = vsub.s32 %v10221, %v10223
          %v10225 = vrot.slane %v9800, %v10224
          %vm10226 = vcmask 720512
          %v10227 = vsel %vm10226, %v10225, %v10220
          %v10228 = vadd.s32 %v10153, 4294967208
          %v10229 = vlaneseq
          %v10230 = vshrl.u32 %v10229, 7
          %v10231 = vsub.s32 %v10228, %v10230
          %v10232 = vrot.slane %v9803, %v10231
          %vm10233 = vcmask 786112
          %v10234 = vsel %vm10233, %v10232, %v10227
          %v10235 = vadd.s32 %v10153, 4294967200
          %v10236 = vlaneseq
          %v10237 = vshrl.u32 %v10236, 7
          %v10238 = vsub.s32 %v10235, %v10237
          %v10239 = vrot.slane %v9806, %v10238
          %vm10240 = vcmask 851712
          %v10241 = vsel %vm10240, %v10239, %v10234
          %v10242 = vadd.s32 %v10153, 4294967192
          %v10243 = vlaneseq
          %v10244 = vshrl.u32 %v10243, 7
          %v10245 = vsub.s32 %v10242, %v10244
          %v10246 = vrot.slane %v9809, %v10245
          %vm10247 = vcmask 917312
          %v10248 = vsel %vm10247, %v10246, %v10241
          %v10249 = vadd.s32 %v10153, 4294967184
          %v10250 = vlaneseq
          %v10251 = vshrl.u32 %v10250, 7
          %v10252 = vsub.s32 %v10249, %v10251
          %v10253 = vrot.slane %v9812, %v10252
          %vm10254 = vcmask 982912
          %v10255 = vsel %vm10254, %v10253, %v10248
          %v10256 = vadd.s32 %v10153, 4294967176
          %v10257 = vlaneseq
          %v10258 = vshrl.u32 %v10257, 7
          %v10259 = vsub.s32 %v10256, %v10258
          %v10260 = vrot.slane %v9815, %v10259
          %vm10261 = vcmask 1048512
          %v10262 = vsel %vm10261, %v10260, %v10255
          %v10263 = vlaneseq
          %v10264 = vshrl.u32 %v10263, 7
          %v10265 = vsub.s32 %v10153, %v10264
          %v10266 = vrot.slane %v9818, %v10265
          %v10267 = vlaneseq
          %v10268 = vshrl.u32 %v10267, 7
          %v10269 = vsub.s32 %v10158, %v10268
          %v10270 = vrot.slane %v9821, %v10269
          %v10271 = vsel %vm10163, %v10270, %v10266
          %v10272 = vlaneseq
          %v10273 = vshrl.u32 %v10272, 7
          %v10274 = vsub.s32 %v10165, %v10273
          %v10275 = vrot.slane %v9824, %v10274
          %v10276 = vsel %vm10170, %v10275, %v10271
          %v10277 = vlaneseq
          %v10278 = vshrl.u32 %v10277, 7
          %v10279 = vsub.s32 %v10172, %v10278
          %v10280 = vrot.slane %v9827, %v10279
          %v10281 = vsel %vm10177, %v10280, %v10276
          %v10282 = vlaneseq
          %v10283 = vshrl.u32 %v10282, 7
          %v10284 = vsub.s32 %v10179, %v10283
          %v10285 = vrot.slane %v9830, %v10284
          %v10286 = vsel %vm10184, %v10285, %v10281
          %v10287 = vlaneseq
          %v10288 = vshrl.u32 %v10287, 7
          %v10289 = vsub.s32 %v10186, %v10288
          %v10290 = vrot.slane %v9833, %v10289
          %v10291 = vsel %vm10191, %v10290, %v10286
          %v10292 = vlaneseq
          %v10293 = vshrl.u32 %v10292, 7
          %v10294 = vsub.s32 %v10193, %v10293
          %v10295 = vrot.slane %v9836, %v10294
          %v10296 = vsel %vm10198, %v10295, %v10291
          %v10297 = vlaneseq
          %v10298 = vshrl.u32 %v10297, 7
          %v10299 = vsub.s32 %v10200, %v10298
          %v10300 = vrot.slane %v9839, %v10299
          %v10301 = vsel %vm10205, %v10300, %v10296
          %v10302 = vlaneseq
          %v10303 = vshrl.u32 %v10302, 7
          %v10304 = vsub.s32 %v10207, %v10303
          %v10305 = vrot.slane %v9842, %v10304
          %v10306 = vsel %vm10212, %v10305, %v10301
          %v10307 = vlaneseq
          %v10308 = vshrl.u32 %v10307, 7
          %v10309 = vsub.s32 %v10214, %v10308
          %v10310 = vrot.slane %v9845, %v10309
          %v10311 = vsel %vm10219, %v10310, %v10306
          %v10312 = vlaneseq
          %v10313 = vshrl.u32 %v10312, 7
          %v10314 = vsub.s32 %v10221, %v10313
          %v10315 = vrot.slane %v9848, %v10314
          %v10316 = vsel %vm10226, %v10315, %v10311
          %v10317 = vlaneseq
          %v10318 = vshrl.u32 %v10317, 7
          %v10319 = vsub.s32 %v10228, %v10318
          %v10320 = vrot.slane %v9851, %v10319
          %v10321 = vsel %vm10233, %v10320, %v10316
          %v10322 = vlaneseq
          %v10323 = vshrl.u32 %v10322, 7
          %v10324 = vsub.s32 %v10235, %v10323
          %v10325 = vrot.slane %v9854, %v10324
          %v10326 = vsel %vm10240, %v10325, %v10321
          %v10327 = vlaneseq
          %v10328 = vshrl.u32 %v10327, 7
          %v10329 = vsub.s32 %v10242, %v10328
          %v10330 = vrot.slane %v9857, %v10329
          %v10331 = vsel %vm10247, %v10330, %v10326
          %v10332 = vlaneseq
          %v10333 = vshrl.u32 %v10332, 7
          %v10334 = vsub.s32 %v10249, %v10333
          %v10335 = vrot.slane %v9860, %v10334
          %v10336 = vsel %vm10254, %v10335, %v10331
          %v10337 = vlaneseq
          %v10338 = vshrl.u32 %v10337, 7
          %v10339 = vsub.s32 %v10256, %v10338
          %v10340 = vrot.slane %v9863, %v10339
          %v10341 = vsel %vm10261, %v10340, %v10336
          %v10342 = vlaneseq
          %v10343 = vshrl.u32 %v10342, 7
          %v10344 = vsub.s32 %v10153, %v10343
          %v10345 = vrot.slane %v9866, %v10344
          %v10346 = vlaneseq
          %v10347 = vshrl.u32 %v10346, 7
          %v10348 = vsub.s32 %v10158, %v10347
          %v10349 = vrot.slane %v9869, %v10348
          %v10350 = vsel %vm10163, %v10349, %v10345
          %v10351 = vlaneseq
          %v10352 = vshrl.u32 %v10351, 7
          %v10353 = vsub.s32 %v10165, %v10352
          %v10354 = vrot.slane %v9872, %v10353
          %v10355 = vsel %vm10170, %v10354, %v10350
          %v10356 = vlaneseq
          %v10357 = vshrl.u32 %v10356, 7
          %v10358 = vsub.s32 %v10172, %v10357
          %v10359 = vrot.slane %v9875, %v10358
          %v10360 = vsel %vm10177, %v10359, %v10355
          %v10361 = vlaneseq
          %v10362 = vshrl.u32 %v10361, 7
          %v10363 = vsub.s32 %v10179, %v10362
          %v10364 = vrot.slane %v9878, %v10363
          %v10365 = vsel %vm10184, %v10364, %v10360
          %v10366 = vlaneseq
          %v10367 = vshrl.u32 %v10366, 7
          %v10368 = vsub.s32 %v10186, %v10367
          %v10369 = vrot.slane %v9881, %v10368
          %v10370 = vsel %vm10191, %v10369, %v10365
          %v10371 = vlaneseq
          %v10372 = vshrl.u32 %v10371, 7
          %v10373 = vsub.s32 %v10193, %v10372
          %v10374 = vrot.slane %v9884, %v10373
          %v10375 = vsel %vm10198, %v10374, %v10370
          %v10376 = vlaneseq
          %v10377 = vshrl.u32 %v10376, 7
          %v10378 = vsub.s32 %v10200, %v10377
          %v10379 = vrot.slane %v9887, %v10378
          %v10380 = vsel %vm10205, %v10379, %v10375
          %v10381 = vlaneseq
          %v10382 = vshrl.u32 %v10381, 7
          %v10383 = vsub.s32 %v10207, %v10382
          %v10384 = vrot.slane %v9890, %v10383
          %v10385 = vsel %vm10212, %v10384, %v10380
          %v10386 = vlaneseq
          %v10387 = vshrl.u32 %v10386, 7
          %v10388 = vsub.s32 %v10214, %v10387
          %v10389 = vrot.slane %v9893, %v10388
          %v10390 = vsel %vm10219, %v10389, %v10385
          %v10391 = vlaneseq
          %v10392 = vshrl.u32 %v10391, 7
          %v10393 = vsub.s32 %v10221, %v10392
          %v10394 = vrot.slane %v9896, %v10393
          %v10395 = vsel %vm10226, %v10394, %v10390
          %v10396 = vlaneseq
          %v10397 = vshrl.u32 %v10396, 7
          %v10398 = vsub.s32 %v10228, %v10397
          %v10399 = vrot.slane %v9899, %v10398
          %v10400 = vsel %vm10233, %v10399, %v10395
          %v10401 = vlaneseq
          %v10402 = vshrl.u32 %v10401, 7
          %v10403 = vsub.s32 %v10235, %v10402
          %v10404 = vrot.slane %v9902, %v10403
          %v10405 = vsel %vm10240, %v10404, %v10400
          %v10406 = vlaneseq
          %v10407 = vshrl.u32 %v10406, 7
          %v10408 = vsub.s32 %v10242, %v10407
          %v10409 = vrot.slane %v9905, %v10408
          %v10410 = vsel %vm10247, %v10409, %v10405
          %v10411 = vlaneseq
          %v10412 = vshrl.u32 %v10411, 7
          %v10413 = vsub.s32 %v10249, %v10412
          %v10414 = vrot.slane %v9908, %v10413
          %v10415 = vsel %vm10254, %v10414, %v10410
          %v10416 = vlaneseq
          %v10417 = vshrl.u32 %v10416, 7
          %v10418 = vsub.s32 %v10256, %v10417
          %v10419 = vrot.slane %v9911, %v10418
          %v10420 = vsel %vm10261, %v10419, %v10415
          %v10421 = vlaneseq
          %v10422 = vshrl.u32 %v10421, 7
          %v10423 = vsub.s32 %v10153, %v10422
          %v10424 = vrot.slane %v9914, %v10423
          %v10425 = vlaneseq
          %v10426 = vshrl.u32 %v10425, 7
          %v10427 = vsub.s32 %v10158, %v10426
          %v10428 = vrot.slane %v9917, %v10427
          %v10429 = vsel %vm10163, %v10428, %v10424
          %v10430 = vlaneseq
          %v10431 = vshrl.u32 %v10430, 7
          %v10432 = vsub.s32 %v10165, %v10431
          %v10433 = vrot.slane %v9920, %v10432
          %v10434 = vsel %vm10170, %v10433, %v10429
          %v10435 = vlaneseq
          %v10436 = vshrl.u32 %v10435, 7
          %v10437 = vsub.s32 %v10172, %v10436
          %v10438 = vrot.slane %v9923, %v10437
          %v10439 = vsel %vm10177, %v10438, %v10434
          %v10440 = vlaneseq
          %v10441 = vshrl.u32 %v10440, 7
          %v10442 = vsub.s32 %v10179, %v10441
          %v10443 = vrot.slane %v9926, %v10442
          %v10444 = vsel %vm10184, %v10443, %v10439
          %v10445 = vlaneseq
          %v10446 = vshrl.u32 %v10445, 7
          %v10447 = vsub.s32 %v10186, %v10446
          %v10448 = vrot.slane %v9929, %v10447
          %v10449 = vsel %vm10191, %v10448, %v10444
          %v10450 = vlaneseq
          %v10451 = vshrl.u32 %v10450, 7
          %v10452 = vsub.s32 %v10193, %v10451
          %v10453 = vrot.slane %v9932, %v10452
          %v10454 = vsel %vm10198, %v10453, %v10449
          %v10455 = vlaneseq
          %v10456 = vshrl.u32 %v10455, 7
          %v10457 = vsub.s32 %v10200, %v10456
          %v10458 = vrot.slane %v9935, %v10457
          %v10459 = vsel %vm10205, %v10458, %v10454
          %v10460 = vlaneseq
          %v10461 = vshrl.u32 %v10460, 7
          %v10462 = vsub.s32 %v10207, %v10461
          %v10463 = vrot.slane %v9938, %v10462
          %v10464 = vsel %vm10212, %v10463, %v10459
          %v10465 = vlaneseq
          %v10466 = vshrl.u32 %v10465, 7
          %v10467 = vsub.s32 %v10214, %v10466
          %v10468 = vrot.slane %v9941, %v10467
          %v10469 = vsel %vm10219, %v10468, %v10464
          %v10470 = vlaneseq
          %v10471 = vshrl.u32 %v10470, 7
          %v10472 = vsub.s32 %v10221, %v10471
          %v10473 = vrot.slane %v9944, %v10472
          %v10474 = vsel %vm10226, %v10473, %v10469
          %v10475 = vlaneseq
          %v10476 = vshrl.u32 %v10475, 7
          %v10477 = vsub.s32 %v10228, %v10476
          %v10478 = vrot.slane %v9947, %v10477
          %v10479 = vsel %vm10233, %v10478, %v10474
          %v10480 = vlaneseq
          %v10481 = vshrl.u32 %v10480, 7
          %v10482 = vsub.s32 %v10235, %v10481
          %v10483 = vrot.slane %v9950, %v10482
          %v10484 = vsel %vm10240, %v10483, %v10479
          %v10485 = vlaneseq
          %v10486 = vshrl.u32 %v10485, 7
          %v10487 = vsub.s32 %v10242, %v10486
          %v10488 = vrot.slane %v9953, %v10487
          %v10489 = vsel %vm10247, %v10488, %v10484
          %v10490 = vlaneseq
          %v10491 = vshrl.u32 %v10490, 7
          %v10492 = vsub.s32 %v10249, %v10491
          %v10493 = vrot.slane %v9956, %v10492
          %v10494 = vsel %vm10254, %v10493, %v10489
          %v10495 = vlaneseq
          %v10496 = vshrl.u32 %v10495, 7
          %v10497 = vsub.s32 %v10256, %v10496
          %v10498 = vrot.slane %v9959, %v10497
          %v10499 = vsel %vm10261, %v10498, %v10494
          %v10500 = vlaneseq
          %v10501 = vshrl.u32 %v10500, 7
          %v10502 = vsub.s32 %v10153, %v10501
          %v10503 = vrot.slane %v9962, %v10502
          %v10504 = vlaneseq
          %v10505 = vshrl.u32 %v10504, 7
          %v10506 = vsub.s32 %v10158, %v10505
          %v10507 = vrot.slane %v9965, %v10506
          %v10508 = vsel %vm10163, %v10507, %v10503
          %v10509 = vlaneseq
          %v10510 = vshrl.u32 %v10509, 7
          %v10511 = vsub.s32 %v10165, %v10510
          %v10512 = vrot.slane %v9968, %v10511
          %v10513 = vsel %vm10170, %v10512, %v10508
          %v10514 = vlaneseq
          %v10515 = vshrl.u32 %v10514, 7
          %v10516 = vsub.s32 %v10172, %v10515
          %v10517 = vrot.slane %v9971, %v10516
          %v10518 = vsel %vm10177, %v10517, %v10513
          %v10519 = vlaneseq
          %v10520 = vshrl.u32 %v10519, 7
          %v10521 = vsub.s32 %v10179, %v10520
          %v10522 = vrot.slane %v9974, %v10521
          %v10523 = vsel %vm10184, %v10522, %v10518
          %v10524 = vlaneseq
          %v10525 = vshrl.u32 %v10524, 7
          %v10526 = vsub.s32 %v10186, %v10525
          %v10527 = vrot.slane %v9977, %v10526
          %v10528 = vsel %vm10191, %v10527, %v10523
          %v10529 = vlaneseq
          %v10530 = vshrl.u32 %v10529, 7
          %v10531 = vsub.s32 %v10193, %v10530
          %v10532 = vrot.slane %v9980, %v10531
          %v10533 = vsel %vm10198, %v10532, %v10528
          %v10534 = vlaneseq
          %v10535 = vshrl.u32 %v10534, 7
          %v10536 = vsub.s32 %v10200, %v10535
          %v10537 = vrot.slane %v9983, %v10536
          %v10538 = vsel %vm10205, %v10537, %v10533
          %v10539 = vlaneseq
          %v10540 = vshrl.u32 %v10539, 7
          %v10541 = vsub.s32 %v10207, %v10540
          %v10542 = vrot.slane %v9986, %v10541
          %v10543 = vsel %vm10212, %v10542, %v10538
          %v10544 = vlaneseq
          %v10545 = vshrl.u32 %v10544, 7
          %v10546 = vsub.s32 %v10214, %v10545
          %v10547 = vrot.slane %v9989, %v10546
          %v10548 = vsel %vm10219, %v10547, %v10543
          %v10549 = vlaneseq
          %v10550 = vshrl.u32 %v10549, 7
          %v10551 = vsub.s32 %v10221, %v10550
          %v10552 = vrot.slane %v9992, %v10551
          %v10553 = vsel %vm10226, %v10552, %v10548
          %v10554 = vlaneseq
          %v10555 = vshrl.u32 %v10554, 7
          %v10556 = vsub.s32 %v10228, %v10555
          %v10557 = vrot.slane %v9995, %v10556
          %v10558 = vsel %vm10233, %v10557, %v10553
          %v10559 = vlaneseq
          %v10560 = vshrl.u32 %v10559, 7
          %v10561 = vsub.s32 %v10235, %v10560
          %v10562 = vrot.slane %v9998, %v10561
          %v10563 = vsel %vm10240, %v10562, %v10558
          %v10564 = vlaneseq
          %v10565 = vshrl.u32 %v10564, 7
          %v10566 = vsub.s32 %v10242, %v10565
          %v10567 = vrot.slane %v10001, %v10566
          %v10568 = vsel %vm10247, %v10567, %v10563
          %v10569 = vlaneseq
          %v10570 = vshrl.u32 %v10569, 7
          %v10571 = vsub.s32 %v10249, %v10570
          %v10572 = vrot.slane %v10004, %v10571
          %v10573 = vsel %vm10254, %v10572, %v10568
          %v10574 = vlaneseq
          %v10575 = vshrl.u32 %v10574, 7
          %v10576 = vsub.s32 %v10256, %v10575
          %v10577 = vrot.slane %v10007, %v10576
          %v10578 = vsel %vm10261, %v10577, %v10573
          %v10579 = vlaneseq
          %v10580 = vshrl.u32 %v10579, 7
          %v10581 = vsub.s32 %v10153, %v10580
          %v10582 = vrot.slane %v10010, %v10581
          %v10583 = vlaneseq
          %v10584 = vshrl.u32 %v10583, 7
          %v10585 = vsub.s32 %v10158, %v10584
          %v10586 = vrot.slane %v10013, %v10585
          %v10587 = vsel %vm10163, %v10586, %v10582
          %v10588 = vlaneseq
          %v10589 = vshrl.u32 %v10588, 7
          %v10590 = vsub.s32 %v10165, %v10589
          %v10591 = vrot.slane %v10016, %v10590
          %v10592 = vsel %vm10170, %v10591, %v10587
          %v10593 = vlaneseq
          %v10594 = vshrl.u32 %v10593, 7
          %v10595 = vsub.s32 %v10172, %v10594
          %v10596 = vrot.slane %v10019, %v10595
          %v10597 = vsel %vm10177, %v10596, %v10592
          %v10598 = vlaneseq
          %v10599 = vshrl.u32 %v10598, 7
          %v10600 = vsub.s32 %v10179, %v10599
          %v10601 = vrot.slane %v10022, %v10600
          %v10602 = vsel %vm10184, %v10601, %v10597
          %v10603 = vlaneseq
          %v10604 = vshrl.u32 %v10603, 7
          %v10605 = vsub.s32 %v10186, %v10604
          %v10606 = vrot.slane %v10025, %v10605
          %v10607 = vsel %vm10191, %v10606, %v10602
          %v10608 = vlaneseq
          %v10609 = vshrl.u32 %v10608, 7
          %v10610 = vsub.s32 %v10193, %v10609
          %v10611 = vrot.slane %v10028, %v10610
          %v10612 = vsel %vm10198, %v10611, %v10607
          %v10613 = vlaneseq
          %v10614 = vshrl.u32 %v10613, 7
          %v10615 = vsub.s32 %v10200, %v10614
          %v10616 = vrot.slane %v10031, %v10615
          %v10617 = vsel %vm10205, %v10616, %v10612
          %v10618 = vlaneseq
          %v10619 = vshrl.u32 %v10618, 7
          %v10620 = vsub.s32 %v10207, %v10619
          %v10621 = vrot.slane %v10034, %v10620
          %v10622 = vsel %vm10212, %v10621, %v10617
          %v10623 = vlaneseq
          %v10624 = vshrl.u32 %v10623, 7
          %v10625 = vsub.s32 %v10214, %v10624
          %v10626 = vrot.slane %v10037, %v10625
          %v10627 = vsel %vm10219, %v10626, %v10622
          %v10628 = vlaneseq
          %v10629 = vshrl.u32 %v10628, 7
          %v10630 = vsub.s32 %v10221, %v10629
          %v10631 = vrot.slane %v10040, %v10630
          %v10632 = vsel %vm10226, %v10631, %v10627
          %v10633 = vlaneseq
          %v10634 = vshrl.u32 %v10633, 7
          %v10635 = vsub.s32 %v10228, %v10634
          %v10636 = vrot.slane %v10043, %v10635
          %v10637 = vsel %vm10233, %v10636, %v10632
          %v10638 = vlaneseq
          %v10639 = vshrl.u32 %v10638, 7
          %v10640 = vsub.s32 %v10235, %v10639
          %v10641 = vrot.slane %v10046, %v10640
          %v10642 = vsel %vm10240, %v10641, %v10637
          %v10643 = vlaneseq
          %v10644 = vshrl.u32 %v10643, 7
          %v10645 = vsub.s32 %v10242, %v10644
          %v10646 = vrot.slane %v10049, %v10645
          %v10647 = vsel %vm10247, %v10646, %v10642
          %v10648 = vlaneseq
          %v10649 = vshrl.u32 %v10648, 7
          %v10650 = vsub.s32 %v10249, %v10649
          %v10651 = vrot.slane %v10052, %v10650
          %v10652 = vsel %vm10254, %v10651, %v10647
          %v10653 = vlaneseq
          %v10654 = vshrl.u32 %v10653, 7
          %v10655 = vsub.s32 %v10256, %v10654
          %v10656 = vrot.slane %v10055, %v10655
          %v10657 = vsel %vm10261, %v10656, %v10652
          %v10658 = vlaneseq
          %v10659 = vshrl.u32 %v10658, 7
          %v10660 = vsub.s32 %v10153, %v10659
          %v10661 = vrot.slane %v10058, %v10660
          %v10662 = vlaneseq
          %v10663 = vshrl.u32 %v10662, 7
          %v10664 = vsub.s32 %v10158, %v10663
          %v10665 = vrot.slane %v10061, %v10664
          %v10666 = vsel %vm10163, %v10665, %v10661
          %v10667 = vlaneseq
          %v10668 = vshrl.u32 %v10667, 7
          %v10669 = vsub.s32 %v10165, %v10668
          %v10670 = vrot.slane %v10064, %v10669
          %v10671 = vsel %vm10170, %v10670, %v10666
          %v10672 = vlaneseq
          %v10673 = vshrl.u32 %v10672, 7
          %v10674 = vsub.s32 %v10172, %v10673
          %v10675 = vrot.slane %v10067, %v10674
          %v10676 = vsel %vm10177, %v10675, %v10671
          %v10677 = vlaneseq
          %v10678 = vshrl.u32 %v10677, 7
          %v10679 = vsub.s32 %v10179, %v10678
          %v10680 = vrot.slane %v10070, %v10679
          %v10681 = vsel %vm10184, %v10680, %v10676
          %v10682 = vlaneseq
          %v10683 = vshrl.u32 %v10682, 7
          %v10684 = vsub.s32 %v10186, %v10683
          %v10685 = vrot.slane %v10073, %v10684
          %v10686 = vsel %vm10191, %v10685, %v10681
          %v10687 = vlaneseq
          %v10688 = vshrl.u32 %v10687, 7
          %v10689 = vsub.s32 %v10193, %v10688
          %v10690 = vrot.slane %v10076, %v10689
          %v10691 = vsel %vm10198, %v10690, %v10686
          %v10692 = vlaneseq
          %v10693 = vshrl.u32 %v10692, 7
          %v10694 = vsub.s32 %v10200, %v10693
          %v10695 = vrot.slane %v10079, %v10694
          %v10696 = vsel %vm10205, %v10695, %v10691
          %v10697 = vlaneseq
          %v10698 = vshrl.u32 %v10697, 7
          %v10699 = vsub.s32 %v10207, %v10698
          %v10700 = vrot.slane %v10082, %v10699
          %v10701 = vsel %vm10212, %v10700, %v10696
          %v10702 = vlaneseq
          %v10703 = vshrl.u32 %v10702, 7
          %v10704 = vsub.s32 %v10214, %v10703
          %v10705 = vrot.slane %v10085, %v10704
          %v10706 = vsel %vm10219, %v10705, %v10701
          %v10707 = vlaneseq
          %v10708 = vshrl.u32 %v10707, 7
          %v10709 = vsub.s32 %v10221, %v10708
          %v10710 = vrot.slane %v10088, %v10709
          %v10711 = vsel %vm10226, %v10710, %v10706
          %v10712 = vlaneseq
          %v10713 = vshrl.u32 %v10712, 7
          %v10714 = vsub.s32 %v10228, %v10713
          %v10715 = vrot.slane %v10091, %v10714
          %v10716 = vsel %vm10233, %v10715, %v10711
          %v10717 = vlaneseq
          %v10718 = vshrl.u32 %v10717, 7
          %v10719 = vsub.s32 %v10235, %v10718
          %v10720 = vrot.slane %v10094, %v10719
          %v10721 = vsel %vm10240, %v10720, %v10716
          %v10722 = vlaneseq
          %v10723 = vshrl.u32 %v10722, 7
          %v10724 = vsub.s32 %v10242, %v10723
          %v10725 = vrot.slane %v10097, %v10724
          %v10726 = vsel %vm10247, %v10725, %v10721
          %v10727 = vlaneseq
          %v10728 = vshrl.u32 %v10727, 7
          %v10729 = vsub.s32 %v10249, %v10728
          %v10730 = vrot.slane %v10100, %v10729
          %v10731 = vsel %vm10254, %v10730, %v10726
          %v10732 = vlaneseq
          %v10733 = vshrl.u32 %v10732, 7
          %v10734 = vsub.s32 %v10256, %v10733
          %v10735 = vrot.slane %v10103, %v10734
          %v10736 = vsel %vm10261, %v10735, %v10731
          %v10737 = vlaneseq
          %v10738 = vshrl.u32 %v10737, 7
          %v10739 = vsub.s32 %v10153, %v10738
          %v10740 = vrot.slane %v10106, %v10739
          %v10741 = vlaneseq
          %v10742 = vshrl.u32 %v10741, 7
          %v10743 = vsub.s32 %v10158, %v10742
          %v10744 = vrot.slane %v10109, %v10743
          %v10745 = vsel %vm10163, %v10744, %v10740
          %v10746 = vlaneseq
          %v10747 = vshrl.u32 %v10746, 7
          %v10748 = vsub.s32 %v10165, %v10747
          %v10749 = vrot.slane %v10112, %v10748
          %v10750 = vsel %vm10170, %v10749, %v10745
          %v10751 = vlaneseq
          %v10752 = vshrl.u32 %v10751, 7
          %v10753 = vsub.s32 %v10172, %v10752
          %v10754 = vrot.slane %v10115, %v10753
          %v10755 = vsel %vm10177, %v10754, %v10750
          %v10756 = vlaneseq
          %v10757 = vshrl.u32 %v10756, 7
          %v10758 = vsub.s32 %v10179, %v10757
          %v10759 = vrot.slane %v10118, %v10758
          %v10760 = vsel %vm10184, %v10759, %v10755
          %v10761 = vlaneseq
          %v10762 = vshrl.u32 %v10761, 7
          %v10763 = vsub.s32 %v10186, %v10762
          %v10764 = vrot.slane %v10121, %v10763
          %v10765 = vsel %vm10191, %v10764, %v10760
          %v10766 = vlaneseq
          %v10767 = vshrl.u32 %v10766, 7
          %v10768 = vsub.s32 %v10193, %v10767
          %v10769 = vrot.slane %v10124, %v10768
          %v10770 = vsel %vm10198, %v10769, %v10765
          %v10771 = vlaneseq
          %v10772 = vshrl.u32 %v10771, 7
          %v10773 = vsub.s32 %v10200, %v10772
          %v10774 = vrot.slane %v10127, %v10773
          %v10775 = vsel %vm10205, %v10774, %v10770
          %v10776 = vlaneseq
          %v10777 = vshrl.u32 %v10776, 7
          %v10778 = vsub.s32 %v10207, %v10777
          %v10779 = vrot.slane %v10130, %v10778
          %v10780 = vsel %vm10212, %v10779, %v10775
          %v10781 = vlaneseq
          %v10782 = vshrl.u32 %v10781, 7
          %v10783 = vsub.s32 %v10214, %v10782
          %v10784 = vrot.slane %v10133, %v10783
          %v10785 = vsel %vm10219, %v10784, %v10780
          %v10786 = vlaneseq
          %v10787 = vshrl.u32 %v10786, 7
          %v10788 = vsub.s32 %v10221, %v10787
          %v10789 = vrot.slane %v10136, %v10788
          %v10790 = vsel %vm10226, %v10789, %v10785
          %v10791 = vlaneseq
          %v10792 = vshrl.u32 %v10791, 7
          %v10793 = vsub.s32 %v10228, %v10792
          %v10794 = vrot.slane %v10139, %v10793
          %v10795 = vsel %vm10233, %v10794, %v10790
          %v10796 = vlaneseq
          %v10797 = vshrl.u32 %v10796, 7
          %v10798 = vsub.s32 %v10235, %v10797
          %v10799 = vrot.slane %v10142, %v10798
          %v10800 = vsel %vm10240, %v10799, %v10795
          %v10801 = vlaneseq
          %v10802 = vshrl.u32 %v10801, 7
          %v10803 = vsub.s32 %v10242, %v10802
          %v10804 = vrot.slane %v10145, %v10803
          %v10805 = vsel %vm10247, %v10804, %v10800
          %v10806 = vlaneseq
          %v10807 = vshrl.u32 %v10806, 7
          %v10808 = vsub.s32 %v10249, %v10807
          %v10809 = vrot.slane %v10148, %v10808
          %v10810 = vsel %vm10254, %v10809, %v10805
          %v10811 = vlaneseq
          %v10812 = vshrl.u32 %v10811, 7
          %v10813 = vsub.s32 %v10256, %v10812
          %v10814 = vrot.slane %v10151, %v10813
          %v10815 = vsel %vm10261, %v10814, %v10810
          %vm10816 = vcmask 1041409
          %v10817 = vsel %vm10816, %v10420, %v10262
          %vm10818 = vcmask 1042434
          %v10819 = vsel %vm10818, %v10578, %v10817
          %vm10820 = vcmask 1043459
          %v10821 = vsel %vm10820, %v10736, %v10819
          %v10822 = vsel %vm10816, %v10499, %v10341
          %v10823 = vsel %vm10818, %v10657, %v10822
          %v10824 = vsel %vm10820, %v10815, %v10823
          %v10825 = vcombine.low %v10821, %v10824
          %v10827 = vmin.f32 %v7719, %v10825
          %10828 = vst [vmem:[#allocation2] sm:$0xff] %v10827
        $region36: #{tpu_custom_call.1} parent=27 // pred_fallthru
          _
        %p10829 = scmp.eq.s32.totalorder %s22, 0
        // Predicated region
        $region37: #{tpu_custom_call.1} parent=27 // pred_check
          %p10830 = pneg %p10829
        $region38: #{tpu_custom_call.1} parent=27 // pred_check_branch
          %10832 = sbr.rel (%p10830) target = $region40
        $region39: #{tpu_custom_call.1} parent=27 // pred_region
          %v10845 = vcombine.low %v4195, %v4232
          %v10846 = vcombine.low %v4306, %v4343
          %v10847 = vcombine.low %v4417, %v4454
          %v10848 = vcombine.low %v4528, %v4565
          %v10849 = vrot.slane %v10846, 7
          %vm10850 = vcmask 1041409
          %v10851 = vsel %vm10850, %v10849, %v10845
          %vm10852 = vcmask 1045509
          %v10853 = vsel %vm10852, %v10849, %v10851
          %v10854 = vrot.slane %v10847, 6
          %vm10855 = vcmask 1042434
          %v10856 = vsel %vm10855, %v10854, %v10853
          %vm10857 = vcmask 1046534
          %v10858 = vsel %vm10857, %v10854, %v10856
          %v10859 = vrot.slane %v10848, 5
          %vm10860 = vcmask 1043459
          %v10861 = vsel %vm10860, %v10859, %v10858
          %vm10862 = vcmask 1047559
          %v10863 = vsel %vm10862, %v10859, %v10861
          %v10864 = vrot.slane %v4380, 7
          %v10865 = vsel %vm10850, %v10864, %v4269
          %v10866 = vsel %vm10852, %v10864, %v10865
          %v10867 = vrot.slane %v4491, 6
          %v10868 = vsel %vm10855, %v10867, %v10866
          %v10869 = vsel %vm10857, %v10867, %v10868
          %v10870 = vrot.slane %v4602, 5
          %v10871 = vsel %vm10860, %v10870, %v10869
          %v10872 = vsel %vm10862, %v10870, %v10871
          %s10875 = smul.u32 %s23, 3
          %s10876 = smul.addr %s10875, 4
          %s10877 = scalar_lea.vmem [#allocation4], %s10876
          %10878 = vst [vmem:[%s10877] sm:$0xff] %v10863
          %10879 = vst [vmem:[%s10877 + $0x8] sm:$0xf] %v10872
        $region40: #{tpu_custom_call.1} parent=27 // pred_fallthru
          _
        %p10880 = scmp.gt.s32.totalorder %s22, 0
        // Predicated region
        $region41: #{tpu_custom_call.1} parent=27 // pred_check
          %p10881 = pneg %p10880
        $region42: #{tpu_custom_call.1} parent=27 // pred_check_branch
          %10883 = sbr.rel (%p10881) target = $region44
        $region43: #{tpu_custom_call.1} parent=27 // pred_region
          %s10884 = smul.u32 %s23, 3
          %s10885 = smul.addr %s10884, 4
          %s10886 = scalar_lea.vmem [#allocation4], %s10885
          %v10887 = vld [vmem:[%s10886] sm:$0xff]
          %v10888 = vld [vmem:[%s10886 + $0x8] sm:$0xf]
          %v10901 = vcombine.low %v4195, %v4232
          %v10902 = vcombine.low %v4306, %v4343
          %v10903 = vcombine.low %v4417, %v4454
          %v10904 = vcombine.low %v4528, %v4565
          %v10905 = vrot.slane %v10902, 7
          %vm10906 = vcmask 1041409
          %v10907 = vsel %vm10906, %v10905, %v10901
          %vm10908 = vcmask 1045509
          %v10909 = vsel %vm10908, %v10905, %v10907
          %v10910 = vrot.slane %v10903, 6
          %vm10911 = vcmask 1042434
          %v10912 = vsel %vm10911, %v10910, %v10909
          %vm10913 = vcmask 1046534
          %v10914 = vsel %vm10913, %v10910, %v10912
          %v10915 = vrot.slane %v10904, 5
          %vm10916 = vcmask 1043459
          %v10917 = vsel %vm10916, %v10915, %v10914
          %vm10918 = vcmask 1047559
          %v10919 = vsel %vm10918, %v10915, %v10917
          %v10920 = vrot.slane %v4380, 7
          %v10921 = vsel %vm10906, %v10920, %v4269
          %v10922 = vsel %vm10908, %v10920, %v10921
          %v10923 = vrot.slane %v4491, 6
          %v10924 = vsel %vm10911, %v10923, %v10922
          %v10925 = vsel %vm10913, %v10923, %v10924
          %v10926 = vrot.slane %v4602, 5
          %v10927 = vsel %vm10916, %v10926, %v10925
          %v10928 = vsel %vm10918, %v10926, %v10927
          %v10931 = vmin.f32 %v10887, %v10919
          %v10932 = vmin.f32 %v10888, %v10928
          %10933 = vst [vmem:[%s10886] sm:$0xff] %v10931
          %10934 = vst [vmem:[%s10886 + $0x8] sm:$0xf] %v10932
        $region44: #{tpu_custom_call.1} parent=27 // pred_fallthru
          _
        // Predicated region
        $region45: #{tpu_custom_call.1} parent=27 // pred_check
          %p10935 = pneg %p4603
        $region46: #{tpu_custom_call.1} parent=27 // pred_check_branch
          %10937 = sbr.rel (%p10935) target = $region48
        $region47: #{tpu_custom_call.1} parent=27 // pred_region
          %v10938 = vld [vmem:[#allocation2] sm:$0xff]
          %v10940 = vcombine.high %v10938, %v10938
          %vm10942 = vcmask 1043456
          %v10943 = vsel %vm10942, %v10938, 0.0
          %v10944 = vsel %vm10942, %v10940, 0.0
          %v10945 = vadd.f32 %v10943, %v10944
          %10946 = vadd.xlane.f32.xlu0 %v10945
          %v10947 = vpop.xlane.xlu0 %10946
          // Predicated region
          $region49: #{tpu_custom_call.1} parent=47 // pred_check
            %p10948 = pneg %p10829
          $region50: #{tpu_custom_call.1} parent=47 // pred_check_branch
            %10950 = sbr.rel (%p10948) target = $region52
          $region51: #{tpu_custom_call.1} parent=47 // pred_region
            %vm10951 = vcmask 3072
            %10952 = vst.msk [vmem:[#allocation3] sm:$0xf] %vm10951, %v10947
          $region52: #{tpu_custom_call.1} parent=47 // pred_fallthru
            _
          // Predicated region
          $region53: #{tpu_custom_call.1} parent=47 // pred_check
            %p10953 = pneg %p10880
          $region54: #{tpu_custom_call.1} parent=47 // pred_check_branch
            %10955 = sbr.rel (%p10953) target = $region56
          $region55: #{tpu_custom_call.1} parent=47 // pred_region
            %v10956 = vld [vmem:[#allocation3] sm:$0xf]
            %v10957 = vadd.f32 %v10956, %v10947
            %vm10958 = vcmask 3072
            %10959 = vst.msk [vmem:[#allocation3] sm:$0xf] %vm10958, %v10957
          $region56: #{tpu_custom_call.1} parent=47 // pred_fallthru
            _
        $region48: #{tpu_custom_call.1} parent=27 // pred_fallthru
          _
        %p10960 = pnand %p10829, %p4603
        %p10961 = pneg %p10960
        // Predicated region
        $region57: #{tpu_custom_call.1} parent=27 // pred_check
          _
        $region58: #{tpu_custom_call.1} parent=27 // pred_check_branch
          %10963 = sbr.rel (%p10960) target = $region60
        $region59: #{tpu_custom_call.1} parent=27 // pred_region
          %v10964 = vld [vmem:[#allocation4] sm:$0xff]
          %v10965 = vld [vmem:[#allocation4 + $0x8] sm:$0xf]
          %v10966 = vadd.f32 %v10964, 0.0
          %v10967 = vadd.f32 %v10965, 0.0
          %v10969 = vcombine.high %v10966, %v10966
          %vm10971 = vcmask 1043456
          %v10972 = vsel %vm10971, %v10966, 0.0
          %v10973 = vsel %vm10971, %v10969, 0.0
          %v10974 = vadd.f32 %v10972, %v10973
          %v10975 = vsel %vm10971, %v10967, 0.0
          %v10976 = vadd.f32 %v10974, %v10975
          %10977 = vadd.xlane.f32.xlu0 %v10976
          %v10978 = vpop.xlane.xlu0 %10977
          %v10979 = vld [vmem:[#allocation3] sm:$0xf]
          %v10980 = vmul.f32 %v10979, 0.00390625
          %v10981 = vmul.f32 %v10978, 0.0026041667
          %v10982 = vadd.f32 %v10980, %v10981
          %10984 = vset.pattern.permute.xlu0 0
          %10985 = vperm.xlu0 %10984, %v10982
          %v10986 = vpop.permute.xlu0 %10985
          %10988 = vst [vmem:[%s198] sm:$0xf] %v10986
        $region60: #{tpu_custom_call.1} parent=27 // pred_fallthru
          _
        %s10989 = sand.u32 %s99, 1
        %s10990 = scalar_lea.sflag [#allocation6], %s10989
        %s10991 = sand.u32 %s99, 1
        %s10992 = smul.addr %s10991, 4
        %s10993 = scalar_lea.vmem [#allocation5], %s10992
        // Predicated region
        $region61: #{tpu_custom_call.1} parent=27 // pred_check
          %p10994 = pneg %p109
        $region62: #{tpu_custom_call.1} parent=27 // pred_check_branch
          %10996 = sbr.rel (%p10994) target = $region64
        $region63: #{tpu_custom_call.1} parent=27 // pred_region
          %s10998 = ssub.s32 64, 64
          %10999 = vsyncadd %s10990, %s10998
          %s11000 = smul.addr %s21, 64
          %s11001 = scalar_lea.hbm %s2, %s11000
          %s11003 = sshll.u32 %s10993, 4
          %s11004 = int_to_ptr.vmem [resolvable:$true] %s11003
          %11006 = dma.vmem_to_hbm [thread:$0]  %s11004, 64, %s11001, %s10990
        $region64: #{tpu_custom_call.1} parent=27 // pred_fallthru
          _
      $region28: #{tpu_custom_call.1} parent=5 // pred_fallthru
        _
      %p11007 = scmp.le.s32.totalorder 2, %s11
      // Predicated region
      $region65: #{tpu_custom_call.1} parent=5 // pred_check
        %p11008 = pneg %p11007
      $region66: #{tpu_custom_call.1} parent=5 // pred_check_branch
        %11010 = sbr.rel (%p11008) target = $region68
      $region67: #{tpu_custom_call.1} parent=5 // pred_region
        %s11011 = ssub.s32 %s11, 2
        // Predicated region
        $region69: #{tpu_custom_call.1} parent=67 // pred_check
          %p11012 = pneg %p115
        $region70: #{tpu_custom_call.1} parent=67 // pred_check_branch
          %11014 = sbr.rel (%p11012) target = $region72
        $region71: #{tpu_custom_call.1} parent=67 // pred_region
          %s11015 = sand.u32 %s100, 1
          %s11016 = scalar_lea.sflag [#allocation6], %s11015
          %s11017 = sand.u32 %s100, 1
          %s11018 = smul.addr %s11017, 4
          %s11019 = scalar_lea.vmem [#allocation5], %s11018
          %11020 = dma.done %s11016, 64
        $region72: #{tpu_custom_call.1} parent=67 // pred_fallthru
          _
      $region68: #{tpu_custom_call.1} parent=5 // pred_fallthru
        _
    $region6: #{tpu_custom_call.1} parent=1 // loop_footer
      %s15 = sadd.s32 1, %s11
    $region7: #{tpu_custom_call.1} parent=1 // loop_footer_branch
      %10 = sbr.rel target = $region3
    $region8: #{tpu_custom_call.1} parent=1 // loop_exit
      _
    %11021 = vsyncpa [#allocation6], 1
    %s11022 = scalar_lea.sflag [#allocation6], 1
    %11023 = vsyncpa %s11022, 1

</llo_original>
